<compile_context>
chip_gen: v7x
topology: tpu7x:2x2x1
jax: 0.10.0
libtpu: 0.0.40
codegen_flags: <defaults>
</compile_context>

<pallas_src>
import numpy as np
import jax
import jax.numpy as jnp
from jax.experimental import pallas as pl
from jax.experimental.pallas import tpu as pltpu


# ---------------------------------------------------------------------------
# Host-side weight preparation (done once, outside the jitted forward)
# ---------------------------------------------------------------------------
def _conv3x3_to_row_matmuls(w_oihw, width):
    """(Cout, Cin, 3, 3) -> 3 block-Toeplitz matrices (3, (width+2)*Cin, width*Cout).

    With activations stored one padded image row per VMEM row, laid out as
    row[wp*Cin + ci] (wp = padded width index), the conv becomes
        out[h] = sum_{dh<3} padded_rows[h+dh] @ Wt[dh]
    with out[h] laid out as out[w*Cout + co].
    """
    w = np.asarray(w_oihw, np.float32)
    cout, cin, _, _ = w.shape
    wp = width + 2
    t = np.zeros((3, wp, cin, width, cout), np.float32)
    src = np.arange(wp)[:, None]
    dst = np.arange(width)[None, :]
    for dh in range(3):
        for dw in range(3):
            mask = (src == dst + dw).astype(np.float32)      # (wp, width)
            tap = w[:, :, dh, dw].T                          # (cin, cout)
            t[dh] += mask[:, None, :, None] * tap[None, :, None, :]
    return t.reshape(3, wp * cin, width * cout)


def _permute_cols_for_pool(wt, width, cout):
    """Permute output columns to [even-w blocks | odd-w blocks] so the width
    half of a 2x2 max-pool is just a max over two contiguous lane halves.
    (Per-channel bias is invariant under this permutation.)"""
    order = np.concatenate([np.arange(0, width, 2), np.arange(1, width, 2)])
    col = (order[:, None] * cout + np.arange(cout)[None, :]).reshape(-1)
    return wt[:, :, col]


def prepare_params(params, height, width):
    """One-time transform of PyTorch-layout weights into the lane-dense
    row-matmul layout used by the fused kernel."""
    hidden = params["w1"].shape[0]
    out_ch = params["w_fc"].shape[1]
    wb = width // 2
    hq, wq = height // 4, width // 4

    w1 = _conv3x3_to_row_matmuls(params["w1"], width)
    w2 = _permute_cols_for_pool(
        _conv3x3_to_row_matmuls(params["w2"], width), width, hidden)
    w3 = _conv3x3_to_row_matmuls(params["w3"], wb)
    w4 = _permute_cols_for_pool(
        _conv3x3_to_row_matmuls(params["w4"], wb), wb, hidden)

    b1 = np.tile(np.asarray(params["b1"], np.float32), width)[None, :]
    b2 = np.tile(np.asarray(params["b2"], np.float32), width)[None, :]
    b3 = np.tile(np.asarray(params["b3"], np.float32), wb)[None, :]
    b4 = np.tile(np.asarray(params["b4"], np.float32), wb)[None, :]

    # nn.Flatten() order is (c, h, w); the kernel flattens as (h, w, c), so
    # pre-permute the FC rows once instead of transposing activations at runtime.
    wfc = np.asarray(params["w_fc"], np.float32)
    wfc = (wfc.reshape(hidden, hq, wq, out_ch)
               .transpose(1, 2, 0, 3)
               .reshape(hq * wq * hidden, out_ch))
    bfc = np.asarray(params["b_fc"], np.float32)[None, :]

    prepped = dict(w1=w1, b1=b1, w2=w2, b2=b2, w3=w3, b3=b3, w4=w4, b4=b4,
                   wfc=wfc, bfc=bfc)
    return {k: jnp.asarray(v) for k, v in prepped.items()}


# ---------------------------------------------------------------------------
# Fused Pallas kernel: conv-conv-pool, conv-conv-pool, flatten+FC
# ---------------------------------------------------------------------------
def tiny_vgg_pallas(x_rows, prep, *, H, W, hidden, out_ch):
    B = x_rows.shape[0]
    HB, WB = H // 2, W // 2          # 32, 32
    HC, WC = H // 4, W // 4          # 16, 16
    C = hidden
    LA = W * C                        # 512   (lane width, stage A)
    LB = WB * C                       # 256   (lane width, stage B)
    LC = WC * C                       # 128   (lane width, pooled stage B)
    F = HC * LC                       # 2048  (flattened features)

    def kernel(x_ref, w1_ref, b1_ref, w2_ref, b2_ref, w3_ref, b3_ref,
               w4_ref, b4_ref, wfc_ref, bfc_ref, o_ref,
               pad_a, pad_b1, pad_b2, row_a, row_b, flat):
        f32 = jnp.float32

        # Re-zero the halo-padded scratches every step (cheap; also safe when
        # the "parallel" batch axis is sharded across TensorCores).
        pad_a[...] = jnp.zeros_like(pad_a)
        pad_b1[...] = jnp.zeros_like(pad_b1)
        pad_b2[...] = jnp.zeros_like(pad_b2)

        def conv(slab, w_ref, b_ref):
            # 3 fat MXU matmuls (one per vertical tap) + bias + ReLU.
            acc = jnp.dot(slab(0), w_ref[0], preferred_element_type=f32)
            acc = acc + jnp.dot(slab(1), w_ref[1], preferred_element_type=f32)
            acc = acc + jnp.dot(slab(2), w_ref[2], preferred_element_type=f32)
            return jnp.maximum(acc + b_ref[...], 0.0)

        # ---------------- block 1 @ HxW ----------------------------------
        y1 = conv(lambda dh: x_ref[0, dh:dh + H, :], w1_ref, b1_ref)      # (H, LA)
        pad_a[1:H + 1, C:(W + 1) * C] = y1                                # write interior
        y2 = conv(lambda dh: pad_a[dh:dh + H, :], w2_ref, b2_ref)         # (H, LA)

        # 2x2 max pool (conv2 columns are pre-permuted to [even w | odd w]):
        # column half = max of two lane halves; row half = short unrolled loop
        # writing directly into block 2's halo-padded scratch.
        row_a[...] = y2
        for i in range(HB):
            r = jnp.maximum(row_a[2 * i:2 * i + 1, :],
                            row_a[2 * i + 1:2 * i + 2, :])                # (1, LA)
            pad_b1[1 + i:2 + i, C:(WB + 1) * C] = jnp.maximum(r[:, :LB], r[:, LB:])

        # ---------------- block 2 @ (H/2)x(W/2) ---------------------------
        y3 = conv(lambda dh: pad_b1[dh:dh + HB, :], w3_ref, b3_ref)       # (HB, LB)
        pad_b2[1:HB + 1, C:(WB + 1) * C] = y3
        y4 = conv(lambda dh: pad_b2[dh:dh + HB, :], w4_ref, b4_ref)       # (HB, LB)

        row_b[...] = y4
        for i in range(HC):
            r = jnp.maximum(row_b[2 * i:2 * i + 1, :],
                            row_b[2 * i + 1:2 * i + 2, :])                # (1, LB)
            flat[0:1, i * LC:(i + 1) * LC] = jnp.maximum(r[:, :LC], r[:, LC:])

        # ---------------- classifier (fused) ------------------------------
        # flat is the (h, w, c)-ordered flatten; wfc rows were pre-permuted to
        # match, so this equals nn.Flatten() (c,h,w order) + nn.Linear.
        o_ref[0] = (jnp.dot(flat[...], wfc_ref[...], preferred_element_type=f32)
                    + bfc_ref[...])

    out = pl.pallas_call(
        kernel,
        out_shape=jax.ShapeDtypeStruct((B, 1, out_ch), jnp.float32),
        grid=(B,),
        in_specs=[
            pl.BlockSpec((1, H + 2, x_rows.shape[2]), lambda b: (b, 0, 0)),  # image rows
            pl.BlockSpec(prep["w1"].shape, lambda b: (0, 0, 0)),
            pl.BlockSpec(prep["b1"].shape, lambda b: (0, 0)),
            pl.BlockSpec(prep["w2"].shape, lambda b: (0, 0, 0)),
            pl.BlockSpec(prep["b2"].shape, lambda b: (0, 0)),
            pl.BlockSpec(prep["w3"].shape, lambda b: (0, 0, 0)),
            pl.BlockSpec(prep["b3"].shape, lambda b: (0, 0)),
            pl.BlockSpec(prep["w4"].shape, lambda b: (0, 0, 0)),
            pl.BlockSpec(prep["b4"].shape, lambda b: (0, 0)),
            pl.BlockSpec(prep["wfc"].shape, lambda b: (0, 0)),
            pl.BlockSpec(prep["bfc"].shape, lambda b: (0, 0)),
        ],
        out_specs=pl.BlockSpec((1, 1, out_ch), lambda b: (b, 0, 0)),
        scratch_shapes=[
            pltpu.VMEM((H + 2, (W + 2) * C), jnp.float32),     # pad_a  (conv2 input + halo)
            pltpu.VMEM((HB + 2, (WB + 2) * C), jnp.float32),   # pad_b1 (conv3 input + halo)
            pltpu.VMEM((HB + 2, (WB + 2) * C), jnp.float32),   # pad_b2 (conv4 input + halo)
            pltpu.VMEM((H, LA), jnp.float32),                   # row_a  (conv2 output)
            pltpu.VMEM((HB, LB), jnp.float32),                  # row_b  (conv4 output)
            pltpu.VMEM((1, F), jnp.float32),                    # flat   (flattened features)
        ],
        compiler_params=pltpu.CompilerParams(
            dimension_semantics=("parallel",),        # 2 TCs on v7x
            vmem_limit_bytes=48 * 1024 * 1024),       # ~15 MiB used; v7x-safe
    )(x_rows, prep["w1"], prep["b1"], prep["w2"], prep["b2"],
      prep["w3"], prep["b3"], prep["w4"], prep["b4"],
      prep["wfc"], prep["bfc"])
    return out.reshape(B, out_ch)


@jax.jit
def tiny_vgg_forward(x_nchw, prep):
    B, Cin, H, W = x_nchw.shape
    hidden = prep["b1"].shape[1] // W
    out_ch = prep["bfc"].shape[1]
    # Single up-front layout prep of the (tiny) network input: NCHW -> NHWC,
    # one 1-pixel zero halo, rows flattened to the lane-dense (w*C + c) layout.
    x = jnp.transpose(x_nchw, (0, 2, 3, 1)).astype(jnp.float32)
    x = jnp.pad(x, ((0, 0), (1, 1), (1, 1), (0, 0)))
    x_rows = x.reshape(B, H + 2, (W + 2) * Cin)
    return tiny_vgg_pallas(x_rows, prep, H=H, W=W, hidden=hidden, out_ch=out_ch)


# ---------------------------------------------------------------------------
# Parameter init (PyTorch layout) and pure-XLA reference for validation
# ---------------------------------------------------------------------------
def init_params(key, in_ch, hidden, out_ch):
    ks = jax.random.split(key, 10)

    def conv_init(kw, kb, cin, cout):
        bound = 1.0 / jnp.sqrt(cin * 9.0)
        w = jax.random.uniform(kw, (cout, cin, 3, 3), jnp.float32, -bound, bound)
        b = jax.random.uniform(kb, (cout,), jnp.float32, -bound, bound)
        return w, b

    w1, b1 = conv_init(ks[0], ks[1], in_ch, hidden)
    w2, b2 = conv_init(ks[2], ks[3], hidden, hidden)
    w3, b3 = conv_init(ks[4], ks[5], hidden, hidden)
    w4, b4 = conv_init(ks[6], ks[7], hidden, hidden)
    F = hidden * 256
    bound = 1.0 / jnp.sqrt(float(F))
    w_fc = jax.random.uniform(ks[8], (F, out_ch), jnp.float32, -bound, bound)
    b_fc = jax.random.uniform(ks[9], (out_ch,), jnp.float32, -bound, bound)
    return dict(w1=w1, b1=b1, w2=w2, b2=b2, w3=w3, b3=b3, w4=w4, b4=b4,
                w_fc=w_fc, b_fc=b_fc)


def tiny_vgg_reference(x_nchw, params):
    """Pure-JAX (XLA) reference with PyTorch semantics, for validation."""
    def conv(x, w, b):
        y = jax.lax.conv_general_dilated(
            x, w, window_strides=(1, 1), padding=((1, 1), (1, 1)),
            dimension_numbers=("NCHW", "OIHW", "NCHW"))
        return jax.nn.relu(y + b[None, :, None, None])

    def pool(x):
        return jax.lax.reduce_window(x, -jnp.inf, jax.lax.max,
                                     (1, 1, 2, 2), (1, 1, 2, 2), "VALID")

    x = conv(x_nchw, params["w1"], params["b1"])
    x = conv(x, params["w2"], params["b2"])
    x = pool(x)
    x = conv(x, params["w3"], params["b3"])
    x = conv(x, params["w4"], params["b4"])
    x = pool(x)
    x = x.reshape(x.shape[0], -1)
    return x @ params["w_fc"] + params["b_fc"][None, :]


if __name__ == "__main__":
    B, in_ch, hidden, out_ch = 2, 3, 8, 3
    H = W = 64  # required by nn.Linear(hidden_units * 256, ...): 64 -> 32 -> 16

    key = jax.random.PRNGKey(0)
    kx, kp = jax.random.split(key)
    x = jax.random.normal(kx, (B, in_ch, H, W), jnp.float32)
    params = init_params(kp, in_ch, hidden, out_ch)
    prep = prepare_params(params, H, W)   # one-time host-side weight repacking

    out = tiny_vgg_forward(x, prep)
    out = jax.block_until_ready(out)
    assert out.shape == (B, out_ch)

    ref = tiny_vgg_reference(x, params)
    err = float(jnp.max(jnp.abs(out - ref)))
    assert err < 2e-3, f"mismatch vs XLA reference: {err}"

    print("KERNEL_OK")
</pallas_src>

<mosaic_0001>
module attributes {stable_mosaic.version = 11 : i64} {
  func.func @kernel(%arg0: i32, %arg1: memref<1x66x198xf32, #tpu.memory_space<vmem>>, %arg2: memref<3x198x512xf32, #tpu.memory_space<vmem>>, %arg3: memref<1x512xf32, #tpu.memory_space<vmem>>, %arg4: memref<3x528x512xf32, #tpu.memory_space<vmem>>, %arg5: memref<1x512xf32, #tpu.memory_space<vmem>>, %arg6: memref<3x272x256xf32, #tpu.memory_space<vmem>>, %arg7: memref<1x256xf32, #tpu.memory_space<vmem>>, %arg8: memref<3x272x256xf32, #tpu.memory_space<vmem>>, %arg9: memref<1x256xf32, #tpu.memory_space<vmem>>, %arg10: memref<2048x3xf32, #tpu.memory_space<vmem>>, %arg11: memref<1x3xf32, #tpu.memory_space<vmem>>, %arg12: memref<1x1x3xf32, #tpu.memory_space<vmem>>, %arg13: memref<66x528xf32, #tpu.memory_space<vmem>>, %arg14: memref<34x272xf32, #tpu.memory_space<vmem>>, %arg15: memref<34x272xf32, #tpu.memory_space<vmem>>, %arg16: memref<64x512xf32, #tpu.memory_space<vmem>>, %arg17: memref<32x256xf32, #tpu.memory_space<vmem>>, %arg18: memref<1x2048xf32, #tpu.memory_space<vmem>>) attributes {dimension_semantics = [#tpu.dimension_semantics<parallel>], iteration_bounds = array<i64: 2>, scalar_prefetch = 0 : i64, scratch_operands = 6 : i64, tpu.core_type = #tpu.core_type<tc>, window_params = [{transform_indices = @transform_0, window_bounds = array<i64: 1, 66, 198>}, {pipeline_mode = #tpu.pipeline_mode<synchronous>, transform_indices = @transform_1, window_bounds = array<i64: 3, 198, 512>}, {pipeline_mode = #tpu.pipeline_mode<synchronous>, transform_indices = @transform_2, window_bounds = array<i64: 1, 512>}, {pipeline_mode = #tpu.pipeline_mode<synchronous>, transform_indices = @transform_3, window_bounds = array<i64: 3, 528, 512>}, {pipeline_mode = #tpu.pipeline_mode<synchronous>, transform_indices = @transform_4, window_bounds = array<i64: 1, 512>}, {pipeline_mode = #tpu.pipeline_mode<synchronous>, transform_indices = @transform_5, window_bounds = array<i64: 3, 272, 256>}, {pipeline_mode = #tpu.pipeline_mode<synchronous>, transform_indices = @transform_6, window_bounds = array<i64: 1, 256>}, {pipeline_mode = #tpu.pipeline_mode<synchronous>, transform_indices = @transform_7, window_bounds = array<i64: 3, 272, 256>}, {pipeline_mode = #tpu.pipeline_mode<synchronous>, transform_indices = @transform_8, window_bounds = array<i64: 1, 256>}, {pipeline_mode = #tpu.pipeline_mode<synchronous>, transform_indices = @transform_9, window_bounds = array<i64: 2048, 3>}, {pipeline_mode = #tpu.pipeline_mode<synchronous>, transform_indices = @transform_10, window_bounds = array<i64: 1, 3>}, {transform_indices = @transform_11, window_bounds = array<i64: 1, 1, 3>}]} {
    %cst = arith.constant 0.000000e+00 : f32
    %0 = vector.broadcast %cst : f32 to vector<66x528xf32>
    %c0 = arith.constant 0 : index
    %c0_0 = arith.constant 0 : index
    %1 = vector.load %arg13[%c0, %c0_0] : memref<66x528xf32, #tpu.memory_space<vmem>>, vector<66x528xf32>
    tpu.vector_store %arg13[%c0, %c0_0], %0 {strides = array<i32>} : memref<66x528xf32, #tpu.memory_space<vmem>>, vector<66x528xf32>,
    %cst_1 = arith.constant 0.000000e+00 : f32
    %2 = vector.broadcast %cst_1 : f32 to vector<34x272xf32>
    %c0_2 = arith.constant 0 : index
    %c0_3 = arith.constant 0 : index
    %3 = vector.load %arg14[%c0_2, %c0_3] : memref<34x272xf32, #tpu.memory_space<vmem>>, vector<34x272xf32>
    tpu.vector_store %arg14[%c0_2, %c0_3], %2 {strides = array<i32>} : memref<34x272xf32, #tpu.memory_space<vmem>>, vector<34x272xf32>,
    %cst_4 = arith.constant 0.000000e+00 : f32
    %4 = vector.broadcast %cst_4 : f32 to vector<34x272xf32>
    %c0_5 = arith.constant 0 : index
    %c0_6 = arith.constant 0 : index
    %5 = vector.load %arg15[%c0_5, %c0_6] : memref<34x272xf32, #tpu.memory_space<vmem>>, vector<34x272xf32>
    tpu.vector_store %arg15[%c0_5, %c0_6], %4 {strides = array<i32>} : memref<34x272xf32, #tpu.memory_space<vmem>>, vector<34x272xf32>,
    %c0_7 = arith.constant 0 : index
    %c0_8 = arith.constant 0 : index
    %c0_9 = arith.constant 0 : index
    %6 = vector.load %arg1[%c0_7, %c0_8, %c0_9] : memref<1x66x198xf32, #tpu.memory_space<vmem>>, vector<1x64x198xf32>
    %7 = vector.shape_cast %6 : vector<1x64x198xf32> to vector<64x198xf32>
    %c0_10 = arith.constant 0 : index
    %c0_11 = arith.constant 0 : index
    %c0_12 = arith.constant 0 : index
    %8 = vector.load %arg2[%c0_10, %c0_11, %c0_12] : memref<3x198x512xf32, #tpu.memory_space<vmem>>, vector<1x198x512xf32>
    %9 = vector.shape_cast %8 : vector<1x198x512xf32> to vector<198x512xf32>
    %cst_13 = arith.constant dense<0.000000e+00> : vector<64x512xf32>
    %10 = tpu.matmul %7, %9, %cst_13 {dimension_numbers = #tpu.dot_dimension_numbers<[1], [0], [0], [1], [0, 0, 1, 1], [], []>} : vector<64x198xf32>, vector<198x512xf32>, vector<64x512xf32> -> vector<64x512xf32>
    %c0_14 = arith.constant 0 : index
    %c1 = arith.constant 1 : index
    %c0_15 = arith.constant 0 : index
    %11 = vector.load %arg1[%c0_14, %c1, %c0_15] : memref<1x66x198xf32, #tpu.memory_space<vmem>>, vector<1x64x198xf32>
    %12 = vector.shape_cast %11 : vector<1x64x198xf32> to vector<64x198xf32>
    %c1_16 = arith.constant 1 : index
    %c0_17 = arith.constant 0 : index
    %c0_18 = arith.constant 0 : index
    %13 = vector.load %arg2[%c1_16, %c0_17, %c0_18] : memref<3x198x512xf32, #tpu.memory_space<vmem>>, vector<1x198x512xf32>
    %14 = vector.shape_cast %13 : vector<1x198x512xf32> to vector<198x512xf32>
    %cst_19 = arith.constant dense<0.000000e+00> : vector<64x512xf32>
    %15 = tpu.matmul %12, %14, %cst_19 {dimension_numbers = #tpu.dot_dimension_numbers<[1], [0], [0], [1], [0, 0, 1, 1], [], []>} : vector<64x198xf32>, vector<198x512xf32>, vector<64x512xf32> -> vector<64x512xf32>
    %16 = arith.addf %10, %15 : vector<64x512xf32>
    %c0_20 = arith.constant 0 : index
    %c2 = arith.constant 2 : index
    %c0_21 = arith.constant 0 : index
    %17 = vector.load %arg1[%c0_20, %c2, %c0_21] : memref<1x66x198xf32, #tpu.memory_space<vmem>>, vector<1x64x198xf32>
    %18 = vector.shape_cast %17 : vector<1x64x198xf32> to vector<64x198xf32>
    %c2_22 = arith.constant 2 : index
    %c0_23 = arith.constant 0 : index
    %c0_24 = arith.constant 0 : index
    %19 = vector.load %arg2[%c2_22, %c0_23, %c0_24] : memref<3x198x512xf32, #tpu.memory_space<vmem>>, vector<1x198x512xf32>
    %20 = vector.shape_cast %19 : vector<1x198x512xf32> to vector<198x512xf32>
    %cst_25 = arith.constant dense<0.000000e+00> : vector<64x512xf32>
    %21 = tpu.matmul %18, %20, %cst_25 {dimension_numbers = #tpu.dot_dimension_numbers<[1], [0], [0], [1], [0, 0, 1, 1], [], []>} : vector<64x198xf32>, vector<198x512xf32>, vector<64x512xf32> -> vector<64x512xf32>
    %22 = arith.addf %16, %21 : vector<64x512xf32>
    %c0_26 = arith.constant 0 : index
    %c0_27 = arith.constant 0 : index
    %23 = vector.load %arg3[%c0_26, %c0_27] : memref<1x512xf32, #tpu.memory_space<vmem>>, vector<1x512xf32>
    %24 = vector.broadcast %23 : vector<1x512xf32> to vector<64x512xf32>
    %25 = arith.addf %22, %24 : vector<64x512xf32>
    %cst_28 = arith.constant 0.000000e+00 : f32
    %26 = vector.broadcast %cst_28 : f32 to vector<64x512xf32>
    %27 = arith.maximumf %25, %26 : vector<64x512xf32>
    %c1_29 = arith.constant 1 : index
    %c8 = arith.constant 8 : index
    %28 = vector.load %arg13[%c1_29, %c8] : memref<66x528xf32, #tpu.memory_space<vmem>>, vector<64x512xf32>
    tpu.vector_store %arg13[%c1_29, %c8], %27 {strides = array<i32>} : memref<66x528xf32, #tpu.memory_space<vmem>>, vector<64x512xf32>,
    %c0_30 = arith.constant 0 : index
    %c0_31 = arith.constant 0 : index
    %29 = vector.load %arg13[%c0_30, %c0_31] : memref<66x528xf32, #tpu.memory_space<vmem>>, vector<64x528xf32>
    %c0_32 = arith.constant 0 : index
    %c0_33 = arith.constant 0 : index
    %c0_34 = arith.constant 0 : index
    %30 = vector.load %arg4[%c0_32, %c0_33, %c0_34] : memref<3x528x512xf32, #tpu.memory_space<vmem>>, vector<1x528x512xf32>
    %31 = vector.shape_cast %30 : vector<1x528x512xf32> to vector<528x512xf32>
    %cst_35 = arith.constant dense<0.000000e+00> : vector<64x512xf32>
    %32 = tpu.matmul %29, %31, %cst_35 {dimension_numbers = #tpu.dot_dimension_numbers<[1], [0], [0], [1], [0, 0, 1, 1], [], []>} : vector<64x528xf32>, vector<528x512xf32>, vector<64x512xf32> -> vector<64x512xf32>
    %c1_36 = arith.constant 1 : index
    %c0_37 = arith.constant 0 : index
    %33 = vector.load %arg13[%c1_36, %c0_37] : memref<66x528xf32, #tpu.memory_space<vmem>>, vector<64x528xf32>
    %c1_38 = arith.constant 1 : index
    %c0_39 = arith.constant 0 : index
    %c0_40 = arith.constant 0 : index
    %34 = vector.load %arg4[%c1_38, %c0_39, %c0_40] : memref<3x528x512xf32, #tpu.memory_space<vmem>>, vector<1x528x512xf32>
    %35 = vector.shape_cast %34 : vector<1x528x512xf32> to vector<528x512xf32>
    %cst_41 = arith.constant dense<0.000000e+00> : vector<64x512xf32>
    %36 = tpu.matmul %33, %35, %cst_41 {dimension_numbers = #tpu.dot_dimension_numbers<[1], [0], [0], [1], [0, 0, 1, 1], [], []>} : vector<64x528xf32>, vector<528x512xf32>, vector<64x512xf32> -> vector<64x512xf32>
    %37 = arith.addf %32, %36 : vector<64x512xf32>
    %c2_42 = arith.constant 2 : index
    %c0_43 = arith.constant 0 : index
    %38 = vector.load %arg13[%c2_42, %c0_43] : memref<66x528xf32, #tpu.memory_space<vmem>>, vector<64x528xf32>
    %c2_44 = arith.constant 2 : index
    %c0_45 = arith.constant 0 : index
    %c0_46 = arith.constant 0 : index
    %39 = vector.load %arg4[%c2_44, %c0_45, %c0_46] : memref<3x528x512xf32, #tpu.memory_space<vmem>>, vector<1x528x512xf32>
    %40 = vector.shape_cast %39 : vector<1x528x512xf32> to vector<528x512xf32>
    %cst_47 = arith.constant dense<0.000000e+00> : vector<64x512xf32>
    %41 = tpu.matmul %38, %40, %cst_47 {dimension_numbers = #tpu.dot_dimension_numbers<[1], [0], [0], [1], [0, 0, 1, 1], [], []>} : vector<64x528xf32>, vector<528x512xf32>, vector<64x512xf32> -> vector<64x512xf32>
    %42 = arith.addf %37, %41 : vector<64x512xf32>
    %c0_48 = arith.constant 0 : index
    %c0_49 = arith.constant 0 : index
    %43 = vector.load %arg5[%c0_48, %c0_49] : memref<1x512xf32, #tpu.memory_space<vmem>>, vector<1x512xf32>
    %44 = vector.broadcast %43 : vector<1x512xf32> to vector<64x512xf32>
    %45 = arith.addf %42, %44 : vector<64x512xf32>
    %cst_50 = arith.constant 0.000000e+00 : f32
    %46 = vector.broadcast %cst_50 : f32 to vector<64x512xf32>
    %47 = arith.maximumf %45, %46 : vector<64x512xf32>
    %c0_51 = arith.constant 0 : index
    %c0_52 = arith.constant 0 : index
    %48 = vector.load %arg16[%c0_51, %c0_52] : memref<64x512xf32, #tpu.memory_space<vmem>>, vector<64x512xf32>
    tpu.vector_store %arg16[%c0_51, %c0_52], %47 {strides = array<i32>} : memref<64x512xf32, #tpu.memory_space<vmem>>, vector<64x512xf32>,
    %c0_53 = arith.constant 0 : index
    %c0_54 = arith.constant 0 : index
    %49 = vector.load %arg16[%c0_53, %c0_54] : memref<64x512xf32, #tpu.memory_space<vmem>>, vector<1x512xf32>
    %c1_55 = arith.constant 1 : index
    %c0_56 = arith.constant 0 : index
    %50 = vector.load %arg16[%c1_55, %c0_56] : memref<64x512xf32, #tpu.memory_space<vmem>>, vector<1x512xf32>
    %51 = arith.maximumf %49, %50 : vector<1x512xf32>
    %52 = vector.extract_strided_slice %51 {offsets = [0, 0], sizes = [1, 256], strides = [1, 1]} : vector<1x512xf32> to vector<1x256xf32>
    %53 = vector.extract_strided_slice %51 {offsets = [0, 256], sizes = [1, 256], strides = [1, 1]} : vector<1x512xf32> to vector<1x256xf32>
    %54 = arith.maximumf %52, %53 : vector<1x256xf32>
    %c1_57 = arith.constant 1 : index
    %c8_58 = arith.constant 8 : index
    %55 = vector.load %arg14[%c1_57, %c8_58] : memref<34x272xf32, #tpu.memory_space<vmem>>, vector<1x256xf32>
    tpu.vector_store %arg14[%c1_57, %c8_58], %54 {strides = array<i32>} : memref<34x272xf32, #tpu.memory_space<vmem>>, vector<1x256xf32>,
    %c2_59 = arith.constant 2 : index
    %c0_60 = arith.constant 0 : index
    %56 = vector.load %arg16[%c2_59, %c0_60] : memref<64x512xf32, #tpu.memory_space<vmem>>, vector<1x512xf32>
    %c3 = arith.constant 3 : index
    %c0_61 = arith.constant 0 : index
    %57 = vector.load %arg16[%c3, %c0_61] : memref<64x512xf32, #tpu.memory_space<vmem>>, vector<1x512xf32>
    %58 = arith.maximumf %56, %57 : vector<1x512xf32>
    %59 = vector.extract_strided_slice %58 {offsets = [0, 0], sizes = [1, 256], strides = [1, 1]} : vector<1x512xf32> to vector<1x256xf32>
    %60 = vector.extract_strided_slice %58 {offsets = [0, 256], sizes = [1, 256], strides = [1, 1]} : vector<1x512xf32> to vector<1x256xf32>
    %61 = arith.maximumf %59, %60 : vector<1x256xf32>
    %c2_62 = arith.constant 2 : index
    %c8_63 = arith.constant 8 : index
    %62 = vector.load %arg14[%c2_62, %c8_63] : memref<34x272xf32, #tpu.memory_space<vmem>>, vector<1x256xf32>
    tpu.vector_store %arg14[%c2_62, %c8_63], %61 {strides = array<i32>} : memref<34x272xf32, #tpu.memory_space<vmem>>, vector<1x256xf32>,
    %c4 = arith.constant 4 : index
    %c0_64 = arith.constant 0 : index
    %63 = vector.load %arg16[%c4, %c0_64] : memref<64x512xf32, #tpu.memory_space<vmem>>, vector<1x512xf32>
    %c5 = arith.constant 5 : index
    %c0_65 = arith.constant 0 : index
    %64 = vector.load %arg16[%c5, %c0_65] : memref<64x512xf32, #tpu.memory_space<vmem>>, vector<1x512xf32>
    %65 = arith.maximumf %63, %64 : vector<1x512xf32>
    %66 = vector.extract_strided_slice %65 {offsets = [0, 0], sizes = [1, 256], strides = [1, 1]} : vector<1x512xf32> to vector<1x256xf32>
    %67 = vector.extract_strided_slice %65 {offsets = [0, 256], sizes = [1, 256], strides = [1, 1]} : vector<1x512xf32> to vector<1x256xf32>
    %68 = arith.maximumf %66, %67 : vector<1x256xf32>
    %c3_66 = arith.constant 3 : index
    %c8_67 = arith.constant 8 : index
    %69 = vector.load %arg14[%c3_66, %c8_67] : memref<34x272xf32, #tpu.memory_space<vmem>>, vector<1x256xf32>
    tpu.vector_store %arg14[%c3_66, %c8_67], %68 {strides = array<i32>} : memref<34x272xf32, #tpu.memory_space<vmem>>, vector<1x256xf32>,
    %c6 = arith.constant 6 : index
    %c0_68 = arith.constant 0 : index
    %70 = vector.load %arg16[%c6, %c0_68] : memref<64x512xf32, #tpu.memory_space<vmem>>, vector<1x512xf32>
    %c7 = arith.constant 7 : index
    %c0_69 = arith.constant 0 : index
    %71 = vector.load %arg16[%c7, %c0_69] : memref<64x512xf32, #tpu.memory_space<vmem>>, vector<1x512xf32>
    %72 = arith.maximumf %70, %71 : vector<1x512xf32>
    %73 = vector.extract_strided_slice %72 {offsets = [0, 0], sizes = [1, 256], strides = [1, 1]} : vector<1x512xf32> to vector<1x256xf32>
    %74 = vector.extract_strided_slice %72 {offsets = [0, 256], sizes = [1, 256], strides = [1, 1]} : vector<1x512xf32> to vector<1x256xf32>
    %75 = arith.maximumf %73, %74 : vector<1x256xf32>
    %c4_70 = arith.constant 4 : index
    %c8_71 = arith.constant 8 : index
    %76 = vector.load %arg14[%c4_70, %c8_71] : memref<34x272xf32, #tpu.memory_space<vmem>>, vector<1x256xf32>
    tpu.vector_store %arg14[%c4_70, %c8_71], %75 {strides = array<i32>} : memref<34x272xf32, #tpu.memory_space<vmem>>, vector<1x256xf32>,
    %c8_72 = arith.constant 8 : index
    %c0_73 = arith.constant 0 : index
    %77 = vector.load %arg16[%c8_72, %c0_73] : memref<64x512xf32, #tpu.memory_space<vmem>>, vector<1x512xf32>
    %c9 = arith.constant 9 : index
    %c0_74 = arith.constant 0 : index
    %78 = vector.load %arg16[%c9, %c0_74] : memref<64x512xf32, #tpu.memory_space<vmem>>, vector<1x512xf32>
    %79 = arith.maximumf %77, %78 : vector<1x512xf32>
    %80 = vector.extract_strided_slice %79 {offsets = [0, 0], sizes = [1, 256], strides = [1, 1]} : vector<1x512xf32> to vector<1x256xf32>
    %81 = vector.extract_strided_slice %79 {offsets = [0, 256], sizes = [1, 256], strides = [1, 1]} : vector<1x512xf32> to vector<1x256xf32>
    %82 = arith.maximumf %80, %81 : vector<1x256xf32>
    %c5_75 = arith.constant 5 : index
    %c8_76 = arith.constant 8 : index
    %83 = vector.load %arg14[%c5_75, %c8_76] : memref<34x272xf32, #tpu.memory_space<vmem>>, vector<1x256xf32>
    tpu.vector_store %arg14[%c5_75, %c8_76], %82 {strides = array<i32>} : memref<34x272xf32, #tpu.memory_space<vmem>>, vector<1x256xf32>,
    %c10 = arith.constant 10 : index
    %c0_77 = arith.constant 0 : index
    %84 = vector.load %arg16[%c10, %c0_77] : memref<64x512xf32, #tpu.memory_space<vmem>>, vector<1x512xf32>
    %c11 = arith.constant 11 : index
    %c0_78 = arith.constant 0 : index
    %85 = vector.load %arg16[%c11, %c0_78] : memref<64x512xf32, #tpu.memory_space<vmem>>, vector<1x512xf32>
    %86 = arith.maximumf %84, %85 : vector<1x512xf32>
    %87 = vector.extract_strided_slice %86 {offsets = [0, 0], sizes = [1, 256], strides = [1, 1]} : vector<1x512xf32> to vector<1x256xf32>
    %88 = vector.extract_strided_slice %86 {offsets = [0, 256], sizes = [1, 256], strides = [1, 1]} : vector<1x512xf32> to vector<1x256xf32>
    %89 = arith.maximumf %87, %88 : vector<1x256xf32>
    %c6_79 = arith.constant 6 : index
    %c8_80 = arith.constant 8 : index
    %90 = vector.load %arg14[%c6_79, %c8_80] : memref<34x272xf32, #tpu.memory_space<vmem>>, vector<1x256xf32>
    tpu.vector_store %arg14[%c6_79, %c8_80], %89 {strides = array<i32>} : memref<34x272xf32, #tpu.memory_space<vmem>>, vector<1x256xf32>,
    %c12 = arith.constant 12 : index
    %c0_81 = arith.constant 0 : index
    %91 = vector.load %arg16[%c12, %c0_81] : memref<64x512xf32, #tpu.memory_space<vmem>>, vector<1x512xf32>
    %c13 = arith.constant 13 : index
    %c0_82 = arith.constant 0 : index
    %92 = vector.load %arg16[%c13, %c0_82] : memref<64x512xf32, #tpu.memory_space<vmem>>, vector<1x512xf32>
    %93 = arith.maximumf %91, %92 : vector<1x512xf32>
    %94 = vector.extract_strided_slice %93 {offsets = [0, 0], sizes = [1, 256], strides = [1, 1]} : vector<1x512xf32> to vector<1x256xf32>
    %95 = vector.extract_strided_slice %93 {offsets = [0, 256], sizes = [1, 256], strides = [1, 1]} : vector<1x512xf32> to vector<1x256xf32>
    %96 = arith.maximumf %94, %95 : vector<1x256xf32>
    %c7_83 = arith.constant 7 : index
    %c8_84 = arith.constant 8 : index
    %97 = vector.load %arg14[%c7_83, %c8_84] : memref<34x272xf32, #tpu.memory_space<vmem>>, vector<1x256xf32>
    tpu.vector_store %arg14[%c7_83, %c8_84], %96 {strides = array<i32>} : memref<34x272xf32, #tpu.memory_space<vmem>>, vector<1x256xf32>,
    %c14 = arith.constant 14 : index
    %c0_85 = arith.constant 0 : index
    %98 = vector.load %arg16[%c14, %c0_85] : memref<64x512xf32, #tpu.memory_space<vmem>>, vector<1x512xf32>
    %c15 = arith.constant 15 : index
    %c0_86 = arith.constant 0 : index
    %99 = vector.load %arg16[%c15, %c0_86] : memref<64x512xf32, #tpu.memory_space<vmem>>, vector<1x512xf32>
    %100 = arith.maximumf %98, %99 : vector<1x512xf32>
    %101 = vector.extract_strided_slice %100 {offsets = [0, 0], sizes = [1, 256], strides = [1, 1]} : vector<1x512xf32> to vector<1x256xf32>
    %102 = vector.extract_strided_slice %100 {offsets = [0, 256], sizes = [1, 256], strides = [1, 1]} : vector<1x512xf32> to vector<1x256xf32>
    %103 = arith.maximumf %101, %102 : vector<1x256xf32>
    %c8_87 = arith.constant 8 : index
    %c8_88 = arith.constant 8 : index
    %104 = vector.load %arg14[%c8_87, %c8_88] : memref<34x272xf32, #tpu.memory_space<vmem>>, vector<1x256xf32>
    tpu.vector_store %arg14[%c8_87, %c8_88], %103 {strides = array<i32>} : memref<34x272xf32, #tpu.memory_space<vmem>>, vector<1x256xf32>,
    %c16 = arith.constant 16 : index
    %c0_89 = arith.constant 0 : index
    %105 = vector.load %arg16[%c16, %c0_89] : memref<64x512xf32, #tpu.memory_space<vmem>>, vector<1x512xf32>
    %c17 = arith.constant 17 : index
    %c0_90 = arith.constant 0 : index
    %106 = vector.load %arg16[%c17, %c0_90] : memref<64x512xf32, #tpu.memory_space<vmem>>, vector<1x512xf32>
    %107 = arith.maximumf %105, %106 : vector<1x512xf32>
    %108 = vector.extract_strided_slice %107 {offsets = [0, 0], sizes = [1, 256], strides = [1, 1]} : vector<1x512xf32> to vector<1x256xf32>
    %109 = vector.extract_strided_slice %107 {offsets = [0, 256], sizes = [1, 256], strides = [1, 1]} : vector<1x512xf32> to vector<1x256xf32>
    %110 = arith.maximumf %108, %109 : vector<1x256xf32>
    %c9_91 = arith.constant 9 : index
    %c8_92 = arith.constant 8 : index
    %111 = vector.load %arg14[%c9_91, %c8_92] : memref<34x272xf32, #tpu.memory_space<vmem>>, vector<1x256xf32>
    tpu.vector_store %arg14[%c9_91, %c8_92], %110 {strides = array<i32>} : memref<34x272xf32, #tpu.memory_space<vmem>>, vector<1x256xf32>,
    %c18 = arith.constant 18 : index
    %c0_93 = arith.constant 0 : index
    %112 = vector.load %arg16[%c18, %c0_93] : memref<64x512xf32, #tpu.memory_space<vmem>>, vector<1x512xf32>
    %c19 = arith.constant 19 : index
    %c0_94 = arith.constant 0 : index
    %113 = vector.load %arg16[%c19, %c0_94] : memref<64x512xf32, #tpu.memory_space<vmem>>, vector<1x512xf32>
    %114 = arith.maximumf %112, %113 : vector<1x512xf32>
    %115 = vector.extract_strided_slice %114 {offsets = [0, 0], sizes = [1, 256], strides = [1, 1]} : vector<1x512xf32> to vector<1x256xf32>
    %116 = vector.extract_strided_slice %114 {offsets = [0, 256], sizes = [1, 256], strides = [1, 1]} : vector<1x512xf32> to vector<1x256xf32>
    %117 = arith.maximumf %115, %116 : vector<1x256xf32>
    %c10_95 = arith.constant 10 : index
    %c8_96 = arith.constant 8 : index
    %118 = vector.load %arg14[%c10_95, %c8_96] : memref<34x272xf32, #tpu.memory_space<vmem>>, vector<1x256xf32>
    tpu.vector_store %arg14[%c10_95, %c8_96], %117 {strides = array<i32>} : memref<34x272xf32, #tpu.memory_space<vmem>>, vector<1x256xf32>,
    %c20 = arith.constant 20 : index
    %c0_97 = arith.constant 0 : index
    %119 = vector.load %arg16[%c20, %c0_97] : memref<64x512xf32, #tpu.memory_space<vmem>>, vector<1x512xf32>
    %c21 = arith.constant 21 : index
    %c0_98 = arith.constant 0 : index
    %120 = vector.load %arg16[%c21, %c0_98] : memref<64x512xf32, #tpu.memory_space<vmem>>, vector<1x512xf32>
    %121 = arith.maximumf %119, %120 : vector<1x512xf32>
    %122 = vector.extract_strided_slice %121 {offsets = [0, 0], sizes = [1, 256], strides = [1, 1]} : vector<1x512xf32> to vector<1x256xf32>
    %123 = vector.extract_strided_slice %121 {offsets = [0, 256], sizes = [1, 256], strides = [1, 1]} : vector<1x512xf32> to vector<1x256xf32>
    %124 = arith.maximumf %122, %123 : vector<1x256xf32>
    %c11_99 = arith.constant 11 : index
    %c8_100 = arith.constant 8 : index
    %125 = vector.load %arg14[%c11_99, %c8_100] : memref<34x272xf32, #tpu.memory_space<vmem>>, vector<1x256xf32>
    tpu.vector_store %arg14[%c11_99, %c8_100], %124 {strides = array<i32>} : memref<34x272xf32, #tpu.memory_space<vmem>>, vector<1x256xf32>,
    %c22 = arith.constant 22 : index
    %c0_101 = arith.constant 0 : index
    %126 = vector.load %arg16[%c22, %c0_101] : memref<64x512xf32, #tpu.memory_space<vmem>>, vector<1x512xf32>
    %c23 = arith.constant 23 : index
    %c0_102 = arith.constant 0 : index
    %127 = vector.load %arg16[%c23, %c0_102] : memref<64x512xf32, #tpu.memory_space<vmem>>, vector<1x512xf32>
    %128 = arith.maximumf %126, %127 : vector<1x512xf32>
    %129 = vector.extract_strided_slice %128 {offsets = [0, 0], sizes = [1, 256], strides = [1, 1]} : vector<1x512xf32> to vector<1x256xf32>
    %130 = vector.extract_strided_slice %128 {offsets = [0, 256], sizes = [1, 256], strides = [1, 1]} : vector<1x512xf32> to vector<1x256xf32>
    %131 = arith.maximumf %129, %130 : vector<1x256xf32>
    %c12_103 = arith.constant 12 : index
    %c8_104 = arith.constant 8 : index
    %132 = vector.load %arg14[%c12_103, %c8_104] : memref<34x272xf32, #tpu.memory_space<vmem>>, vector<1x256xf32>
    tpu.vector_store %arg14[%c12_103, %c8_104], %131 {strides = array<i32>} : memref<34x272xf32, #tpu.memory_space<vmem>>, vector<1x256xf32>,
    %c24 = arith.constant 24 : index
    %c0_105 = arith.constant 0 : index
    %133 = vector.load %arg16[%c24, %c0_105] : memref<64x512xf32, #tpu.memory_space<vmem>>, vector<1x512xf32>
    %c25 = arith.constant 25 : index
    %c0_106 = arith.constant 0 : index
    %134 = vector.load %arg16[%c25, %c0_106] : memref<64x512xf32, #tpu.memory_space<vmem>>, vector<1x512xf32>
    %135 = arith.maximumf %133, %134 : vector<1x512xf32>
    %136 = vector.extract_strided_slice %135 {offsets = [0, 0], sizes = [1, 256], strides = [1, 1]} : vector<1x512xf32> to vector<1x256xf32>
    %137 = vector.extract_strided_slice %135 {offsets = [0, 256], sizes = [1, 256], strides = [1, 1]} : vector<1x512xf32> to vector<1x256xf32>
    %138 = arith.maximumf %136, %137 : vector<1x256xf32>
    %c13_107 = arith.constant 13 : index
    %c8_108 = arith.constant 8 : index
    %139 = vector.load %arg14[%c13_107, %c8_108] : memref<34x272xf32, #tpu.memory_space<vmem>>, vector<1x256xf32>
    tpu.vector_store %arg14[%c13_107, %c8_108], %138 {strides = array<i32>} : memref<34x272xf32, #tpu.memory_space<vmem>>, vector<1x256xf32>,
    %c26 = arith.constant 26 : index
    %c0_109 = arith.constant 0 : index
    %140 = vector.load %arg16[%c26, %c0_109] : memref<64x512xf32, #tpu.memory_space<vmem>>, vector<1x512xf32>
    %c27 = arith.constant 27 : index
    %c0_110 = arith.constant 0 : index
    %141 = vector.load %arg16[%c27, %c0_110] : memref<64x512xf32, #tpu.memory_space<vmem>>, vector<1x512xf32>
    %142 = arith.maximumf %140, %141 : vector<1x512xf32>
    %143 = vector.extract_strided_slice %142 {offsets = [0, 0], sizes = [1, 256], strides = [1, 1]} : vector<1x512xf32> to vector<1x256xf32>
    %144 = vector.extract_strided_slice %142 {offsets = [0, 256], sizes = [1, 256], strides = [1, 1]} : vector<1x512xf32> to vector<1x256xf32>
    %145 = arith.maximumf %143, %144 : vector<1x256xf32>
    %c14_111 = arith.constant 14 : index
    %c8_112 = arith.constant 8 : index
    %146 = vector.load %arg14[%c14_111, %c8_112] : memref<34x272xf32, #tpu.memory_space<vmem>>, vector<1x256xf32>
    tpu.vector_store %arg14[%c14_111, %c8_112], %145 {strides = array<i32>} : memref<34x272xf32, #tpu.memory_space<vmem>>, vector<1x256xf32>,
    %c28 = arith.constant 28 : index
    %c0_113 = arith.constant 0 : index
    %147 = vector.load %arg16[%c28, %c0_113] : memref<64x512xf32, #tpu.memory_space<vmem>>, vector<1x512xf32>
    %c29 = arith.constant 29 : index
    %c0_114 = arith.constant 0 : index
    %148 = vector.load %arg16[%c29, %c0_114] : memref<64x512xf32, #tpu.memory_space<vmem>>, vector<1x512xf32>
    %149 = arith.maximumf %147, %148 : vector<1x512xf32>
    %150 = vector.extract_strided_slice %149 {offsets = [0, 0], sizes = [1, 256], strides = [1, 1]} : vector<1x512xf32> to vector<1x256xf32>
    %151 = vector.extract_strided_slice %149 {offsets = [0, 256], sizes = [1, 256], strides = [1, 1]} : vector<1x512xf32> to vector<1x256xf32>
    %152 = arith.maximumf %150, %151 : vector<1x256xf32>
    %c15_115 = arith.constant 15 : index
    %c8_116 = arith.constant 8 : index
    %153 = vector.load %arg14[%c15_115, %c8_116] : memref<34x272xf32, #tpu.memory_space<vmem>>, vector<1x256xf32>
    tpu.vector_store %arg14[%c15_115, %c8_116], %152 {strides = array<i32>} : memref<34x272xf32, #tpu.memory_space<vmem>>, vector<1x256xf32>,
    %c30 = arith.constant 30 : index
    %c0_117 = arith.constant 0 : index
    %154 = vector.load %arg16[%c30, %c0_117] : memref<64x512xf32, #tpu.memory_space<vmem>>, vector<1x512xf32>
    %c31 = arith.constant 31 : index
    %c0_118 = arith.constant 0 : index
    %155 = vector.load %arg16[%c31, %c0_118] : memref<64x512xf32, #tpu.memory_space<vmem>>, vector<1x512xf32>
    %156 = arith.maximumf %154, %155 : vector<1x512xf32>
    %157 = vector.extract_strided_slice %156 {offsets = [0, 0], sizes = [1, 256], strides = [1, 1]} : vector<1x512xf32> to vector<1x256xf32>
    %158 = vector.extract_strided_slice %156 {offsets = [0, 256], sizes = [1, 256], strides = [1, 1]} : vector<1x512xf32> to vector<1x256xf32>
    %159 = arith.maximumf %157, %158 : vector<1x256xf32>
    %c16_119 = arith.constant 16 : index
    %c8_120 = arith.constant 8 : index
    %160 = vector.load %arg14[%c16_119, %c8_120] : memref<34x272xf32, #tpu.memory_space<vmem>>, vector<1x256xf32>
    tpu.vector_store %arg14[%c16_119, %c8_120], %159 {strides = array<i32>} : memref<34x272xf32, #tpu.memory_space<vmem>>, vector<1x256xf32>,
    %c32 = arith.constant 32 : index
    %c0_121 = arith.constant 0 : index
    %161 = vector.load %arg16[%c32, %c0_121] : memref<64x512xf32, #tpu.memory_space<vmem>>, vector<1x512xf32>
    %c33 = arith.constant 33 : index
    %c0_122 = arith.constant 0 : index
    %162 = vector.load %arg16[%c33, %c0_122] : memref<64x512xf32, #tpu.memory_space<vmem>>, vector<1x512xf32>
    %163 = arith.maximumf %161, %162 : vector<1x512xf32>
    %164 = vector.extract_strided_slice %163 {offsets = [0, 0], sizes = [1, 256], strides = [1, 1]} : vector<1x512xf32> to vector<1x256xf32>
    %165 = vector.extract_strided_slice %163 {offsets = [0, 256], sizes = [1, 256], strides = [1, 1]} : vector<1x512xf32> to vector<1x256xf32>
    %166 = arith.maximumf %164, %165 : vector<1x256xf32>
    %c17_123 = arith.constant 17 : index
    %c8_124 = arith.constant 8 : index
    %167 = vector.load %arg14[%c17_123, %c8_124] : memref<34x272xf32, #tpu.memory_space<vmem>>, vector<1x256xf32>
    tpu.vector_store %arg14[%c17_123, %c8_124], %166 {strides = array<i32>} : memref<34x272xf32, #tpu.memory_space<vmem>>, vector<1x256xf32>,
    %c34 = arith.constant 34 : index
    %c0_125 = arith.constant 0 : index
    %168 = vector.load %arg16[%c34, %c0_125] : memref<64x512xf32, #tpu.memory_space<vmem>>, vector<1x512xf32>
    %c35 = arith.constant 35 : index
    %c0_126 = arith.constant 0 : index
    %169 = vector.load %arg16[%c35, %c0_126] : memref<64x512xf32, #tpu.memory_space<vmem>>, vector<1x512xf32>
    %170 = arith.maximumf %168, %169 : vector<1x512xf32>
    %171 = vector.extract_strided_slice %170 {offsets = [0, 0], sizes = [1, 256], strides = [1, 1]} : vector<1x512xf32> to vector<1x256xf32>
    %172 = vector.extract_strided_slice %170 {offsets = [0, 256], sizes = [1, 256], strides = [1, 1]} : vector<1x512xf32> to vector<1x256xf32>
    %173 = arith.maximumf %171, %172 : vector<1x256xf32>
    %c18_127 = arith.constant 18 : index
    %c8_128 = arith.constant 8 : index
    %174 = vector.load %arg14[%c18_127, %c8_128] : memref<34x272xf32, #tpu.memory_space<vmem>>, vector<1x256xf32>
    tpu.vector_store %arg14[%c18_127, %c8_128], %173 {strides = array<i32>} : memref<34x272xf32, #tpu.memory_space<vmem>>, vector<1x256xf32>,
    %c36 = arith.constant 36 : index
    %c0_129 = arith.constant 0 : index
    %175 = vector.load %arg16[%c36, %c0_129] : memref<64x512xf32, #tpu.memory_space<vmem>>, vector<1x512xf32>
    %c37 = arith.constant 37 : index
    %c0_130 = arith.constant 0 : index
    %176 = vector.load %arg16[%c37, %c0_130] : memref<64x512xf32, #tpu.memory_space<vmem>>, vector<1x512xf32>
    %177 = arith.maximumf %175, %176 : vector<1x512xf32>
    %178 = vector.extract_strided_slice %177 {offsets = [0, 0], sizes = [1, 256], strides = [1, 1]} : vector<1x512xf32> to vector<1x256xf32>
    %179 = vector.extract_strided_slice %177 {offsets = [0, 256], sizes = [1, 256], strides = [1, 1]} : vector<1x512xf32> to vector<1x256xf32>
    %180 = arith.maximumf %178, %179 : vector<1x256xf32>
    %c19_131 = arith.constant 19 : index
    %c8_132 = arith.constant 8 : index
    %181 = vector.load %arg14[%c19_131, %c8_132] : memref<34x272xf32, #tpu.memory_space<vmem>>, vector<1x256xf32>
    tpu.vector_store %arg14[%c19_131, %c8_132], %180 {strides = array<i32>} : memref<34x272xf32, #tpu.memory_space<vmem>>, vector<1x256xf32>,
    %c38 = arith.constant 38 : index
    %c0_133 = arith.constant 0 : index
    %182 = vector.load %arg16[%c38, %c0_133] : memref<64x512xf32, #tpu.memory_space<vmem>>, vector<1x512xf32>
    %c39 = arith.constant 39 : index
    %c0_134 = arith.constant 0 : index
    %183 = vector.load %arg16[%c39, %c0_134] : memref<64x512xf32, #tpu.memory_space<vmem>>, vector<1x512xf32>
    %184 = arith.maximumf %182, %183 : vector<1x512xf32>
    %185 = vector.extract_strided_slice %184 {offsets = [0, 0], sizes = [1, 256], strides = [1, 1]} : vector<1x512xf32> to vector<1x256xf32>
    %186 = vector.extract_strided_slice %184 {offsets = [0, 256], sizes = [1, 256], strides = [1, 1]} : vector<1x512xf32> to vector<1x256xf32>
    %187 = arith.maximumf %185, %186 : vector<1x256xf32>
    %c20_135 = arith.constant 20 : index
    %c8_136 = arith.constant 8 : index
    %188 = vector.load %arg14[%c20_135, %c8_136] : memref<34x272xf32, #tpu.memory_space<vmem>>, vector<1x256xf32>
    tpu.vector_store %arg14[%c20_135, %c8_136], %187 {strides = array<i32>} : memref<34x272xf32, #tpu.memory_space<vmem>>, vector<1x256xf32>,
    %c40 = arith.constant 40 : index
    %c0_137 = arith.constant 0 : index
    %189 = vector.load %arg16[%c40, %c0_137] : memref<64x512xf32, #tpu.memory_space<vmem>>, vector<1x512xf32>
    %c41 = arith.constant 41 : index
    %c0_138 = arith.constant 0 : index
    %190 = vector.load %arg16[%c41, %c0_138] : memref<64x512xf32, #tpu.memory_space<vmem>>, vector<1x512xf32>
    %191 = arith.maximumf %189, %190 : vector<1x512xf32>
    %192 = vector.extract_strided_slice %191 {offsets = [0, 0], sizes = [1, 256], strides = [1, 1]} : vector<1x512xf32> to vector<1x256xf32>
    %193 = vector.extract_strided_slice %191 {offsets = [0, 256], sizes = [1, 256], strides = [1, 1]} : vector<1x512xf32> to vector<1x256xf32>
    %194 = arith.maximumf %192, %193 : vector<1x256xf32>
    %c21_139 = arith.constant 21 : index
    %c8_140 = arith.constant 8 : index
    %195 = vector.load %arg14[%c21_139, %c8_140] : memref<34x272xf32, #tpu.memory_space<vmem>>, vector<1x256xf32>
    tpu.vector_store %arg14[%c21_139, %c8_140], %194 {strides = array<i32>} : memref<34x272xf32, #tpu.memory_space<vmem>>, vector<1x256xf32>,
    %c42 = arith.constant 42 : index
    %c0_141 = arith.constant 0 : index
    %196 = vector.load %arg16[%c42, %c0_141] : memref<64x512xf32, #tpu.memory_space<vmem>>, vector<1x512xf32>
    %c43 = arith.constant 43 : index
    %c0_142 = arith.constant 0 : index
    %197 = vector.load %arg16[%c43, %c0_142] : memref<64x512xf32, #tpu.memory_space<vmem>>, vector<1x512xf32>
    %198 = arith.maximumf %196, %197 : vector<1x512xf32>
    %199 = vector.extract_strided_slice %198 {offsets = [0, 0], sizes = [1, 256], strides = [1, 1]} : vector<1x512xf32> to vector<1x256xf32>
    %200 = vector.extract_strided_slice %198 {offsets = [0, 256], sizes = [1, 256], strides = [1, 1]} : vector<1x512xf32> to vector<1x256xf32>
    %201 = arith.maximumf %199, %200 : vector<1x256xf32>
    %c22_143 = arith.constant 22 : index
    %c8_144 = arith.constant 8 : index
    %202 = vector.load %arg14[%c22_143, %c8_144] : memref<34x272xf32, #tpu.memory_space<vmem>>, vector<1x256xf32>
    tpu.vector_store %arg14[%c22_143, %c8_144], %201 {strides = array<i32>} : memref<34x272xf32, #tpu.memory_space<vmem>>, vector<1x256xf32>,
    %c44 = arith.constant 44 : index
    %c0_145 = arith.constant 0 : index
    %203 = vector.load %arg16[%c44, %c0_145] : memref<64x512xf32, #tpu.memory_space<vmem>>, vector<1x512xf32>
    %c45 = arith.constant 45 : index
    %c0_146 = arith.constant 0 : index
    %204 = vector.load %arg16[%c45, %c0_146] : memref<64x512xf32, #tpu.memory_space<vmem>>, vector<1x512xf32>
    %205 = arith.maximumf %203, %204 : vector<1x512xf32>
    %206 = vector.extract_strided_slice %205 {offsets = [0, 0], sizes = [1, 256], strides = [1, 1]} : vector<1x512xf32> to vector<1x256xf32>
    %207 = vector.extract_strided_slice %205 {offsets = [0, 256], sizes = [1, 256], strides = [1, 1]} : vector<1x512xf32> to vector<1x256xf32>
    %208 = arith.maximumf %206, %207 : vector<1x256xf32>
    %c23_147 = arith.constant 23 : index
    %c8_148 = arith.constant 8 : index
    %209 = vector.load %arg14[%c23_147, %c8_148] : memref<34x272xf32, #tpu.memory_space<vmem>>, vector<1x256xf32>
    tpu.vector_store %arg14[%c23_147, %c8_148], %208 {strides = array<i32>} : memref<34x272xf32, #tpu.memory_space<vmem>>, vector<1x256xf32>,
    %c46 = arith.constant 46 : index
    %c0_149 = arith.constant 0 : index
    %210 = vector.load %arg16[%c46, %c0_149] : memref<64x512xf32, #tpu.memory_space<vmem>>, vector<1x512xf32>
    %c47 = arith.constant 47 : index
    %c0_150 = arith.constant 0 : index
    %211 = vector.load %arg16[%c47, %c0_150] : memref<64x512xf32, #tpu.memory_space<vmem>>, vector<1x512xf32>
    %212 = arith.maximumf %210, %211 : vector<1x512xf32>
    %213 = vector.extract_strided_slice %212 {offsets = [0, 0], sizes = [1, 256], strides = [1, 1]} : vector<1x512xf32> to vector<1x256xf32>
    %214 = vector.extract_strided_slice %212 {offsets = [0, 256], sizes = [1, 256], strides = [1, 1]} : vector<1x512xf32> to vector<1x256xf32>
    %215 = arith.maximumf %213, %214 : vector<1x256xf32>
    %c24_151 = arith.constant 24 : index
    %c8_152 = arith.constant 8 : index
    %216 = vector.load %arg14[%c24_151, %c8_152] : memref<34x272xf32, #tpu.memory_space<vmem>>, vector<1x256xf32>
    tpu.vector_store %arg14[%c24_151, %c8_152], %215 {strides = array<i32>} : memref<34x272xf32, #tpu.memory_space<vmem>>, vector<1x256xf32>,
    %c48 = arith.constant 48 : index
    %c0_153 = arith.constant 0 : index
    %217 = vector.load %arg16[%c48, %c0_153] : memref<64x512xf32, #tpu.memory_space<vmem>>, vector<1x512xf32>
    %c49 = arith.constant 49 : index
    %c0_154 = arith.constant 0 : index
    %218 = vector.load %arg16[%c49, %c0_154] : memref<64x512xf32, #tpu.memory_space<vmem>>, vector<1x512xf32>
    %219 = arith.maximumf %217, %218 : vector<1x512xf32>
    %220 = vector.extract_strided_slice %219 {offsets = [0, 0], sizes = [1, 256], strides = [1, 1]} : vector<1x512xf32> to vector<1x256xf32>
    %221 = vector.extract_strided_slice %219 {offsets = [0, 256], sizes = [1, 256], strides = [1, 1]} : vector<1x512xf32> to vector<1x256xf32>
    %222 = arith.maximumf %220, %221 : vector<1x256xf32>
    %c25_155 = arith.constant 25 : index
    %c8_156 = arith.constant 8 : index
    %223 = vector.load %arg14[%c25_155, %c8_156] : memref<34x272xf32, #tpu.memory_space<vmem>>, vector<1x256xf32>
    tpu.vector_store %arg14[%c25_155, %c8_156], %222 {strides = array<i32>} : memref<34x272xf32, #tpu.memory_space<vmem>>, vector<1x256xf32>,
    %c50 = arith.constant 50 : index
    %c0_157 = arith.constant 0 : index
    %224 = vector.load %arg16[%c50, %c0_157] : memref<64x512xf32, #tpu.memory_space<vmem>>, vector<1x512xf32>
    %c51 = arith.constant 51 : index
    %c0_158 = arith.constant 0 : index
    %225 = vector.load %arg16[%c51, %c0_158] : memref<64x512xf32, #tpu.memory_space<vmem>>, vector<1x512xf32>
    %226 = arith.maximumf %224, %225 : vector<1x512xf32>
    %227 = vector.extract_strided_slice %226 {offsets = [0, 0], sizes = [1, 256], strides = [1, 1]} : vector<1x512xf32> to vector<1x256xf32>
    %228 = vector.extract_strided_slice %226 {offsets = [0, 256], sizes = [1, 256], strides = [1, 1]} : vector<1x512xf32> to vector<1x256xf32>
    %229 = arith.maximumf %227, %228 : vector<1x256xf32>
    %c26_159 = arith.constant 26 : index
    %c8_160 = arith.constant 8 : index
    %230 = vector.load %arg14[%c26_159, %c8_160] : memref<34x272xf32, #tpu.memory_space<vmem>>, vector<1x256xf32>
    tpu.vector_store %arg14[%c26_159, %c8_160], %229 {strides = array<i32>} : memref<34x272xf32, #tpu.memory_space<vmem>>, vector<1x256xf32>,
    %c52 = arith.constant 52 : index
    %c0_161 = arith.constant 0 : index
    %231 = vector.load %arg16[%c52, %c0_161] : memref<64x512xf32, #tpu.memory_space<vmem>>, vector<1x512xf32>
    %c53 = arith.constant 53 : index
    %c0_162 = arith.constant 0 : index
    %232 = vector.load %arg16[%c53, %c0_162] : memref<64x512xf32, #tpu.memory_space<vmem>>, vector<1x512xf32>
    %233 = arith.maximumf %231, %232 : vector<1x512xf32>
    %234 = vector.extract_strided_slice %233 {offsets = [0, 0], sizes = [1, 256], strides = [1, 1]} : vector<1x512xf32> to vector<1x256xf32>
    %235 = vector.extract_strided_slice %233 {offsets = [0, 256], sizes = [1, 256], strides = [1, 1]} : vector<1x512xf32> to vector<1x256xf32>
    %236 = arith.maximumf %234, %235 : vector<1x256xf32>
    %c27_163 = arith.constant 27 : index
    %c8_164 = arith.constant 8 : index
    %237 = vector.load %arg14[%c27_163, %c8_164] : memref<34x272xf32, #tpu.memory_space<vmem>>, vector<1x256xf32>
    tpu.vector_store %arg14[%c27_163, %c8_164], %236 {strides = array<i32>} : memref<34x272xf32, #tpu.memory_space<vmem>>, vector<1x256xf32>,
    %c54 = arith.constant 54 : index
    %c0_165 = arith.constant 0 : index
    %238 = vector.load %arg16[%c54, %c0_165] : memref<64x512xf32, #tpu.memory_space<vmem>>, vector<1x512xf32>
    %c55 = arith.constant 55 : index
    %c0_166 = arith.constant 0 : index
    %239 = vector.load %arg16[%c55, %c0_166] : memref<64x512xf32, #tpu.memory_space<vmem>>, vector<1x512xf32>
    %240 = arith.maximumf %238, %239 : vector<1x512xf32>
    %241 = vector.extract_strided_slice %240 {offsets = [0, 0], sizes = [1, 256], strides = [1, 1]} : vector<1x512xf32> to vector<1x256xf32>
    %242 = vector.extract_strided_slice %240 {offsets = [0, 256], sizes = [1, 256], strides = [1, 1]} : vector<1x512xf32> to vector<1x256xf32>
    %243 = arith.maximumf %241, %242 : vector<1x256xf32>
    %c28_167 = arith.constant 28 : index
    %c8_168 = arith.constant 8 : index
    %244 = vector.load %arg14[%c28_167, %c8_168] : memref<34x272xf32, #tpu.memory_space<vmem>>, vector<1x256xf32>
    tpu.vector_store %arg14[%c28_167, %c8_168], %243 {strides = array<i32>} : memref<34x272xf32, #tpu.memory_space<vmem>>, vector<1x256xf32>,
    %c56 = arith.constant 56 : index
    %c0_169 = arith.constant 0 : index
    %245 = vector.load %arg16[%c56, %c0_169] : memref<64x512xf32, #tpu.memory_space<vmem>>, vector<1x512xf32>
    %c57 = arith.constant 57 : index
    %c0_170 = arith.constant 0 : index
    %246 = vector.load %arg16[%c57, %c0_170] : memref<64x512xf32, #tpu.memory_space<vmem>>, vector<1x512xf32>
    %247 = arith.maximumf %245, %246 : vector<1x512xf32>
    %248 = vector.extract_strided_slice %247 {offsets = [0, 0], sizes = [1, 256], strides = [1, 1]} : vector<1x512xf32> to vector<1x256xf32>
    %249 = vector.extract_strided_slice %247 {offsets = [0, 256], sizes = [1, 256], strides = [1, 1]} : vector<1x512xf32> to vector<1x256xf32>
    %250 = arith.maximumf %248, %249 : vector<1x256xf32>
    %c29_171 = arith.constant 29 : index
    %c8_172 = arith.constant 8 : index
    %251 = vector.load %arg14[%c29_171, %c8_172] : memref<34x272xf32, #tpu.memory_space<vmem>>, vector<1x256xf32>
    tpu.vector_store %arg14[%c29_171, %c8_172], %250 {strides = array<i32>} : memref<34x272xf32, #tpu.memory_space<vmem>>, vector<1x256xf32>,
    %c58 = arith.constant 58 : index
    %c0_173 = arith.constant 0 : index
    %252 = vector.load %arg16[%c58, %c0_173] : memref<64x512xf32, #tpu.memory_space<vmem>>, vector<1x512xf32>
    %c59 = arith.constant 59 : index
    %c0_174 = arith.constant 0 : index
    %253 = vector.load %arg16[%c59, %c0_174] : memref<64x512xf32, #tpu.memory_space<vmem>>, vector<1x512xf32>
    %254 = arith.maximumf %252, %253 : vector<1x512xf32>
    %255 = vector.extract_strided_slice %254 {offsets = [0, 0], sizes = [1, 256], strides = [1, 1]} : vector<1x512xf32> to vector<1x256xf32>
    %256 = vector.extract_strided_slice %254 {offsets = [0, 256], sizes = [1, 256], strides = [1, 1]} : vector<1x512xf32> to vector<1x256xf32>
    %257 = arith.maximumf %255, %256 : vector<1x256xf32>
    %c30_175 = arith.constant 30 : index
    %c8_176 = arith.constant 8 : index
    %258 = vector.load %arg14[%c30_175, %c8_176] : memref<34x272xf32, #tpu.memory_space<vmem>>, vector<1x256xf32>
    tpu.vector_store %arg14[%c30_175, %c8_176], %257 {strides = array<i32>} : memref<34x272xf32, #tpu.memory_space<vmem>>, vector<1x256xf32>,
    %c60 = arith.constant 60 : index
    %c0_177 = arith.constant 0 : index
    %259 = vector.load %arg16[%c60, %c0_177] : memref<64x512xf32, #tpu.memory_space<vmem>>, vector<1x512xf32>
    %c61 = arith.constant 61 : index
    %c0_178 = arith.constant 0 : index
    %260 = vector.load %arg16[%c61, %c0_178] : memref<64x512xf32, #tpu.memory_space<vmem>>, vector<1x512xf32>
    %261 = arith.maximumf %259, %260 : vector<1x512xf32>
    %262 = vector.extract_strided_slice %261 {offsets = [0, 0], sizes = [1, 256], strides = [1, 1]} : vector<1x512xf32> to vector<1x256xf32>
    %263 = vector.extract_strided_slice %261 {offsets = [0, 256], sizes = [1, 256], strides = [1, 1]} : vector<1x512xf32> to vector<1x256xf32>
    %264 = arith.maximumf %262, %263 : vector<1x256xf32>
    %c31_179 = arith.constant 31 : index
    %c8_180 = arith.constant 8 : index
    %265 = vector.load %arg14[%c31_179, %c8_180] : memref<34x272xf32, #tpu.memory_space<vmem>>, vector<1x256xf32>
    tpu.vector_store %arg14[%c31_179, %c8_180], %264 {strides = array<i32>} : memref<34x272xf32, #tpu.memory_space<vmem>>, vector<1x256xf32>,
    %c62 = arith.constant 62 : index
    %c0_181 = arith.constant 0 : index
    %266 = vector.load %arg16[%c62, %c0_181] : memref<64x512xf32, #tpu.memory_space<vmem>>, vector<1x512xf32>
    %c63 = arith.constant 63 : index
    %c0_182 = arith.constant 0 : index
    %267 = vector.load %arg16[%c63, %c0_182] : memref<64x512xf32, #tpu.memory_space<vmem>>, vector<1x512xf32>
    %268 = arith.maximumf %266, %267 : vector<1x512xf32>
    %269 = vector.extract_strided_slice %268 {offsets = [0, 0], sizes = [1, 256], strides = [1, 1]} : vector<1x512xf32> to vector<1x256xf32>
    %270 = vector.extract_strided_slice %268 {offsets = [0, 256], sizes = [1, 256], strides = [1, 1]} : vector<1x512xf32> to vector<1x256xf32>
    %271 = arith.maximumf %269, %270 : vector<1x256xf32>
    %c32_183 = arith.constant 32 : index
    %c8_184 = arith.constant 8 : index
    %272 = vector.load %arg14[%c32_183, %c8_184] : memref<34x272xf32, #tpu.memory_space<vmem>>, vector<1x256xf32>
    tpu.vector_store %arg14[%c32_183, %c8_184], %271 {strides = array<i32>} : memref<34x272xf32, #tpu.memory_space<vmem>>, vector<1x256xf32>,
    %c0_185 = arith.constant 0 : index
    %c0_186 = arith.constant 0 : index
    %273 = vector.load %arg14[%c0_185, %c0_186] : memref<34x272xf32, #tpu.memory_space<vmem>>, vector<32x272xf32>
    %c0_187 = arith.constant 0 : index
    %c0_188 = arith.constant 0 : index
    %c0_189 = arith.constant 0 : index
    %274 = vector.load %arg6[%c0_187, %c0_188, %c0_189] : memref<3x272x256xf32, #tpu.memory_space<vmem>>, vector<1x272x256xf32>
    %275 = vector.shape_cast %274 : vector<1x272x256xf32> to vector<272x256xf32>
    %cst_190 = arith.constant dense<0.000000e+00> : vector<32x256xf32>
    %276 = tpu.matmul %273, %275, %cst_190 {dimension_numbers = #tpu.dot_dimension_numbers<[1], [0], [0], [1], [0, 0, 1, 1], [], []>} : vector<32x272xf32>, vector<272x256xf32>, vector<32x256xf32> -> vector<32x256xf32>
    %c1_191 = arith.constant 1 : index
    %c0_192 = arith.constant 0 : index
    %277 = vector.load %arg14[%c1_191, %c0_192] : memref<34x272xf32, #tpu.memory_space<vmem>>, vector<32x272xf32>
    %c1_193 = arith.constant 1 : index
    %c0_194 = arith.constant 0 : index
    %c0_195 = arith.constant 0 : index
    %278 = vector.load %arg6[%c1_193, %c0_194, %c0_195] : memref<3x272x256xf32, #tpu.memory_space<vmem>>, vector<1x272x256xf32>
    %279 = vector.shape_cast %278 : vector<1x272x256xf32> to vector<272x256xf32>
    %cst_196 = arith.constant dense<0.000000e+00> : vector<32x256xf32>
    %280 = tpu.matmul %277, %279, %cst_196 {dimension_numbers = #tpu.dot_dimension_numbers<[1], [0], [0], [1], [0, 0, 1, 1], [], []>} : vector<32x272xf32>, vector<272x256xf32>, vector<32x256xf32> -> vector<32x256xf32>
    %281 = arith.addf %276, %280 : vector<32x256xf32>
    %c2_197 = arith.constant 2 : index
    %c0_198 = arith.constant 0 : index
    %282 = vector.load %arg14[%c2_197, %c0_198] : memref<34x272xf32, #tpu.memory_space<vmem>>, vector<32x272xf32>
    %c2_199 = arith.constant 2 : index
    %c0_200 = arith.constant 0 : index
    %c0_201 = arith.constant 0 : index
    %283 = vector.load %arg6[%c2_199, %c0_200, %c0_201] : memref<3x272x256xf32, #tpu.memory_space<vmem>>, vector<1x272x256xf32>
    %284 = vector.shape_cast %283 : vector<1x272x256xf32> to vector<272x256xf32>
    %cst_202 = arith.constant dense<0.000000e+00> : vector<32x256xf32>
    %285 = tpu.matmul %282, %284, %cst_202 {dimension_numbers = #tpu.dot_dimension_numbers<[1], [0], [0], [1], [0, 0, 1, 1], [], []>} : vector<32x272xf32>, vector<272x256xf32>, vector<32x256xf32> -> vector<32x256xf32>
    %286 = arith.addf %281, %285 : vector<32x256xf32>
    %c0_203 = arith.constant 0 : index
    %c0_204 = arith.constant 0 : index
    %287 = vector.load %arg7[%c0_203, %c0_204] : memref<1x256xf32, #tpu.memory_space<vmem>>, vector<1x256xf32>
    %288 = vector.broadcast %287 : vector<1x256xf32> to vector<32x256xf32>
    %289 = arith.addf %286, %288 : vector<32x256xf32>
    %cst_205 = arith.constant 0.000000e+00 : f32
    %290 = vector.broadcast %cst_205 : f32 to vector<32x256xf32>
    %291 = arith.maximumf %289, %290 : vector<32x256xf32>
    %c1_206 = arith.constant 1 : index
    %c8_207 = arith.constant 8 : index
    %292 = vector.load %arg15[%c1_206, %c8_207] : memref<34x272xf32, #tpu.memory_space<vmem>>, vector<32x256xf32>
    tpu.vector_store %arg15[%c1_206, %c8_207], %291 {strides = array<i32>} : memref<34x272xf32, #tpu.memory_space<vmem>>, vector<32x256xf32>,
    %c0_208 = arith.constant 0 : index
    %c0_209 = arith.constant 0 : index
    %293 = vector.load %arg15[%c0_208, %c0_209] : memref<34x272xf32, #tpu.memory_space<vmem>>, vector<32x272xf32>
    %c0_210 = arith.constant 0 : index
    %c0_211 = arith.constant 0 : index
    %c0_212 = arith.constant 0 : index
    %294 = vector.load %arg8[%c0_210, %c0_211, %c0_212] : memref<3x272x256xf32, #tpu.memory_space<vmem>>, vector<1x272x256xf32>
    %295 = vector.shape_cast %294 : vector<1x272x256xf32> to vector<272x256xf32>
    %cst_213 = arith.constant dense<0.000000e+00> : vector<32x256xf32>
    %296 = tpu.matmul %293, %295, %cst_213 {dimension_numbers = #tpu.dot_dimension_numbers<[1], [0], [0], [1], [0, 0, 1, 1], [], []>} : vector<32x272xf32>, vector<272x256xf32>, vector<32x256xf32> -> vector<32x256xf32>
    %c1_214 = arith.constant 1 : index
    %c0_215 = arith.constant 0 : index
    %297 = vector.load %arg15[%c1_214, %c0_215] : memref<34x272xf32, #tpu.memory_space<vmem>>, vector<32x272xf32>
    %c1_216 = arith.constant 1 : index
    %c0_217 = arith.constant 0 : index
    %c0_218 = arith.constant 0 : index
    %298 = vector.load %arg8[%c1_216, %c0_217, %c0_218] : memref<3x272x256xf32, #tpu.memory_space<vmem>>, vector<1x272x256xf32>
    %299 = vector.shape_cast %298 : vector<1x272x256xf32> to vector<272x256xf32>
    %cst_219 = arith.constant dense<0.000000e+00> : vector<32x256xf32>
    %300 = tpu.matmul %297, %299, %cst_219 {dimension_numbers = #tpu.dot_dimension_numbers<[1], [0], [0], [1], [0, 0, 1, 1], [], []>} : vector<32x272xf32>, vector<272x256xf32>, vector<32x256xf32> -> vector<32x256xf32>
    %301 = arith.addf %296, %300 : vector<32x256xf32>
    %c2_220 = arith.constant 2 : index
    %c0_221 = arith.constant 0 : index
    %302 = vector.load %arg15[%c2_220, %c0_221] : memref<34x272xf32, #tpu.memory_space<vmem>>, vector<32x272xf32>
    %c2_222 = arith.constant 2 : index
    %c0_223 = arith.constant 0 : index
    %c0_224 = arith.constant 0 : index
    %303 = vector.load %arg8[%c2_222, %c0_223, %c0_224] : memref<3x272x256xf32, #tpu.memory_space<vmem>>, vector<1x272x256xf32>
    %304 = vector.shape_cast %303 : vector<1x272x256xf32> to vector<272x256xf32>
    %cst_225 = arith.constant dense<0.000000e+00> : vector<32x256xf32>
    %305 = tpu.matmul %302, %304, %cst_225 {dimension_numbers = #tpu.dot_dimension_numbers<[1], [0], [0], [1], [0, 0, 1, 1], [], []>} : vector<32x272xf32>, vector<272x256xf32>, vector<32x256xf32> -> vector<32x256xf32>
    %306 = arith.addf %301, %305 : vector<32x256xf32>
    %c0_226 = arith.constant 0 : index
    %c0_227 = arith.constant 0 : index
    %307 = vector.load %arg9[%c0_226, %c0_227] : memref<1x256xf32, #tpu.memory_space<vmem>>, vector<1x256xf32>
    %308 = vector.broadcast %307 : vector<1x256xf32> to vector<32x256xf32>
    %309 = arith.addf %306, %308 : vector<32x256xf32>
    %cst_228 = arith.constant 0.000000e+00 : f32
    %310 = vector.broadcast %cst_228 : f32 to vector<32x256xf32>
    %311 = arith.maximumf %309, %310 : vector<32x256xf32>
    %c0_229 = arith.constant 0 : index
    %c0_230 = arith.constant 0 : index
    %312 = vector.load %arg17[%c0_229, %c0_230] : memref<32x256xf32, #tpu.memory_space<vmem>>, vector<32x256xf32>
    tpu.vector_store %arg17[%c0_229, %c0_230], %311 {strides = array<i32>} : memref<32x256xf32, #tpu.memory_space<vmem>>, vector<32x256xf32>,
    %c0_231 = arith.constant 0 : index
    %c0_232 = arith.constant 0 : index
    %313 = vector.load %arg17[%c0_231, %c0_232] : memref<32x256xf32, #tpu.memory_space<vmem>>, vector<1x256xf32>
    %c1_233 = arith.constant 1 : index
    %c0_234 = arith.constant 0 : index
    %314 = vector.load %arg17[%c1_233, %c0_234] : memref<32x256xf32, #tpu.memory_space<vmem>>, vector<1x256xf32>
    %315 = arith.maximumf %313, %314 : vector<1x256xf32>
    %316 = vector.extract_strided_slice %315 {offsets = [0, 0], sizes = [1, 128], strides = [1, 1]} : vector<1x256xf32> to vector<1x128xf32>
    %317 = vector.extract_strided_slice %315 {offsets = [0, 128], sizes = [1, 128], strides = [1, 1]} : vector<1x256xf32> to vector<1x128xf32>
    %318 = arith.maximumf %316, %317 : vector<1x128xf32>
    %c0_235 = arith.constant 0 : index
    %c0_236 = arith.constant 0 : index
    %319 = vector.load %arg18[%c0_235, %c0_236] : memref<1x2048xf32, #tpu.memory_space<vmem>>, vector<1x128xf32>
    tpu.vector_store %arg18[%c0_235, %c0_236], %318 {strides = array<i32>} : memref<1x2048xf32, #tpu.memory_space<vmem>>, vector<1x128xf32>,
    %c2_237 = arith.constant 2 : index
    %c0_238 = arith.constant 0 : index
    %320 = vector.load %arg17[%c2_237, %c0_238] : memref<32x256xf32, #tpu.memory_space<vmem>>, vector<1x256xf32>
    %c3_239 = arith.constant 3 : index
    %c0_240 = arith.constant 0 : index
    %321 = vector.load %arg17[%c3_239, %c0_240] : memref<32x256xf32, #tpu.memory_space<vmem>>, vector<1x256xf32>
    %322 = arith.maximumf %320, %321 : vector<1x256xf32>
    %323 = vector.extract_strided_slice %322 {offsets = [0, 0], sizes = [1, 128], strides = [1, 1]} : vector<1x256xf32> to vector<1x128xf32>
    %324 = vector.extract_strided_slice %322 {offsets = [0, 128], sizes = [1, 128], strides = [1, 1]} : vector<1x256xf32> to vector<1x128xf32>
    %325 = arith.maximumf %323, %324 : vector<1x128xf32>
    %c0_241 = arith.constant 0 : index
    %c128 = arith.constant 128 : index
    %326 = vector.load %arg18[%c0_241, %c128] : memref<1x2048xf32, #tpu.memory_space<vmem>>, vector<1x128xf32>
    tpu.vector_store %arg18[%c0_241, %c128], %325 {strides = array<i32>} : memref<1x2048xf32, #tpu.memory_space<vmem>>, vector<1x128xf32>,
    %c4_242 = arith.constant 4 : index
    %c0_243 = arith.constant 0 : index
    %327 = vector.load %arg17[%c4_242, %c0_243] : memref<32x256xf32, #tpu.memory_space<vmem>>, vector<1x256xf32>
    %c5_244 = arith.constant 5 : index
    %c0_245 = arith.constant 0 : index
    %328 = vector.load %arg17[%c5_244, %c0_245] : memref<32x256xf32, #tpu.memory_space<vmem>>, vector<1x256xf32>
    %329 = arith.maximumf %327, %328 : vector<1x256xf32>
    %330 = vector.extract_strided_slice %329 {offsets = [0, 0], sizes = [1, 128], strides = [1, 1]} : vector<1x256xf32> to vector<1x128xf32>
    %331 = vector.extract_strided_slice %329 {offsets = [0, 128], sizes = [1, 128], strides = [1, 1]} : vector<1x256xf32> to vector<1x128xf32>
    %332 = arith.maximumf %330, %331 : vector<1x128xf32>
    %c0_246 = arith.constant 0 : index
    %c256 = arith.constant 256 : index
    %333 = vector.load %arg18[%c0_246, %c256] : memref<1x2048xf32, #tpu.memory_space<vmem>>, vector<1x128xf32>
    tpu.vector_store %arg18[%c0_246, %c256], %332 {strides = array<i32>} : memref<1x2048xf32, #tpu.memory_space<vmem>>, vector<1x128xf32>,
    %c6_247 = arith.constant 6 : index
    %c0_248 = arith.constant 0 : index
    %334 = vector.load %arg17[%c6_247, %c0_248] : memref<32x256xf32, #tpu.memory_space<vmem>>, vector<1x256xf32>
    %c7_249 = arith.constant 7 : index
    %c0_250 = arith.constant 0 : index
    %335 = vector.load %arg17[%c7_249, %c0_250] : memref<32x256xf32, #tpu.memory_space<vmem>>, vector<1x256xf32>
    %336 = arith.maximumf %334, %335 : vector<1x256xf32>
    %337 = vector.extract_strided_slice %336 {offsets = [0, 0], sizes = [1, 128], strides = [1, 1]} : vector<1x256xf32> to vector<1x128xf32>
    %338 = vector.extract_strided_slice %336 {offsets = [0, 128], sizes = [1, 128], strides = [1, 1]} : vector<1x256xf32> to vector<1x128xf32>
    %339 = arith.maximumf %337, %338 : vector<1x128xf32>
    %c0_251 = arith.constant 0 : index
    %c384 = arith.constant 384 : index
    %340 = vector.load %arg18[%c0_251, %c384] : memref<1x2048xf32, #tpu.memory_space<vmem>>, vector<1x128xf32>
    tpu.vector_store %arg18[%c0_251, %c384], %339 {strides = array<i32>} : memref<1x2048xf32, #tpu.memory_space<vmem>>, vector<1x128xf32>,
    %c8_252 = arith.constant 8 : index
    %c0_253 = arith.constant 0 : index
    %341 = vector.load %arg17[%c8_252, %c0_253] : memref<32x256xf32, #tpu.memory_space<vmem>>, vector<1x256xf32>
    %c9_254 = arith.constant 9 : index
    %c0_255 = arith.constant 0 : index
    %342 = vector.load %arg17[%c9_254, %c0_255] : memref<32x256xf32, #tpu.memory_space<vmem>>, vector<1x256xf32>
    %343 = arith.maximumf %341, %342 : vector<1x256xf32>
    %344 = vector.extract_strided_slice %343 {offsets = [0, 0], sizes = [1, 128], strides = [1, 1]} : vector<1x256xf32> to vector<1x128xf32>
    %345 = vector.extract_strided_slice %343 {offsets = [0, 128], sizes = [1, 128], strides = [1, 1]} : vector<1x256xf32> to vector<1x128xf32>
    %346 = arith.maximumf %344, %345 : vector<1x128xf32>
    %c0_256 = arith.constant 0 : index
    %c512 = arith.constant 512 : index
    %347 = vector.load %arg18[%c0_256, %c512] : memref<1x2048xf32, #tpu.memory_space<vmem>>, vector<1x128xf32>
    tpu.vector_store %arg18[%c0_256, %c512], %346 {strides = array<i32>} : memref<1x2048xf32, #tpu.memory_space<vmem>>, vector<1x128xf32>,
    %c10_257 = arith.constant 10 : index
    %c0_258 = arith.constant 0 : index
    %348 = vector.load %arg17[%c10_257, %c0_258] : memref<32x256xf32, #tpu.memory_space<vmem>>, vector<1x256xf32>
    %c11_259 = arith.constant 11 : index
    %c0_260 = arith.constant 0 : index
    %349 = vector.load %arg17[%c11_259, %c0_260] : memref<32x256xf32, #tpu.memory_space<vmem>>, vector<1x256xf32>
    %350 = arith.maximumf %348, %349 : vector<1x256xf32>
    %351 = vector.extract_strided_slice %350 {offsets = [0, 0], sizes = [1, 128], strides = [1, 1]} : vector<1x256xf32> to vector<1x128xf32>
    %352 = vector.extract_strided_slice %350 {offsets = [0, 128], sizes = [1, 128], strides = [1, 1]} : vector<1x256xf32> to vector<1x128xf32>
    %353 = arith.maximumf %351, %352 : vector<1x128xf32>
    %c0_261 = arith.constant 0 : index
    %c640 = arith.constant 640 : index
    %354 = vector.load %arg18[%c0_261, %c640] : memref<1x2048xf32, #tpu.memory_space<vmem>>, vector<1x128xf32>
    tpu.vector_store %arg18[%c0_261, %c640], %353 {strides = array<i32>} : memref<1x2048xf32, #tpu.memory_space<vmem>>, vector<1x128xf32>,
    %c12_262 = arith.constant 12 : index
    %c0_263 = arith.constant 0 : index
    %355 = vector.load %arg17[%c12_262, %c0_263] : memref<32x256xf32, #tpu.memory_space<vmem>>, vector<1x256xf32>
    %c13_264 = arith.constant 13 : index
    %c0_265 = arith.constant 0 : index
    %356 = vector.load %arg17[%c13_264, %c0_265] : memref<32x256xf32, #tpu.memory_space<vmem>>, vector<1x256xf32>
    %357 = arith.maximumf %355, %356 : vector<1x256xf32>
    %358 = vector.extract_strided_slice %357 {offsets = [0, 0], sizes = [1, 128], strides = [1, 1]} : vector<1x256xf32> to vector<1x128xf32>
    %359 = vector.extract_strided_slice %357 {offsets = [0, 128], sizes = [1, 128], strides = [1, 1]} : vector<1x256xf32> to vector<1x128xf32>
    %360 = arith.maximumf %358, %359 : vector<1x128xf32>
    %c0_266 = arith.constant 0 : index
    %c768 = arith.constant 768 : index
    %361 = vector.load %arg18[%c0_266, %c768] : memref<1x2048xf32, #tpu.memory_space<vmem>>, vector<1x128xf32>
    tpu.vector_store %arg18[%c0_266, %c768], %360 {strides = array<i32>} : memref<1x2048xf32, #tpu.memory_space<vmem>>, vector<1x128xf32>,
    %c14_267 = arith.constant 14 : index
    %c0_268 = arith.constant 0 : index
    %362 = vector.load %arg17[%c14_267, %c0_268] : memref<32x256xf32, #tpu.memory_space<vmem>>, vector<1x256xf32>
    %c15_269 = arith.constant 15 : index
    %c0_270 = arith.constant 0 : index
    %363 = vector.load %arg17[%c15_269, %c0_270] : memref<32x256xf32, #tpu.memory_space<vmem>>, vector<1x256xf32>
    %364 = arith.maximumf %362, %363 : vector<1x256xf32>
    %365 = vector.extract_strided_slice %364 {offsets = [0, 0], sizes = [1, 128], strides = [1, 1]} : vector<1x256xf32> to vector<1x128xf32>
    %366 = vector.extract_strided_slice %364 {offsets = [0, 128], sizes = [1, 128], strides = [1, 1]} : vector<1x256xf32> to vector<1x128xf32>
    %367 = arith.maximumf %365, %366 : vector<1x128xf32>
    %c0_271 = arith.constant 0 : index
    %c896 = arith.constant 896 : index
    %368 = vector.load %arg18[%c0_271, %c896] : memref<1x2048xf32, #tpu.memory_space<vmem>>, vector<1x128xf32>
    tpu.vector_store %arg18[%c0_271, %c896], %367 {strides = array<i32>} : memref<1x2048xf32, #tpu.memory_space<vmem>>, vector<1x128xf32>,
    %c16_272 = arith.constant 16 : index
    %c0_273 = arith.constant 0 : index
    %369 = vector.load %arg17[%c16_272, %c0_273] : memref<32x256xf32, #tpu.memory_space<vmem>>, vector<1x256xf32>
    %c17_274 = arith.constant 17 : index
    %c0_275 = arith.constant 0 : index
    %370 = vector.load %arg17[%c17_274, %c0_275] : memref<32x256xf32, #tpu.memory_space<vmem>>, vector<1x256xf32>
    %371 = arith.maximumf %369, %370 : vector<1x256xf32>
    %372 = vector.extract_strided_slice %371 {offsets = [0, 0], sizes = [1, 128], strides = [1, 1]} : vector<1x256xf32> to vector<1x128xf32>
    %373 = vector.extract_strided_slice %371 {offsets = [0, 128], sizes = [1, 128], strides = [1, 1]} : vector<1x256xf32> to vector<1x128xf32>
    %374 = arith.maximumf %372, %373 : vector<1x128xf32>
    %c0_276 = arith.constant 0 : index
    %c1024 = arith.constant 1024 : index
    %375 = vector.load %arg18[%c0_276, %c1024] : memref<1x2048xf32, #tpu.memory_space<vmem>>, vector<1x128xf32>
    tpu.vector_store %arg18[%c0_276, %c1024], %374 {strides = array<i32>} : memref<1x2048xf32, #tpu.memory_space<vmem>>, vector<1x128xf32>,
    %c18_277 = arith.constant 18 : index
    %c0_278 = arith.constant 0 : index
    %376 = vector.load %arg17[%c18_277, %c0_278] : memref<32x256xf32, #tpu.memory_space<vmem>>, vector<1x256xf32>
    %c19_279 = arith.constant 19 : index
    %c0_280 = arith.constant 0 : index
    %377 = vector.load %arg17[%c19_279, %c0_280] : memref<32x256xf32, #tpu.memory_space<vmem>>, vector<1x256xf32>
    %378 = arith.maximumf %376, %377 : vector<1x256xf32>
    %379 = vector.extract_strided_slice %378 {offsets = [0, 0], sizes = [1, 128], strides = [1, 1]} : vector<1x256xf32> to vector<1x128xf32>
    %380 = vector.extract_strided_slice %378 {offsets = [0, 128], sizes = [1, 128], strides = [1, 1]} : vector<1x256xf32> to vector<1x128xf32>
    %381 = arith.maximumf %379, %380 : vector<1x128xf32>
    %c0_281 = arith.constant 0 : index
    %c1152 = arith.constant 1152 : index
    %382 = vector.load %arg18[%c0_281, %c1152] : memref<1x2048xf32, #tpu.memory_space<vmem>>, vector<1x128xf32>
    tpu.vector_store %arg18[%c0_281, %c1152], %381 {strides = array<i32>} : memref<1x2048xf32, #tpu.memory_space<vmem>>, vector<1x128xf32>,
    %c20_282 = arith.constant 20 : index
    %c0_283 = arith.constant 0 : index
    %383 = vector.load %arg17[%c20_282, %c0_283] : memref<32x256xf32, #tpu.memory_space<vmem>>, vector<1x256xf32>
    %c21_284 = arith.constant 21 : index
    %c0_285 = arith.constant 0 : index
    %384 = vector.load %arg17[%c21_284, %c0_285] : memref<32x256xf32, #tpu.memory_space<vmem>>, vector<1x256xf32>
    %385 = arith.maximumf %383, %384 : vector<1x256xf32>
    %386 = vector.extract_strided_slice %385 {offsets = [0, 0], sizes = [1, 128], strides = [1, 1]} : vector<1x256xf32> to vector<1x128xf32>
    %387 = vector.extract_strided_slice %385 {offsets = [0, 128], sizes = [1, 128], strides = [1, 1]} : vector<1x256xf32> to vector<1x128xf32>
    %388 = arith.maximumf %386, %387 : vector<1x128xf32>
    %c0_286 = arith.constant 0 : index
    %c1280 = arith.constant 1280 : index
    %389 = vector.load %arg18[%c0_286, %c1280] : memref<1x2048xf32, #tpu.memory_space<vmem>>, vector<1x128xf32>
    tpu.vector_store %arg18[%c0_286, %c1280], %388 {strides = array<i32>} : memref<1x2048xf32, #tpu.memory_space<vmem>>, vector<1x128xf32>,
    %c22_287 = arith.constant 22 : index
    %c0_288 = arith.constant 0 : index
    %390 = vector.load %arg17[%c22_287, %c0_288] : memref<32x256xf32, #tpu.memory_space<vmem>>, vector<1x256xf32>
    %c23_289 = arith.constant 23 : index
    %c0_290 = arith.constant 0 : index
    %391 = vector.load %arg17[%c23_289, %c0_290] : memref<32x256xf32, #tpu.memory_space<vmem>>, vector<1x256xf32>
    %392 = arith.maximumf %390, %391 : vector<1x256xf32>
    %393 = vector.extract_strided_slice %392 {offsets = [0, 0], sizes = [1, 128], strides = [1, 1]} : vector<1x256xf32> to vector<1x128xf32>
    %394 = vector.extract_strided_slice %392 {offsets = [0, 128], sizes = [1, 128], strides = [1, 1]} : vector<1x256xf32> to vector<1x128xf32>
    %395 = arith.maximumf %393, %394 : vector<1x128xf32>
    %c0_291 = arith.constant 0 : index
    %c1408 = arith.constant 1408 : index
    %396 = vector.load %arg18[%c0_291, %c1408] : memref<1x2048xf32, #tpu.memory_space<vmem>>, vector<1x128xf32>
    tpu.vector_store %arg18[%c0_291, %c1408], %395 {strides = array<i32>} : memref<1x2048xf32, #tpu.memory_space<vmem>>, vector<1x128xf32>,
    %c24_292 = arith.constant 24 : index
    %c0_293 = arith.constant 0 : index
    %397 = vector.load %arg17[%c24_292, %c0_293] : memref<32x256xf32, #tpu.memory_space<vmem>>, vector<1x256xf32>
    %c25_294 = arith.constant 25 : index
    %c0_295 = arith.constant 0 : index
    %398 = vector.load %arg17[%c25_294, %c0_295] : memref<32x256xf32, #tpu.memory_space<vmem>>, vector<1x256xf32>
    %399 = arith.maximumf %397, %398 : vector<1x256xf32>
    %400 = vector.extract_strided_slice %399 {offsets = [0, 0], sizes = [1, 128], strides = [1, 1]} : vector<1x256xf32> to vector<1x128xf32>
    %401 = vector.extract_strided_slice %399 {offsets = [0, 128], sizes = [1, 128], strides = [1, 1]} : vector<1x256xf32> to vector<1x128xf32>
    %402 = arith.maximumf %400, %401 : vector<1x128xf32>
    %c0_296 = arith.constant 0 : index
    %c1536 = arith.constant 1536 : index
    %403 = vector.load %arg18[%c0_296, %c1536] : memref<1x2048xf32, #tpu.memory_space<vmem>>, vector<1x128xf32>
    tpu.vector_store %arg18[%c0_296, %c1536], %402 {strides = array<i32>} : memref<1x2048xf32, #tpu.memory_space<vmem>>, vector<1x128xf32>,
    %c26_297 = arith.constant 26 : index
    %c0_298 = arith.constant 0 : index
    %404 = vector.load %arg17[%c26_297, %c0_298] : memref<32x256xf32, #tpu.memory_space<vmem>>, vector<1x256xf32>
    %c27_299 = arith.constant 27 : index
    %c0_300 = arith.constant 0 : index
    %405 = vector.load %arg17[%c27_299, %c0_300] : memref<32x256xf32, #tpu.memory_space<vmem>>, vector<1x256xf32>
    %406 = arith.maximumf %404, %405 : vector<1x256xf32>
    %407 = vector.extract_strided_slice %406 {offsets = [0, 0], sizes = [1, 128], strides = [1, 1]} : vector<1x256xf32> to vector<1x128xf32>
    %408 = vector.extract_strided_slice %406 {offsets = [0, 128], sizes = [1, 128], strides = [1, 1]} : vector<1x256xf32> to vector<1x128xf32>
    %409 = arith.maximumf %407, %408 : vector<1x128xf32>
    %c0_301 = arith.constant 0 : index
    %c1664 = arith.constant 1664 : index
    %410 = vector.load %arg18[%c0_301, %c1664] : memref<1x2048xf32, #tpu.memory_space<vmem>>, vector<1x128xf32>
    tpu.vector_store %arg18[%c0_301, %c1664], %409 {strides = array<i32>} : memref<1x2048xf32, #tpu.memory_space<vmem>>, vector<1x128xf32>,
    %c28_302 = arith.constant 28 : index
    %c0_303 = arith.constant 0 : index
    %411 = vector.load %arg17[%c28_302, %c0_303] : memref<32x256xf32, #tpu.memory_space<vmem>>, vector<1x256xf32>
    %c29_304 = arith.constant 29 : index
    %c0_305 = arith.constant 0 : index
    %412 = vector.load %arg17[%c29_304, %c0_305] : memref<32x256xf32, #tpu.memory_space<vmem>>, vector<1x256xf32>
    %413 = arith.maximumf %411, %412 : vector<1x256xf32>
    %414 = vector.extract_strided_slice %413 {offsets = [0, 0], sizes = [1, 128], strides = [1, 1]} : vector<1x256xf32> to vector<1x128xf32>
    %415 = vector.extract_strided_slice %413 {offsets = [0, 128], sizes = [1, 128], strides = [1, 1]} : vector<1x256xf32> to vector<1x128xf32>
    %416 = arith.maximumf %414, %415 : vector<1x128xf32>
    %c0_306 = arith.constant 0 : index
    %c1792 = arith.constant 1792 : index
    %417 = vector.load %arg18[%c0_306, %c1792] : memref<1x2048xf32, #tpu.memory_space<vmem>>, vector<1x128xf32>
    tpu.vector_store %arg18[%c0_306, %c1792], %416 {strides = array<i32>} : memref<1x2048xf32, #tpu.memory_space<vmem>>, vector<1x128xf32>,
    %c30_307 = arith.constant 30 : index
    %c0_308 = arith.constant 0 : index
    %418 = vector.load %arg17[%c30_307, %c0_308] : memref<32x256xf32, #tpu.memory_space<vmem>>, vector<1x256xf32>
    %c31_309 = arith.constant 31 : index
    %c0_310 = arith.constant 0 : index
    %419 = vector.load %arg17[%c31_309, %c0_310] : memref<32x256xf32, #tpu.memory_space<vmem>>, vector<1x256xf32>
    %420 = arith.maximumf %418, %419 : vector<1x256xf32>
    %421 = vector.extract_strided_slice %420 {offsets = [0, 0], sizes = [1, 128], strides = [1, 1]} : vector<1x256xf32> to vector<1x128xf32>
    %422 = vector.extract_strided_slice %420 {offsets = [0, 128], sizes = [1, 128], strides = [1, 1]} : vector<1x256xf32> to vector<1x128xf32>
    %423 = arith.maximumf %421, %422 : vector<1x128xf32>
    %c0_311 = arith.constant 0 : index
    %c1920 = arith.constant 1920 : index
    %424 = vector.load %arg18[%c0_311, %c1920] : memref<1x2048xf32, #tpu.memory_space<vmem>>, vector<1x128xf32>
    tpu.vector_store %arg18[%c0_311, %c1920], %423 {strides = array<i32>} : memref<1x2048xf32, #tpu.memory_space<vmem>>, vector<1x128xf32>,
    %c0_312 = arith.constant 0 : index
    %c0_313 = arith.constant 0 : index
    %425 = vector.load %arg18[%c0_312, %c0_313] : memref<1x2048xf32, #tpu.memory_space<vmem>>, vector<1x2048xf32>
    %c0_314 = arith.constant 0 : index
    %c0_315 = arith.constant 0 : index
    %426 = vector.load %arg10[%c0_314, %c0_315] : memref<2048x3xf32, #tpu.memory_space<vmem>>, vector<2048x3xf32>
    %cst_316 = arith.constant dense<0.000000e+00> : vector<1x3xf32>
    %427 = tpu.matmul %425, %426, %cst_316 {dimension_numbers = #tpu.dot_dimension_numbers<[1], [0], [0], [1], [0, 0, 1, 1], [], []>} : vector<1x2048xf32>, vector<2048x3xf32>, vector<1x3xf32> -> vector<1x3xf32>
    %c0_317 = arith.constant 0 : index
    %c0_318 = arith.constant 0 : index
    %428 = vector.load %arg11[%c0_317, %c0_318] : memref<1x3xf32, #tpu.memory_space<vmem>>, vector<1x3xf32>
    %429 = arith.addf %427, %428 : vector<1x3xf32>
    %c0_319 = arith.constant 0 : index
    %c0_320 = arith.constant 0 : index
    %c0_321 = arith.constant 0 : index
    %430 = vector.load %arg12[%c0_319, %c0_320, %c0_321] : memref<1x1x3xf32, #tpu.memory_space<vmem>>, vector<1x1x3xf32>
    %431 = vector.shape_cast %430 : vector<1x1x3xf32> to vector<1x3xf32>
    %432 = vector.shape_cast %429 : vector<1x3xf32> to vector<1x1x3xf32>
    tpu.vector_store %arg12[%c0_319, %c0_320, %c0_321], %432 {strides = array<i32>} : memref<1x1x3xf32, #tpu.memory_space<vmem>>, vector<1x1x3xf32>,
    return
  }
  func.func @transform_0(%arg0: i32) -> (i32, i32, i32) {
    %c0_i32 = arith.constant 0 : i32
    %c0_i32_0 = arith.constant 0 : i32
    %c0_i32_1 = arith.constant 0 : i32
    return %arg0, %c0_i32, %c0_i32_0 : i32, i32, i32
  }
  func.func @transform_1(%arg0: i32) -> (i32, i32, i32) {
    %c0_i32 = arith.constant 0 : i32
    %c0_i32_0 = arith.constant 0 : i32
    %c0_i32_1 = arith.constant 0 : i32
    %c0_i32_2 = arith.constant 0 : i32
    return %c0_i32, %c0_i32_0, %c0_i32_1 : i32, i32, i32
  }
  func.func @transform_2(%arg0: i32) -> (i32, i32) {
    %c0_i32 = arith.constant 0 : i32
    %c0_i32_0 = arith.constant 0 : i32
    %c0_i32_1 = arith.constant 0 : i32
    return %c0_i32, %c0_i32_0 : i32, i32
  }
  func.func @transform_3(%arg0: i32) -> (i32, i32, i32) {
    %c0_i32 = arith.constant 0 : i32
    %c0_i32_0 = arith.constant 0 : i32
    %c0_i32_1 = arith.constant 0 : i32
    %c0_i32_2 = arith.constant 0 : i32
    return %c0_i32, %c0_i32_0, %c0_i32_1 : i32, i32, i32
  }
  func.func @transform_4(%arg0: i32) -> (i32, i32) {
    %c0_i32 = arith.constant 0 : i32
    %c0_i32_0 = arith.constant 0 : i32
    %c0_i32_1 = arith.constant 0 : i32
    return %c0_i32, %c0_i32_0 : i32, i32
  }
  func.func @transform_5(%arg0: i32) -> (i32, i32, i32) {
    %c0_i32 = arith.constant 0 : i32
    %c0_i32_0 = arith.constant 0 : i32
    %c0_i32_1 = arith.constant 0 : i32
    %c0_i32_2 = arith.constant 0 : i32
    return %c0_i32, %c0_i32_0, %c0_i32_1 : i32, i32, i32
  }
  func.func @transform_6(%arg0: i32) -> (i32, i32) {
    %c0_i32 = arith.constant 0 : i32
    %c0_i32_0 = arith.constant 0 : i32
    %c0_i32_1 = arith.constant 0 : i32
    return %c0_i32, %c0_i32_0 : i32, i32
  }
  func.func @transform_7(%arg0: i32) -> (i32, i32, i32) {
    %c0_i32 = arith.constant 0 : i32
    %c0_i32_0 = arith.constant 0 : i32
    %c0_i32_1 = arith.constant 0 : i32
    %c0_i32_2 = arith.constant 0 : i32
    return %c0_i32, %c0_i32_0, %c0_i32_1 : i32, i32, i32
  }
  func.func @transform_8(%arg0: i32) -> (i32, i32) {
    %c0_i32 = arith.constant 0 : i32
    %c0_i32_0 = arith.constant 0 : i32
    %c0_i32_1 = arith.constant 0 : i32
    return %c0_i32, %c0_i32_0 : i32, i32
  }
  func.func @transform_9(%arg0: i32) -> (i32, i32) {
    %c0_i32 = arith.constant 0 : i32
    %c0_i32_0 = arith.constant 0 : i32
    %c0_i32_1 = arith.constant 0 : i32
    return %c0_i32, %c0_i32_0 : i32, i32
  }
  func.func @transform_10(%arg0: i32) -> (i32, i32) {
    %c0_i32 = arith.constant 0 : i32
    %c0_i32_0 = arith.constant 0 : i32
    %c0_i32_1 = arith.constant 0 : i32
    return %c0_i32, %c0_i32_0 : i32, i32
  }
  func.func @transform_11(%arg0: i32) -> (i32, i32, i32) {
    %c0_i32 = arith.constant 0 : i32
    %c0_i32_0 = arith.constant 0 : i32
    %c0_i32_1 = arith.constant 0 : i32
    return %arg0, %c0_i32, %c0_i32_0 : i32, i32, i32
  }
}

</mosaic_0001>

<llo_original>
// kernel: tiny_vgg_forward.1
$region0: #{tiny_vgg_forward.1}
  #allocation0 [shape = 'u32[]', space=smem, size = 0x4, offset = 0x4, fixed_abs, tag = 'smem constant byte address 0x4 - core index']
  #allocation1 [shape = 'u32[144,128]{1,0:T(1,128)}', space=vmem, size = 0x12000, scoped, tag = 'internal scratch']
  #allocation2 [shape = 'f32[66,528]{1,0:T(8,128)}', space=vmem, size = 0x2d000, scoped, tag = 'scratch operand']
  #allocation3 [shape = 'f32[34,272]{1,0:T(8,128)}', space=vmem, size = 0xf000, scoped, tag = 'scratch operand']
  #allocation4 [shape = 'f32[34,272]{1,0:T(8,128)}', space=vmem, size = 0xf000, scoped, tag = 'scratch operand']
  #allocation5 [shape = 'f32[64,512]{1,0:T(8,128)}', space=vmem, size = 0x20000, scoped, tag = 'scratch operand']
  #allocation6 [shape = 'f32[32,256]{1,0:T(8,128)}', space=vmem, size = 0x8000, scoped, tag = 'scratch operand']
  #allocation7 [shape = 'f32[1,2048]{1,0:T(1,128)}', space=vmem, size = 0x2000, scoped, tag = 'scratch operand']
  %s0 = inlined_call_operand.vmem [shape: f32[2,66,198], index: 0, kind: input, shape index: {}]
  %s1 = inlined_call_operand.hbm [shape: f32[3,198,512], index: 1, kind: input, shape index: {}]
  %s2 = inlined_call_operand.hbm [shape: f32[1,512], index: 2, kind: input, shape index: {}]
  %s3 = inlined_call_operand.hbm [shape: f32[3,528,512], index: 3, kind: input, shape index: {}]
  %s4 = inlined_call_operand.hbm [shape: f32[1,512], index: 4, kind: input, shape index: {}]
  %s5 = inlined_call_operand.hbm [shape: f32[3,272,256], index: 5, kind: input, shape index: {}]
  %s6 = inlined_call_operand.hbm [shape: f32[1,256], index: 6, kind: input, shape index: {}]
  %s7 = inlined_call_operand.hbm [shape: f32[3,272,256], index: 7, kind: input, shape index: {}]
  %s8 = inlined_call_operand.hbm [shape: f32[1,256], index: 8, kind: input, shape index: {}]
  %s9 = inlined_call_operand.vmem [shape: f32[2048,3], index: 9, kind: input, shape index: {}]
  %s10 = inlined_call_operand.hbm [shape: f32[1,3], index: 10, kind: input, shape index: {}]
  %s11 = inlined_call_operand.hbm [shape: f32[2,1,3], index: 11, kind: output, shape index: {}]
  %s12 = sld [smem:[#allocation0]]
  $region113: #{tiny_vgg_forward.1} parent=0
    _
  %s14 = ssub.s32 1, %s12
  %s15 = scalar_select 0, %s14, %s12
  $region1: #{tiny_vgg_forward.1} parent=0
    #allocation8 [shape = 'u8[1228800]{0}', space=vmem, size = 0x12c000, scoped, tag = 'input window, operand 1, single buffered']
    #allocation9 [shape = 's32[2]{0}', space=sflag, size = 0x8, scoped, tag = 'scoped memory for tiny_vgg_forward.1']
    #allocation10 [shape = 's32[2]{0}', space=sflag, size = 0x8, scoped, tag = 'scoped memory for tiny_vgg_forward.1']
    #allocation11 [shape = 'u8[2048]{0}', space=vmem, size = 0x800, scoped, tag = 'input window, operand 2, single buffered']
    #allocation12 [shape = 's32[1]{0}', space=sflag, size = 0x4, scoped, tag = 'scoped memory for tiny_vgg_forward.1']
    #allocation13 [shape = 'u8[3244032]{0}', space=vmem, size = 0x318000, scoped, tag = 'input window, operand 3, single buffered']
    #allocation14 [shape = 'u8[2048]{0}', space=vmem, size = 0x800, scoped, tag = 'input window, operand 4, single buffered']
    #allocation15 [shape = 's32[1]{0}', space=sflag, size = 0x4, scoped, tag = 'scoped memory for tiny_vgg_forward.1']
    #allocation16 [shape = 'u8[835584]{0}', space=vmem, size = 0xcc000, scoped, tag = 'input window, operand 5, single buffered']
    #allocation17 [shape = 'u8[1024]{0}', space=vmem, size = 0x400, scoped, tag = 'input window, operand 6, single buffered']
    #allocation18 [shape = 's32[1]{0}', space=sflag, size = 0x4, scoped, tag = 'scoped memory for tiny_vgg_forward.1']
    #allocation19 [shape = 'u8[835584]{0}', space=vmem, size = 0xcc000, scoped, tag = 'input window, operand 7, single buffered']
    #allocation20 [shape = 'u8[1024]{0}', space=vmem, size = 0x400, scoped, tag = 'input window, operand 8, single buffered']
    #allocation21 [shape = 's32[1]{0}', space=sflag, size = 0x4, scoped, tag = 'scoped memory for tiny_vgg_forward.1']
    #allocation22 [shape = 'u8[512]{0}', space=vmem, size = 0x400, scoped, tag = 'input window, operand 10, single buffered']
    #allocation23 [shape = 'u8[1024]{0}', space=vmem, size = 0x400, scoped, tag = 'output window, operand 0']
    %16 = vsyncpa [#allocation9], 0
    %17 = vsyncpa [#allocation12], 0
    %18 = vsyncpa [#allocation15], 0
    %19 = vsyncpa [#allocation18], 0
    %20 = vsyncpa [#allocation21], 0
    %21 = vsyncpa [#allocation10], 0
    %s22 = scalar_lea.sflag [#allocation10], 1
    %23 = vsyncpa %s22, 0
    loop: start=0, step=1, limit=4
    $region2: #{tiny_vgg_forward.1} parent=1 // loop_pre_header
      _
    $region3: #{tiny_vgg_forward.1} parent=1 // loop_header
      %s25 = sphi 0, %s29
      %p26 = scmp.ge.s32.totalorder %s25, 4
      %s35 = sphi 0, %s37
      %s38 = sphi 0, %s35
      %s39 = sphi 0, %s38
      %s55 = sphi 0, %s39
      %s59 = sphi 0, %s59
      %s61 = sphi 0, %s59
      %s62 = sphi 0, %s61
      %s76 = sphi 0, %s62
      %s80 = sphi 0, %s80
      %s82 = sphi 0, %s80
      %s83 = sphi 0, %s82
      %s97 = sphi 0, %s83
      %s101 = sphi 0, %s101
      %s103 = sphi 0, %s101
      %s104 = sphi 0, %s103
      %s118 = sphi 0, %s104
      %s122 = sphi 0, %s122
      %s124 = sphi 0, %s122
      %s125 = sphi 0, %s124
      %s139 = sphi 0, %s125
      %s143 = sphi 0, %s143
      %s145 = sphi 0, %s143
      %s146 = sphi 0, %s145
      %s160 = sphi 0, %s146
      %s164 = sphi 0, %s164
      %s166 = sphi 0, %s164
      %s167 = sphi 0, %s166
      %s181 = sphi 0, %s167
      %s185 = sphi 0, %s185
      %s187 = sphi 0, %s185
      %s188 = sphi 0, %s187
      %s202 = sphi 0, %s188
      %s206 = sphi 0, %s206
      %s208 = sphi 0, %s206
      %s209 = sphi 0, %s208
      %s223 = sphi 0, %s209
      %s227 = sphi 0, %s227
      %s229 = sphi 0, %s227
      %s230 = sphi 0, %s229
      %s244 = sphi 0, %s230
      %s248 = sphi 0, %s248
      %s250 = sphi 0, %s248
      %s251 = sphi 0, %s250
      %s265 = sphi 0, %s251
      %s271 = sphi 0, %s273
      %s274 = sphi 0, %s271
      %s275 = sphi 0, %s274
      %s291 = sphi 0, %s275
    $region4: #{tiny_vgg_forward.1} parent=1 // loop_header_branch
      %28 = sbr.rel (%p26) target = $region8
    $region5: #{tiny_vgg_forward.1} parent=1 // loop_body
      %s30 = ssub.s32 %s25, 1
      %s31 = ssub.s32 %s25, 2
      %s32 = sadd.s32 %s25, 1
      %s33 = ssub.s32 %s25, %s32
      %p34 = scmp.eq.s32.totalorder %s33, 0
      %s36 = sadd.s32 %s35, 1
      %s37 = scalar_select %p34, %s35, %s36
      %p40 = pneg %p34
      %p41 = scmp.eq.s32.totalorder %s25, 1
      %p42 = por %p40, %p41
      %p43 = scmp.ne.s32.totalorder %s35, %s38
      %p44 = scmp.eq.s32.totalorder %s25, 0
      %p45 = por %p43, %p44
      %p46 = scmp.ne.s32.totalorder %s35, %s38
      %p47 = scmp.eq.s32.totalorder %s30, 1
      %p48 = por %p46, %p47
      %p49 = scmp.ne.s32.totalorder %s38, %s39
      %p50 = scmp.eq.s32.totalorder %s30, 0
      %p51 = por %p49, %p50
      %p52 = scmp.ne.s32.totalorder %s38, %s39
      %p53 = scmp.eq.s32.totalorder %s31, 1
      %p54 = por %p52, %p53
      %p56 = scmp.ne.s32.totalorder %s39, %s55
      %p57 = scmp.eq.s32.totalorder %s31, 0
      %p58 = por %p56, %p57
      %s60 = sadd.s32 %s59, 1
      %p63 = scmp.eq.s32.totalorder %s25, 1
      %p64 = scmp.ne.s32.totalorder %s59, %s61
      %p65 = scmp.eq.s32.totalorder %s25, 0
      %p66 = por %p64, %p65
      %p67 = scmp.ne.s32.totalorder %s59, %s61
      %p68 = scmp.eq.s32.totalorder %s30, 1
      %p69 = por %p67, %p68
      %p70 = scmp.ne.s32.totalorder %s61, %s62
      %p71 = scmp.eq.s32.totalorder %s30, 0
      %p72 = por %p70, %p71
      %p73 = scmp.ne.s32.totalorder %s61, %s62
      %p74 = scmp.eq.s32.totalorder %s31, 1
      %p75 = por %p73, %p74
      %p77 = scmp.ne.s32.totalorder %s62, %s76
      %p78 = scmp.eq.s32.totalorder %s31, 0
      %p79 = por %p77, %p78
      %s81 = sadd.s32 %s80, 1
      %p84 = scmp.eq.s32.totalorder %s25, 1
      %p85 = scmp.ne.s32.totalorder %s80, %s82
      %p86 = scmp.eq.s32.totalorder %s25, 0
      %p87 = por %p85, %p86
      %p88 = scmp.ne.s32.totalorder %s80, %s82
      %p89 = scmp.eq.s32.totalorder %s30, 1
      %p90 = por %p88, %p89
      %p91 = scmp.ne.s32.totalorder %s82, %s83
      %p92 = scmp.eq.s32.totalorder %s30, 0
      %p93 = por %p91, %p92
      %p94 = scmp.ne.s32.totalorder %s82, %s83
      %p95 = scmp.eq.s32.totalorder %s31, 1
      %p96 = por %p94, %p95
      %p98 = scmp.ne.s32.totalorder %s83, %s97
      %p99 = scmp.eq.s32.totalorder %s31, 0
      %p100 = por %p98, %p99
      %s102 = sadd.s32 %s101, 1
      %p105 = scmp.eq.s32.totalorder %s25, 1
      %p106 = scmp.ne.s32.totalorder %s101, %s103
      %p107 = scmp.eq.s32.totalorder %s25, 0
      %p108 = por %p106, %p107
      %p109 = scmp.ne.s32.totalorder %s101, %s103
      %p110 = scmp.eq.s32.totalorder %s30, 1
      %p111 = por %p109, %p110
      %p112 = scmp.ne.s32.totalorder %s103, %s104
      %p113 = scmp.eq.s32.totalorder %s30, 0
      %p114 = por %p112, %p113
      %p115 = scmp.ne.s32.totalorder %s103, %s104
      %p116 = scmp.eq.s32.totalorder %s31, 1
      %p117 = por %p115, %p116
      %p119 = scmp.ne.s32.totalorder %s104, %s118
      %p120 = scmp.eq.s32.totalorder %s31, 0
      %p121 = por %p119, %p120
      %s123 = sadd.s32 %s122, 1
      %p126 = scmp.eq.s32.totalorder %s25, 1
      %p127 = scmp.ne.s32.totalorder %s122, %s124
      %p128 = scmp.eq.s32.totalorder %s25, 0
      %p129 = por %p127, %p128
      %p130 = scmp.ne.s32.totalorder %s122, %s124
      %p131 = scmp.eq.s32.totalorder %s30, 1
      %p132 = por %p130, %p131
      %p133 = scmp.ne.s32.totalorder %s124, %s125
      %p134 = scmp.eq.s32.totalorder %s30, 0
      %p135 = por %p133, %p134
      %p136 = scmp.ne.s32.totalorder %s124, %s125
      %p137 = scmp.eq.s32.totalorder %s31, 1
      %p138 = por %p136, %p137
      %p140 = scmp.ne.s32.totalorder %s125, %s139
      %p141 = scmp.eq.s32.totalorder %s31, 0
      %p142 = por %p140, %p141
      %s144 = sadd.s32 %s143, 1
      %p147 = scmp.eq.s32.totalorder %s25, 1
      %p148 = scmp.ne.s32.totalorder %s143, %s145
      %p149 = scmp.eq.s32.totalorder %s25, 0
      %p150 = por %p148, %p149
      %p151 = scmp.ne.s32.totalorder %s143, %s145
      %p152 = scmp.eq.s32.totalorder %s30, 1
      %p153 = por %p151, %p152
      %p154 = scmp.ne.s32.totalorder %s145, %s146
      %p155 = scmp.eq.s32.totalorder %s30, 0
      %p156 = por %p154, %p155
      %p157 = scmp.ne.s32.totalorder %s145, %s146
      %p158 = scmp.eq.s32.totalorder %s31, 1
      %p159 = por %p157, %p158
      %p161 = scmp.ne.s32.totalorder %s146, %s160
      %p162 = scmp.eq.s32.totalorder %s31, 0
      %p163 = por %p161, %p162
      %s165 = sadd.s32 %s164, 1
      %p168 = scmp.eq.s32.totalorder %s25, 1
      %p169 = scmp.ne.s32.totalorder %s164, %s166
      %p170 = scmp.eq.s32.totalorder %s25, 0
      %p171 = por %p169, %p170
      %p172 = scmp.ne.s32.totalorder %s164, %s166
      %p173 = scmp.eq.s32.totalorder %s30, 1
      %p174 = por %p172, %p173
      %p175 = scmp.ne.s32.totalorder %s166, %s167
      %p176 = scmp.eq.s32.totalorder %s30, 0
      %p177 = por %p175, %p176
      %p178 = scmp.ne.s32.totalorder %s166, %s167
      %p179 = scmp.eq.s32.totalorder %s31, 1
      %p180 = por %p178, %p179
      %p182 = scmp.ne.s32.totalorder %s167, %s181
      %p183 = scmp.eq.s32.totalorder %s31, 0
      %p184 = por %p182, %p183
      %s186 = sadd.s32 %s185, 1
      %p189 = scmp.eq.s32.totalorder %s25, 1
      %p190 = scmp.ne.s32.totalorder %s185, %s187
      %p191 = scmp.eq.s32.totalorder %s25, 0
      %p192 = por %p190, %p191
      %p193 = scmp.ne.s32.totalorder %s185, %s187
      %p194 = scmp.eq.s32.totalorder %s30, 1
      %p195 = por %p193, %p194
      %p196 = scmp.ne.s32.totalorder %s187, %s188
      %p197 = scmp.eq.s32.totalorder %s30, 0
      %p198 = por %p196, %p197
      %p199 = scmp.ne.s32.totalorder %s187, %s188
      %p200 = scmp.eq.s32.totalorder %s31, 1
      %p201 = por %p199, %p200
      %p203 = scmp.ne.s32.totalorder %s188, %s202
      %p204 = scmp.eq.s32.totalorder %s31, 0
      %p205 = por %p203, %p204
      %s207 = sadd.s32 %s206, 1
      %p210 = scmp.eq.s32.totalorder %s25, 1
      %p211 = scmp.ne.s32.totalorder %s206, %s208
      %p212 = scmp.eq.s32.totalorder %s25, 0
      %p213 = por %p211, %p212
      %p214 = scmp.ne.s32.totalorder %s206, %s208
      %p215 = scmp.eq.s32.totalorder %s30, 1
      %p216 = por %p214, %p215
      %p217 = scmp.ne.s32.totalorder %s208, %s209
      %p218 = scmp.eq.s32.totalorder %s30, 0
      %p219 = por %p217, %p218
      %p220 = scmp.ne.s32.totalorder %s208, %s209
      %p221 = scmp.eq.s32.totalorder %s31, 1
      %p222 = por %p220, %p221
      %p224 = scmp.ne.s32.totalorder %s209, %s223
      %p225 = scmp.eq.s32.totalorder %s31, 0
      %p226 = por %p224, %p225
      %s228 = sadd.s32 %s227, 1
      %p231 = scmp.eq.s32.totalorder %s25, 1
      %p232 = scmp.ne.s32.totalorder %s227, %s229
      %p233 = scmp.eq.s32.totalorder %s25, 0
      %p234 = por %p232, %p233
      %p235 = scmp.ne.s32.totalorder %s227, %s229
      %p236 = scmp.eq.s32.totalorder %s30, 1
      %p237 = por %p235, %p236
      %p238 = scmp.ne.s32.totalorder %s229, %s230
      %p239 = scmp.eq.s32.totalorder %s30, 0
      %p240 = por %p238, %p239
      %p241 = scmp.ne.s32.totalorder %s229, %s230
      %p242 = scmp.eq.s32.totalorder %s31, 1
      %p243 = por %p241, %p242
      %p245 = scmp.ne.s32.totalorder %s230, %s244
      %p246 = scmp.eq.s32.totalorder %s31, 0
      %p247 = por %p245, %p246
      %s249 = sadd.s32 %s248, 1
      %p252 = scmp.eq.s32.totalorder %s25, 1
      %p253 = scmp.ne.s32.totalorder %s248, %s250
      %p254 = scmp.eq.s32.totalorder %s25, 0
      %p255 = por %p253, %p254
      %p256 = scmp.ne.s32.totalorder %s248, %s250
      %p257 = scmp.eq.s32.totalorder %s30, 1
      %p258 = por %p256, %p257
      %p259 = scmp.ne.s32.totalorder %s250, %s251
      %p260 = scmp.eq.s32.totalorder %s30, 0
      %p261 = por %p259, %p260
      %p262 = scmp.ne.s32.totalorder %s250, %s251
      %p263 = scmp.eq.s32.totalorder %s31, 1
      %p264 = por %p262, %p263
      %p266 = scmp.ne.s32.totalorder %s251, %s265
      %p267 = scmp.eq.s32.totalorder %s31, 0
      %p268 = por %p266, %p267
      %s269 = ssub.s32 %s25, %s32
      %p270 = scmp.eq.s32.totalorder %s269, 0
      %s272 = sadd.s32 %s271, 1
      %s273 = scalar_select %p270, %s271, %s272
      %p276 = pneg %p270
      %p277 = scmp.eq.s32.totalorder %s25, 1
      %p278 = por %p276, %p277
      %p279 = scmp.ne.s32.totalorder %s271, %s274
      %p280 = scmp.eq.s32.totalorder %s25, 0
      %p281 = por %p279, %p280
      %p282 = scmp.ne.s32.totalorder %s271, %s274
      %p283 = scmp.eq.s32.totalorder %s30, 1
      %p284 = por %p282, %p283
      %p285 = scmp.ne.s32.totalorder %s274, %s275
      %p286 = scmp.eq.s32.totalorder %s30, 0
      %p287 = por %p285, %p286
      %p288 = scmp.ne.s32.totalorder %s274, %s275
      %p289 = scmp.eq.s32.totalorder %s31, 1
      %p290 = por %p288, %p289
      %p292 = scmp.ne.s32.totalorder %s275, %s291
      %p293 = scmp.eq.s32.totalorder %s31, 0
      %p294 = por %p292, %p293
      %p295 = scmp.le.s32.totalorder 1, %s25
      %p296 = scmp.lt.s32.totalorder %s25, 3
      %p297 = pnand %p295, %p296
      %p298 = pneg %p297
      // Predicated region
      $region9: #{tiny_vgg_forward.1} parent=5 // pred_check
        _
      $region10: #{tiny_vgg_forward.1} parent=5 // pred_check_branch
        %300 = sbr.rel (%p297) target = $region12
      $region11: #{tiny_vgg_forward.1} parent=5 // pred_region
        %s301 = ssub.s32 %s25, 1
        // Predicated region
        $region13: #{tiny_vgg_forward.1} parent=11 // pred_check
          %p302 = pneg %p72
        $region14: #{tiny_vgg_forward.1} parent=11 // pred_check_branch
          %304 = sbr.rel (%p302) target = $region16
        $region15: #{tiny_vgg_forward.1} parent=11 // pred_region
          %s306 = ssub.s32 38400, 38400
          %307 = vsyncadd [#allocation9], %s306
          %s308 = sshll.u32 [#allocation8], 4
          %s309 = int_to_ptr.vmem [resolvable:$true] %s308
          %314 = dma.hbm_to_vmem [thread:$0]  %s1, 38400, %s309, [#allocation9], 512, 512, 32
        $region16: #{tiny_vgg_forward.1} parent=11 // pred_fallthru
          _
        // Predicated region
        $region17: #{tiny_vgg_forward.1} parent=11 // pred_check
          %p315 = pneg %p93
        $region18: #{tiny_vgg_forward.1} parent=11 // pred_check_branch
          %317 = sbr.rel (%p315) target = $region20
        $region19: #{tiny_vgg_forward.1} parent=11 // pred_region
          %s319 = ssub.s32 64, 64
          %320 = vsyncadd [#allocation12], %s319
          %s322 = sshll.u32 [#allocation11], 4
          %s323 = int_to_ptr.vmem [resolvable:$true] %s322
          %325 = dma.hbm_to_vmem [thread:$0]  %s2, 64, %s323, [#allocation12]
        $region20: #{tiny_vgg_forward.1} parent=11 // pred_fallthru
          _
        // Predicated region
        $region21: #{tiny_vgg_forward.1} parent=11 // pred_check
          %p326 = pneg %p114
        $region22: #{tiny_vgg_forward.1} parent=11 // pred_check_branch
          %328 = sbr.rel (%p326) target = $region24
        $region23: #{tiny_vgg_forward.1} parent=11 // pred_region
          %s330 = ssub.s32 101376, 101376
          %331 = vsyncadd [#allocation12], %s330
          %s332 = sshll.u32 [#allocation13], 4
          %s333 = int_to_ptr.vmem [resolvable:$true] %s332
          %338 = dma.hbm_to_vmem [thread:$0]  %s3, 101376, %s333, [#allocation12], 512, 512, 32
        $region24: #{tiny_vgg_forward.1} parent=11 // pred_fallthru
          _
        // Predicated region
        $region25: #{tiny_vgg_forward.1} parent=11 // pred_check
          %p339 = pneg %p135
        $region26: #{tiny_vgg_forward.1} parent=11 // pred_check_branch
          %341 = sbr.rel (%p339) target = $region28
        $region27: #{tiny_vgg_forward.1} parent=11 // pred_region
          %s343 = ssub.s32 64, 64
          %344 = vsyncadd [#allocation15], %s343
          %s346 = sshll.u32 [#allocation14], 4
          %s347 = int_to_ptr.vmem [resolvable:$true] %s346
          %349 = dma.hbm_to_vmem [thread:$0]  %s4, 64, %s347, [#allocation15]
        $region28: #{tiny_vgg_forward.1} parent=11 // pred_fallthru
          _
        // Predicated region
        $region29: #{tiny_vgg_forward.1} parent=11 // pred_check
          %p350 = pneg %p156
        $region30: #{tiny_vgg_forward.1} parent=11 // pred_check_branch
          %352 = sbr.rel (%p350) target = $region32
        $region31: #{tiny_vgg_forward.1} parent=11 // pred_region
          %s354 = ssub.s32 26112, 26112
          %355 = vsyncadd [#allocation15], %s354
          %s356 = sshll.u32 [#allocation16], 4
          %s357 = int_to_ptr.vmem [resolvable:$true] %s356
          %362 = dma.hbm_to_vmem [thread:$0]  %s5, 26112, %s357, [#allocation15], 256, 256, 16
        $region32: #{tiny_vgg_forward.1} parent=11 // pred_fallthru
          _
        // Predicated region
        $region33: #{tiny_vgg_forward.1} parent=11 // pred_check
          %p363 = pneg %p177
        $region34: #{tiny_vgg_forward.1} parent=11 // pred_check_branch
          %365 = sbr.rel (%p363) target = $region36
        $region35: #{tiny_vgg_forward.1} parent=11 // pred_region
          %s367 = ssub.s32 32, 32
          %368 = vsyncadd [#allocation18], %s367
          %s370 = sshll.u32 [#allocation17], 4
          %s371 = int_to_ptr.vmem [resolvable:$true] %s370
          %373 = dma.hbm_to_vmem [thread:$0]  %s6, 32, %s371, [#allocation18]
        $region36: #{tiny_vgg_forward.1} parent=11 // pred_fallthru
          _
        // Predicated region
        $region37: #{tiny_vgg_forward.1} parent=11 // pred_check
          %p374 = pneg %p198
        $region38: #{tiny_vgg_forward.1} parent=11 // pred_check_branch
          %376 = sbr.rel (%p374) target = $region40
        $region39: #{tiny_vgg_forward.1} parent=11 // pred_region
          %s378 = ssub.s32 26112, 26112
          %379 = vsyncadd [#allocation18], %s378
          %s380 = sshll.u32 [#allocation19], 4
          %s381 = int_to_ptr.vmem [resolvable:$true] %s380
          %386 = dma.hbm_to_vmem [thread:$0]  %s7, 26112, %s381, [#allocation18], 256, 256, 16
        $region40: #{tiny_vgg_forward.1} parent=11 // pred_fallthru
          _
        // Predicated region
        $region41: #{tiny_vgg_forward.1} parent=11 // pred_check
          %p387 = pneg %p219
        $region42: #{tiny_vgg_forward.1} parent=11 // pred_check_branch
          %389 = sbr.rel (%p387) target = $region44
        $region43: #{tiny_vgg_forward.1} parent=11 // pred_region
          %s391 = ssub.s32 32, 32
          %392 = vsyncadd [#allocation21], %s391
          %s394 = sshll.u32 [#allocation20], 4
          %s395 = int_to_ptr.vmem [resolvable:$true] %s394
          %397 = dma.hbm_to_vmem [thread:$0]  %s8, 32, %s395, [#allocation21]
        $region44: #{tiny_vgg_forward.1} parent=11 // pred_fallthru
          _
        // Predicated region
        $region45: #{tiny_vgg_forward.1} parent=11 // pred_check
          %p398 = pneg %p240
        $region46: #{tiny_vgg_forward.1} parent=11 // pred_check_branch
          %400 = sbr.rel (%p398) target = $region48
        $region47: #{tiny_vgg_forward.1} parent=11 // pred_region
          _
        $region48: #{tiny_vgg_forward.1} parent=11 // pred_fallthru
          _
        // Predicated region
        $region49: #{tiny_vgg_forward.1} parent=11 // pred_check
          %p401 = pneg %p261
        $region50: #{tiny_vgg_forward.1} parent=11 // pred_check_branch
          %403 = sbr.rel (%p401) target = $region52
        $region51: #{tiny_vgg_forward.1} parent=11 // pred_region
          %s405 = ssub.s32 16, 16
          %406 = vsyncadd [#allocation21], %s405
          %s408 = sshll.u32 [#allocation22], 4
          %s409 = int_to_ptr.vmem [resolvable:$true] %s408
          %411 = dma.hbm_to_vmem [thread:$0]  %s10, 16, %s409, [#allocation21]
        $region52: #{tiny_vgg_forward.1} parent=11 // pred_fallthru
          _
      $region12: #{tiny_vgg_forward.1} parent=5 // pred_fallthru
        _
      %p412 = scmp.lt.s32.totalorder %s25, 2
      // Predicated region
      $region53: #{tiny_vgg_forward.1} parent=5 // pred_check
        %p413 = pneg %p412
      $region54: #{tiny_vgg_forward.1} parent=5 // pred_check_branch
        %415 = sbr.rel (%p413) target = $region56
      $region55: #{tiny_vgg_forward.1} parent=5 // pred_region
        // Predicated region
        $region57: #{tiny_vgg_forward.1} parent=55 // pred_check
          %p416 = pneg %p45
        $region58: #{tiny_vgg_forward.1} parent=55 // pred_check_branch
          %418 = sbr.rel (%p416) target = $region60
        $region59: #{tiny_vgg_forward.1} parent=55 // pred_region
          %p419 = scmp.lt.s32.totalorder %s25, 1
          %s420 = scalar_select %p419, %s25, 1
          %s421 = smul.addr %s420, 18
          %s422 = smul.addr %s421, 8
          %s423 = scalar_lea.vmem %s0, %s422
        $region60: #{tiny_vgg_forward.1} parent=55 // pred_fallthru
          _
      $region56: #{tiny_vgg_forward.1} parent=5 // pred_fallthru
        _
      %p424 = scmp.le.s32.totalorder 1, %s25
      %p425 = scmp.lt.s32.totalorder %s25, 3
      %p426 = pnand %p424, %p425
      %p427 = pneg %p426
      // Predicated region
      $region61: #{tiny_vgg_forward.1} parent=5 // pred_check
        _
      $region62: #{tiny_vgg_forward.1} parent=5 // pred_check_branch
        %429 = sbr.rel (%p426) target = $region64
      $region63: #{tiny_vgg_forward.1} parent=5 // pred_region
        %s430 = ssub.s32 %s25, 1
        // Predicated region
        $region65: #{tiny_vgg_forward.1} parent=63 // pred_check
          %p431 = pneg %p72
        $region66: #{tiny_vgg_forward.1} parent=63 // pred_check_branch
          %433 = sbr.rel (%p431) target = $region68
        $region67: #{tiny_vgg_forward.1} parent=63 // pred_region
          %434 = dma.done [#allocation9], 38400
        $region68: #{tiny_vgg_forward.1} parent=63 // pred_fallthru
          _
        // Predicated region
        $region69: #{tiny_vgg_forward.1} parent=63 // pred_check
          %p435 = pneg %p93
        $region70: #{tiny_vgg_forward.1} parent=63 // pred_check_branch
          %437 = sbr.rel (%p435) target = $region72
        $region71: #{tiny_vgg_forward.1} parent=63 // pred_region
          %438 = dma.done [#allocation12], 64
        $region72: #{tiny_vgg_forward.1} parent=63 // pred_fallthru
          _
        // Predicated region
        $region73: #{tiny_vgg_forward.1} parent=63 // pred_check
          %p439 = pneg %p114
        $region74: #{tiny_vgg_forward.1} parent=63 // pred_check_branch
          %441 = sbr.rel (%p439) target = $region76
        $region75: #{tiny_vgg_forward.1} parent=63 // pred_region
          %442 = dma.done [#allocation12], 101376
        $region76: #{tiny_vgg_forward.1} parent=63 // pred_fallthru
          _
        // Predicated region
        $region77: #{tiny_vgg_forward.1} parent=63 // pred_check
          %p443 = pneg %p135
        $region78: #{tiny_vgg_forward.1} parent=63 // pred_check_branch
          %445 = sbr.rel (%p443) target = $region80
        $region79: #{tiny_vgg_forward.1} parent=63 // pred_region
          %446 = dma.done [#allocation15], 64
        $region80: #{tiny_vgg_forward.1} parent=63 // pred_fallthru
          _
        // Predicated region
        $region81: #{tiny_vgg_forward.1} parent=63 // pred_check
          %p447 = pneg %p156
        $region82: #{tiny_vgg_forward.1} parent=63 // pred_check_branch
          %449 = sbr.rel (%p447) target = $region84
        $region83: #{tiny_vgg_forward.1} parent=63 // pred_region
          %450 = dma.done [#allocation15], 26112
        $region84: #{tiny_vgg_forward.1} parent=63 // pred_fallthru
          _
        // Predicated region
        $region85: #{tiny_vgg_forward.1} parent=63 // pred_check
          %p451 = pneg %p177
        $region86: #{tiny_vgg_forward.1} parent=63 // pred_check_branch
          %453 = sbr.rel (%p451) target = $region88
        $region87: #{tiny_vgg_forward.1} parent=63 // pred_region
          %454 = dma.done [#allocation18], 32
        $region88: #{tiny_vgg_forward.1} parent=63 // pred_fallthru
          _
        // Predicated region
        $region89: #{tiny_vgg_forward.1} parent=63 // pred_check
          %p455 = pneg %p198
        $region90: #{tiny_vgg_forward.1} parent=63 // pred_check_branch
          %457 = sbr.rel (%p455) target = $region92
        $region91: #{tiny_vgg_forward.1} parent=63 // pred_region
          %458 = dma.done [#allocation18], 26112
        $region92: #{tiny_vgg_forward.1} parent=63 // pred_fallthru
          _
        // Predicated region
        $region93: #{tiny_vgg_forward.1} parent=63 // pred_check
          %p459 = pneg %p219
        $region94: #{tiny_vgg_forward.1} parent=63 // pred_check_branch
          %461 = sbr.rel (%p459) target = $region96
        $region95: #{tiny_vgg_forward.1} parent=63 // pred_region
          %462 = dma.done [#allocation21], 32
        $region96: #{tiny_vgg_forward.1} parent=63 // pred_fallthru
          _
        // Predicated region
        $region97: #{tiny_vgg_forward.1} parent=63 // pred_check
          %p463 = pneg %p261
        $region98: #{tiny_vgg_forward.1} parent=63 // pred_check_branch
          %465 = sbr.rel (%p463) target = $region100
        $region99: #{tiny_vgg_forward.1} parent=63 // pred_region
          %466 = dma.done [#allocation21], 16
        $region100: #{tiny_vgg_forward.1} parent=63 // pred_fallthru
          _
        %p467 = scmp.lt.s32.totalorder %s30, 1
        %s468 = scalar_select %p467, %s30, 1
        %s469 = smul.addr %s468, 18
        %s470 = smul.addr %s469, 8
        %s471 = scalar_lea.vmem %s0, %s470
        %p472 = pneg %p51
        %p473 = pneg %p48
        %p474 = pneg %p72
        %p475 = pneg %p69
        %p476 = pneg %p93
        %p477 = pneg %p90
        %p478 = pneg %p114
        %p479 = pneg %p111
        %p480 = pneg %p135
        %p481 = pneg %p132
        %p482 = pneg %p156
        %p483 = pneg %p153
        %p484 = pneg %p177
        %p485 = pneg %p174
        %p486 = pneg %p198
        %p487 = pneg %p195
        %p488 = pneg %p219
        %p489 = pneg %p216
        %p490 = pneg %p240
        %p491 = pneg %p237
        %p492 = pneg %p261
        %p493 = pneg %p258
        %p494 = pneg %p287
        %p495 = pneg %p284
        %s496 = sand.u32 %s274, 1
        %s497 = scalar_lea.sflag [#allocation10], %s496
        %s498 = sand.u32 %s274, 1
        %s499 = scalar_lea.vmem [#allocation23], %s498
        %p500 = scmp.lt.s32.totalorder %s30, 1
        %s501 = scalar_select %p500, %s30, 1
        %s502 = smul.addr %s501, 18
        %s503 = smul.addr %s502, 8
        %s504 = scalar_lea.vmem %s0, %s503
        %505 = vst [vmem:[#allocation2] sm:$0xff] 0.0
        %506 = vst [vmem:[#allocation2 + $0x8] sm:$0xff] 0.0
        %507 = vst [vmem:[#allocation2 + $0x10] sm:$0xff] 0.0
        %508 = vst [vmem:[#allocation2 + $0x18] sm:$0xff] 0.0
        %vm509 = vcmask 130048
        %510 = vst.msk [vmem:[#allocation2 + $0x20] sm:$0xff] %vm509, 0.0
        %511 = vst [vmem:[#allocation2 + $0x28] sm:$0xff] 0.0
        %512 = vst [vmem:[#allocation2 + $0x30] sm:$0xff] 0.0
        %513 = vst [vmem:[#allocation2 + $0x38] sm:$0xff] 0.0
        %514 = vst [vmem:[#allocation2 + $0x40] sm:$0xff] 0.0
        %515 = vst.msk [vmem:[#allocation2 + $0x48] sm:$0xff] %vm509, 0.0
        %516 = vst [vmem:[#allocation2 + $0x50] sm:$0xff] 0.0
        %517 = vst [vmem:[#allocation2 + $0x58] sm:$0xff] 0.0
        %518 = vst [vmem:[#allocation2 + $0x60] sm:$0xff] 0.0
        %519 = vst [vmem:[#allocation2 + $0x68] sm:$0xff] 0.0
        %520 = vst.msk [vmem:[#allocation2 + $0x70] sm:$0xff] %vm509, 0.0
        %521 = vst [vmem:[#allocation2 + $0x78] sm:$0xff] 0.0
        %522 = vst [vmem:[#allocation2 + $0x80] sm:$0xff] 0.0
        %523 = vst [vmem:[#allocation2 + $0x88] sm:$0xff] 0.0
        %524 = vst [vmem:[#allocation2 + $0x90] sm:$0xff] 0.0
        %525 = vst.msk [vmem:[#allocation2 + $0x98] sm:$0xff] %vm509, 0.0
        %526 = vst [vmem:[#allocation2 + $0xa0] sm:$0xff] 0.0
        %527 = vst [vmem:[#allocation2 + $0xa8] sm:$0xff] 0.0
        %528 = vst [vmem:[#allocation2 + $0xb0] sm:$0xff] 0.0
        %529 = vst [vmem:[#allocation2 + $0xb8] sm:$0xff] 0.0
        %530 = vst.msk [vmem:[#allocation2 + $0xc0] sm:$0xff] %vm509, 0.0
        %531 = vst [vmem:[#allocation2 + $0xc8] sm:$0xff] 0.0
        %532 = vst [vmem:[#allocation2 + $0xd0] sm:$0xff] 0.0
        %533 = vst [vmem:[#allocation2 + $0xd8] sm:$0xff] 0.0
        %534 = vst [vmem:[#allocation2 + $0xe0] sm:$0xff] 0.0
        %535 = vst.msk [vmem:[#allocation2 + $0xe8] sm:$0xff] %vm509, 0.0
        %536 = vst [vmem:[#allocation2 + $0xf0] sm:$0xff] 0.0
        %537 = vst [vmem:[#allocation2 + $0xf8] sm:$0xff] 0.0
        %538 = vst [vmem:[#allocation2 + $0x100] sm:$0xff] 0.0
        %539 = vst [vmem:[#allocation2 + $0x108] sm:$0xff] 0.0
        %540 = vst.msk [vmem:[#allocation2 + $0x110] sm:$0xff] %vm509, 0.0
        %541 = vst [vmem:[#allocation2 + $0x118] sm:$0xff] 0.0
        %542 = vst [vmem:[#allocation2 + $0x120] sm:$0xff] 0.0
        %543 = vst [vmem:[#allocation2 + $0x128] sm:$0xff] 0.0
        %544 = vst [vmem:[#allocation2 + $0x130] sm:$0xff] 0.0
        %545 = vst.msk [vmem:[#allocation2 + $0x138] sm:$0xff] %vm509, 0.0
        %546 = vst [vmem:[#allocation2 + $0x140] sm:$0x3] 0.0
        %547 = vst [vmem:[#allocation2 + $0x148] sm:$0x3] 0.0
        %548 = vst [vmem:[#allocation2 + $0x150] sm:$0x3] 0.0
        %549 = vst [vmem:[#allocation2 + $0x158] sm:$0x3] 0.0
        %vm550 = vcmask 123904
        %551 = vst.msk [vmem:[#allocation2 + $0x160] sm:$0x3] %vm550, 0.0
        %552 = vst [vmem:[#allocation3] sm:$0xff] 0.0
        %553 = vst [vmem:[#allocation3 + $0x8] sm:$0xff] 0.0
        %554 = vst.msk [vmem:[#allocation3 + $0x10] sm:$0xff] %vm509, 0.0
        %555 = vst [vmem:[#allocation3 + $0x18] sm:$0xff] 0.0
        %556 = vst [vmem:[#allocation3 + $0x20] sm:$0xff] 0.0
        %557 = vst.msk [vmem:[#allocation3 + $0x28] sm:$0xff] %vm509, 0.0
        %558 = vst [vmem:[#allocation3 + $0x30] sm:$0xff] 0.0
        %559 = vst [vmem:[#allocation3 + $0x38] sm:$0xff] 0.0
        %560 = vst.msk [vmem:[#allocation3 + $0x40] sm:$0xff] %vm509, 0.0
        %561 = vst [vmem:[#allocation3 + $0x48] sm:$0xff] 0.0
        %562 = vst [vmem:[#allocation3 + $0x50] sm:$0xff] 0.0
        %563 = vst.msk [vmem:[#allocation3 + $0x58] sm:$0xff] %vm509, 0.0
        %564 = vst [vmem:[#allocation3 + $0x60] sm:$0x3] 0.0
        %565 = vst [vmem:[#allocation3 + $0x68] sm:$0x3] 0.0
        %566 = vst.msk [vmem:[#allocation3 + $0x70] sm:$0x3] %vm550, 0.0
        %567 = vst [vmem:[#allocation4] sm:$0xff] 0.0
        %568 = vst [vmem:[#allocation4 + $0x8] sm:$0xff] 0.0
        %569 = vst.msk [vmem:[#allocation4 + $0x10] sm:$0xff] %vm509, 0.0
        %570 = vst [vmem:[#allocation4 + $0x18] sm:$0xff] 0.0
        %571 = vst [vmem:[#allocation4 + $0x20] sm:$0xff] 0.0
        %572 = vst.msk [vmem:[#allocation4 + $0x28] sm:$0xff] %vm509, 0.0
        %573 = vst [vmem:[#allocation4 + $0x30] sm:$0xff] 0.0
        %574 = vst [vmem:[#allocation4 + $0x38] sm:$0xff] 0.0
        %575 = vst.msk [vmem:[#allocation4 + $0x40] sm:$0xff] %vm509, 0.0
        %576 = vst [vmem:[#allocation4 + $0x48] sm:$0xff] 0.0
        %577 = vst [vmem:[#allocation4 + $0x50] sm:$0xff] 0.0
        %578 = vst.msk [vmem:[#allocation4 + $0x58] sm:$0xff] %vm509, 0.0
        %579 = vst [vmem:[#allocation4 + $0x60] sm:$0x3] 0.0
        %580 = vst [vmem:[#allocation4 + $0x68] sm:$0x3] 0.0
        %581 = vst.msk [vmem:[#allocation4 + $0x70] sm:$0x3] %vm550, 0.0
        %v582 = vld [vmem:[%s504] sm:$0xff]
        %v583 = vld [vmem:[%s504 + $0x8] sm:$0xff]
        %v584 = vld [vmem:[%s504 + $0x10] sm:$0xff]
        %v585 = vld [vmem:[%s504 + $0x18] sm:$0xff]
        %v586 = vld [vmem:[%s504 + $0x20] sm:$0xff]
        %v587 = vld [vmem:[%s504 + $0x28] sm:$0xff]
        %v588 = vld [vmem:[%s504 + $0x30] sm:$0xff]
        %v589 = vld [vmem:[%s504 + $0x38] sm:$0xff]
        %v590 = vld [vmem:[%s504 + $0x40] sm:$0xff]
        %v591 = vld [vmem:[%s504 + $0x48] sm:$0xff]
        %v592 = vld [vmem:[%s504 + $0x50] sm:$0xff]
        %v593 = vld [vmem:[%s504 + $0x58] sm:$0xff]
        %v594 = vld [vmem:[%s504 + $0x60] sm:$0xff]
        %v595 = vld [vmem:[%s504 + $0x68] sm:$0xff]
        %v596 = vld [vmem:[%s504 + $0x70] sm:$0xff]
        %v597 = vld [vmem:[%s504 + $0x78] sm:$0xff]
        %v598 = vld [vmem:[#allocation8] sm:$0xff]
        %v599 = vld [vmem:[#allocation8 + $0x8] sm:$0xff]
        %v600 = vld [vmem:[#allocation8 + $0x10] sm:$0xff]
        %v601 = vld [vmem:[#allocation8 + $0x18] sm:$0xff]
        %v602 = vld [vmem:[#allocation8 + $0x20] sm:$0xff]
        %v603 = vld [vmem:[#allocation8 + $0x28] sm:$0xff]
        %v604 = vld [vmem:[#allocation8 + $0x30] sm:$0xff]
        %v605 = vld [vmem:[#allocation8 + $0x38] sm:$0xff]
        %v606 = vld [vmem:[#allocation8 + $0x40] sm:$0xff]
        %v607 = vld [vmem:[#allocation8 + $0x48] sm:$0xff]
        %v608 = vld [vmem:[#allocation8 + $0x50] sm:$0xff]
        %v609 = vld [vmem:[#allocation8 + $0x58] sm:$0xff]
        %v610 = vld [vmem:[#allocation8 + $0x60] sm:$0xff]
        %v611 = vld [vmem:[#allocation8 + $0x68] sm:$0xff]
        %v612 = vld [vmem:[#allocation8 + $0x70] sm:$0xff]
        %v613 = vld [vmem:[#allocation8 + $0x78] sm:$0xff]
        %v614 = vld [vmem:[#allocation8 + $0x80] sm:$0xff]
        %v615 = vld [vmem:[#allocation8 + $0x88] sm:$0xff]
        %v616 = vld [vmem:[#allocation8 + $0x90] sm:$0xff]
        %v617 = vld [vmem:[#allocation8 + $0x98] sm:$0xff]
        %v618 = vld [vmem:[#allocation8 + $0xa0] sm:$0xff]
        %v619 = vld [vmem:[#allocation8 + $0xa8] sm:$0xff]
        %v620 = vld [vmem:[#allocation8 + $0xb0] sm:$0xff]
        %v621 = vld [vmem:[#allocation8 + $0xb8] sm:$0xff]
        %v622 = vld [vmem:[#allocation8 + $0xc0] sm:$0xff]
        %v623 = vld [vmem:[#allocation8 + $0xc8] sm:$0xff]
        %v624 = vld [vmem:[#allocation8 + $0xd0] sm:$0xff]
        %v625 = vld [vmem:[#allocation8 + $0xd8] sm:$0xff]
        %v626 = vld [vmem:[#allocation8 + $0xe0] sm:$0xff]
        %v627 = vld [vmem:[#allocation8 + $0xe8] sm:$0xff]
        %v628 = vld [vmem:[#allocation8 + $0xf0] sm:$0xff]
        %v629 = vld [vmem:[#allocation8 + $0xf8] sm:$0xff]
        %v630 = vld [vmem:[#allocation8 + $0x100] sm:$0xff]
        %v631 = vld [vmem:[#allocation8 + $0x108] sm:$0xff]
        %v632 = vld [vmem:[#allocation8 + $0x110] sm:$0xff]
        %v633 = vld [vmem:[#allocation8 + $0x118] sm:$0xff]
        %v634 = vld [vmem:[#allocation8 + $0x120] sm:$0xff]
        %v635 = vld [vmem:[#allocation8 + $0x128] sm:$0xff]
        %v636 = vld [vmem:[#allocation8 + $0x130] sm:$0xff]
        %v637 = vld [vmem:[#allocation8 + $0x138] sm:$0xff]
        %v638 = vld [vmem:[#allocation8 + $0x140] sm:$0xff]
        %v639 = vld [vmem:[#allocation8 + $0x148] sm:$0xff]
        %v640 = vld [vmem:[#allocation8 + $0x150] sm:$0xff]
        %v641 = vld [vmem:[#allocation8 + $0x158] sm:$0xff]
        %v642 = vld [vmem:[#allocation8 + $0x160] sm:$0xff]
        %v643 = vld [vmem:[#allocation8 + $0x168] sm:$0xff]
        %v644 = vld [vmem:[#allocation8 + $0x170] sm:$0xff]
        %v645 = vld [vmem:[#allocation8 + $0x178] sm:$0xff]
        %v646 = vld [vmem:[#allocation8 + $0x180] sm:$0xff]
        %v647 = vld [vmem:[#allocation8 + $0x188] sm:$0xff]
        %v648 = vld [vmem:[#allocation8 + $0x190] sm:$0xff]
        %v649 = vld [vmem:[#allocation8 + $0x198] sm:$0xff]
        %v650 = vld [vmem:[#allocation8 + $0x1a0] sm:$0xff]
        %v651 = vld [vmem:[#allocation8 + $0x1a8] sm:$0xff]
        %v652 = vld [vmem:[#allocation8 + $0x1b0] sm:$0xff]
        %v653 = vld [vmem:[#allocation8 + $0x1b8] sm:$0xff]
        %v654 = vld [vmem:[#allocation8 + $0x1c0] sm:$0xff]
        %v655 = vld [vmem:[#allocation8 + $0x1c8] sm:$0xff]
        %v656 = vld [vmem:[#allocation8 + $0x1d0] sm:$0xff]
        %v657 = vld [vmem:[#allocation8 + $0x1d8] sm:$0xff]
        %v658 = vld [vmem:[#allocation8 + $0x1e0] sm:$0xff]
        %v659 = vld [vmem:[#allocation8 + $0x1e8] sm:$0xff]
        %v660 = vld [vmem:[#allocation8 + $0x1f0] sm:$0xff]
        %v661 = vld [vmem:[#allocation8 + $0x1f8] sm:$0xff]
        %v662 = vld [vmem:[#allocation8 + $0x200] sm:$0xff]
        %v663 = vld [vmem:[#allocation8 + $0x208] sm:$0xff]
        %v664 = vld [vmem:[#allocation8 + $0x210] sm:$0xff]
        %v665 = vld [vmem:[#allocation8 + $0x218] sm:$0xff]
        %v666 = vld [vmem:[#allocation8 + $0x220] sm:$0xff]
        %v667 = vld [vmem:[#allocation8 + $0x228] sm:$0xff]
        %v668 = vld [vmem:[#allocation8 + $0x230] sm:$0xff]
        %v669 = vld [vmem:[#allocation8 + $0x238] sm:$0xff]
        %v670 = vld [vmem:[#allocation8 + $0x240] sm:$0xff]
        %v671 = vld [vmem:[#allocation8 + $0x248] sm:$0xff]
        %v672 = vld [vmem:[#allocation8 + $0x250] sm:$0xff]
        %v673 = vld [vmem:[#allocation8 + $0x258] sm:$0xff]
        %v674 = vld [vmem:[#allocation8 + $0x260] sm:$0xff]
        %v675 = vld [vmem:[#allocation8 + $0x268] sm:$0xff]
        %v676 = vld [vmem:[#allocation8 + $0x270] sm:$0xff]
        %v677 = vld [vmem:[#allocation8 + $0x278] sm:$0xff]
        %v678 = vld [vmem:[#allocation8 + $0x280] sm:$0xff]
        %v679 = vld [vmem:[#allocation8 + $0x288] sm:$0xff]
        %v680 = vld [vmem:[#allocation8 + $0x290] sm:$0xff]
        %v681 = vld [vmem:[#allocation8 + $0x298] sm:$0xff]
        %v682 = vld [vmem:[#allocation8 + $0x2a0] sm:$0xff]
        %v683 = vld [vmem:[#allocation8 + $0x2a8] sm:$0xff]
        %v684 = vld [vmem:[#allocation8 + $0x2b0] sm:$0xff]
        %v685 = vld [vmem:[#allocation8 + $0x2b8] sm:$0xff]
        %v686 = vld [vmem:[#allocation8 + $0x2c0] sm:$0xff]
        %v687 = vld [vmem:[#allocation8 + $0x2c8] sm:$0xff]
        %v688 = vld [vmem:[#allocation8 + $0x2d0] sm:$0xff]
        %v689 = vld [vmem:[#allocation8 + $0x2d8] sm:$0xff]
        %v690 = vld [vmem:[#allocation8 + $0x2e0] sm:$0xff]
        %v691 = vld [vmem:[#allocation8 + $0x2e8] sm:$0xff]
        %v692 = vld [vmem:[#allocation8 + $0x2f0] sm:$0xff]
        %v693 = vld [vmem:[#allocation8 + $0x2f8] sm:$0xff]
        %v694 = vld [vmem:[#allocation8 + $0x300] sm:$0x3f]
        %v695 = vld [vmem:[#allocation8 + $0x308] sm:$0x3f]
        %v696 = vld [vmem:[#allocation8 + $0x310] sm:$0x3f]
        %v697 = vld [vmem:[#allocation8 + $0x318] sm:$0x3f]
        %v698 = vld [vmem:[%s504] sm:$0xfe]
        %v699 = vld [vmem:[%s504 + $0x8] sm:$0xfe]
        %v700 = vld [vmem:[%s504 + $0x80] sm:$0x1]
        %v701 = vld [vmem:[%s504 + $0x88] sm:$0x1]
        %s702 = scalar_lea.vmem [#allocation8], 800
        %v703 = vld [vmem:[%s702] sm:$0xff]
        %v704 = vld [vmem:[%s702 + $0x8] sm:$0xff]
        %v705 = vld [vmem:[%s702 + $0x10] sm:$0xff]
        %v706 = vld [vmem:[%s702 + $0x18] sm:$0xff]
        %v707 = vld [vmem:[%s702 + $0x20] sm:$0xff]
        %v708 = vld [vmem:[%s702 + $0x28] sm:$0xff]
        %v709 = vld [vmem:[%s702 + $0x30] sm:$0xff]
        %v710 = vld [vmem:[%s702 + $0x38] sm:$0xff]
        %v711 = vld [vmem:[%s702 + $0x40] sm:$0xff]
        %v712 = vld [vmem:[%s702 + $0x48] sm:$0xff]
        %v713 = vld [vmem:[%s702 + $0x50] sm:$0xff]
        %v714 = vld [vmem:[%s702 + $0x58] sm:$0xff]
        %v715 = vld [vmem:[%s702 + $0x60] sm:$0xff]
        %v716 = vld [vmem:[%s702 + $0x68] sm:$0xff]
        %v717 = vld [vmem:[%s702 + $0x70] sm:$0xff]
        %v718 = vld [vmem:[%s702 + $0x78] sm:$0xff]
        %v719 = vld [vmem:[%s702 + $0x80] sm:$0xff]
        %v720 = vld [vmem:[%s702 + $0x88] sm:$0xff]
        %v721 = vld [vmem:[%s702 + $0x90] sm:$0xff]
        %v722 = vld [vmem:[%s702 + $0x98] sm:$0xff]
        %v723 = vld [vmem:[%s702 + $0xa0] sm:$0xff]
        %v724 = vld [vmem:[%s702 + $0xa8] sm:$0xff]
        %v725 = vld [vmem:[%s702 + $0xb0] sm:$0xff]
        %v726 = vld [vmem:[%s702 + $0xb8] sm:$0xff]
        %v727 = vld [vmem:[%s702 + $0xc0] sm:$0xff]
        %v728 = vld [vmem:[%s702 + $0xc8] sm:$0xff]
        %v729 = vld [vmem:[%s702 + $0xd0] sm:$0xff]
        %v730 = vld [vmem:[%s702 + $0xd8] sm:$0xff]
        %v731 = vld [vmem:[%s702 + $0xe0] sm:$0xff]
        %v732 = vld [vmem:[%s702 + $0xe8] sm:$0xff]
        %v733 = vld [vmem:[%s702 + $0xf0] sm:$0xff]
        %v734 = vld [vmem:[%s702 + $0xf8] sm:$0xff]
        %v735 = vld [vmem:[%s702 + $0x100] sm:$0xff]
        %v736 = vld [vmem:[%s702 + $0x108] sm:$0xff]
        %v737 = vld [vmem:[%s702 + $0x110] sm:$0xff]
        %v738 = vld [vmem:[%s702 + $0x118] sm:$0xff]
        %v739 = vld [vmem:[%s702 + $0x120] sm:$0xff]
        %v740 = vld [vmem:[%s702 + $0x128] sm:$0xff]
        %v741 = vld [vmem:[%s702 + $0x130] sm:$0xff]
        %v742 = vld [vmem:[%s702 + $0x138] sm:$0xff]
        %v743 = vld [vmem:[%s702 + $0x140] sm:$0xff]
        %v744 = vld [vmem:[%s702 + $0x148] sm:$0xff]
        %v745 = vld [vmem:[%s702 + $0x150] sm:$0xff]
        %v746 = vld [vmem:[%s702 + $0x158] sm:$0xff]
        %v747 = vld [vmem:[%s702 + $0x160] sm:$0xff]
        %v748 = vld [vmem:[%s702 + $0x168] sm:$0xff]
        %v749 = vld [vmem:[%s702 + $0x170] sm:$0xff]
        %v750 = vld [vmem:[%s702 + $0x178] sm:$0xff]
        %v751 = vld [vmem:[%s702 + $0x180] sm:$0xff]
        %v752 = vld [vmem:[%s702 + $0x188] sm:$0xff]
        %v753 = vld [vmem:[%s702 + $0x190] sm:$0xff]
        %v754 = vld [vmem:[%s702 + $0x198] sm:$0xff]
        %v755 = vld [vmem:[%s702 + $0x1a0] sm:$0xff]
        %v756 = vld [vmem:[%s702 + $0x1a8] sm:$0xff]
        %v757 = vld [vmem:[%s702 + $0x1b0] sm:$0xff]
        %v758 = vld [vmem:[%s702 + $0x1b8] sm:$0xff]
        %v759 = vld [vmem:[%s702 + $0x1c0] sm:$0xff]
        %v760 = vld [vmem:[%s702 + $0x1c8] sm:$0xff]
        %v761 = vld [vmem:[%s702 + $0x1d0] sm:$0xff]
        %v762 = vld [vmem:[%s702 + $0x1d8] sm:$0xff]
        %v763 = vld [vmem:[%s702 + $0x1e0] sm:$0xff]
        %v764 = vld [vmem:[%s702 + $0x1e8] sm:$0xff]
        %v765 = vld [vmem:[%s702 + $0x1f0] sm:$0xff]
        %v766 = vld [vmem:[%s702 + $0x1f8] sm:$0xff]
        %v767 = vld [vmem:[%s702 + $0x200] sm:$0xff]
        %v768 = vld [vmem:[%s702 + $0x208] sm:$0xff]
        %v769 = vld [vmem:[%s702 + $0x210] sm:$0xff]
        %v770 = vld [vmem:[%s702 + $0x218] sm:$0xff]
        %v771 = vld [vmem:[%s702 + $0x220] sm:$0xff]
        %v772 = vld [vmem:[%s702 + $0x228] sm:$0xff]
        %v773 = vld [vmem:[%s702 + $0x230] sm:$0xff]
        %v774 = vld [vmem:[%s702 + $0x238] sm:$0xff]
        %v775 = vld [vmem:[%s702 + $0x240] sm:$0xff]
        %v776 = vld [vmem:[%s702 + $0x248] sm:$0xff]
        %v777 = vld [vmem:[%s702 + $0x250] sm:$0xff]
        %v778 = vld [vmem:[%s702 + $0x258] sm:$0xff]
        %v779 = vld [vmem:[%s702 + $0x260] sm:$0xff]
        %v780 = vld [vmem:[%s702 + $0x268] sm:$0xff]
        %v781 = vld [vmem:[%s702 + $0x270] sm:$0xff]
        %v782 = vld [vmem:[%s702 + $0x278] sm:$0xff]
        %v783 = vld [vmem:[%s702 + $0x280] sm:$0xff]
        %v784 = vld [vmem:[%s702 + $0x288] sm:$0xff]
        %v785 = vld [vmem:[%s702 + $0x290] sm:$0xff]
        %v786 = vld [vmem:[%s702 + $0x298] sm:$0xff]
        %v787 = vld [vmem:[%s702 + $0x2a0] sm:$0xff]
        %v788 = vld [vmem:[%s702 + $0x2a8] sm:$0xff]
        %v789 = vld [vmem:[%s702 + $0x2b0] sm:$0xff]
        %v790 = vld [vmem:[%s702 + $0x2b8] sm:$0xff]
        %v791 = vld [vmem:[%s702 + $0x2c0] sm:$0xff]
        %v792 = vld [vmem:[%s702 + $0x2c8] sm:$0xff]
        %v793 = vld [vmem:[%s702 + $0x2d0] sm:$0xff]
        %v794 = vld [vmem:[%s702 + $0x2d8] sm:$0xff]
        %v795 = vld [vmem:[%s702 + $0x2e0] sm:$0xff]
        %v796 = vld [vmem:[%s702 + $0x2e8] sm:$0xff]
        %v797 = vld [vmem:[%s702 + $0x2f0] sm:$0xff]
        %v798 = vld [vmem:[%s702 + $0x2f8] sm:$0xff]
        %v799 = vld [vmem:[%s702 + $0x300] sm:$0x3f]
        %v800 = vld [vmem:[%s702 + $0x308] sm:$0x3f]
        %v801 = vld [vmem:[%s702 + $0x310] sm:$0x3f]
        %v802 = vld [vmem:[%s702 + $0x318] sm:$0x3f]
        %vm821 = vcmask 1046528
        %v822 = vrot.slane %v698, 1
        %v823 = vrot.slane %v584, 1
        %v824 = vsel %vm821, %v822, %v823
        %v825 = vrot.slane %v699, 1
        %v826 = vrot.slane %v585, 1
        %v827 = vsel %vm821, %v825, %v826
        %v828 = vrot.slane %v586, 1
        %v829 = vsel %vm821, %v823, %v828
        %v830 = vrot.slane %v587, 1
        %v831 = vsel %vm821, %v826, %v830
        %v832 = vrot.slane %v588, 1
        %v833 = vsel %vm821, %v828, %v832
        %v834 = vrot.slane %v589, 1
        %v835 = vsel %vm821, %v830, %v834
        %v836 = vrot.slane %v590, 1
        %v837 = vsel %vm821, %v832, %v836
        %v838 = vrot.slane %v591, 1
        %v839 = vsel %vm821, %v834, %v838
        %v840 = vrot.slane %v592, 1
        %v841 = vsel %vm821, %v836, %v840
        %v842 = vrot.slane %v593, 1
        %v843 = vsel %vm821, %v838, %v842
        %v844 = vrot.slane %v594, 1
        %v845 = vsel %vm821, %v840, %v844
        %v846 = vrot.slane %v595, 1
        %v847 = vsel %vm821, %v842, %v846
        %v848 = vrot.slane %v596, 1
        %v849 = vsel %vm821, %v844, %v848
        %v850 = vrot.slane %v597, 1
        %v851 = vsel %vm821, %v846, %v850
        %v852 = vrot.slane %v700, 1
        %v853 = vsel %vm821, %v848, %v852
        %v854 = vrot.slane %v701, 1
        %v855 = vsel %vm821, %v850, %v854
        %vm864 = vcmask 572416
        %v865 = vsel %vm864, %v827, 0
        %v867 = vsel %vm864, %v831, 0
        %v869 = vsel %vm864, %v835, 0
        %v871 = vsel %vm864, %v839, 0
        %v873 = vsel %vm864, %v843, 0
        %v875 = vsel %vm864, %v847, 0
        %v877 = vsel %vm864, %v851, 0
        %v879 = vsel %vm864, %v855, 0
        %vm881 = vcmask 1045504
        %v883 = vsel %vm881, %v799, 0
        %v886 = vsel %vm881, %v800, 0
        %v889 = vsel %vm881, %v801, 0
        %v892 = vsel %vm881, %v802, 0
        %894 = vmatprep.subr.mxu0 %v704
        %895 = vmatpush1.msra.mxu0 %v703
        %896 = vmatprep.subr.mxu0 %v708
        %897 = vmatpush1.msra.mxu0 %v707
        %898 = vmatprep.subr.mxu0 %v712
        %899 = vmatpush1.msra.mxu0 %v711
        %900 = vmatprep.subr.mxu0 %v716
        %901 = vmatpush1.msra.mxu0 %v715
        %902 = vmatprep.subr.mxu0 %v720
        %903 = vmatpush1.msra.mxu0 %v719
        %904 = vmatprep.subr.mxu0 %v724
        %905 = vmatpush1.msra.mxu0 %v723
        %906 = vmatprep.subr.mxu0 %v728
        %907 = vmatpush1.msra.mxu0 %v727
        %908 = vmatprep.subr.mxu0 %v732
        %909 = vmatpush1.msra.mxu0 %v731
        %910 = vmatprep.subr.mxu0 %v736
        %911 = vmatpush1.msra.mxu0 %v735
        %912 = vmatprep.subr.mxu0 %v740
        %913 = vmatpush1.msra.mxu0 %v739
        %914 = vmatprep.subr.mxu0 %v744
        %915 = vmatpush1.msra.mxu0 %v743
        %916 = vmatprep.subr.mxu0 %v748
        %917 = vmatpush1.msra.mxu0 %v747
        %918 = vmatprep.subr.mxu0 %v752
        %919 = vmatpush1.msra.mxu0 %v751
        %920 = vmatprep.subr.mxu0 %v756
        %921 = vmatpush1.msra.mxu0 %v755
        %922 = vmatprep.subr.mxu0 %v760
        %923 = vmatpush1.msra.mxu0 %v759
        %924 = vmatprep.subr.mxu0 %v764
        %925 = vmatpush1.msra.mxu0 %v763
        %926 = vmatprep.subr.mxu0 %v768
        %927 = vmatpush1.msra.mxu0 %v767
        %928 = vmatprep.subr.mxu0 %v772
        %929 = vmatpush1.msra.mxu0 %v771
        %930 = vmatprep.subr.mxu0 %v776
        %931 = vmatpush1.msra.mxu0 %v775
        %932 = vmatprep.subr.mxu0 %v780
        %933 = vmatpush1.msra.mxu0 %v779
        %934 = vmatprep.subr.mxu0 %v784
        %935 = vmatpush1.msra.mxu0 %v783
        %936 = vmatprep.subr.mxu0 %v788
        %937 = vmatpush1.msra.mxu0 %v787
        %938 = vmatprep.subr.mxu0 %v792
        %939 = vmatpush1.msra.mxu0 %v791
        %940 = vmatprep.subr.mxu0 %v796
        %941 = vmatpush1.msra.mxu0 %v795
        %942 = vmatprep.subr.mxu0 %v886
        %943 = vmatpush1.msra.mxu0 %v883
        %944 = vmatprep.subr.mxu0 0.0
        %945 = vmatpush1.msra.mxu0 0.0
        %946 = vmatprep.subr.mxu0 0.0
        %947 = vmatpush1.msra.mxu0 0.0
        %948 = vmatprep.subr.mxu0 0.0
        %949 = vmatpush1.msra.mxu0 0.0
        %950 = vmatprep.subr.mxu0 0.0
        %951 = vmatpush1.msra.mxu0 0.0
        %952 = vmatprep.subr.mxu0 0.0
        %953 = vmatpush1.msra.mxu0 0.0
        %954 = vmatprep.subr.mxu0 0.0
        %955 = vmatpush1.msra.mxu0 0.0
        %956 = vmatprep.subr.mxu0 0.0
        %957 = vmatpush1.msra.mxu0 0.0
        %958 = vmatprep.mubr.f32.mxu0 %v865
        %959 = vmatmul.mubr.f32.gmra.mrb[0].mxu0 %v824
        %v960 = vpop.f32.mrb[0].mxu0
        %v961 = vadd.f32 0.0, %v960
        %v962 = vpop.f32.mrb[0].mxu0
        %v963 = vadd.f32 0.0, %v962
        %964 = vmatprep.mubr.f32.mxu0 %v867
        %965 = vmatmul.mubr.f32.gmra.mrb[0].mxu0 %v829
        %v966 = vpop.f32.mrb[0].mxu0
        %v967 = vadd.f32 0.0, %v966
        %v968 = vpop.f32.mrb[0].mxu0
        %v969 = vadd.f32 0.0, %v968
        %970 = vmatprep.mubr.f32.mxu0 %v869
        %971 = vmatmul.mubr.f32.gmra.mrb[0].mxu0 %v833
        %v972 = vpop.f32.mrb[0].mxu0
        %v973 = vadd.f32 0.0, %v972
        %v974 = vpop.f32.mrb[0].mxu0
        %v975 = vadd.f32 0.0, %v974
        %976 = vmatprep.mubr.f32.mxu0 %v871
        %977 = vmatmul.mubr.f32.gmra.mrb[0].mxu0 %v837
        %v978 = vpop.f32.mrb[0].mxu0
        %v979 = vadd.f32 0.0, %v978
        %v980 = vpop.f32.mrb[0].mxu0
        %v981 = vadd.f32 0.0, %v980
        %982 = vmatprep.mubr.f32.mxu0 %v873
        %983 = vmatmul.mubr.f32.gmra.mrb[0].mxu0 %v841
        %v984 = vpop.f32.mrb[0].mxu0
        %v985 = vadd.f32 0.0, %v984
        %v986 = vpop.f32.mrb[0].mxu0
        %v987 = vadd.f32 0.0, %v986
        %988 = vmatprep.mubr.f32.mxu0 %v875
        %989 = vmatmul.mubr.f32.gmra.mrb[0].mxu0 %v845
        %v990 = vpop.f32.mrb[0].mxu0
        %v991 = vadd.f32 0.0, %v990
        %v992 = vpop.f32.mrb[0].mxu0
        %v993 = vadd.f32 0.0, %v992
        %994 = vmatprep.mubr.f32.mxu0 %v877
        %995 = vmatmul.mubr.f32.gmra.mrb[0].mxu0 %v849
        %v996 = vpop.f32.mrb[0].mxu0
        %v997 = vadd.f32 0.0, %v996
        %v998 = vpop.f32.mrb[0].mxu0
        %v999 = vadd.f32 0.0, %v998
        %1000 = vmatprep.mubr.f32.mxu0 %v879
        %1001 = vmatmul.mubr.f32.gmra.mrb[0].mxu0 %v853
        %v1002 = vpop.f32.mrb[0].mxu0
        %v1003 = vadd.f32 0.0, %v1002
        %v1004 = vpop.f32.mrb[0].mxu0
        %v1005 = vadd.f32 0.0, %v1004
        %1006 = vdwg.mxu0
        %1007 = vmatprep.subr.mxu0 %v706
        %1008 = vmatpush1.msra.mxu0 %v705
        %1009 = vmatprep.subr.mxu0 %v710
        %1010 = vmatpush1.msra.mxu0 %v709
        %1011 = vmatprep.subr.mxu0 %v714
        %1012 = vmatpush1.msra.mxu0 %v713
        %1013 = vmatprep.subr.mxu0 %v718
        %1014 = vmatpush1.msra.mxu0 %v717
        %1015 = vmatprep.subr.mxu0 %v722
        %1016 = vmatpush1.msra.mxu0 %v721
        %1017 = vmatprep.subr.mxu0 %v726
        %1018 = vmatpush1.msra.mxu0 %v725
        %1019 = vmatprep.subr.mxu0 %v730
        %1020 = vmatpush1.msra.mxu0 %v729
        %1021 = vmatprep.subr.mxu0 %v734
        %1022 = vmatpush1.msra.mxu0 %v733
        %1023 = vmatprep.subr.mxu0 %v738
        %1024 = vmatpush1.msra.mxu0 %v737
        %1025 = vmatprep.subr.mxu0 %v742
        %1026 = vmatpush1.msra.mxu0 %v741
        %1027 = vmatprep.subr.mxu0 %v746
        %1028 = vmatpush1.msra.mxu0 %v745
        %1029 = vmatprep.subr.mxu0 %v750
        %1030 = vmatpush1.msra.mxu0 %v749
        %1031 = vmatprep.subr.mxu0 %v754
        %1032 = vmatpush1.msra.mxu0 %v753
        %1033 = vmatprep.subr.mxu0 %v758
        %1034 = vmatpush1.msra.mxu0 %v757
        %1035 = vmatprep.subr.mxu0 %v762
        %1036 = vmatpush1.msra.mxu0 %v761
        %1037 = vmatprep.subr.mxu0 %v766
        %1038 = vmatpush1.msra.mxu0 %v765
        %1039 = vmatprep.subr.mxu0 %v770
        %1040 = vmatpush1.msra.mxu0 %v769
        %1041 = vmatprep.subr.mxu0 %v774
        %1042 = vmatpush1.msra.mxu0 %v773
        %1043 = vmatprep.subr.mxu0 %v778
        %1044 = vmatpush1.msra.mxu0 %v777
        %1045 = vmatprep.subr.mxu0 %v782
        %1046 = vmatpush1.msra.mxu0 %v781
        %1047 = vmatprep.subr.mxu0 %v786
        %1048 = vmatpush1.msra.mxu0 %v785
        %1049 = vmatprep.subr.mxu0 %v790
        %1050 = vmatpush1.msra.mxu0 %v789
        %1051 = vmatprep.subr.mxu0 %v794
        %1052 = vmatpush1.msra.mxu0 %v793
        %1053 = vmatprep.subr.mxu0 %v798
        %1054 = vmatpush1.msra.mxu0 %v797
        %1055 = vmatprep.subr.mxu0 %v892
        %1056 = vmatpush1.msra.mxu0 %v889
        %1057 = vmatprep.subr.mxu0 0.0
        %1058 = vmatpush1.msra.mxu0 0.0
        %1059 = vmatprep.subr.mxu0 0.0
        %1060 = vmatpush1.msra.mxu0 0.0
        %1061 = vmatprep.subr.mxu0 0.0
        %1062 = vmatpush1.msra.mxu0 0.0
        %1063 = vmatprep.subr.mxu0 0.0
        %1064 = vmatpush1.msra.mxu0 0.0
        %1065 = vmatprep.subr.mxu0 0.0
        %1066 = vmatpush1.msra.mxu0 0.0
        %1067 = vmatprep.subr.mxu0 0.0
        %1068 = vmatpush1.msra.mxu0 0.0
        %1069 = vmatprep.subr.mxu0 0.0
        %1070 = vmatpush1.msra.mxu0 0.0
        %1071 = vmatprep.mubr.f32.mxu0 %v865
        %1072 = vmatmul.mubr.f32.gmra.mrb[0].mxu0 %v824
        %v1073 = vpop.f32.mrb[0].mxu0
        %v1074 = vadd.f32 0.0, %v1073
        %v1075 = vpop.f32.mrb[0].mxu0
        %v1076 = vadd.f32 0.0, %v1075
        %1077 = vmatprep.mubr.f32.mxu0 %v867
        %1078 = vmatmul.mubr.f32.gmra.mrb[0].mxu0 %v829
        %v1079 = vpop.f32.mrb[0].mxu0
        %v1080 = vadd.f32 0.0, %v1079
        %v1081 = vpop.f32.mrb[0].mxu0
        %v1082 = vadd.f32 0.0, %v1081
        %1083 = vmatprep.mubr.f32.mxu0 %v869
        %1084 = vmatmul.mubr.f32.gmra.mrb[0].mxu0 %v833
        %v1085 = vpop.f32.mrb[0].mxu0
        %v1086 = vadd.f32 0.0, %v1085
        %v1087 = vpop.f32.mrb[0].mxu0
        %v1088 = vadd.f32 0.0, %v1087
        %1089 = vmatprep.mubr.f32.mxu0 %v871
        %1090 = vmatmul.mubr.f32.gmra.mrb[0].mxu0 %v837
        %v1091 = vpop.f32.mrb[0].mxu0
        %v1092 = vadd.f32 0.0, %v1091
        %v1093 = vpop.f32.mrb[0].mxu0
        %v1094 = vadd.f32 0.0, %v1093
        %1095 = vmatprep.mubr.f32.mxu0 %v873
        %1096 = vmatmul.mubr.f32.gmra.mrb[0].mxu0 %v841
        %v1097 = vpop.f32.mrb[0].mxu0
        %v1098 = vadd.f32 0.0, %v1097
        %v1099 = vpop.f32.mrb[0].mxu0
        %v1100 = vadd.f32 0.0, %v1099
        %1101 = vmatprep.mubr.f32.mxu0 %v875
        %1102 = vmatmul.mubr.f32.gmra.mrb[0].mxu0 %v845
        %v1103 = vpop.f32.mrb[0].mxu0
        %v1104 = vadd.f32 0.0, %v1103
        %v1105 = vpop.f32.mrb[0].mxu0
        %v1106 = vadd.f32 0.0, %v1105
        %1107 = vmatprep.mubr.f32.mxu0 %v877
        %1108 = vmatmul.mubr.f32.gmra.mrb[0].mxu0 %v849
        %v1109 = vpop.f32.mrb[0].mxu0
        %v1110 = vadd.f32 0.0, %v1109
        %v1111 = vpop.f32.mrb[0].mxu0
        %v1112 = vadd.f32 0.0, %v1111
        %1113 = vmatprep.mubr.f32.mxu0 %v879
        %1114 = vmatmul.mubr.f32.gmra.mrb[0].mxu0 %v853
        %v1115 = vpop.f32.mrb[0].mxu0
        %v1116 = vadd.f32 0.0, %v1115
        %v1117 = vpop.f32.mrb[0].mxu0
        %v1118 = vadd.f32 0.0, %v1117
        %1119 = vdwg.mxu0
        %v1121 = vsel %vm864, %v583, 0
        %v1123 = vsel %vm864, %v585, 0
        %v1125 = vsel %vm864, %v587, 0
        %v1127 = vsel %vm864, %v589, 0
        %v1129 = vsel %vm864, %v591, 0
        %v1131 = vsel %vm864, %v593, 0
        %v1133 = vsel %vm864, %v595, 0
        %v1135 = vsel %vm864, %v597, 0
        %v1138 = vsel %vm881, %v694, 0
        %v1141 = vsel %vm881, %v695, 0
        %v1144 = vsel %vm881, %v696, 0
        %v1147 = vsel %vm881, %v697, 0
        %1149 = vmatprep.subr.mxu0 %v599
        %1150 = vmatpush1.msra.mxu0 %v598
        %1151 = vmatprep.subr.mxu0 %v603
        %1152 = vmatpush1.msra.mxu0 %v602
        %1153 = vmatprep.subr.mxu0 %v607
        %1154 = vmatpush1.msra.mxu0 %v606
        %1155 = vmatprep.subr.mxu0 %v611
        %1156 = vmatpush1.msra.mxu0 %v610
        %1157 = vmatprep.subr.mxu0 %v615
        %1158 = vmatpush1.msra.mxu0 %v614
        %1159 = vmatprep.subr.mxu0 %v619
        %1160 = vmatpush1.msra.mxu0 %v618
        %1161 = vmatprep.subr.mxu0 %v623
        %1162 = vmatpush1.msra.mxu0 %v622
        %1163 = vmatprep.subr.mxu0 %v627
        %1164 = vmatpush1.msra.mxu0 %v626
        %1165 = vmatprep.subr.mxu0 %v631
        %1166 = vmatpush1.msra.mxu0 %v630
        %1167 = vmatprep.subr.mxu0 %v635
        %1168 = vmatpush1.msra.mxu0 %v634
        %1169 = vmatprep.subr.mxu0 %v639
        %1170 = vmatpush1.msra.mxu0 %v638
        %1171 = vmatprep.subr.mxu0 %v643
        %1172 = vmatpush1.msra.mxu0 %v642
        %1173 = vmatprep.subr.mxu0 %v647
        %1174 = vmatpush1.msra.mxu0 %v646
        %1175 = vmatprep.subr.mxu0 %v651
        %1176 = vmatpush1.msra.mxu0 %v650
        %1177 = vmatprep.subr.mxu0 %v655
        %1178 = vmatpush1.msra.mxu0 %v654
        %1179 = vmatprep.subr.mxu0 %v659
        %1180 = vmatpush1.msra.mxu0 %v658
        %1181 = vmatprep.subr.mxu0 %v663
        %1182 = vmatpush1.msra.mxu0 %v662
        %1183 = vmatprep.subr.mxu0 %v667
        %1184 = vmatpush1.msra.mxu0 %v666
        %1185 = vmatprep.subr.mxu0 %v671
        %1186 = vmatpush1.msra.mxu0 %v670
        %1187 = vmatprep.subr.mxu0 %v675
        %1188 = vmatpush1.msra.mxu0 %v674
        %1189 = vmatprep.subr.mxu0 %v679
        %1190 = vmatpush1.msra.mxu0 %v678
        %1191 = vmatprep.subr.mxu0 %v683
        %1192 = vmatpush1.msra.mxu0 %v682
        %1193 = vmatprep.subr.mxu0 %v687
        %1194 = vmatpush1.msra.mxu0 %v686
        %1195 = vmatprep.subr.mxu0 %v691
        %1196 = vmatpush1.msra.mxu0 %v690
        %1197 = vmatprep.subr.mxu0 %v1141
        %1198 = vmatpush1.msra.mxu0 %v1138
        %1199 = vmatprep.subr.mxu0 0.0
        %1200 = vmatpush1.msra.mxu0 0.0
        %1201 = vmatprep.subr.mxu0 0.0
        %1202 = vmatpush1.msra.mxu0 0.0
        %1203 = vmatprep.subr.mxu0 0.0
        %1204 = vmatpush1.msra.mxu0 0.0
        %1205 = vmatprep.subr.mxu0 0.0
        %1206 = vmatpush1.msra.mxu0 0.0
        %1207 = vmatprep.subr.mxu0 0.0
        %1208 = vmatpush1.msra.mxu0 0.0
        %1209 = vmatprep.subr.mxu0 0.0
        %1210 = vmatpush1.msra.mxu0 0.0
        %1211 = vmatprep.subr.mxu0 0.0
        %1212 = vmatpush1.msra.mxu0 0.0
        %1213 = vmatprep.mubr.f32.mxu0 %v1121
        %1214 = vmatmul.mubr.f32.gmra.mrb[0].mxu0 %v582
        %v1215 = vpop.f32.mrb[0].mxu0
        %v1216 = vadd.f32 %v961, %v1215
        %v1217 = vpop.f32.mrb[0].mxu0
        %v1218 = vadd.f32 %v963, %v1217
        %1219 = vmatprep.mubr.f32.mxu0 %v1123
        %1220 = vmatmul.mubr.f32.gmra.mrb[0].mxu0 %v584
        %v1221 = vpop.f32.mrb[0].mxu0
        %v1222 = vadd.f32 %v967, %v1221
        %v1223 = vpop.f32.mrb[0].mxu0
        %v1224 = vadd.f32 %v969, %v1223
        %1225 = vmatprep.mubr.f32.mxu0 %v1125
        %1226 = vmatmul.mubr.f32.gmra.mrb[0].mxu0 %v586
        %v1227 = vpop.f32.mrb[0].mxu0
        %v1228 = vadd.f32 %v973, %v1227
        %v1229 = vpop.f32.mrb[0].mxu0
        %v1230 = vadd.f32 %v975, %v1229
        %1231 = vmatprep.mubr.f32.mxu0 %v1127
        %1232 = vmatmul.mubr.f32.gmra.mrb[0].mxu0 %v588
        %v1233 = vpop.f32.mrb[0].mxu0
        %v1234 = vadd.f32 %v979, %v1233
        %v1235 = vpop.f32.mrb[0].mxu0
        %v1236 = vadd.f32 %v981, %v1235
        %1237 = vmatprep.mubr.f32.mxu0 %v1129
        %1238 = vmatmul.mubr.f32.gmra.mrb[0].mxu0 %v590
        %v1239 = vpop.f32.mrb[0].mxu0
        %v1240 = vadd.f32 %v985, %v1239
        %v1241 = vpop.f32.mrb[0].mxu0
        %v1242 = vadd.f32 %v987, %v1241
        %1243 = vmatprep.mubr.f32.mxu0 %v1131
        %1244 = vmatmul.mubr.f32.gmra.mrb[0].mxu0 %v592
        %v1245 = vpop.f32.mrb[0].mxu0
        %v1246 = vadd.f32 %v991, %v1245
        %v1247 = vpop.f32.mrb[0].mxu0
        %v1248 = vadd.f32 %v993, %v1247
        %1249 = vmatprep.mubr.f32.mxu0 %v1133
        %1250 = vmatmul.mubr.f32.gmra.mrb[0].mxu0 %v594
        %v1251 = vpop.f32.mrb[0].mxu0
        %v1252 = vadd.f32 %v997, %v1251
        %v1253 = vpop.f32.mrb[0].mxu0
        %v1254 = vadd.f32 %v999, %v1253
        %1255 = vmatprep.mubr.f32.mxu0 %v1135
        %1256 = vmatmul.mubr.f32.gmra.mrb[0].mxu0 %v596
        %v1257 = vpop.f32.mrb[0].mxu0
        %v1258 = vadd.f32 %v1003, %v1257
        %v1259 = vpop.f32.mrb[0].mxu0
        %v1260 = vadd.f32 %v1005, %v1259
        %1261 = vdwg.mxu0
        %1262 = vmatprep.subr.mxu0 %v601
        %1263 = vmatpush1.msra.mxu0 %v600
        %1264 = vmatprep.subr.mxu0 %v605
        %1265 = vmatpush1.msra.mxu0 %v604
        %1266 = vmatprep.subr.mxu0 %v609
        %1267 = vmatpush1.msra.mxu0 %v608
        %1268 = vmatprep.subr.mxu0 %v613
        %1269 = vmatpush1.msra.mxu0 %v612
        %1270 = vmatprep.subr.mxu0 %v617
        %1271 = vmatpush1.msra.mxu0 %v616
        %1272 = vmatprep.subr.mxu0 %v621
        %1273 = vmatpush1.msra.mxu0 %v620
        %1274 = vmatprep.subr.mxu0 %v625
        %1275 = vmatpush1.msra.mxu0 %v624
        %1276 = vmatprep.subr.mxu0 %v629
        %1277 = vmatpush1.msra.mxu0 %v628
        %1278 = vmatprep.subr.mxu0 %v633
        %1279 = vmatpush1.msra.mxu0 %v632
        %1280 = vmatprep.subr.mxu0 %v637
        %1281 = vmatpush1.msra.mxu0 %v636
        %1282 = vmatprep.subr.mxu0 %v641
        %1283 = vmatpush1.msra.mxu0 %v640
        %1284 = vmatprep.subr.mxu0 %v645
        %1285 = vmatpush1.msra.mxu0 %v644
        %1286 = vmatprep.subr.mxu0 %v649
        %1287 = vmatpush1.msra.mxu0 %v648
        %1288 = vmatprep.subr.mxu0 %v653
        %1289 = vmatpush1.msra.mxu0 %v652
        %1290 = vmatprep.subr.mxu0 %v657
        %1291 = vmatpush1.msra.mxu0 %v656
        %1292 = vmatprep.subr.mxu0 %v661
        %1293 = vmatpush1.msra.mxu0 %v660
        %1294 = vmatprep.subr.mxu0 %v665
        %1295 = vmatpush1.msra.mxu0 %v664
        %1296 = vmatprep.subr.mxu0 %v669
        %1297 = vmatpush1.msra.mxu0 %v668
        %1298 = vmatprep.subr.mxu0 %v673
        %1299 = vmatpush1.msra.mxu0 %v672
        %1300 = vmatprep.subr.mxu0 %v677
        %1301 = vmatpush1.msra.mxu0 %v676
        %1302 = vmatprep.subr.mxu0 %v681
        %1303 = vmatpush1.msra.mxu0 %v680
        %1304 = vmatprep.subr.mxu0 %v685
        %1305 = vmatpush1.msra.mxu0 %v684
        %1306 = vmatprep.subr.mxu0 %v689
        %1307 = vmatpush1.msra.mxu0 %v688
        %1308 = vmatprep.subr.mxu0 %v693
        %1309 = vmatpush1.msra.mxu0 %v692
        %1310 = vmatprep.subr.mxu0 %v1147
        %1311 = vmatpush1.msra.mxu0 %v1144
        %1312 = vmatprep.subr.mxu0 0.0
        %1313 = vmatpush1.msra.mxu0 0.0
        %1314 = vmatprep.subr.mxu0 0.0
        %1315 = vmatpush1.msra.mxu0 0.0
        %1316 = vmatprep.subr.mxu0 0.0
        %1317 = vmatpush1.msra.mxu0 0.0
        %1318 = vmatprep.subr.mxu0 0.0
        %1319 = vmatpush1.msra.mxu0 0.0
        %1320 = vmatprep.subr.mxu0 0.0
        %1321 = vmatpush1.msra.mxu0 0.0
        %1322 = vmatprep.subr.mxu0 0.0
        %1323 = vmatpush1.msra.mxu0 0.0
        %1324 = vmatprep.subr.mxu0 0.0
        %1325 = vmatpush1.msra.mxu0 0.0
        %1326 = vmatprep.mubr.f32.mxu0 %v1121
        %1327 = vmatmul.mubr.f32.gmra.mrb[0].mxu0 %v582
        %v1328 = vpop.f32.mrb[0].mxu0
        %v1329 = vadd.f32 %v1074, %v1328
        %v1330 = vpop.f32.mrb[0].mxu0
        %v1331 = vadd.f32 %v1076, %v1330
        %1332 = vmatprep.mubr.f32.mxu0 %v1123
        %1333 = vmatmul.mubr.f32.gmra.mrb[0].mxu0 %v584
        %v1334 = vpop.f32.mrb[0].mxu0
        %v1335 = vadd.f32 %v1080, %v1334
        %v1336 = vpop.f32.mrb[0].mxu0
        %v1337 = vadd.f32 %v1082, %v1336
        %1338 = vmatprep.mubr.f32.mxu0 %v1125
        %1339 = vmatmul.mubr.f32.gmra.mrb[0].mxu0 %v586
        %v1340 = vpop.f32.mrb[0].mxu0
        %v1341 = vadd.f32 %v1086, %v1340
        %v1342 = vpop.f32.mrb[0].mxu0
        %v1343 = vadd.f32 %v1088, %v1342
        %1344 = vmatprep.mubr.f32.mxu0 %v1127
        %1345 = vmatmul.mubr.f32.gmra.mrb[0].mxu0 %v588
        %v1346 = vpop.f32.mrb[0].mxu0
        %v1347 = vadd.f32 %v1092, %v1346
        %v1348 = vpop.f32.mrb[0].mxu0
        %v1349 = vadd.f32 %v1094, %v1348
        %1350 = vmatprep.mubr.f32.mxu0 %v1129
        %1351 = vmatmul.mubr.f32.gmra.mrb[0].mxu0 %v590
        %v1352 = vpop.f32.mrb[0].mxu0
        %v1353 = vadd.f32 %v1098, %v1352
        %v1354 = vpop.f32.mrb[0].mxu0
        %v1355 = vadd.f32 %v1100, %v1354
        %1356 = vmatprep.mubr.f32.mxu0 %v1131
        %1357 = vmatmul.mubr.f32.gmra.mrb[0].mxu0 %v592
        %v1358 = vpop.f32.mrb[0].mxu0
        %v1359 = vadd.f32 %v1104, %v1358
        %v1360 = vpop.f32.mrb[0].mxu0
        %v1361 = vadd.f32 %v1106, %v1360
        %1362 = vmatprep.mubr.f32.mxu0 %v1133
        %1363 = vmatmul.mubr.f32.gmra.mrb[0].mxu0 %v594
        %v1364 = vpop.f32.mrb[0].mxu0
        %v1365 = vadd.f32 %v1110, %v1364
        %v1366 = vpop.f32.mrb[0].mxu0
        %v1367 = vadd.f32 %v1112, %v1366
        %1368 = vmatprep.mubr.f32.mxu0 %v1135
        %1369 = vmatmul.mubr.f32.gmra.mrb[0].mxu0 %v596
        %v1370 = vpop.f32.mrb[0].mxu0
        %v1371 = vadd.f32 %v1116, %v1370
        %v1372 = vpop.f32.mrb[0].mxu0
        %v1373 = vadd.f32 %v1118, %v1372
        %1374 = vdwg.mxu0
        %v1375 = vld [vmem:[%s504] sm:$0xfc]
        %v1376 = vld [vmem:[%s504 + $0x8] sm:$0xfc]
        %v1377 = vld [vmem:[%s504 + $0x80] sm:$0x3]
        %v1378 = vld [vmem:[%s504 + $0x88] sm:$0x3]
        %s1379 = scalar_lea.vmem [#allocation8], 1600
        %v1380 = vld [vmem:[%s1379] sm:$0xff]
        %v1381 = vld [vmem:[%s1379 + $0x8] sm:$0xff]
        %v1382 = vld [vmem:[%s1379 + $0x10] sm:$0xff]
        %v1383 = vld [vmem:[%s1379 + $0x18] sm:$0xff]
        %v1384 = vld [vmem:[%s1379 + $0x20] sm:$0xff]
        %v1385 = vld [vmem:[%s1379 + $0x28] sm:$0xff]
        %v1386 = vld [vmem:[%s1379 + $0x30] sm:$0xff]
        %v1387 = vld [vmem:[%s1379 + $0x38] sm:$0xff]
        %v1388 = vld [vmem:[%s1379 + $0x40] sm:$0xff]
        %v1389 = vld [vmem:[%s1379 + $0x48] sm:$0xff]
        %v1390 = vld [vmem:[%s1379 + $0x50] sm:$0xff]
        %v1391 = vld [vmem:[%s1379 + $0x58] sm:$0xff]
        %v1392 = vld [vmem:[%s1379 + $0x60] sm:$0xff]
        %v1393 = vld [vmem:[%s1379 + $0x68] sm:$0xff]
        %v1394 = vld [vmem:[%s1379 + $0x70] sm:$0xff]
        %v1395 = vld [vmem:[%s1379 + $0x78] sm:$0xff]
        %v1396 = vld [vmem:[%s1379 + $0x80] sm:$0xff]
        %v1397 = vld [vmem:[%s1379 + $0x88] sm:$0xff]
        %v1398 = vld [vmem:[%s1379 + $0x90] sm:$0xff]
        %v1399 = vld [vmem:[%s1379 + $0x98] sm:$0xff]
        %v1400 = vld [vmem:[%s1379 + $0xa0] sm:$0xff]
        %v1401 = vld [vmem:[%s1379 + $0xa8] sm:$0xff]
        %v1402 = vld [vmem:[%s1379 + $0xb0] sm:$0xff]
        %v1403 = vld [vmem:[%s1379 + $0xb8] sm:$0xff]
        %v1404 = vld [vmem:[%s1379 + $0xc0] sm:$0xff]
        %v1405 = vld [vmem:[%s1379 + $0xc8] sm:$0xff]
        %v1406 = vld [vmem:[%s1379 + $0xd0] sm:$0xff]
        %v1407 = vld [vmem:[%s1379 + $0xd8] sm:$0xff]
        %v1408 = vld [vmem:[%s1379 + $0xe0] sm:$0xff]
        %v1409 = vld [vmem:[%s1379 + $0xe8] sm:$0xff]
        %v1410 = vld [vmem:[%s1379 + $0xf0] sm:$0xff]
        %v1411 = vld [vmem:[%s1379 + $0xf8] sm:$0xff]
        %v1412 = vld [vmem:[%s1379 + $0x100] sm:$0xff]
        %v1413 = vld [vmem:[%s1379 + $0x108] sm:$0xff]
        %v1414 = vld [vmem:[%s1379 + $0x110] sm:$0xff]
        %v1415 = vld [vmem:[%s1379 + $0x118] sm:$0xff]
        %v1416 = vld [vmem:[%s1379 + $0x120] sm:$0xff]
        %v1417 = vld [vmem:[%s1379 + $0x128] sm:$0xff]
        %v1418 = vld [vmem:[%s1379 + $0x130] sm:$0xff]
        %v1419 = vld [vmem:[%s1379 + $0x138] sm:$0xff]
        %v1420 = vld [vmem:[%s1379 + $0x140] sm:$0xff]
        %v1421 = vld [vmem:[%s1379 + $0x148] sm:$0xff]
        %v1422 = vld [vmem:[%s1379 + $0x150] sm:$0xff]
        %v1423 = vld [vmem:[%s1379 + $0x158] sm:$0xff]
        %v1424 = vld [vmem:[%s1379 + $0x160] sm:$0xff]
        %v1425 = vld [vmem:[%s1379 + $0x168] sm:$0xff]
        %v1426 = vld [vmem:[%s1379 + $0x170] sm:$0xff]
        %v1427 = vld [vmem:[%s1379 + $0x178] sm:$0xff]
        %v1428 = vld [vmem:[%s1379 + $0x180] sm:$0xff]
        %v1429 = vld [vmem:[%s1379 + $0x188] sm:$0xff]
        %v1430 = vld [vmem:[%s1379 + $0x190] sm:$0xff]
        %v1431 = vld [vmem:[%s1379 + $0x198] sm:$0xff]
        %v1432 = vld [vmem:[%s1379 + $0x1a0] sm:$0xff]
        %v1433 = vld [vmem:[%s1379 + $0x1a8] sm:$0xff]
        %v1434 = vld [vmem:[%s1379 + $0x1b0] sm:$0xff]
        %v1435 = vld [vmem:[%s1379 + $0x1b8] sm:$0xff]
        %v1436 = vld [vmem:[%s1379 + $0x1c0] sm:$0xff]
        %v1437 = vld [vmem:[%s1379 + $0x1c8] sm:$0xff]
        %v1438 = vld [vmem:[%s1379 + $0x1d0] sm:$0xff]
        %v1439 = vld [vmem:[%s1379 + $0x1d8] sm:$0xff]
        %v1440 = vld [vmem:[%s1379 + $0x1e0] sm:$0xff]
        %v1441 = vld [vmem:[%s1379 + $0x1e8] sm:$0xff]
        %v1442 = vld [vmem:[%s1379 + $0x1f0] sm:$0xff]
        %v1443 = vld [vmem:[%s1379 + $0x1f8] sm:$0xff]
        %v1444 = vld [vmem:[%s1379 + $0x200] sm:$0xff]
        %v1445 = vld [vmem:[%s1379 + $0x208] sm:$0xff]
        %v1446 = vld [vmem:[%s1379 + $0x210] sm:$0xff]
        %v1447 = vld [vmem:[%s1379 + $0x218] sm:$0xff]
        %v1448 = vld [vmem:[%s1379 + $0x220] sm:$0xff]
        %v1449 = vld [vmem:[%s1379 + $0x228] sm:$0xff]
        %v1450 = vld [vmem:[%s1379 + $0x230] sm:$0xff]
        %v1451 = vld [vmem:[%s1379 + $0x238] sm:$0xff]
        %v1452 = vld [vmem:[%s1379 + $0x240] sm:$0xff]
        %v1453 = vld [vmem:[%s1379 + $0x248] sm:$0xff]
        %v1454 = vld [vmem:[%s1379 + $0x250] sm:$0xff]
        %v1455 = vld [vmem:[%s1379 + $0x258] sm:$0xff]
        %v1456 = vld [vmem:[%s1379 + $0x260] sm:$0xff]
        %v1457 = vld [vmem:[%s1379 + $0x268] sm:$0xff]
        %v1458 = vld [vmem:[%s1379 + $0x270] sm:$0xff]
        %v1459 = vld [vmem:[%s1379 + $0x278] sm:$0xff]
        %v1460 = vld [vmem:[%s1379 + $0x280] sm:$0xff]
        %v1461 = vld [vmem:[%s1379 + $0x288] sm:$0xff]
        %v1462 = vld [vmem:[%s1379 + $0x290] sm:$0xff]
        %v1463 = vld [vmem:[%s1379 + $0x298] sm:$0xff]
        %v1464 = vld [vmem:[%s1379 + $0x2a0] sm:$0xff]
        %v1465 = vld [vmem:[%s1379 + $0x2a8] sm:$0xff]
        %v1466 = vld [vmem:[%s1379 + $0x2b0] sm:$0xff]
        %v1467 = vld [vmem:[%s1379 + $0x2b8] sm:$0xff]
        %v1468 = vld [vmem:[%s1379 + $0x2c0] sm:$0xff]
        %v1469 = vld [vmem:[%s1379 + $0x2c8] sm:$0xff]
        %v1470 = vld [vmem:[%s1379 + $0x2d0] sm:$0xff]
        %v1471 = vld [vmem:[%s1379 + $0x2d8] sm:$0xff]
        %v1472 = vld [vmem:[%s1379 + $0x2e0] sm:$0xff]
        %v1473 = vld [vmem:[%s1379 + $0x2e8] sm:$0xff]
        %v1474 = vld [vmem:[%s1379 + $0x2f0] sm:$0xff]
        %v1475 = vld [vmem:[%s1379 + $0x2f8] sm:$0xff]
        %v1476 = vld [vmem:[%s1379 + $0x300] sm:$0x3f]
        %v1477 = vld [vmem:[%s1379 + $0x308] sm:$0x3f]
        %v1478 = vld [vmem:[%s1379 + $0x310] sm:$0x3f]
        %v1479 = vld [vmem:[%s1379 + $0x318] sm:$0x3f]
        %v1484 = vrot.slane %v1375, 2
        %v1485 = vrot.slane %v584, 2
        %v1486 = vsel %vm881, %v1484, %v1485
        %v1487 = vrot.slane %v1376, 2
        %v1488 = vrot.slane %v585, 2
        %v1489 = vsel %vm881, %v1487, %v1488
        %v1490 = vrot.slane %v586, 2
        %v1491 = vsel %vm881, %v1485, %v1490
        %v1492 = vrot.slane %v587, 2
        %v1493 = vsel %vm881, %v1488, %v1492
        %v1494 = vrot.slane %v588, 2
        %v1495 = vsel %vm881, %v1490, %v1494
        %v1496 = vrot.slane %v589, 2
        %v1497 = vsel %vm881, %v1492, %v1496
        %v1498 = vrot.slane %v590, 2
        %v1499 = vsel %vm881, %v1494, %v1498
        %v1500 = vrot.slane %v591, 2
        %v1501 = vsel %vm881, %v1496, %v1500
        %v1502 = vrot.slane %v592, 2
        %v1503 = vsel %vm881, %v1498, %v1502
        %v1504 = vrot.slane %v593, 2
        %v1505 = vsel %vm881, %v1500, %v1504
        %v1506 = vrot.slane %v594, 2
        %v1507 = vsel %vm881, %v1502, %v1506
        %v1508 = vrot.slane %v595, 2
        %v1509 = vsel %vm881, %v1504, %v1508
        %v1510 = vrot.slane %v596, 2
        %v1511 = vsel %vm881, %v1506, %v1510
        %v1512 = vrot.slane %v597, 2
        %v1513 = vsel %vm881, %v1508, %v1512
        %v1514 = vrot.slane %v1377, 2
        %v1515 = vsel %vm881, %v1510, %v1514
        %v1516 = vrot.slane %v1378, 2
        %v1517 = vsel %vm881, %v1512, %v1516
        %v1526 = vsel %vm864, %v1489, 0
        %v1528 = vsel %vm864, %v1493, 0
        %v1530 = vsel %vm864, %v1497, 0
        %v1532 = vsel %vm864, %v1501, 0
        %v1534 = vsel %vm864, %v1505, 0
        %v1536 = vsel %vm864, %v1509, 0
        %v1538 = vsel %vm864, %v1513, 0
        %v1540 = vsel %vm864, %v1517, 0
        %v1543 = vsel %vm881, %v1476, 0
        %v1546 = vsel %vm881, %v1477, 0
        %v1549 = vsel %vm881, %v1478, 0
        %v1552 = vsel %vm881, %v1479, 0
        %1554 = vmatprep.subr.mxu0 %v1381
        %1555 = vmatpush1.msra.mxu0 %v1380
        %1556 = vmatprep.subr.mxu0 %v1385
        %1557 = vmatpush1.msra.mxu0 %v1384
        %1558 = vmatprep.subr.mxu0 %v1389
        %1559 = vmatpush1.msra.mxu0 %v1388
        %1560 = vmatprep.subr.mxu0 %v1393
        %1561 = vmatpush1.msra.mxu0 %v1392
        %1562 = vmatprep.subr.mxu0 %v1397
        %1563 = vmatpush1.msra.mxu0 %v1396
        %1564 = vmatprep.subr.mxu0 %v1401
        %1565 = vmatpush1.msra.mxu0 %v1400
        %1566 = vmatprep.subr.mxu0 %v1405
        %1567 = vmatpush1.msra.mxu0 %v1404
        %1568 = vmatprep.subr.mxu0 %v1409
        %1569 = vmatpush1.msra.mxu0 %v1408
        %1570 = vmatprep.subr.mxu0 %v1413
        %1571 = vmatpush1.msra.mxu0 %v1412
        %1572 = vmatprep.subr.mxu0 %v1417
        %1573 = vmatpush1.msra.mxu0 %v1416
        %1574 = vmatprep.subr.mxu0 %v1421
        %1575 = vmatpush1.msra.mxu0 %v1420
        %1576 = vmatprep.subr.mxu0 %v1425
        %1577 = vmatpush1.msra.mxu0 %v1424
        %1578 = vmatprep.subr.mxu0 %v1429
        %1579 = vmatpush1.msra.mxu0 %v1428
        %1580 = vmatprep.subr.mxu0 %v1433
        %1581 = vmatpush1.msra.mxu0 %v1432
        %1582 = vmatprep.subr.mxu0 %v1437
        %1583 = vmatpush1.msra.mxu0 %v1436
        %1584 = vmatprep.subr.mxu0 %v1441
        %1585 = vmatpush1.msra.mxu0 %v1440
        %1586 = vmatprep.subr.mxu0 %v1445
        %1587 = vmatpush1.msra.mxu0 %v1444
        %1588 = vmatprep.subr.mxu0 %v1449
        %1589 = vmatpush1.msra.mxu0 %v1448
        %1590 = vmatprep.subr.mxu0 %v1453
        %1591 = vmatpush1.msra.mxu0 %v1452
        %1592 = vmatprep.subr.mxu0 %v1457
        %1593 = vmatpush1.msra.mxu0 %v1456
        %1594 = vmatprep.subr.mxu0 %v1461
        %1595 = vmatpush1.msra.mxu0 %v1460
        %1596 = vmatprep.subr.mxu0 %v1465
        %1597 = vmatpush1.msra.mxu0 %v1464
        %1598 = vmatprep.subr.mxu0 %v1469
        %1599 = vmatpush1.msra.mxu0 %v1468
        %1600 = vmatprep.subr.mxu0 %v1473
        %1601 = vmatpush1.msra.mxu0 %v1472
        %1602 = vmatprep.subr.mxu0 %v1546
        %1603 = vmatpush1.msra.mxu0 %v1543
        %1604 = vmatprep.subr.mxu0 0.0
        %1605 = vmatpush1.msra.mxu0 0.0
        %1606 = vmatprep.subr.mxu0 0.0
        %1607 = vmatpush1.msra.mxu0 0.0
        %1608 = vmatprep.subr.mxu0 0.0
        %1609 = vmatpush1.msra.mxu0 0.0
        %1610 = vmatprep.subr.mxu0 0.0
        %1611 = vmatpush1.msra.mxu0 0.0
        %1612 = vmatprep.subr.mxu0 0.0
        %1613 = vmatpush1.msra.mxu0 0.0
        %1614 = vmatprep.subr.mxu0 0.0
        %1615 = vmatpush1.msra.mxu0 0.0
        %1616 = vmatprep.subr.mxu0 0.0
        %1617 = vmatpush1.msra.mxu0 0.0
        %1618 = vmatprep.mubr.f32.mxu0 %v1526
        %1619 = vmatmul.mubr.f32.gmra.mrb[0].mxu0 %v1486
        %v1620 = vpop.f32.mrb[0].mxu0
        %v1621 = vadd.f32 0.0, %v1620
        %v1622 = vpop.f32.mrb[0].mxu0
        %v1623 = vadd.f32 0.0, %v1622
        %1624 = vmatprep.mubr.f32.mxu0 %v1528
        %1625 = vmatmul.mubr.f32.gmra.mrb[0].mxu0 %v1491
        %v1626 = vpop.f32.mrb[0].mxu0
        %v1627 = vadd.f32 0.0, %v1626
        %v1628 = vpop.f32.mrb[0].mxu0
        %v1629 = vadd.f32 0.0, %v1628
        %1630 = vmatprep.mubr.f32.mxu0 %v1530
        %1631 = vmatmul.mubr.f32.gmra.mrb[0].mxu0 %v1495
        %v1632 = vpop.f32.mrb[0].mxu0
        %v1633 = vadd.f32 0.0, %v1632
        %v1634 = vpop.f32.mrb[0].mxu0
        %v1635 = vadd.f32 0.0, %v1634
        %1636 = vmatprep.mubr.f32.mxu0 %v1532
        %1637 = vmatmul.mubr.f32.gmra.mrb[0].mxu0 %v1499
        %v1638 = vpop.f32.mrb[0].mxu0
        %v1639 = vadd.f32 0.0, %v1638
        %v1640 = vpop.f32.mrb[0].mxu0
        %v1641 = vadd.f32 0.0, %v1640
        %1642 = vmatprep.mubr.f32.mxu0 %v1534
        %1643 = vmatmul.mubr.f32.gmra.mrb[0].mxu0 %v1503
        %v1644 = vpop.f32.mrb[0].mxu0
        %v1645 = vadd.f32 0.0, %v1644
        %v1646 = vpop.f32.mrb[0].mxu0
        %v1647 = vadd.f32 0.0, %v1646
        %1648 = vmatprep.mubr.f32.mxu0 %v1536
        %1649 = vmatmul.mubr.f32.gmra.mrb[0].mxu0 %v1507
        %v1650 = vpop.f32.mrb[0].mxu0
        %v1651 = vadd.f32 0.0, %v1650
        %v1652 = vpop.f32.mrb[0].mxu0
        %v1653 = vadd.f32 0.0, %v1652
        %1654 = vmatprep.mubr.f32.mxu0 %v1538
        %1655 = vmatmul.mubr.f32.gmra.mrb[0].mxu0 %v1511
        %v1656 = vpop.f32.mrb[0].mxu0
        %v1657 = vadd.f32 0.0, %v1656
        %v1658 = vpop.f32.mrb[0].mxu0
        %v1659 = vadd.f32 0.0, %v1658
        %1660 = vmatprep.mubr.f32.mxu0 %v1540
        %1661 = vmatmul.mubr.f32.gmra.mrb[0].mxu0 %v1515
        %v1662 = vpop.f32.mrb[0].mxu0
        %v1663 = vadd.f32 0.0, %v1662
        %v1664 = vpop.f32.mrb[0].mxu0
        %v1665 = vadd.f32 0.0, %v1664
        %1666 = vdwg.mxu0
        %1667 = vmatprep.subr.mxu0 %v1383
        %1668 = vmatpush1.msra.mxu0 %v1382
        %1669 = vmatprep.subr.mxu0 %v1387
        %1670 = vmatpush1.msra.mxu0 %v1386
        %1671 = vmatprep.subr.mxu0 %v1391
        %1672 = vmatpush1.msra.mxu0 %v1390
        %1673 = vmatprep.subr.mxu0 %v1395
        %1674 = vmatpush1.msra.mxu0 %v1394
        %1675 = vmatprep.subr.mxu0 %v1399
        %1676 = vmatpush1.msra.mxu0 %v1398
        %1677 = vmatprep.subr.mxu0 %v1403
        %1678 = vmatpush1.msra.mxu0 %v1402
        %1679 = vmatprep.subr.mxu0 %v1407
        %1680 = vmatpush1.msra.mxu0 %v1406
        %1681 = vmatprep.subr.mxu0 %v1411
        %1682 = vmatpush1.msra.mxu0 %v1410
        %1683 = vmatprep.subr.mxu0 %v1415
        %1684 = vmatpush1.msra.mxu0 %v1414
        %1685 = vmatprep.subr.mxu0 %v1419
        %1686 = vmatpush1.msra.mxu0 %v1418
        %1687 = vmatprep.subr.mxu0 %v1423
        %1688 = vmatpush1.msra.mxu0 %v1422
        %1689 = vmatprep.subr.mxu0 %v1427
        %1690 = vmatpush1.msra.mxu0 %v1426
        %1691 = vmatprep.subr.mxu0 %v1431
        %1692 = vmatpush1.msra.mxu0 %v1430
        %1693 = vmatprep.subr.mxu0 %v1435
        %1694 = vmatpush1.msra.mxu0 %v1434
        %1695 = vmatprep.subr.mxu0 %v1439
        %1696 = vmatpush1.msra.mxu0 %v1438
        %1697 = vmatprep.subr.mxu0 %v1443
        %1698 = vmatpush1.msra.mxu0 %v1442
        %1699 = vmatprep.subr.mxu0 %v1447
        %1700 = vmatpush1.msra.mxu0 %v1446
        %1701 = vmatprep.subr.mxu0 %v1451
        %1702 = vmatpush1.msra.mxu0 %v1450
        %1703 = vmatprep.subr.mxu0 %v1455
        %1704 = vmatpush1.msra.mxu0 %v1454
        %1705 = vmatprep.subr.mxu0 %v1459
        %1706 = vmatpush1.msra.mxu0 %v1458
        %1707 = vmatprep.subr.mxu0 %v1463
        %1708 = vmatpush1.msra.mxu0 %v1462
        %1709 = vmatprep.subr.mxu0 %v1467
        %1710 = vmatpush1.msra.mxu0 %v1466
        %1711 = vmatprep.subr.mxu0 %v1471
        %1712 = vmatpush1.msra.mxu0 %v1470
        %1713 = vmatprep.subr.mxu0 %v1475
        %1714 = vmatpush1.msra.mxu0 %v1474
        %1715 = vmatprep.subr.mxu0 %v1552
        %1716 = vmatpush1.msra.mxu0 %v1549
        %1717 = vmatprep.subr.mxu0 0.0
        %1718 = vmatpush1.msra.mxu0 0.0
        %1719 = vmatprep.subr.mxu0 0.0
        %1720 = vmatpush1.msra.mxu0 0.0
        %1721 = vmatprep.subr.mxu0 0.0
        %1722 = vmatpush1.msra.mxu0 0.0
        %1723 = vmatprep.subr.mxu0 0.0
        %1724 = vmatpush1.msra.mxu0 0.0
        %1725 = vmatprep.subr.mxu0 0.0
        %1726 = vmatpush1.msra.mxu0 0.0
        %1727 = vmatprep.subr.mxu0 0.0
        %1728 = vmatpush1.msra.mxu0 0.0
        %1729 = vmatprep.subr.mxu0 0.0
        %1730 = vmatpush1.msra.mxu0 0.0
        %1731 = vmatprep.mubr.f32.mxu0 %v1526
        %1732 = vmatmul.mubr.f32.gmra.mrb[0].mxu0 %v1486
        %v1733 = vpop.f32.mrb[0].mxu0
        %v1734 = vadd.f32 0.0, %v1733
        %v1735 = vpop.f32.mrb[0].mxu0
        %v1736 = vadd.f32 0.0, %v1735
        %1737 = vmatprep.mubr.f32.mxu0 %v1528
        %1738 = vmatmul.mubr.f32.gmra.mrb[0].mxu0 %v1491
        %v1739 = vpop.f32.mrb[0].mxu0
        %v1740 = vadd.f32 0.0, %v1739
        %v1741 = vpop.f32.mrb[0].mxu0
        %v1742 = vadd.f32 0.0, %v1741
        %1743 = vmatprep.mubr.f32.mxu0 %v1530
        %1744 = vmatmul.mubr.f32.gmra.mrb[0].mxu0 %v1495
        %v1745 = vpop.f32.mrb[0].mxu0
        %v1746 = vadd.f32 0.0, %v1745
        %v1747 = vpop.f32.mrb[0].mxu0
        %v1748 = vadd.f32 0.0, %v1747
        %1749 = vmatprep.mubr.f32.mxu0 %v1532
        %1750 = vmatmul.mubr.f32.gmra.mrb[0].mxu0 %v1499
        %v1751 = vpop.f32.mrb[0].mxu0
        %v1752 = vadd.f32 0.0, %v1751
        %v1753 = vpop.f32.mrb[0].mxu0
        %v1754 = vadd.f32 0.0, %v1753
        %1755 = vmatprep.mubr.f32.mxu0 %v1534
        %1756 = vmatmul.mubr.f32.gmra.mrb[0].mxu0 %v1503
        %v1757 = vpop.f32.mrb[0].mxu0
        %v1758 = vadd.f32 0.0, %v1757
        %v1759 = vpop.f32.mrb[0].mxu0
        %v1760 = vadd.f32 0.0, %v1759
        %1761 = vmatprep.mubr.f32.mxu0 %v1536
        %1762 = vmatmul.mubr.f32.gmra.mrb[0].mxu0 %v1507
        %v1763 = vpop.f32.mrb[0].mxu0
        %v1764 = vadd.f32 0.0, %v1763
        %v1765 = vpop.f32.mrb[0].mxu0
        %v1766 = vadd.f32 0.0, %v1765
        %1767 = vmatprep.mubr.f32.mxu0 %v1538
        %1768 = vmatmul.mubr.f32.gmra.mrb[0].mxu0 %v1511
        %v1769 = vpop.f32.mrb[0].mxu0
        %v1770 = vadd.f32 0.0, %v1769
        %v1771 = vpop.f32.mrb[0].mxu0
        %v1772 = vadd.f32 0.0, %v1771
        %1773 = vmatprep.mubr.f32.mxu0 %v1540
        %1774 = vmatmul.mubr.f32.gmra.mrb[0].mxu0 %v1515
        %v1775 = vpop.f32.mrb[0].mxu0
        %v1776 = vadd.f32 0.0, %v1775
        %v1777 = vpop.f32.mrb[0].mxu0
        %v1778 = vadd.f32 0.0, %v1777
        %1779 = vdwg.mxu0
        %v1780 = vadd.f32 %v1216, %v1621
        %v1781 = vadd.f32 %v1218, %v1623
        %v1782 = vadd.f32 %v1329, %v1734
        %v1783 = vadd.f32 %v1331, %v1736
        %v1784 = vadd.f32 %v1222, %v1627
        %v1785 = vadd.f32 %v1224, %v1629
        %v1786 = vadd.f32 %v1335, %v1740
        %v1787 = vadd.f32 %v1337, %v1742
        %v1788 = vadd.f32 %v1228, %v1633
        %v1789 = vadd.f32 %v1230, %v1635
        %v1790 = vadd.f32 %v1341, %v1746
        %v1791 = vadd.f32 %v1343, %v1748
        %v1792 = vadd.f32 %v1234, %v1639
        %v1793 = vadd.f32 %v1236, %v1641
        %v1794 = vadd.f32 %v1347, %v1752
        %v1795 = vadd.f32 %v1349, %v1754
        %v1796 = vadd.f32 %v1240, %v1645
        %v1797 = vadd.f32 %v1242, %v1647
        %v1798 = vadd.f32 %v1353, %v1758
        %v1799 = vadd.f32 %v1355, %v1760
        %v1800 = vadd.f32 %v1246, %v1651
        %v1801 = vadd.f32 %v1248, %v1653
        %v1802 = vadd.f32 %v1359, %v1764
        %v1803 = vadd.f32 %v1361, %v1766
        %v1804 = vadd.f32 %v1252, %v1657
        %v1805 = vadd.f32 %v1254, %v1659
        %v1806 = vadd.f32 %v1365, %v1770
        %v1807 = vadd.f32 %v1367, %v1772
        %v1808 = vadd.f32 %v1258, %v1663
        %v1809 = vadd.f32 %v1260, %v1665
        %v1810 = vadd.f32 %v1371, %v1776
        %v1811 = vadd.f32 %v1373, %v1778
        %v1812 = vld [vmem:[#allocation11] sm:$0xf]
        %v1814 = vlaneseq
        %v1815 = vshrl.u32 %v1814, 7
        %v1816 = vsub.s32 0, %v1815
        %v1817 = vrot.slane %v1812, %v1816
        %v1818 = vlaneseq
        %v1819 = vshrl.u32 %v1818, 7
        %v1820 = vsub.s32 1, %v1819
        %v1821 = vrot.slane %v1812, %v1820
        %v1822 = vlaneseq
        %v1823 = vshrl.u32 %v1822, 7
        %v1824 = vsub.s32 2, %v1823
        %v1825 = vrot.slane %v1812, %v1824
        %v1826 = vlaneseq
        %v1827 = vshrl.u32 %v1826, 7
        %v1828 = vsub.s32 3, %v1827
        %v1829 = vrot.slane %v1812, %v1828
        %v1834 = vadd.f32 %v1780, %v1817
        %v1835 = vadd.f32 %v1781, %v1821
        %v1836 = vadd.f32 %v1782, %v1825
        %v1837 = vadd.f32 %v1783, %v1829
        %v1838 = vadd.f32 %v1784, %v1817
        %v1839 = vadd.f32 %v1785, %v1821
        %v1840 = vadd.f32 %v1786, %v1825
        %v1841 = vadd.f32 %v1787, %v1829
        %v1842 = vadd.f32 %v1788, %v1817
        %v1843 = vadd.f32 %v1789, %v1821
        %v1844 = vadd.f32 %v1790, %v1825
        %v1845 = vadd.f32 %v1791, %v1829
        %v1846 = vadd.f32 %v1792, %v1817
        %v1847 = vadd.f32 %v1793, %v1821
        %v1848 = vadd.f32 %v1794, %v1825
        %v1849 = vadd.f32 %v1795, %v1829
        %v1850 = vadd.f32 %v1796, %v1817
        %v1851 = vadd.f32 %v1797, %v1821
        %v1852 = vadd.f32 %v1798, %v1825
        %v1853 = vadd.f32 %v1799, %v1829
        %v1854 = vadd.f32 %v1800, %v1817
        %v1855 = vadd.f32 %v1801, %v1821
        %v1856 = vadd.f32 %v1802, %v1825
        %v1857 = vadd.f32 %v1803, %v1829
        %v1858 = vadd.f32 %v1804, %v1817
        %v1859 = vadd.f32 %v1805, %v1821
        %v1860 = vadd.f32 %v1806, %v1825
        %v1861 = vadd.f32 %v1807, %v1829
        %v1862 = vadd.f32 %v1808, %v1817
        %v1863 = vadd.f32 %v1809, %v1821
        %v1864 = vadd.f32 %v1810, %v1825
        %v1865 = vadd.f32 %v1811, %v1829
        %v1866 = vmax.f32 %v1834, 0.0
        %v1867 = vmax.f32 %v1835, 0.0
        %v1868 = vmax.f32 %v1836, 0.0
        %v1869 = vmax.f32 %v1837, 0.0
        %v1870 = vmax.f32 %v1838, 0.0
        %v1871 = vmax.f32 %v1839, 0.0
        %v1872 = vmax.f32 %v1840, 0.0
        %v1873 = vmax.f32 %v1841, 0.0
        %v1874 = vmax.f32 %v1842, 0.0
        %v1875 = vmax.f32 %v1843, 0.0
        %v1876 = vmax.f32 %v1844, 0.0
        %v1877 = vmax.f32 %v1845, 0.0
        %v1878 = vmax.f32 %v1846, 0.0
        %v1879 = vmax.f32 %v1847, 0.0
        %v1880 = vmax.f32 %v1848, 0.0
        %v1881 = vmax.f32 %v1849, 0.0
        %v1882 = vmax.f32 %v1850, 0.0
        %v1883 = vmax.f32 %v1851, 0.0
        %v1884 = vmax.f32 %v1852, 0.0
        %v1885 = vmax.f32 %v1853, 0.0
        %v1886 = vmax.f32 %v1854, 0.0
        %v1887 = vmax.f32 %v1855, 0.0
        %v1888 = vmax.f32 %v1856, 0.0
        %v1889 = vmax.f32 %v1857, 0.0
        %v1890 = vmax.f32 %v1858, 0.0
        %v1891 = vmax.f32 %v1859, 0.0
        %v1892 = vmax.f32 %v1860, 0.0
        %v1893 = vmax.f32 %v1861, 0.0
        %v1894 = vmax.f32 %v1862, 0.0
        %v1895 = vmax.f32 %v1863, 0.0
        %v1896 = vmax.f32 %v1864, 0.0
        %v1897 = vmax.f32 %v1865, 0.0
        %vm1930 = vcmask 1040384
        %v1931 = vrot.slane %v1866, 7
        %v1932 = vrot.slane %v1867, 7
        %v1933 = vrot.slane %v1868, 7
        %v1934 = vrot.slane %v1869, 7
        %v1935 = vrot.slane %v1870, 7
        %v1936 = vsel %vm1930, %v1931, %v1935
        %v1937 = vrot.slane %v1871, 7
        %v1938 = vsel %vm1930, %v1932, %v1937
        %v1939 = vrot.slane %v1872, 7
        %v1940 = vsel %vm1930, %v1933, %v1939
        %v1941 = vrot.slane %v1873, 7
        %v1942 = vsel %vm1930, %v1934, %v1941
        %v1943 = vrot.slane %v1874, 7
        %v1944 = vsel %vm1930, %v1935, %v1943
        %v1945 = vrot.slane %v1875, 7
        %v1946 = vsel %vm1930, %v1937, %v1945
        %v1947 = vrot.slane %v1876, 7
        %v1948 = vsel %vm1930, %v1939, %v1947
        %v1949 = vrot.slane %v1877, 7
        %v1950 = vsel %vm1930, %v1941, %v1949
        %v1951 = vrot.slane %v1878, 7
        %v1952 = vsel %vm1930, %v1943, %v1951
        %v1953 = vrot.slane %v1879, 7
        %v1954 = vsel %vm1930, %v1945, %v1953
        %v1955 = vrot.slane %v1880, 7
        %v1956 = vsel %vm1930, %v1947, %v1955
        %v1957 = vrot.slane %v1881, 7
        %v1958 = vsel %vm1930, %v1949, %v1957
        %v1959 = vrot.slane %v1882, 7
        %v1960 = vsel %vm1930, %v1951, %v1959
        %v1961 = vrot.slane %v1883, 7
        %v1962 = vsel %vm1930, %v1953, %v1961
        %v1963 = vrot.slane %v1884, 7
        %v1964 = vsel %vm1930, %v1955, %v1963
        %v1965 = vrot.slane %v1885, 7
        %v1966 = vsel %vm1930, %v1957, %v1965
        %v1967 = vrot.slane %v1886, 7
        %v1968 = vsel %vm1930, %v1959, %v1967
        %v1969 = vrot.slane %v1887, 7
        %v1970 = vsel %vm1930, %v1961, %v1969
        %v1971 = vrot.slane %v1888, 7
        %v1972 = vsel %vm1930, %v1963, %v1971
        %v1973 = vrot.slane %v1889, 7
        %v1974 = vsel %vm1930, %v1965, %v1973
        %v1975 = vrot.slane %v1890, 7
        %v1976 = vsel %vm1930, %v1967, %v1975
        %v1977 = vrot.slane %v1891, 7
        %v1978 = vsel %vm1930, %v1969, %v1977
        %v1979 = vrot.slane %v1892, 7
        %v1980 = vsel %vm1930, %v1971, %v1979
        %v1981 = vrot.slane %v1893, 7
        %v1982 = vsel %vm1930, %v1973, %v1981
        %v1983 = vrot.slane %v1894, 7
        %v1984 = vsel %vm1930, %v1975, %v1983
        %v1985 = vrot.slane %v1895, 7
        %v1986 = vsel %vm1930, %v1977, %v1985
        %v1987 = vrot.slane %v1896, 7
        %v1988 = vsel %vm1930, %v1979, %v1987
        %v1989 = vrot.slane %v1897, 7
        %v1990 = vsel %vm1930, %v1981, %v1989
        %1991 = vrot.lane.b32.xlu0 %v1931, 8
        %v1992 = vpop.permute.xlu0 %1991
        %1993 = vrot.lane.b32.xlu0 %v1932, 8
        %v1994 = vpop.permute.xlu0 %1993
        %1995 = vrot.lane.b32.xlu0 %v1933, 8
        %v1996 = vpop.permute.xlu0 %1995
        %1997 = vrot.lane.b32.xlu0 %v1934, 8
        %v1998 = vpop.permute.xlu0 %1997
        %1999 = vrot.lane.b32.xlu0 %v1936, 8
        %v2000 = vpop.permute.xlu0 %1999
        %2001 = vrot.lane.b32.xlu0 %v1938, 8
        %v2002 = vpop.permute.xlu0 %2001
        %2003 = vrot.lane.b32.xlu0 %v1940, 8
        %v2004 = vpop.permute.xlu0 %2003
        %2005 = vrot.lane.b32.xlu0 %v1942, 8
        %v2006 = vpop.permute.xlu0 %2005
        %2007 = vrot.lane.b32.xlu0 %v1944, 8
        %v2008 = vpop.permute.xlu0 %2007
        %2009 = vrot.lane.b32.xlu0 %v1946, 8
        %v2010 = vpop.permute.xlu0 %2009
        %2011 = vrot.lane.b32.xlu0 %v1948, 8
        %v2012 = vpop.permute.xlu0 %2011
        %2013 = vrot.lane.b32.xlu0 %v1950, 8
        %v2014 = vpop.permute.xlu0 %2013
        %2015 = vrot.lane.b32.xlu0 %v1952, 8
        %v2016 = vpop.permute.xlu0 %2015
        %2017 = vrot.lane.b32.xlu0 %v1954, 8
        %v2018 = vpop.permute.xlu0 %2017
        %2019 = vrot.lane.b32.xlu0 %v1956, 8
        %v2020 = vpop.permute.xlu0 %2019
        %2021 = vrot.lane.b32.xlu0 %v1958, 8
        %v2022 = vpop.permute.xlu0 %2021
        %2023 = vrot.lane.b32.xlu0 %v1960, 8
        %v2024 = vpop.permute.xlu0 %2023
        %2025 = vrot.lane.b32.xlu0 %v1962, 8
        %v2026 = vpop.permute.xlu0 %2025
        %2027 = vrot.lane.b32.xlu0 %v1964, 8
        %v2028 = vpop.permute.xlu0 %2027
        %2029 = vrot.lane.b32.xlu0 %v1966, 8
        %v2030 = vpop.permute.xlu0 %2029
        %2031 = vrot.lane.b32.xlu0 %v1968, 8
        %v2032 = vpop.permute.xlu0 %2031
        %2033 = vrot.lane.b32.xlu0 %v1970, 8
        %v2034 = vpop.permute.xlu0 %2033
        %2035 = vrot.lane.b32.xlu0 %v1972, 8
        %v2036 = vpop.permute.xlu0 %2035
        %2037 = vrot.lane.b32.xlu0 %v1974, 8
        %v2038 = vpop.permute.xlu0 %2037
        %2039 = vrot.lane.b32.xlu0 %v1976, 8
        %v2040 = vpop.permute.xlu0 %2039
        %2041 = vrot.lane.b32.xlu0 %v1978, 8
        %v2042 = vpop.permute.xlu0 %2041
        %2043 = vrot.lane.b32.xlu0 %v1980, 8
        %v2044 = vpop.permute.xlu0 %2043
        %2045 = vrot.lane.b32.xlu0 %v1982, 8
        %v2046 = vpop.permute.xlu0 %2045
        %2047 = vrot.lane.b32.xlu0 %v1984, 8
        %v2048 = vpop.permute.xlu0 %2047
        %2049 = vrot.lane.b32.xlu0 %v1986, 8
        %v2050 = vpop.permute.xlu0 %2049
        %2051 = vrot.lane.b32.xlu0 %v1988, 8
        %v2052 = vpop.permute.xlu0 %2051
        %2053 = vrot.lane.b32.xlu0 %v1990, 8
        %v2054 = vpop.permute.xlu0 %2053
        %2055 = vrot.lane.b32.xlu0 %v1983, 8
        %v2056 = vpop.permute.xlu0 %2055
        %2057 = vrot.lane.b32.xlu0 %v1985, 8
        %v2058 = vpop.permute.xlu0 %2057
        %2059 = vrot.lane.b32.xlu0 %v1987, 8
        %v2060 = vpop.permute.xlu0 %2059
        %2061 = vrot.lane.b32.xlu0 %v1989, 8
        %v2062 = vpop.permute.xlu0 %2061
        %vm2063 = vcmask 64512
        %v2064 = vsel %vm2063, %v1992, %v1994
        %v2065 = vsel %vm2063, %v1994, %v1996
        %v2066 = vsel %vm2063, %v1996, %v1998
        %v2067 = vsel %vm2063, %v2000, %v2002
        %v2068 = vsel %vm2063, %v2002, %v2004
        %v2069 = vsel %vm2063, %v2004, %v2006
        %v2070 = vsel %vm2063, %v2008, %v2010
        %v2071 = vsel %vm2063, %v2010, %v2012
        %v2072 = vsel %vm2063, %v2012, %v2014
        %v2073 = vsel %vm2063, %v2016, %v2018
        %v2074 = vsel %vm2063, %v2018, %v2020
        %v2075 = vsel %vm2063, %v2020, %v2022
        %v2076 = vsel %vm2063, %v2024, %v2026
        %v2077 = vsel %vm2063, %v2026, %v2028
        %v2078 = vsel %vm2063, %v2028, %v2030
        %v2079 = vsel %vm2063, %v2032, %v2034
        %v2080 = vsel %vm2063, %v2034, %v2036
        %v2081 = vsel %vm2063, %v2036, %v2038
        %v2082 = vsel %vm2063, %v2040, %v2042
        %v2083 = vsel %vm2063, %v2042, %v2044
        %v2084 = vsel %vm2063, %v2044, %v2046
        %v2085 = vsel %vm2063, %v2048, %v2050
        %v2086 = vsel %vm2063, %v2050, %v2052
        %v2087 = vsel %vm2063, %v2052, %v2054
        %v2088 = vsel %vm2063, %v2056, %v2058
        %v2089 = vsel %vm2063, %v2058, %v2060
        %v2090 = vsel %vm2063, %v2060, %v2062
        %vm2136 = vcmask 1047617
        %2137 = vst.msk [vmem:[#allocation2] sm:$0xfe] %vm2136, %v1992
        %2138 = vst [vmem:[#allocation2 + $0x8] sm:$0xfe] %v2064
        %2139 = vst [vmem:[#allocation2 + $0x10] sm:$0xfe] %v2065
        %2140 = vst [vmem:[#allocation2 + $0x18] sm:$0xfe] %v2066
        %vm2141 = vcmask 64513
        %2142 = vst.msk [vmem:[#allocation2 + $0x20] sm:$0xfe] %vm2141, %v1998
        %vm2143 = vcmask 1047616
        %2144 = vst.msk [vmem:[#allocation2 + $0x28] sm:$0xff] %vm2143, %v2000
        %2145 = vst [vmem:[#allocation2 + $0x30] sm:$0xff] %v2067
        %2146 = vst [vmem:[#allocation2 + $0x38] sm:$0xff] %v2068
        %2147 = vst [vmem:[#allocation2 + $0x40] sm:$0xff] %v2069
        %2148 = vst.msk [vmem:[#allocation2 + $0x48] sm:$0xff] %vm2063, %v2006
        %2149 = vst.msk [vmem:[#allocation2 + $0x50] sm:$0xff] %vm2143, %v2008
        %2150 = vst [vmem:[#allocation2 + $0x58] sm:$0xff] %v2070
        %2151 = vst [vmem:[#allocation2 + $0x60] sm:$0xff] %v2071
        %2152 = vst [vmem:[#allocation2 + $0x68] sm:$0xff] %v2072
        %2153 = vst.msk [vmem:[#allocation2 + $0x70] sm:$0xff] %vm2063, %v2014
        %2154 = vst.msk [vmem:[#allocation2 + $0x78] sm:$0xff] %vm2143, %v2016
        %2155 = vst [vmem:[#allocation2 + $0x80] sm:$0xff] %v2073
        %2156 = vst [vmem:[#allocation2 + $0x88] sm:$0xff] %v2074
        %2157 = vst [vmem:[#allocation2 + $0x90] sm:$0xff] %v2075
        %2158 = vst.msk [vmem:[#allocation2 + $0x98] sm:$0xff] %vm2063, %v2022
        %2159 = vst.msk [vmem:[#allocation2 + $0xa0] sm:$0xff] %vm2143, %v2024
        %2160 = vst [vmem:[#allocation2 + $0xa8] sm:$0xff] %v2076
        %2161 = vst [vmem:[#allocation2 + $0xb0] sm:$0xff] %v2077
        %2162 = vst [vmem:[#allocation2 + $0xb8] sm:$0xff] %v2078
        %2163 = vst.msk [vmem:[#allocation2 + $0xc0] sm:$0xff] %vm2063, %v2030
        %2164 = vst.msk [vmem:[#allocation2 + $0xc8] sm:$0xff] %vm2143, %v2032
        %2165 = vst [vmem:[#allocation2 + $0xd0] sm:$0xff] %v2079
        %2166 = vst [vmem:[#allocation2 + $0xd8] sm:$0xff] %v2080
        %2167 = vst [vmem:[#allocation2 + $0xe0] sm:$0xff] %v2081
        %2168 = vst.msk [vmem:[#allocation2 + $0xe8] sm:$0xff] %vm2063, %v2038
        %2169 = vst.msk [vmem:[#allocation2 + $0xf0] sm:$0xff] %vm2143, %v2040
        %2170 = vst [vmem:[#allocation2 + $0xf8] sm:$0xff] %v2082
        %2171 = vst [vmem:[#allocation2 + $0x100] sm:$0xff] %v2083
        %2172 = vst [vmem:[#allocation2 + $0x108] sm:$0xff] %v2084
        %2173 = vst.msk [vmem:[#allocation2 + $0x110] sm:$0xff] %vm2063, %v2046
        %2174 = vst.msk [vmem:[#allocation2 + $0x118] sm:$0xff] %vm2143, %v2048
        %2175 = vst [vmem:[#allocation2 + $0x120] sm:$0xff] %v2085
        %2176 = vst [vmem:[#allocation2 + $0x128] sm:$0xff] %v2086
        %2177 = vst [vmem:[#allocation2 + $0x130] sm:$0xff] %v2087
        %2178 = vst.msk [vmem:[#allocation2 + $0x138] sm:$0xff] %vm2063, %v2054
        %vm2179 = vcmask 1040448
        %2180 = vst.msk [vmem:[#allocation2 + $0x140] sm:$0x1] %vm2179, %v2056
        %2181 = vst [vmem:[#allocation2 + $0x148] sm:$0x1] %v2088
        %2182 = vst [vmem:[#allocation2 + $0x150] sm:$0x1] %v2089
        %2183 = vst [vmem:[#allocation2 + $0x158] sm:$0x1] %v2090
        %vm2184 = vcmask 57344
        %2185 = vst.msk [vmem:[#allocation2 + $0x160] sm:$0x1] %vm2184, %v2062
        %v2186 = vld [vmem:[#allocation2] sm:$0xff]
        %v2187 = vld [vmem:[#allocation2 + $0x8] sm:$0xff]
        %v2188 = vld [vmem:[#allocation2 + $0x10] sm:$0xff]
        %v2189 = vld [vmem:[#allocation2 + $0x18] sm:$0xff]
        %v2190 = vld [vmem:[#allocation2 + $0x20] sm:$0xff]
        %v2191 = vld [vmem:[#allocation2 + $0x28] sm:$0xff]
        %v2192 = vld [vmem:[#allocation2 + $0x30] sm:$0xff]
        %v2193 = vld [vmem:[#allocation2 + $0x38] sm:$0xff]
        %v2194 = vld [vmem:[#allocation2 + $0x40] sm:$0xff]
        %v2195 = vld [vmem:[#allocation2 + $0x48] sm:$0xff]
        %v2196 = vld [vmem:[#allocation2 + $0x50] sm:$0xff]
        %v2197 = vld [vmem:[#allocation2 + $0x58] sm:$0xff]
        %v2198 = vld [vmem:[#allocation2 + $0x60] sm:$0xff]
        %v2199 = vld [vmem:[#allocation2 + $0x68] sm:$0xff]
        %v2200 = vld [vmem:[#allocation2 + $0x70] sm:$0xff]
        %v2201 = vld [vmem:[#allocation2 + $0x78] sm:$0xff]
        %v2202 = vld [vmem:[#allocation2 + $0x80] sm:$0xff]
        %v2203 = vld [vmem:[#allocation2 + $0x88] sm:$0xff]
        %v2204 = vld [vmem:[#allocation2 + $0x90] sm:$0xff]
        %v2205 = vld [vmem:[#allocation2 + $0x98] sm:$0xff]
        %v2206 = vld [vmem:[#allocation2 + $0xa0] sm:$0xff]
        %v2207 = vld [vmem:[#allocation2 + $0xa8] sm:$0xff]
        %v2208 = vld [vmem:[#allocation2 + $0xb0] sm:$0xff]
        %v2209 = vld [vmem:[#allocation2 + $0xb8] sm:$0xff]
        %v2210 = vld [vmem:[#allocation2 + $0xc0] sm:$0xff]
        %v2211 = vld [vmem:[#allocation2 + $0xc8] sm:$0xff]
        %v2212 = vld [vmem:[#allocation2 + $0xd0] sm:$0xff]
        %v2213 = vld [vmem:[#allocation2 + $0xd8] sm:$0xff]
        %v2214 = vld [vmem:[#allocation2 + $0xe0] sm:$0xff]
        %v2215 = vld [vmem:[#allocation2 + $0xe8] sm:$0xff]
        %v2216 = vld [vmem:[#allocation2 + $0xf0] sm:$0xff]
        %v2217 = vld [vmem:[#allocation2 + $0xf8] sm:$0xff]
        %v2218 = vld [vmem:[#allocation2 + $0x100] sm:$0xff]
        %v2219 = vld [vmem:[#allocation2 + $0x108] sm:$0xff]
        %v2220 = vld [vmem:[#allocation2 + $0x110] sm:$0xff]
        %v2221 = vld [vmem:[#allocation2 + $0x118] sm:$0xff]
        %v2222 = vld [vmem:[#allocation2 + $0x120] sm:$0xff]
        %v2223 = vld [vmem:[#allocation2 + $0x128] sm:$0xff]
        %v2224 = vld [vmem:[#allocation2 + $0x130] sm:$0xff]
        %v2225 = vld [vmem:[#allocation2 + $0x138] sm:$0xff]
        %v2226 = vld [vmem:[#allocation13] sm:$0xff]
        %v2227 = vld [vmem:[#allocation13 + $0x8] sm:$0xff]
        %v2228 = vld [vmem:[#allocation13 + $0x10] sm:$0xff]
        %v2229 = vld [vmem:[#allocation13 + $0x18] sm:$0xff]
        %v2230 = vld [vmem:[#allocation13 + $0x20] sm:$0xff]
        %v2231 = vld [vmem:[#allocation13 + $0x28] sm:$0xff]
        %v2232 = vld [vmem:[#allocation13 + $0x30] sm:$0xff]
        %v2233 = vld [vmem:[#allocation13 + $0x38] sm:$0xff]
        %v2234 = vld [vmem:[#allocation13 + $0x40] sm:$0xff]
        %v2235 = vld [vmem:[#allocation13 + $0x48] sm:$0xff]
        %v2236 = vld [vmem:[#allocation13 + $0x50] sm:$0xff]
        %v2237 = vld [vmem:[#allocation13 + $0x58] sm:$0xff]
        %v2238 = vld [vmem:[#allocation13 + $0x60] sm:$0xff]
        %v2239 = vld [vmem:[#allocation13 + $0x68] sm:$0xff]
        %v2240 = vld [vmem:[#allocation13 + $0x70] sm:$0xff]
        %v2241 = vld [vmem:[#allocation13 + $0x78] sm:$0xff]
        %v2242 = vld [vmem:[#allocation13 + $0x80] sm:$0xff]
        %v2243 = vld [vmem:[#allocation13 + $0x88] sm:$0xff]
        %v2244 = vld [vmem:[#allocation13 + $0x90] sm:$0xff]
        %v2245 = vld [vmem:[#allocation13 + $0x98] sm:$0xff]
        %v2246 = vld [vmem:[#allocation13 + $0xa0] sm:$0xff]
        %v2247 = vld [vmem:[#allocation13 + $0xa8] sm:$0xff]
        %v2248 = vld [vmem:[#allocation13 + $0xb0] sm:$0xff]
        %v2249 = vld [vmem:[#allocation13 + $0xb8] sm:$0xff]
        %v2250 = vld [vmem:[#allocation13 + $0xc0] sm:$0xff]
        %v2251 = vld [vmem:[#allocation13 + $0xc8] sm:$0xff]
        %v2252 = vld [vmem:[#allocation13 + $0xd0] sm:$0xff]
        %v2253 = vld [vmem:[#allocation13 + $0xd8] sm:$0xff]
        %v2254 = vld [vmem:[#allocation13 + $0xe0] sm:$0xff]
        %v2255 = vld [vmem:[#allocation13 + $0xe8] sm:$0xff]
        %v2256 = vld [vmem:[#allocation13 + $0xf0] sm:$0xff]
        %v2257 = vld [vmem:[#allocation13 + $0xf8] sm:$0xff]
        %v2258 = vld [vmem:[#allocation13 + $0x100] sm:$0xff]
        %v2259 = vld [vmem:[#allocation13 + $0x108] sm:$0xff]
        %v2260 = vld [vmem:[#allocation13 + $0x110] sm:$0xff]
        %v2261 = vld [vmem:[#allocation13 + $0x118] sm:$0xff]
        %v2262 = vld [vmem:[#allocation13 + $0x120] sm:$0xff]
        %v2263 = vld [vmem:[#allocation13 + $0x128] sm:$0xff]
        %v2264 = vld [vmem:[#allocation13 + $0x130] sm:$0xff]
        %v2265 = vld [vmem:[#allocation13 + $0x138] sm:$0xff]
        %v2266 = vld [vmem:[#allocation13 + $0x140] sm:$0xff]
        %v2267 = vld [vmem:[#allocation13 + $0x148] sm:$0xff]
        %v2268 = vld [vmem:[#allocation13 + $0x150] sm:$0xff]
        %v2269 = vld [vmem:[#allocation13 + $0x158] sm:$0xff]
        %v2270 = vld [vmem:[#allocation13 + $0x160] sm:$0xff]
        %v2271 = vld [vmem:[#allocation13 + $0x168] sm:$0xff]
        %v2272 = vld [vmem:[#allocation13 + $0x170] sm:$0xff]
        %v2273 = vld [vmem:[#allocation13 + $0x178] sm:$0xff]
        %v2274 = vld [vmem:[#allocation13 + $0x180] sm:$0xff]
        %v2275 = vld [vmem:[#allocation13 + $0x188] sm:$0xff]
        %v2276 = vld [vmem:[#allocation13 + $0x190] sm:$0xff]
        %v2277 = vld [vmem:[#allocation13 + $0x198] sm:$0xff]
        %v2278 = vld [vmem:[#allocation13 + $0x1a0] sm:$0xff]
        %v2279 = vld [vmem:[#allocation13 + $0x1a8] sm:$0xff]
        %v2280 = vld [vmem:[#allocation13 + $0x1b0] sm:$0xff]
        %v2281 = vld [vmem:[#allocation13 + $0x1b8] sm:$0xff]
        %v2282 = vld [vmem:[#allocation13 + $0x1c0] sm:$0xff]
        %v2283 = vld [vmem:[#allocation13 + $0x1c8] sm:$0xff]
        %v2284 = vld [vmem:[#allocation13 + $0x1d0] sm:$0xff]
        %v2285 = vld [vmem:[#allocation13 + $0x1d8] sm:$0xff]
        %v2286 = vld [vmem:[#allocation13 + $0x1e0] sm:$0xff]
        %v2287 = vld [vmem:[#allocation13 + $0x1e8] sm:$0xff]
        %v2288 = vld [vmem:[#allocation13 + $0x1f0] sm:$0xff]
        %v2289 = vld [vmem:[#allocation13 + $0x1f8] sm:$0xff]
        %v2290 = vld [vmem:[#allocation13 + $0x200] sm:$0xff]
        %v2291 = vld [vmem:[#allocation13 + $0x208] sm:$0xff]
        %v2292 = vld [vmem:[#allocation13 + $0x210] sm:$0xff]
        %v2293 = vld [vmem:[#allocation13 + $0x218] sm:$0xff]
        %v2294 = vld [vmem:[#allocation13 + $0x220] sm:$0xff]
        %v2295 = vld [vmem:[#allocation13 + $0x228] sm:$0xff]
        %v2296 = vld [vmem:[#allocation13 + $0x230] sm:$0xff]
        %v2297 = vld [vmem:[#allocation13 + $0x238] sm:$0xff]
        %v2298 = vld [vmem:[#allocation13 + $0x240] sm:$0xff]
        %v2299 = vld [vmem:[#allocation13 + $0x248] sm:$0xff]
        %v2300 = vld [vmem:[#allocation13 + $0x250] sm:$0xff]
        %v2301 = vld [vmem:[#allocation13 + $0x258] sm:$0xff]
        %v2302 = vld [vmem:[#allocation13 + $0x260] sm:$0xff]
        %v2303 = vld [vmem:[#allocation13 + $0x268] sm:$0xff]
        %v2304 = vld [vmem:[#allocation13 + $0x270] sm:$0xff]
        %v2305 = vld [vmem:[#allocation13 + $0x278] sm:$0xff]
        %v2306 = vld [vmem:[#allocation13 + $0x280] sm:$0xff]
        %v2307 = vld [vmem:[#allocation13 + $0x288] sm:$0xff]
        %v2308 = vld [vmem:[#allocation13 + $0x290] sm:$0xff]
        %v2309 = vld [vmem:[#allocation13 + $0x298] sm:$0xff]
        %v2310 = vld [vmem:[#allocation13 + $0x2a0] sm:$0xff]
        %v2311 = vld [vmem:[#allocation13 + $0x2a8] sm:$0xff]
        %v2312 = vld [vmem:[#allocation13 + $0x2b0] sm:$0xff]
        %v2313 = vld [vmem:[#allocation13 + $0x2b8] sm:$0xff]
        %v2314 = vld [vmem:[#allocation13 + $0x2c0] sm:$0xff]
        %v2315 = vld [vmem:[#allocation13 + $0x2c8] sm:$0xff]
        %v2316 = vld [vmem:[#allocation13 + $0x2d0] sm:$0xff]
        %v2317 = vld [vmem:[#allocation13 + $0x2d8] sm:$0xff]
        %v2318 = vld [vmem:[#allocation13 + $0x2e0] sm:$0xff]
        %v2319 = vld [vmem:[#allocation13 + $0x2e8] sm:$0xff]
        %v2320 = vld [vmem:[#allocation13 + $0x2f0] sm:$0xff]
        %v2321 = vld [vmem:[#allocation13 + $0x2f8] sm:$0xff]
        %v2322 = vld [vmem:[#allocation13 + $0x300] sm:$0xff]
        %v2323 = vld [vmem:[#allocation13 + $0x308] sm:$0xff]
        %v2324 = vld [vmem:[#allocation13 + $0x310] sm:$0xff]
        %v2325 = vld [vmem:[#allocation13 + $0x318] sm:$0xff]
        %v2326 = vld [vmem:[#allocation13 + $0x320] sm:$0xff]
        %v2327 = vld [vmem:[#allocation13 + $0x328] sm:$0xff]
        %v2328 = vld [vmem:[#allocation13 + $0x330] sm:$0xff]
        %v2329 = vld [vmem:[#allocation13 + $0x338] sm:$0xff]
        %v2330 = vld [vmem:[#allocation13 + $0x340] sm:$0xff]
        %v2331 = vld [vmem:[#allocation13 + $0x348] sm:$0xff]
        %v2332 = vld [vmem:[#allocation13 + $0x350] sm:$0xff]
        %v2333 = vld [vmem:[#allocation13 + $0x358] sm:$0xff]
        %v2334 = vld [vmem:[#allocation13 + $0x360] sm:$0xff]
        %v2335 = vld [vmem:[#allocation13 + $0x368] sm:$0xff]
        %v2336 = vld [vmem:[#allocation13 + $0x370] sm:$0xff]
        %v2337 = vld [vmem:[#allocation13 + $0x378] sm:$0xff]
        %v2338 = vld [vmem:[#allocation13 + $0x380] sm:$0xff]
        %v2339 = vld [vmem:[#allocation13 + $0x388] sm:$0xff]
        %v2340 = vld [vmem:[#allocation13 + $0x390] sm:$0xff]
        %v2341 = vld [vmem:[#allocation13 + $0x398] sm:$0xff]
        %v2342 = vld [vmem:[#allocation13 + $0x3a0] sm:$0xff]
        %v2343 = vld [vmem:[#allocation13 + $0x3a8] sm:$0xff]
        %v2344 = vld [vmem:[#allocation13 + $0x3b0] sm:$0xff]
        %v2345 = vld [vmem:[#allocation13 + $0x3b8] sm:$0xff]
        %v2346 = vld [vmem:[#allocation13 + $0x3c0] sm:$0xff]
        %v2347 = vld [vmem:[#allocation13 + $0x3c8] sm:$0xff]
        %v2348 = vld [vmem:[#allocation13 + $0x3d0] sm:$0xff]
        %v2349 = vld [vmem:[#allocation13 + $0x3d8] sm:$0xff]
        %v2350 = vld [vmem:[#allocation13 + $0x3e0] sm:$0xff]
        %v2351 = vld [vmem:[#allocation13 + $0x3e8] sm:$0xff]
        %v2352 = vld [vmem:[#allocation13 + $0x3f0] sm:$0xff]
        %v2353 = vld [vmem:[#allocation13 + $0x3f8] sm:$0xff]
        %v2354 = vld [vmem:[#allocation13 + $0x400] sm:$0xff]
        %v2355 = vld [vmem:[#allocation13 + $0x408] sm:$0xff]
        %v2356 = vld [vmem:[#allocation13 + $0x410] sm:$0xff]
        %v2357 = vld [vmem:[#allocation13 + $0x418] sm:$0xff]
        %v2358 = vld [vmem:[#allocation13 + $0x420] sm:$0xff]
        %v2359 = vld [vmem:[#allocation13 + $0x428] sm:$0xff]
        %v2360 = vld [vmem:[#allocation13 + $0x430] sm:$0xff]
        %v2361 = vld [vmem:[#allocation13 + $0x438] sm:$0xff]
        %v2362 = vld [vmem:[#allocation13 + $0x440] sm:$0xff]
        %v2363 = vld [vmem:[#allocation13 + $0x448] sm:$0xff]
        %v2364 = vld [vmem:[#allocation13 + $0x450] sm:$0xff]
        %v2365 = vld [vmem:[#allocation13 + $0x458] sm:$0xff]
        %v2366 = vld [vmem:[#allocation13 + $0x460] sm:$0xff]
        %v2367 = vld [vmem:[#allocation13 + $0x468] sm:$0xff]
        %v2368 = vld [vmem:[#allocation13 + $0x470] sm:$0xff]
        %v2369 = vld [vmem:[#allocation13 + $0x478] sm:$0xff]
        %v2370 = vld [vmem:[#allocation13 + $0x480] sm:$0xff]
        %v2371 = vld [vmem:[#allocation13 + $0x488] sm:$0xff]
        %v2372 = vld [vmem:[#allocation13 + $0x490] sm:$0xff]
        %v2373 = vld [vmem:[#allocation13 + $0x498] sm:$0xff]
        %v2374 = vld [vmem:[#allocation13 + $0x4a0] sm:$0xff]
        %v2375 = vld [vmem:[#allocation13 + $0x4a8] sm:$0xff]
        %v2376 = vld [vmem:[#allocation13 + $0x4b0] sm:$0xff]
        %v2377 = vld [vmem:[#allocation13 + $0x4b8] sm:$0xff]
        %v2378 = vld [vmem:[#allocation13 + $0x4c0] sm:$0xff]
        %v2379 = vld [vmem:[#allocation13 + $0x4c8] sm:$0xff]
        %v2380 = vld [vmem:[#allocation13 + $0x4d0] sm:$0xff]
        %v2381 = vld [vmem:[#allocation13 + $0x4d8] sm:$0xff]
        %v2382 = vld [vmem:[#allocation13 + $0x4e0] sm:$0xff]
        %v2383 = vld [vmem:[#allocation13 + $0x4e8] sm:$0xff]
        %v2384 = vld [vmem:[#allocation13 + $0x4f0] sm:$0xff]
        %v2385 = vld [vmem:[#allocation13 + $0x4f8] sm:$0xff]
        %v2386 = vld [vmem:[#allocation13 + $0x500] sm:$0xff]
        %v2387 = vld [vmem:[#allocation13 + $0x508] sm:$0xff]
        %v2388 = vld [vmem:[#allocation13 + $0x510] sm:$0xff]
        %v2389 = vld [vmem:[#allocation13 + $0x518] sm:$0xff]
        %v2390 = vld [vmem:[#allocation13 + $0x520] sm:$0xff]
        %v2391 = vld [vmem:[#allocation13 + $0x528] sm:$0xff]
        %v2392 = vld [vmem:[#allocation13 + $0x530] sm:$0xff]
        %v2393 = vld [vmem:[#allocation13 + $0x538] sm:$0xff]
        %v2394 = vld [vmem:[#allocation13 + $0x540] sm:$0xff]
        %v2395 = vld [vmem:[#allocation13 + $0x548] sm:$0xff]
        %v2396 = vld [vmem:[#allocation13 + $0x550] sm:$0xff]
        %v2397 = vld [vmem:[#allocation13 + $0x558] sm:$0xff]
        %v2398 = vld [vmem:[#allocation13 + $0x560] sm:$0xff]
        %v2399 = vld [vmem:[#allocation13 + $0x568] sm:$0xff]
        %v2400 = vld [vmem:[#allocation13 + $0x570] sm:$0xff]
        %v2401 = vld [vmem:[#allocation13 + $0x578] sm:$0xff]
        %v2402 = vld [vmem:[#allocation13 + $0x580] sm:$0xff]
        %v2403 = vld [vmem:[#allocation13 + $0x588] sm:$0xff]
        %v2404 = vld [vmem:[#allocation13 + $0x590] sm:$0xff]
        %v2405 = vld [vmem:[#allocation13 + $0x598] sm:$0xff]
        %v2406 = vld [vmem:[#allocation13 + $0x5a0] sm:$0xff]
        %v2407 = vld [vmem:[#allocation13 + $0x5a8] sm:$0xff]
        %v2408 = vld [vmem:[#allocation13 + $0x5b0] sm:$0xff]
        %v2409 = vld [vmem:[#allocation13 + $0x5b8] sm:$0xff]
        %v2410 = vld [vmem:[#allocation13 + $0x5c0] sm:$0xff]
        %v2411 = vld [vmem:[#allocation13 + $0x5c8] sm:$0xff]
        %v2412 = vld [vmem:[#allocation13 + $0x5d0] sm:$0xff]
        %v2413 = vld [vmem:[#allocation13 + $0x5d8] sm:$0xff]
        %v2414 = vld [vmem:[#allocation13 + $0x5e0] sm:$0xff]
        %v2415 = vld [vmem:[#allocation13 + $0x5e8] sm:$0xff]
        %v2416 = vld [vmem:[#allocation13 + $0x5f0] sm:$0xff]
        %v2417 = vld [vmem:[#allocation13 + $0x5f8] sm:$0xff]
        %v2418 = vld [vmem:[#allocation13 + $0x600] sm:$0xff]
        %v2419 = vld [vmem:[#allocation13 + $0x608] sm:$0xff]
        %v2420 = vld [vmem:[#allocation13 + $0x610] sm:$0xff]
        %v2421 = vld [vmem:[#allocation13 + $0x618] sm:$0xff]
        %v2422 = vld [vmem:[#allocation13 + $0x620] sm:$0xff]
        %v2423 = vld [vmem:[#allocation13 + $0x628] sm:$0xff]
        %v2424 = vld [vmem:[#allocation13 + $0x630] sm:$0xff]
        %v2425 = vld [vmem:[#allocation13 + $0x638] sm:$0xff]
        %v2426 = vld [vmem:[#allocation13 + $0x640] sm:$0xff]
        %v2427 = vld [vmem:[#allocation13 + $0x648] sm:$0xff]
        %v2428 = vld [vmem:[#allocation13 + $0x650] sm:$0xff]
        %v2429 = vld [vmem:[#allocation13 + $0x658] sm:$0xff]
        %v2430 = vld [vmem:[#allocation13 + $0x660] sm:$0xff]
        %v2431 = vld [vmem:[#allocation13 + $0x668] sm:$0xff]
        %v2432 = vld [vmem:[#allocation13 + $0x670] sm:$0xff]
        %v2433 = vld [vmem:[#allocation13 + $0x678] sm:$0xff]
        %v2434 = vld [vmem:[#allocation13 + $0x680] sm:$0xff]
        %v2435 = vld [vmem:[#allocation13 + $0x688] sm:$0xff]
        %v2436 = vld [vmem:[#allocation13 + $0x690] sm:$0xff]
        %v2437 = vld [vmem:[#allocation13 + $0x698] sm:$0xff]
        %v2438 = vld [vmem:[#allocation13 + $0x6a0] sm:$0xff]
        %v2439 = vld [vmem:[#allocation13 + $0x6a8] sm:$0xff]
        %v2440 = vld [vmem:[#allocation13 + $0x6b0] sm:$0xff]
        %v2441 = vld [vmem:[#allocation13 + $0x6b8] sm:$0xff]
        %v2442 = vld [vmem:[#allocation13 + $0x6c0] sm:$0xff]
        %v2443 = vld [vmem:[#allocation13 + $0x6c8] sm:$0xff]
        %v2444 = vld [vmem:[#allocation13 + $0x6d0] sm:$0xff]
        %v2445 = vld [vmem:[#allocation13 + $0x6d8] sm:$0xff]
        %v2446 = vld [vmem:[#allocation13 + $0x6e0] sm:$0xff]
        %v2447 = vld [vmem:[#allocation13 + $0x6e8] sm:$0xff]
        %v2448 = vld [vmem:[#allocation13 + $0x6f0] sm:$0xff]
        %v2449 = vld [vmem:[#allocation13 + $0x6f8] sm:$0xff]
        %v2450 = vld [vmem:[#allocation13 + $0x700] sm:$0xff]
        %v2451 = vld [vmem:[#allocation13 + $0x708] sm:$0xff]
        %v2452 = vld [vmem:[#allocation13 + $0x710] sm:$0xff]
        %v2453 = vld [vmem:[#allocation13 + $0x718] sm:$0xff]
        %v2454 = vld [vmem:[#allocation13 + $0x720] sm:$0xff]
        %v2455 = vld [vmem:[#allocation13 + $0x728] sm:$0xff]
        %v2456 = vld [vmem:[#allocation13 + $0x730] sm:$0xff]
        %v2457 = vld [vmem:[#allocation13 + $0x738] sm:$0xff]
        %v2458 = vld [vmem:[#allocation13 + $0x740] sm:$0xff]
        %v2459 = vld [vmem:[#allocation13 + $0x748] sm:$0xff]
        %v2460 = vld [vmem:[#allocation13 + $0x750] sm:$0xff]
        %v2461 = vld [vmem:[#allocation13 + $0x758] sm:$0xff]
        %v2462 = vld [vmem:[#allocation13 + $0x760] sm:$0xff]
        %v2463 = vld [vmem:[#allocation13 + $0x768] sm:$0xff]
        %v2464 = vld [vmem:[#allocation13 + $0x770] sm:$0xff]
        %v2465 = vld [vmem:[#allocation13 + $0x778] sm:$0xff]
        %v2466 = vld [vmem:[#allocation13 + $0x780] sm:$0xff]
        %v2467 = vld [vmem:[#allocation13 + $0x788] sm:$0xff]
        %v2468 = vld [vmem:[#allocation13 + $0x790] sm:$0xff]
        %v2469 = vld [vmem:[#allocation13 + $0x798] sm:$0xff]
        %v2470 = vld [vmem:[#allocation13 + $0x7a0] sm:$0xff]
        %v2471 = vld [vmem:[#allocation13 + $0x7a8] sm:$0xff]
        %v2472 = vld [vmem:[#allocation13 + $0x7b0] sm:$0xff]
        %v2473 = vld [vmem:[#allocation13 + $0x7b8] sm:$0xff]
        %v2474 = vld [vmem:[#allocation13 + $0x7c0] sm:$0xff]
        %v2475 = vld [vmem:[#allocation13 + $0x7c8] sm:$0xff]
        %v2476 = vld [vmem:[#allocation13 + $0x7d0] sm:$0xff]
        %v2477 = vld [vmem:[#allocation13 + $0x7d8] sm:$0xff]
        %v2478 = vld [vmem:[#allocation13 + $0x7e0] sm:$0xff]
        %v2479 = vld [vmem:[#allocation13 + $0x7e8] sm:$0xff]
        %v2480 = vld [vmem:[#allocation13 + $0x7f0] sm:$0xff]
        %v2481 = vld [vmem:[#allocation13 + $0x7f8] sm:$0xff]
        %v2482 = vld [vmem:[#allocation13 + $0x800] sm:$0xff]
        %v2483 = vld [vmem:[#allocation13 + $0x808] sm:$0xff]
        %v2484 = vld [vmem:[#allocation13 + $0x810] sm:$0xff]
        %v2485 = vld [vmem:[#allocation13 + $0x818] sm:$0xff]
        %v2486 = vld [vmem:[#allocation13 + $0x820] sm:$0xff]
        %v2487 = vld [vmem:[#allocation13 + $0x828] sm:$0xff]
        %v2488 = vld [vmem:[#allocation13 + $0x830] sm:$0xff]
        %v2489 = vld [vmem:[#allocation13 + $0x838] sm:$0xff]
        %v2490 = vld [vmem:[#allocation2] sm:$0xfe]
        %v2491 = vld [vmem:[#allocation2 + $0x8] sm:$0xfe]
        %v2492 = vld [vmem:[#allocation2 + $0x10] sm:$0xfe]
        %v2493 = vld [vmem:[#allocation2 + $0x18] sm:$0xfe]
        %v2494 = vld [vmem:[#allocation2 + $0x20] sm:$0xfe]
        %v2495 = vld [vmem:[#allocation2 + $0x140] sm:$0x1]
        %v2496 = vld [vmem:[#allocation2 + $0x148] sm:$0x1]
        %v2497 = vld [vmem:[#allocation2 + $0x150] sm:$0x1]
        %v2498 = vld [vmem:[#allocation2 + $0x158] sm:$0x1]
        %v2499 = vld [vmem:[#allocation2 + $0x160] sm:$0x1]
        %s2500 = scalar_lea.vmem [#allocation13], 2112
        %v2501 = vld [vmem:[%s2500] sm:$0xff]
        %v2502 = vld [vmem:[%s2500 + $0x8] sm:$0xff]
        %v2503 = vld [vmem:[%s2500 + $0x10] sm:$0xff]
        %v2504 = vld [vmem:[%s2500 + $0x18] sm:$0xff]
        %v2505 = vld [vmem:[%s2500 + $0x20] sm:$0xff]
        %v2506 = vld [vmem:[%s2500 + $0x28] sm:$0xff]
        %v2507 = vld [vmem:[%s2500 + $0x30] sm:$0xff]
        %v2508 = vld [vmem:[%s2500 + $0x38] sm:$0xff]
        %v2509 = vld [vmem:[%s2500 + $0x40] sm:$0xff]
        %v2510 = vld [vmem:[%s2500 + $0x48] sm:$0xff]
        %v2511 = vld [vmem:[%s2500 + $0x50] sm:$0xff]
        %v2512 = vld [vmem:[%s2500 + $0x58] sm:$0xff]
        %v2513 = vld [vmem:[%s2500 + $0x60] sm:$0xff]
        %v2514 = vld [vmem:[%s2500 + $0x68] sm:$0xff]
        %v2515 = vld [vmem:[%s2500 + $0x70] sm:$0xff]
        %v2516 = vld [vmem:[%s2500 + $0x78] sm:$0xff]
        %v2517 = vld [vmem:[%s2500 + $0x80] sm:$0xff]
        %v2518 = vld [vmem:[%s2500 + $0x88] sm:$0xff]
        %v2519 = vld [vmem:[%s2500 + $0x90] sm:$0xff]
        %v2520 = vld [vmem:[%s2500 + $0x98] sm:$0xff]
        %v2521 = vld [vmem:[%s2500 + $0xa0] sm:$0xff]
        %v2522 = vld [vmem:[%s2500 + $0xa8] sm:$0xff]
        %v2523 = vld [vmem:[%s2500 + $0xb0] sm:$0xff]
        %v2524 = vld [vmem:[%s2500 + $0xb8] sm:$0xff]
        %v2525 = vld [vmem:[%s2500 + $0xc0] sm:$0xff]
        %v2526 = vld [vmem:[%s2500 + $0xc8] sm:$0xff]
        %v2527 = vld [vmem:[%s2500 + $0xd0] sm:$0xff]
        %v2528 = vld [vmem:[%s2500 + $0xd8] sm:$0xff]
        %v2529 = vld [vmem:[%s2500 + $0xe0] sm:$0xff]
        %v2530 = vld [vmem:[%s2500 + $0xe8] sm:$0xff]
        %v2531 = vld [vmem:[%s2500 + $0xf0] sm:$0xff]
        %v2532 = vld [vmem:[%s2500 + $0xf8] sm:$0xff]
        %v2533 = vld [vmem:[%s2500 + $0x100] sm:$0xff]
        %v2534 = vld [vmem:[%s2500 + $0x108] sm:$0xff]
        %v2535 = vld [vmem:[%s2500 + $0x110] sm:$0xff]
        %v2536 = vld [vmem:[%s2500 + $0x118] sm:$0xff]
        %v2537 = vld [vmem:[%s2500 + $0x120] sm:$0xff]
        %v2538 = vld [vmem:[%s2500 + $0x128] sm:$0xff]
        %v2539 = vld [vmem:[%s2500 + $0x130] sm:$0xff]
        %v2540 = vld [vmem:[%s2500 + $0x138] sm:$0xff]
        %v2541 = vld [vmem:[%s2500 + $0x140] sm:$0xff]
        %v2542 = vld [vmem:[%s2500 + $0x148] sm:$0xff]
        %v2543 = vld [vmem:[%s2500 + $0x150] sm:$0xff]
        %v2544 = vld [vmem:[%s2500 + $0x158] sm:$0xff]
        %v2545 = vld [vmem:[%s2500 + $0x160] sm:$0xff]
        %v2546 = vld [vmem:[%s2500 + $0x168] sm:$0xff]
        %v2547 = vld [vmem:[%s2500 + $0x170] sm:$0xff]
        %v2548 = vld [vmem:[%s2500 + $0x178] sm:$0xff]
        %v2549 = vld [vmem:[%s2500 + $0x180] sm:$0xff]
        %v2550 = vld [vmem:[%s2500 + $0x188] sm:$0xff]
        %v2551 = vld [vmem:[%s2500 + $0x190] sm:$0xff]
        %v2552 = vld [vmem:[%s2500 + $0x198] sm:$0xff]
        %v2553 = vld [vmem:[%s2500 + $0x1a0] sm:$0xff]
        %v2554 = vld [vmem:[%s2500 + $0x1a8] sm:$0xff]
        %v2555 = vld [vmem:[%s2500 + $0x1b0] sm:$0xff]
        %v2556 = vld [vmem:[%s2500 + $0x1b8] sm:$0xff]
        %v2557 = vld [vmem:[%s2500 + $0x1c0] sm:$0xff]
        %v2558 = vld [vmem:[%s2500 + $0x1c8] sm:$0xff]
        %v2559 = vld [vmem:[%s2500 + $0x1d0] sm:$0xff]
        %v2560 = vld [vmem:[%s2500 + $0x1d8] sm:$0xff]
        %v2561 = vld [vmem:[%s2500 + $0x1e0] sm:$0xff]
        %v2562 = vld [vmem:[%s2500 + $0x1e8] sm:$0xff]
        %v2563 = vld [vmem:[%s2500 + $0x1f0] sm:$0xff]
        %v2564 = vld [vmem:[%s2500 + $0x1f8] sm:$0xff]
        %v2565 = vld [vmem:[%s2500 + $0x200] sm:$0xff]
        %v2566 = vld [vmem:[%s2500 + $0x208] sm:$0xff]
        %v2567 = vld [vmem:[%s2500 + $0x210] sm:$0xff]
        %v2568 = vld [vmem:[%s2500 + $0x218] sm:$0xff]
        %v2569 = vld [vmem:[%s2500 + $0x220] sm:$0xff]
        %v2570 = vld [vmem:[%s2500 + $0x228] sm:$0xff]
        %v2571 = vld [vmem:[%s2500 + $0x230] sm:$0xff]
        %v2572 = vld [vmem:[%s2500 + $0x238] sm:$0xff]
        %v2573 = vld [vmem:[%s2500 + $0x240] sm:$0xff]
        %v2574 = vld [vmem:[%s2500 + $0x248] sm:$0xff]
        %v2575 = vld [vmem:[%s2500 + $0x250] sm:$0xff]
        %v2576 = vld [vmem:[%s2500 + $0x258] sm:$0xff]
        %v2577 = vld [vmem:[%s2500 + $0x260] sm:$0xff]
        %v2578 = vld [vmem:[%s2500 + $0x268] sm:$0xff]
        %v2579 = vld [vmem:[%s2500 + $0x270] sm:$0xff]
        %v2580 = vld [vmem:[%s2500 + $0x278] sm:$0xff]
        %v2581 = vld [vmem:[%s2500 + $0x280] sm:$0xff]
        %v2582 = vld [vmem:[%s2500 + $0x288] sm:$0xff]
        %v2583 = vld [vmem:[%s2500 + $0x290] sm:$0xff]
        %v2584 = vld [vmem:[%s2500 + $0x298] sm:$0xff]
        %v2585 = vld [vmem:[%s2500 + $0x2a0] sm:$0xff]
        %v2586 = vld [vmem:[%s2500 + $0x2a8] sm:$0xff]
        %v2587 = vld [vmem:[%s2500 + $0x2b0] sm:$0xff]
        %v2588 = vld [vmem:[%s2500 + $0x2b8] sm:$0xff]
        %v2589 = vld [vmem:[%s2500 + $0x2c0] sm:$0xff]
        %v2590 = vld [vmem:[%s2500 + $0x2c8] sm:$0xff]
        %v2591 = vld [vmem:[%s2500 + $0x2d0] sm:$0xff]
        %v2592 = vld [vmem:[%s2500 + $0x2d8] sm:$0xff]
        %v2593 = vld [vmem:[%s2500 + $0x2e0] sm:$0xff]
        %v2594 = vld [vmem:[%s2500 + $0x2e8] sm:$0xff]
        %v2595 = vld [vmem:[%s2500 + $0x2f0] sm:$0xff]
        %v2596 = vld [vmem:[%s2500 + $0x2f8] sm:$0xff]
        %v2597 = vld [vmem:[%s2500 + $0x300] sm:$0xff]
        %v2598 = vld [vmem:[%s2500 + $0x308] sm:$0xff]
        %v2599 = vld [vmem:[%s2500 + $0x310] sm:$0xff]
        %v2600 = vld [vmem:[%s2500 + $0x318] sm:$0xff]
        %v2601 = vld [vmem:[%s2500 + $0x320] sm:$0xff]
        %v2602 = vld [vmem:[%s2500 + $0x328] sm:$0xff]
        %v2603 = vld [vmem:[%s2500 + $0x330] sm:$0xff]
        %v2604 = vld [vmem:[%s2500 + $0x338] sm:$0xff]
        %v2605 = vld [vmem:[%s2500 + $0x340] sm:$0xff]
        %v2606 = vld [vmem:[%s2500 + $0x348] sm:$0xff]
        %v2607 = vld [vmem:[%s2500 + $0x350] sm:$0xff]
        %v2608 = vld [vmem:[%s2500 + $0x358] sm:$0xff]
        %v2609 = vld [vmem:[%s2500 + $0x360] sm:$0xff]
        %v2610 = vld [vmem:[%s2500 + $0x368] sm:$0xff]
        %v2611 = vld [vmem:[%s2500 + $0x370] sm:$0xff]
        %v2612 = vld [vmem:[%s2500 + $0x378] sm:$0xff]
        %v2613 = vld [vmem:[%s2500 + $0x380] sm:$0xff]
        %v2614 = vld [vmem:[%s2500 + $0x388] sm:$0xff]
        %v2615 = vld [vmem:[%s2500 + $0x390] sm:$0xff]
        %v2616 = vld [vmem:[%s2500 + $0x398] sm:$0xff]
        %v2617 = vld [vmem:[%s2500 + $0x3a0] sm:$0xff]
        %v2618 = vld [vmem:[%s2500 + $0x3a8] sm:$0xff]
        %v2619 = vld [vmem:[%s2500 + $0x3b0] sm:$0xff]
        %v2620 = vld [vmem:[%s2500 + $0x3b8] sm:$0xff]
        %v2621 = vld [vmem:[%s2500 + $0x3c0] sm:$0xff]
        %v2622 = vld [vmem:[%s2500 + $0x3c8] sm:$0xff]
        %v2623 = vld [vmem:[%s2500 + $0x3d0] sm:$0xff]
        %v2624 = vld [vmem:[%s2500 + $0x3d8] sm:$0xff]
        %v2625 = vld [vmem:[%s2500 + $0x3e0] sm:$0xff]
        %v2626 = vld [vmem:[%s2500 + $0x3e8] sm:$0xff]
        %v2627 = vld [vmem:[%s2500 + $0x3f0] sm:$0xff]
        %v2628 = vld [vmem:[%s2500 + $0x3f8] sm:$0xff]
        %v2629 = vld [vmem:[%s2500 + $0x400] sm:$0xff]
        %v2630 = vld [vmem:[%s2500 + $0x408] sm:$0xff]
        %v2631 = vld [vmem:[%s2500 + $0x410] sm:$0xff]
        %v2632 = vld [vmem:[%s2500 + $0x418] sm:$0xff]
        %v2633 = vld [vmem:[%s2500 + $0x420] sm:$0xff]
        %v2634 = vld [vmem:[%s2500 + $0x428] sm:$0xff]
        %v2635 = vld [vmem:[%s2500 + $0x430] sm:$0xff]
        %v2636 = vld [vmem:[%s2500 + $0x438] sm:$0xff]
        %v2637 = vld [vmem:[%s2500 + $0x440] sm:$0xff]
        %v2638 = vld [vmem:[%s2500 + $0x448] sm:$0xff]
        %v2639 = vld [vmem:[%s2500 + $0x450] sm:$0xff]
        %v2640 = vld [vmem:[%s2500 + $0x458] sm:$0xff]
        %v2641 = vld [vmem:[%s2500 + $0x460] sm:$0xff]
        %v2642 = vld [vmem:[%s2500 + $0x468] sm:$0xff]
        %v2643 = vld [vmem:[%s2500 + $0x470] sm:$0xff]
        %v2644 = vld [vmem:[%s2500 + $0x478] sm:$0xff]
        %v2645 = vld [vmem:[%s2500 + $0x480] sm:$0xff]
        %v2646 = vld [vmem:[%s2500 + $0x488] sm:$0xff]
        %v2647 = vld [vmem:[%s2500 + $0x490] sm:$0xff]
        %v2648 = vld [vmem:[%s2500 + $0x498] sm:$0xff]
        %v2649 = vld [vmem:[%s2500 + $0x4a0] sm:$0xff]
        %v2650 = vld [vmem:[%s2500 + $0x4a8] sm:$0xff]
        %v2651 = vld [vmem:[%s2500 + $0x4b0] sm:$0xff]
        %v2652 = vld [vmem:[%s2500 + $0x4b8] sm:$0xff]
        %v2653 = vld [vmem:[%s2500 + $0x4c0] sm:$0xff]
        %v2654 = vld [vmem:[%s2500 + $0x4c8] sm:$0xff]
        %v2655 = vld [vmem:[%s2500 + $0x4d0] sm:$0xff]
        %v2656 = vld [vmem:[%s2500 + $0x4d8] sm:$0xff]
        %v2657 = vld [vmem:[%s2500 + $0x4e0] sm:$0xff]
        %v2658 = vld [vmem:[%s2500 + $0x4e8] sm:$0xff]
        %v2659 = vld [vmem:[%s2500 + $0x4f0] sm:$0xff]
        %v2660 = vld [vmem:[%s2500 + $0x4f8] sm:$0xff]
        %v2661 = vld [vmem:[%s2500 + $0x500] sm:$0xff]
        %v2662 = vld [vmem:[%s2500 + $0x508] sm:$0xff]
        %v2663 = vld [vmem:[%s2500 + $0x510] sm:$0xff]
        %v2664 = vld [vmem:[%s2500 + $0x518] sm:$0xff]
        %v2665 = vld [vmem:[%s2500 + $0x520] sm:$0xff]
        %v2666 = vld [vmem:[%s2500 + $0x528] sm:$0xff]
        %v2667 = vld [vmem:[%s2500 + $0x530] sm:$0xff]
        %v2668 = vld [vmem:[%s2500 + $0x538] sm:$0xff]
        %v2669 = vld [vmem:[%s2500 + $0x540] sm:$0xff]
        %v2670 = vld [vmem:[%s2500 + $0x548] sm:$0xff]
        %v2671 = vld [vmem:[%s2500 + $0x550] sm:$0xff]
        %v2672 = vld [vmem:[%s2500 + $0x558] sm:$0xff]
        %v2673 = vld [vmem:[%s2500 + $0x560] sm:$0xff]
        %v2674 = vld [vmem:[%s2500 + $0x568] sm:$0xff]
        %v2675 = vld [vmem:[%s2500 + $0x570] sm:$0xff]
        %v2676 = vld [vmem:[%s2500 + $0x578] sm:$0xff]
        %v2677 = vld [vmem:[%s2500 + $0x580] sm:$0xff]
        %v2678 = vld [vmem:[%s2500 + $0x588] sm:$0xff]
        %v2679 = vld [vmem:[%s2500 + $0x590] sm:$0xff]
        %v2680 = vld [vmem:[%s2500 + $0x598] sm:$0xff]
        %v2681 = vld [vmem:[%s2500 + $0x5a0] sm:$0xff]
        %v2682 = vld [vmem:[%s2500 + $0x5a8] sm:$0xff]
        %v2683 = vld [vmem:[%s2500 + $0x5b0] sm:$0xff]
        %v2684 = vld [vmem:[%s2500 + $0x5b8] sm:$0xff]
        %v2685 = vld [vmem:[%s2500 + $0x5c0] sm:$0xff]
        %v2686 = vld [vmem:[%s2500 + $0x5c8] sm:$0xff]
        %v2687 = vld [vmem:[%s2500 + $0x5d0] sm:$0xff]
        %v2688 = vld [vmem:[%s2500 + $0x5d8] sm:$0xff]
        %v2689 = vld [vmem:[%s2500 + $0x5e0] sm:$0xff]
        %v2690 = vld [vmem:[%s2500 + $0x5e8] sm:$0xff]
        %v2691 = vld [vmem:[%s2500 + $0x5f0] sm:$0xff]
        %v2692 = vld [vmem:[%s2500 + $0x5f8] sm:$0xff]
        %v2693 = vld [vmem:[%s2500 + $0x600] sm:$0xff]
        %v2694 = vld [vmem:[%s2500 + $0x608] sm:$0xff]
        %v2695 = vld [vmem:[%s2500 + $0x610] sm:$0xff]
        %v2696 = vld [vmem:[%s2500 + $0x618] sm:$0xff]
        %v2697 = vld [vmem:[%s2500 + $0x620] sm:$0xff]
        %v2698 = vld [vmem:[%s2500 + $0x628] sm:$0xff]
        %v2699 = vld [vmem:[%s2500 + $0x630] sm:$0xff]
        %v2700 = vld [vmem:[%s2500 + $0x638] sm:$0xff]
        %v2701 = vld [vmem:[%s2500 + $0x640] sm:$0xff]
        %v2702 = vld [vmem:[%s2500 + $0x648] sm:$0xff]
        %v2703 = vld [vmem:[%s2500 + $0x650] sm:$0xff]
        %v2704 = vld [vmem:[%s2500 + $0x658] sm:$0xff]
        %v2705 = vld [vmem:[%s2500 + $0x660] sm:$0xff]
        %v2706 = vld [vmem:[%s2500 + $0x668] sm:$0xff]
        %v2707 = vld [vmem:[%s2500 + $0x670] sm:$0xff]
        %v2708 = vld [vmem:[%s2500 + $0x678] sm:$0xff]
        %v2709 = vld [vmem:[%s2500 + $0x680] sm:$0xff]
        %v2710 = vld [vmem:[%s2500 + $0x688] sm:$0xff]
        %v2711 = vld [vmem:[%s2500 + $0x690] sm:$0xff]
        %v2712 = vld [vmem:[%s2500 + $0x698] sm:$0xff]
        %v2713 = vld [vmem:[%s2500 + $0x6a0] sm:$0xff]
        %v2714 = vld [vmem:[%s2500 + $0x6a8] sm:$0xff]
        %v2715 = vld [vmem:[%s2500 + $0x6b0] sm:$0xff]
        %v2716 = vld [vmem:[%s2500 + $0x6b8] sm:$0xff]
        %v2717 = vld [vmem:[%s2500 + $0x6c0] sm:$0xff]
        %v2718 = vld [vmem:[%s2500 + $0x6c8] sm:$0xff]
        %v2719 = vld [vmem:[%s2500 + $0x6d0] sm:$0xff]
        %v2720 = vld [vmem:[%s2500 + $0x6d8] sm:$0xff]
        %v2721 = vld [vmem:[%s2500 + $0x6e0] sm:$0xff]
        %v2722 = vld [vmem:[%s2500 + $0x6e8] sm:$0xff]
        %v2723 = vld [vmem:[%s2500 + $0x6f0] sm:$0xff]
        %v2724 = vld [vmem:[%s2500 + $0x6f8] sm:$0xff]
        %v2725 = vld [vmem:[%s2500 + $0x700] sm:$0xff]
        %v2726 = vld [vmem:[%s2500 + $0x708] sm:$0xff]
        %v2727 = vld [vmem:[%s2500 + $0x710] sm:$0xff]
        %v2728 = vld [vmem:[%s2500 + $0x718] sm:$0xff]
        %v2729 = vld [vmem:[%s2500 + $0x720] sm:$0xff]
        %v2730 = vld [vmem:[%s2500 + $0x728] sm:$0xff]
        %v2731 = vld [vmem:[%s2500 + $0x730] sm:$0xff]
        %v2732 = vld [vmem:[%s2500 + $0x738] sm:$0xff]
        %v2733 = vld [vmem:[%s2500 + $0x740] sm:$0xff]
        %v2734 = vld [vmem:[%s2500 + $0x748] sm:$0xff]
        %v2735 = vld [vmem:[%s2500 + $0x750] sm:$0xff]
        %v2736 = vld [vmem:[%s2500 + $0x758] sm:$0xff]
        %v2737 = vld [vmem:[%s2500 + $0x760] sm:$0xff]
        %v2738 = vld [vmem:[%s2500 + $0x768] sm:$0xff]
        %v2739 = vld [vmem:[%s2500 + $0x770] sm:$0xff]
        %v2740 = vld [vmem:[%s2500 + $0x778] sm:$0xff]
        %v2741 = vld [vmem:[%s2500 + $0x780] sm:$0xff]
        %v2742 = vld [vmem:[%s2500 + $0x788] sm:$0xff]
        %v2743 = vld [vmem:[%s2500 + $0x790] sm:$0xff]
        %v2744 = vld [vmem:[%s2500 + $0x798] sm:$0xff]
        %v2745 = vld [vmem:[%s2500 + $0x7a0] sm:$0xff]
        %v2746 = vld [vmem:[%s2500 + $0x7a8] sm:$0xff]
        %v2747 = vld [vmem:[%s2500 + $0x7b0] sm:$0xff]
        %v2748 = vld [vmem:[%s2500 + $0x7b8] sm:$0xff]
        %v2749 = vld [vmem:[%s2500 + $0x7c0] sm:$0xff]
        %v2750 = vld [vmem:[%s2500 + $0x7c8] sm:$0xff]
        %v2751 = vld [vmem:[%s2500 + $0x7d0] sm:$0xff]
        %v2752 = vld [vmem:[%s2500 + $0x7d8] sm:$0xff]
        %v2753 = vld [vmem:[%s2500 + $0x7e0] sm:$0xff]
        %v2754 = vld [vmem:[%s2500 + $0x7e8] sm:$0xff]
        %v2755 = vld [vmem:[%s2500 + $0x7f0] sm:$0xff]
        %v2756 = vld [vmem:[%s2500 + $0x7f8] sm:$0xff]
        %v2757 = vld [vmem:[%s2500 + $0x800] sm:$0xff]
        %v2758 = vld [vmem:[%s2500 + $0x808] sm:$0xff]
        %v2759 = vld [vmem:[%s2500 + $0x810] sm:$0xff]
        %v2760 = vld [vmem:[%s2500 + $0x818] sm:$0xff]
        %v2761 = vld [vmem:[%s2500 + $0x820] sm:$0xff]
        %v2762 = vld [vmem:[%s2500 + $0x828] sm:$0xff]
        %v2763 = vld [vmem:[%s2500 + $0x830] sm:$0xff]
        %v2764 = vld [vmem:[%s2500 + $0x838] sm:$0xff]
        %v2810 = vrot.slane %v2490, 1
        %v2811 = vrot.slane %v2191, 1
        %v2812 = vsel %vm821, %v2810, %v2811
        %v2813 = vrot.slane %v2491, 1
        %v2814 = vrot.slane %v2192, 1
        %v2815 = vsel %vm821, %v2813, %v2814
        %v2816 = vrot.slane %v2492, 1
        %v2817 = vrot.slane %v2193, 1
        %v2818 = vsel %vm821, %v2816, %v2817
        %v2819 = vrot.slane %v2493, 1
        %v2820 = vrot.slane %v2194, 1
        %v2821 = vsel %vm821, %v2819, %v2820
        %v2822 = vrot.slane %v2494, 1
        %v2823 = vrot.slane %v2195, 1
        %v2824 = vsel %vm821, %v2822, %v2823
        %v2825 = vrot.slane %v2196, 1
        %v2826 = vsel %vm821, %v2811, %v2825
        %v2827 = vrot.slane %v2197, 1
        %v2828 = vsel %vm821, %v2814, %v2827
        %v2829 = vrot.slane %v2198, 1
        %v2830 = vsel %vm821, %v2817, %v2829
        %v2831 = vrot.slane %v2199, 1
        %v2832 = vsel %vm821, %v2820, %v2831
        %v2833 = vrot.slane %v2200, 1
        %v2834 = vsel %vm821, %v2823, %v2833
        %v2835 = vrot.slane %v2201, 1
        %v2836 = vsel %vm821, %v2825, %v2835
        %v2837 = vrot.slane %v2202, 1
        %v2838 = vsel %vm821, %v2827, %v2837
        %v2839 = vrot.slane %v2203, 1
        %v2840 = vsel %vm821, %v2829, %v2839
        %v2841 = vrot.slane %v2204, 1
        %v2842 = vsel %vm821, %v2831, %v2841
        %v2843 = vrot.slane %v2205, 1
        %v2844 = vsel %vm821, %v2833, %v2843
        %v2845 = vrot.slane %v2206, 1
        %v2846 = vsel %vm821, %v2835, %v2845
        %v2847 = vrot.slane %v2207, 1
        %v2848 = vsel %vm821, %v2837, %v2847
        %v2849 = vrot.slane %v2208, 1
        %v2850 = vsel %vm821, %v2839, %v2849
        %v2851 = vrot.slane %v2209, 1
        %v2852 = vsel %vm821, %v2841, %v2851
        %v2853 = vrot.slane %v2210, 1
        %v2854 = vsel %vm821, %v2843, %v2853
        %v2855 = vrot.slane %v2211, 1
        %v2856 = vsel %vm821, %v2845, %v2855
        %v2857 = vrot.slane %v2212, 1
        %v2858 = vsel %vm821, %v2847, %v2857
        %v2859 = vrot.slane %v2213, 1
        %v2860 = vsel %vm821, %v2849, %v2859
        %v2861 = vrot.slane %v2214, 1
        %v2862 = vsel %vm821, %v2851, %v2861
        %v2863 = vrot.slane %v2215, 1
        %v2864 = vsel %vm821, %v2853, %v2863
        %v2865 = vrot.slane %v2216, 1
        %v2866 = vsel %vm821, %v2855, %v2865
        %v2867 = vrot.slane %v2217, 1
        %v2868 = vsel %vm821, %v2857, %v2867
        %v2869 = vrot.slane %v2218, 1
        %v2870 = vsel %vm821, %v2859, %v2869
        %v2871 = vrot.slane %v2219, 1
        %v2872 = vsel %vm821, %v2861, %v2871
        %v2873 = vrot.slane %v2220, 1
        %v2874 = vsel %vm821, %v2863, %v2873
        %v2875 = vrot.slane %v2221, 1
        %v2876 = vsel %vm821, %v2865, %v2875
        %v2877 = vrot.slane %v2222, 1
        %v2878 = vsel %vm821, %v2867, %v2877
        %v2879 = vrot.slane %v2223, 1
        %v2880 = vsel %vm821, %v2869, %v2879
        %v2881 = vrot.slane %v2224, 1
        %v2882 = vsel %vm821, %v2871, %v2881
        %v2883 = vrot.slane %v2225, 1
        %v2884 = vsel %vm821, %v2873, %v2883
        %v2885 = vrot.slane %v2495, 1
        %v2886 = vsel %vm821, %v2875, %v2885
        %v2887 = vrot.slane %v2496, 1
        %v2888 = vsel %vm821, %v2877, %v2887
        %v2889 = vrot.slane %v2497, 1
        %v2890 = vsel %vm821, %v2879, %v2889
        %v2891 = vrot.slane %v2498, 1
        %v2892 = vsel %vm821, %v2881, %v2891
        %v2893 = vrot.slane %v2499, 1
        %v2894 = vsel %vm821, %v2883, %v2893
        %v2927 = vsel %vm509, %v2824, 0
        %v2929 = vsel %vm509, %v2834, 0
        %v2931 = vsel %vm509, %v2844, 0
        %v2933 = vsel %vm509, %v2854, 0
        %v2935 = vsel %vm509, %v2864, 0
        %v2937 = vsel %vm509, %v2874, 0
        %v2939 = vsel %vm509, %v2884, 0
        %v2941 = vsel %vm509, %v2894, 0
        %2943 = vmatprep.subr.mxu0 %v2502
        %2944 = vmatpush1.msra.mxu0 %v2501
        %2945 = vmatprep.subr.mxu0 %v2506
        %2946 = vmatpush1.msra.mxu0 %v2505
        %2947 = vmatprep.subr.mxu0 %v2510
        %2948 = vmatpush1.msra.mxu0 %v2509
        %2949 = vmatprep.subr.mxu0 %v2514
        %2950 = vmatpush1.msra.mxu0 %v2513
        %2951 = vmatprep.subr.mxu0 %v2518
        %2952 = vmatpush1.msra.mxu0 %v2517
        %2953 = vmatprep.subr.mxu0 %v2522
        %2954 = vmatpush1.msra.mxu0 %v2521
        %2955 = vmatprep.subr.mxu0 %v2526
        %2956 = vmatpush1.msra.mxu0 %v2525
        %2957 = vmatprep.subr.mxu0 %v2530
        %2958 = vmatpush1.msra.mxu0 %v2529
        %2959 = vmatprep.subr.mxu0 %v2534
        %2960 = vmatpush1.msra.mxu0 %v2533
        %2961 = vmatprep.subr.mxu0 %v2538
        %2962 = vmatpush1.msra.mxu0 %v2537
        %2963 = vmatprep.subr.mxu0 %v2542
        %2964 = vmatpush1.msra.mxu0 %v2541
        %2965 = vmatprep.subr.mxu0 %v2546
        %2966 = vmatpush1.msra.mxu0 %v2545
        %2967 = vmatprep.subr.mxu0 %v2550
        %2968 = vmatpush1.msra.mxu0 %v2549
        %2969 = vmatprep.subr.mxu0 %v2554
        %2970 = vmatpush1.msra.mxu0 %v2553
        %2971 = vmatprep.subr.mxu0 %v2558
        %2972 = vmatpush1.msra.mxu0 %v2557
        %2973 = vmatprep.subr.mxu0 %v2562
        %2974 = vmatpush1.msra.mxu0 %v2561
        %2975 = vmatprep.subr.mxu0 %v2566
        %2976 = vmatpush1.msra.mxu0 %v2565
        %2977 = vmatprep.subr.mxu0 %v2570
        %2978 = vmatpush1.msra.mxu0 %v2569
        %2979 = vmatprep.subr.mxu0 %v2574
        %2980 = vmatpush1.msra.mxu0 %v2573
        %2981 = vmatprep.subr.mxu0 %v2578
        %2982 = vmatpush1.msra.mxu0 %v2577
        %2983 = vmatprep.subr.mxu0 %v2582
        %2984 = vmatpush1.msra.mxu0 %v2581
        %2985 = vmatprep.subr.mxu0 %v2586
        %2986 = vmatpush1.msra.mxu0 %v2585
        %2987 = vmatprep.subr.mxu0 %v2590
        %2988 = vmatpush1.msra.mxu0 %v2589
        %2989 = vmatprep.subr.mxu0 %v2594
        %2990 = vmatpush1.msra.mxu0 %v2593
        %2991 = vmatprep.subr.mxu0 %v2598
        %2992 = vmatpush1.msra.mxu0 %v2597
        %2993 = vmatprep.subr.mxu0 %v2602
        %2994 = vmatpush1.msra.mxu0 %v2601
        %2995 = vmatprep.subr.mxu0 %v2606
        %2996 = vmatpush1.msra.mxu0 %v2605
        %2997 = vmatprep.subr.mxu0 %v2610
        %2998 = vmatpush1.msra.mxu0 %v2609
        %2999 = vmatprep.subr.mxu0 %v2614
        %3000 = vmatpush1.msra.mxu0 %v2613
        %3001 = vmatprep.subr.mxu0 %v2618
        %3002 = vmatpush1.msra.mxu0 %v2617
        %3003 = vmatprep.subr.mxu0 %v2622
        %3004 = vmatpush1.msra.mxu0 %v2621
        %3005 = vmatprep.subr.mxu0 %v2626
        %3006 = vmatpush1.msra.mxu0 %v2625
        %3007 = vmatprep.mubr.f32.mxu0 %v2815
        %3008 = vmatmul.mubr.f32.gmra.mrb[0].mxu0 %v2812
        %v3009 = vpop.f32.mrb[0].mxu0
        %v3010 = vadd.f32 0.0, %v3009
        %v3011 = vpop.f32.mrb[0].mxu0
        %v3012 = vadd.f32 0.0, %v3011
        %3013 = vmatprep.mubr.f32.mxu0 %v2828
        %3014 = vmatmul.mubr.f32.gmra.mrb[0].mxu0 %v2826
        %v3015 = vpop.f32.mrb[0].mxu0
        %v3016 = vadd.f32 0.0, %v3015
        %v3017 = vpop.f32.mrb[0].mxu0
        %v3018 = vadd.f32 0.0, %v3017
        %3019 = vmatprep.mubr.f32.mxu0 %v2838
        %3020 = vmatmul.mubr.f32.gmra.mrb[0].mxu0 %v2836
        %v3021 = vpop.f32.mrb[0].mxu0
        %v3022 = vadd.f32 0.0, %v3021
        %v3023 = vpop.f32.mrb[0].mxu0
        %v3024 = vadd.f32 0.0, %v3023
        %3025 = vmatprep.mubr.f32.mxu0 %v2848
        %3026 = vmatmul.mubr.f32.gmra.mrb[0].mxu0 %v2846
        %v3027 = vpop.f32.mrb[0].mxu0
        %v3028 = vadd.f32 0.0, %v3027
        %v3029 = vpop.f32.mrb[0].mxu0
        %v3030 = vadd.f32 0.0, %v3029
        %3031 = vmatprep.mubr.f32.mxu0 %v2858
        %3032 = vmatmul.mubr.f32.gmra.mrb[0].mxu0 %v2856
        %v3033 = vpop.f32.mrb[0].mxu0
        %v3034 = vadd.f32 0.0, %v3033
        %v3035 = vpop.f32.mrb[0].mxu0
        %v3036 = vadd.f32 0.0, %v3035
        %3037 = vmatprep.mubr.f32.mxu0 %v2868
        %3038 = vmatmul.mubr.f32.gmra.mrb[0].mxu0 %v2866
        %v3039 = vpop.f32.mrb[0].mxu0
        %v3040 = vadd.f32 0.0, %v3039
        %v3041 = vpop.f32.mrb[0].mxu0
        %v3042 = vadd.f32 0.0, %v3041
        %3043 = vmatprep.mubr.f32.mxu0 %v2878
        %3044 = vmatmul.mubr.f32.gmra.mrb[0].mxu0 %v2876
        %v3045 = vpop.f32.mrb[0].mxu0
        %v3046 = vadd.f32 0.0, %v3045
        %v3047 = vpop.f32.mrb[0].mxu0
        %v3048 = vadd.f32 0.0, %v3047
        %3049 = vmatprep.mubr.f32.mxu0 %v2888
        %3050 = vmatmul.mubr.f32.gmra.mrb[0].mxu0 %v2886
        %v3051 = vpop.f32.mrb[0].mxu0
        %v3052 = vadd.f32 0.0, %v3051
        %v3053 = vpop.f32.mrb[0].mxu0
        %v3054 = vadd.f32 0.0, %v3053
        %3055 = vdwg.mxu0
        %3056 = vmatprep.subr.mxu0 %v2630
        %3057 = vmatpush1.msra.mxu0 %v2629
        %3058 = vmatprep.subr.mxu0 %v2634
        %3059 = vmatpush1.msra.mxu0 %v2633
        %3060 = vmatprep.subr.mxu0 %v2638
        %3061 = vmatpush1.msra.mxu0 %v2637
        %3062 = vmatprep.subr.mxu0 %v2642
        %3063 = vmatpush1.msra.mxu0 %v2641
        %3064 = vmatprep.subr.mxu0 %v2646
        %3065 = vmatpush1.msra.mxu0 %v2645
        %3066 = vmatprep.subr.mxu0 %v2650
        %3067 = vmatpush1.msra.mxu0 %v2649
        %3068 = vmatprep.subr.mxu0 %v2654
        %3069 = vmatpush1.msra.mxu0 %v2653
        %3070 = vmatprep.subr.mxu0 %v2658
        %3071 = vmatpush1.msra.mxu0 %v2657
        %3072 = vmatprep.subr.mxu0 %v2662
        %3073 = vmatpush1.msra.mxu0 %v2661
        %3074 = vmatprep.subr.mxu0 %v2666
        %3075 = vmatpush1.msra.mxu0 %v2665
        %3076 = vmatprep.subr.mxu0 %v2670
        %3077 = vmatpush1.msra.mxu0 %v2669
        %3078 = vmatprep.subr.mxu0 %v2674
        %3079 = vmatpush1.msra.mxu0 %v2673
        %3080 = vmatprep.subr.mxu0 %v2678
        %3081 = vmatpush1.msra.mxu0 %v2677
        %3082 = vmatprep.subr.mxu0 %v2682
        %3083 = vmatpush1.msra.mxu0 %v2681
        %3084 = vmatprep.subr.mxu0 %v2686
        %3085 = vmatpush1.msra.mxu0 %v2685
        %3086 = vmatprep.subr.mxu0 %v2690
        %3087 = vmatpush1.msra.mxu0 %v2689
        %3088 = vmatprep.subr.mxu0 %v2694
        %3089 = vmatpush1.msra.mxu0 %v2693
        %3090 = vmatprep.subr.mxu0 %v2698
        %3091 = vmatpush1.msra.mxu0 %v2697
        %3092 = vmatprep.subr.mxu0 %v2702
        %3093 = vmatpush1.msra.mxu0 %v2701
        %3094 = vmatprep.subr.mxu0 %v2706
        %3095 = vmatpush1.msra.mxu0 %v2705
        %3096 = vmatprep.subr.mxu0 %v2710
        %3097 = vmatpush1.msra.mxu0 %v2709
        %3098 = vmatprep.subr.mxu0 %v2714
        %3099 = vmatpush1.msra.mxu0 %v2713
        %3100 = vmatprep.subr.mxu0 %v2718
        %3101 = vmatpush1.msra.mxu0 %v2717
        %3102 = vmatprep.subr.mxu0 %v2722
        %3103 = vmatpush1.msra.mxu0 %v2721
        %3104 = vmatprep.subr.mxu0 %v2726
        %3105 = vmatpush1.msra.mxu0 %v2725
        %3106 = vmatprep.subr.mxu0 %v2730
        %3107 = vmatpush1.msra.mxu0 %v2729
        %3108 = vmatprep.subr.mxu0 %v2734
        %3109 = vmatpush1.msra.mxu0 %v2733
        %3110 = vmatprep.subr.mxu0 %v2738
        %3111 = vmatpush1.msra.mxu0 %v2737
        %3112 = vmatprep.subr.mxu0 %v2742
        %3113 = vmatpush1.msra.mxu0 %v2741
        %3114 = vmatprep.subr.mxu0 %v2746
        %3115 = vmatpush1.msra.mxu0 %v2745
        %3116 = vmatprep.subr.mxu0 %v2750
        %3117 = vmatpush1.msra.mxu0 %v2749
        %3118 = vmatprep.subr.mxu0 %v2754
        %3119 = vmatpush1.msra.mxu0 %v2753
        %3120 = vmatprep.mubr.f32.mxu0 %v2821
        %3121 = vmatmul.mubr.f32.gmra.mrb[0].mxu0 %v2818
        %v3122 = vpop.f32.mrb[0].mxu0
        %v3123 = vadd.f32 %v3010, %v3122
        %v3124 = vpop.f32.mrb[0].mxu0
        %v3125 = vadd.f32 %v3012, %v3124
        %3126 = vmatprep.mubr.f32.mxu0 %v2832
        %3127 = vmatmul.mubr.f32.gmra.mrb[0].mxu0 %v2830
        %v3128 = vpop.f32.mrb[0].mxu0
        %v3129 = vadd.f32 %v3016, %v3128
        %v3130 = vpop.f32.mrb[0].mxu0
        %v3131 = vadd.f32 %v3018, %v3130
        %3132 = vmatprep.mubr.f32.mxu0 %v2842
        %3133 = vmatmul.mubr.f32.gmra.mrb[0].mxu0 %v2840
        %v3134 = vpop.f32.mrb[0].mxu0
        %v3135 = vadd.f32 %v3022, %v3134
        %v3136 = vpop.f32.mrb[0].mxu0
        %v3137 = vadd.f32 %v3024, %v3136
        %3138 = vmatprep.mubr.f32.mxu0 %v2852
        %3139 = vmatmul.mubr.f32.gmra.mrb[0].mxu0 %v2850
        %v3140 = vpop.f32.mrb[0].mxu0
        %v3141 = vadd.f32 %v3028, %v3140
        %v3142 = vpop.f32.mrb[0].mxu0
        %v3143 = vadd.f32 %v3030, %v3142
        %3144 = vmatprep.mubr.f32.mxu0 %v2862
        %3145 = vmatmul.mubr.f32.gmra.mrb[0].mxu0 %v2860
        %v3146 = vpop.f32.mrb[0].mxu0
        %v3147 = vadd.f32 %v3034, %v3146
        %v3148 = vpop.f32.mrb[0].mxu0
        %v3149 = vadd.f32 %v3036, %v3148
        %3150 = vmatprep.mubr.f32.mxu0 %v2872
        %3151 = vmatmul.mubr.f32.gmra.mrb[0].mxu0 %v2870
        %v3152 = vpop.f32.mrb[0].mxu0
        %v3153 = vadd.f32 %v3040, %v3152
        %v3154 = vpop.f32.mrb[0].mxu0
        %v3155 = vadd.f32 %v3042, %v3154
        %3156 = vmatprep.mubr.f32.mxu0 %v2882
        %3157 = vmatmul.mubr.f32.gmra.mrb[0].mxu0 %v2880
        %v3158 = vpop.f32.mrb[0].mxu0
        %v3159 = vadd.f32 %v3046, %v3158
        %v3160 = vpop.f32.mrb[0].mxu0
        %v3161 = vadd.f32 %v3048, %v3160
        %3162 = vmatprep.mubr.f32.mxu0 %v2892
        %3163 = vmatmul.mubr.f32.gmra.mrb[0].mxu0 %v2890
        %v3164 = vpop.f32.mrb[0].mxu0
        %v3165 = vadd.f32 %v3052, %v3164
        %v3166 = vpop.f32.mrb[0].mxu0
        %v3167 = vadd.f32 %v3054, %v3166
        %3168 = vdwg.mxu0
        %3169 = vmatprep.subr.mxu0 %v2758
        %3170 = vmatpush1.msra.mxu0 %v2757
        %3171 = vmatprep.subr.mxu0 %v2762
        %3172 = vmatpush1.msra.mxu0 %v2761
        %3173 = vmatprep.subr.mxu0 0.0
        %3174 = vmatpush1.msra.mxu0 0.0
        %3175 = vmatprep.subr.mxu0 0.0
        %3176 = vmatpush1.msra.mxu0 0.0
        %3177 = vmatprep.subr.mxu0 0.0
        %3178 = vmatpush1.msra.mxu0 0.0
        %3179 = vmatprep.subr.mxu0 0.0
        %3180 = vmatpush1.msra.mxu0 0.0
        %3181 = vmatprep.subr.mxu0 0.0
        %3182 = vmatpush1.msra.mxu0 0.0
        %3183 = vmatprep.subr.mxu0 0.0
        %3184 = vmatpush1.msra.mxu0 0.0
        %3185 = vmatprep.subr.mxu0 0.0
        %3186 = vmatpush1.msra.mxu0 0.0
        %3187 = vmatprep.subr.mxu0 0.0
        %3188 = vmatpush1.msra.mxu0 0.0
        %3189 = vmatprep.subr.mxu0 0.0
        %3190 = vmatpush1.msra.mxu0 0.0
        %3191 = vmatprep.subr.mxu0 0.0
        %3192 = vmatpush1.msra.mxu0 0.0
        %3193 = vmatprep.subr.mxu0 0.0
        %3194 = vmatpush1.msra.mxu0 0.0
        %3195 = vmatprep.subr.mxu0 0.0
        %3196 = vmatpush1.msra.mxu0 0.0
        %3197 = vmatprep.subr.mxu0 0.0
        %3198 = vmatpush1.msra.mxu0 0.0
        %3199 = vmatprep.subr.mxu0 0.0
        %3200 = vmatpush1.msra.mxu0 0.0
        %3201 = vmatprep.subr.mxu0 0.0
        %3202 = vmatpush1.msra.mxu0 0.0
        %3203 = vmatprep.subr.mxu0 0.0
        %3204 = vmatpush1.msra.mxu0 0.0
        %3205 = vmatprep.subr.mxu0 0.0
        %3206 = vmatpush1.msra.mxu0 0.0
        %3207 = vmatprep.subr.mxu0 0.0
        %3208 = vmatpush1.msra.mxu0 0.0
        %3209 = vmatprep.subr.mxu0 0.0
        %3210 = vmatpush1.msra.mxu0 0.0
        %3211 = vmatprep.subr.mxu0 0.0
        %3212 = vmatpush1.msra.mxu0 0.0
        %3213 = vmatprep.subr.mxu0 0.0
        %3214 = vmatpush1.msra.mxu0 0.0
        %3215 = vmatprep.subr.mxu0 0.0
        %3216 = vmatpush1.msra.mxu0 0.0
        %3217 = vmatprep.subr.mxu0 0.0
        %3218 = vmatpush1.msra.mxu0 0.0
        %3219 = vmatprep.subr.mxu0 0.0
        %3220 = vmatpush1.msra.mxu0 0.0
        %3221 = vmatprep.subr.mxu0 0.0
        %3222 = vmatpush1.msra.mxu0 0.0
        %3223 = vmatprep.subr.mxu0 0.0
        %3224 = vmatpush1.msra.mxu0 0.0
        %3225 = vmatprep.subr.mxu0 0.0
        %3226 = vmatpush1.msra.mxu0 0.0
        %3227 = vmatprep.subr.mxu0 0.0
        %3228 = vmatpush1.msra.mxu0 0.0
        %3229 = vmatprep.subr.mxu0 0.0
        %3230 = vmatpush1.msra.mxu0 0.0
        %3231 = vmatprep.subr.mxu0 0.0
        %3232 = vmatpush1.msra.mxu0 0.0
        %3233 = vmatprep.mubr.f32.mxu0 0.0
        %3234 = vmatmul.mubr.f32.gmra.mrb[0].mxu0 %v2927
        %v3235 = vpop.f32.mrb[0].mxu0
        %v3236 = vadd.f32 %v3123, %v3235
        %v3237 = vpop.f32.mrb[0].mxu0
        %v3238 = vadd.f32 %v3125, %v3237
        %3239 = vmatprep.mubr.f32.mxu0 0.0
        %3240 = vmatmul.mubr.f32.gmra.mrb[0].mxu0 %v2929
        %v3241 = vpop.f32.mrb[0].mxu0
        %v3242 = vadd.f32 %v3129, %v3241
        %v3243 = vpop.f32.mrb[0].mxu0
        %v3244 = vadd.f32 %v3131, %v3243
        %3245 = vmatprep.mubr.f32.mxu0 0.0
        %3246 = vmatmul.mubr.f32.gmra.mrb[0].mxu0 %v2931
        %v3247 = vpop.f32.mrb[0].mxu0
        %v3248 = vadd.f32 %v3135, %v3247
        %v3249 = vpop.f32.mrb[0].mxu0
        %v3250 = vadd.f32 %v3137, %v3249
        %3251 = vmatprep.mubr.f32.mxu0 0.0
        %3252 = vmatmul.mubr.f32.gmra.mrb[0].mxu0 %v2933
        %v3253 = vpop.f32.mrb[0].mxu0
        %v3254 = vadd.f32 %v3141, %v3253
        %v3255 = vpop.f32.mrb[0].mxu0
        %v3256 = vadd.f32 %v3143, %v3255
        %3257 = vmatprep.mubr.f32.mxu0 0.0
        %3258 = vmatmul.mubr.f32.gmra.mrb[0].mxu0 %v2935
        %v3259 = vpop.f32.mrb[0].mxu0
        %v3260 = vadd.f32 %v3147, %v3259
        %v3261 = vpop.f32.mrb[0].mxu0
        %v3262 = vadd.f32 %v3149, %v3261
        %3263 = vmatprep.mubr.f32.mxu0 0.0
        %3264 = vmatmul.mubr.f32.gmra.mrb[0].mxu0 %v2937
        %v3265 = vpop.f32.mrb[0].mxu0
        %v3266 = vadd.f32 %v3153, %v3265
        %v3267 = vpop.f32.mrb[0].mxu0
        %v3268 = vadd.f32 %v3155, %v3267
        %3269 = vmatprep.mubr.f32.mxu0 0.0
        %3270 = vmatmul.mubr.f32.gmra.mrb[0].mxu0 %v2939
        %v3271 = vpop.f32.mrb[0].mxu0
        %v3272 = vadd.f32 %v3159, %v3271
        %v3273 = vpop.f32.mrb[0].mxu0
        %v3274 = vadd.f32 %v3161, %v3273
        %3275 = vmatprep.mubr.f32.mxu0 0.0
        %3276 = vmatmul.mubr.f32.gmra.mrb[0].mxu0 %v2941
        %v3277 = vpop.f32.mrb[0].mxu0
        %v3278 = vadd.f32 %v3165, %v3277
        %v3279 = vpop.f32.mrb[0].mxu0
        %v3280 = vadd.f32 %v3167, %v3279
        %3281 = vdwg.mxu0
        %3282 = vmatprep.subr.mxu0 %v2504
        %3283 = vmatpush1.msra.mxu0 %v2503
        %3284 = vmatprep.subr.mxu0 %v2508
        %3285 = vmatpush1.msra.mxu0 %v2507
        %3286 = vmatprep.subr.mxu0 %v2512
        %3287 = vmatpush1.msra.mxu0 %v2511
        %3288 = vmatprep.subr.mxu0 %v2516
        %3289 = vmatpush1.msra.mxu0 %v2515
        %3290 = vmatprep.subr.mxu0 %v2520
        %3291 = vmatpush1.msra.mxu0 %v2519
        %3292 = vmatprep.subr.mxu0 %v2524
        %3293 = vmatpush1.msra.mxu0 %v2523
        %3294 = vmatprep.subr.mxu0 %v2528
        %3295 = vmatpush1.msra.mxu0 %v2527
        %3296 = vmatprep.subr.mxu0 %v2532
        %3297 = vmatpush1.msra.mxu0 %v2531
        %3298 = vmatprep.subr.mxu0 %v2536
        %3299 = vmatpush1.msra.mxu0 %v2535
        %3300 = vmatprep.subr.mxu0 %v2540
        %3301 = vmatpush1.msra.mxu0 %v2539
        %3302 = vmatprep.subr.mxu0 %v2544
        %3303 = vmatpush1.msra.mxu0 %v2543
        %3304 = vmatprep.subr.mxu0 %v2548
        %3305 = vmatpush1.msra.mxu0 %v2547
        %3306 = vmatprep.subr.mxu0 %v2552
        %3307 = vmatpush1.msra.mxu0 %v2551
        %3308 = vmatprep.subr.mxu0 %v2556
        %3309 = vmatpush1.msra.mxu0 %v2555
        %3310 = vmatprep.subr.mxu0 %v2560
        %3311 = vmatpush1.msra.mxu0 %v2559
        %3312 = vmatprep.subr.mxu0 %v2564
        %3313 = vmatpush1.msra.mxu0 %v2563
        %3314 = vmatprep.subr.mxu0 %v2568
        %3315 = vmatpush1.msra.mxu0 %v2567
        %3316 = vmatprep.subr.mxu0 %v2572
        %3317 = vmatpush1.msra.mxu0 %v2571
        %3318 = vmatprep.subr.mxu0 %v2576
        %3319 = vmatpush1.msra.mxu0 %v2575
        %3320 = vmatprep.subr.mxu0 %v2580
        %3321 = vmatpush1.msra.mxu0 %v2579
        %3322 = vmatprep.subr.mxu0 %v2584
        %3323 = vmatpush1.msra.mxu0 %v2583
        %3324 = vmatprep.subr.mxu0 %v2588
        %3325 = vmatpush1.msra.mxu0 %v2587
        %3326 = vmatprep.subr.mxu0 %v2592
        %3327 = vmatpush1.msra.mxu0 %v2591
        %3328 = vmatprep.subr.mxu0 %v2596
        %3329 = vmatpush1.msra.mxu0 %v2595
        %3330 = vmatprep.subr.mxu0 %v2600
        %3331 = vmatpush1.msra.mxu0 %v2599
        %3332 = vmatprep.subr.mxu0 %v2604
        %3333 = vmatpush1.msra.mxu0 %v2603
        %3334 = vmatprep.subr.mxu0 %v2608
        %3335 = vmatpush1.msra.mxu0 %v2607
        %3336 = vmatprep.subr.mxu0 %v2612
        %3337 = vmatpush1.msra.mxu0 %v2611
        %3338 = vmatprep.subr.mxu0 %v2616
        %3339 = vmatpush1.msra.mxu0 %v2615
        %3340 = vmatprep.subr.mxu0 %v2620
        %3341 = vmatpush1.msra.mxu0 %v2619
        %3342 = vmatprep.subr.mxu0 %v2624
        %3343 = vmatpush1.msra.mxu0 %v2623
        %3344 = vmatprep.subr.mxu0 %v2628
        %3345 = vmatpush1.msra.mxu0 %v2627
        %3346 = vmatprep.mubr.f32.mxu0 %v2815
        %3347 = vmatmul.mubr.f32.gmra.mrb[0].mxu0 %v2812
        %v3348 = vpop.f32.mrb[0].mxu0
        %v3349 = vadd.f32 0.0, %v3348
        %v3350 = vpop.f32.mrb[0].mxu0
        %v3351 = vadd.f32 0.0, %v3350
        %3352 = vmatprep.mubr.f32.mxu0 %v2828
        %3353 = vmatmul.mubr.f32.gmra.mrb[0].mxu0 %v2826
        %v3354 = vpop.f32.mrb[0].mxu0
        %v3355 = vadd.f32 0.0, %v3354
        %v3356 = vpop.f32.mrb[0].mxu0
        %v3357 = vadd.f32 0.0, %v3356
        %3358 = vmatprep.mubr.f32.mxu0 %v2838
        %3359 = vmatmul.mubr.f32.gmra.mrb[0].mxu0 %v2836
        %v3360 = vpop.f32.mrb[0].mxu0
        %v3361 = vadd.f32 0.0, %v3360
        %v3362 = vpop.f32.mrb[0].mxu0
        %v3363 = vadd.f32 0.0, %v3362
        %3364 = vmatprep.mubr.f32.mxu0 %v2848
        %3365 = vmatmul.mubr.f32.gmra.mrb[0].mxu0 %v2846
        %v3366 = vpop.f32.mrb[0].mxu0
        %v3367 = vadd.f32 0.0, %v3366
        %v3368 = vpop.f32.mrb[0].mxu0
        %v3369 = vadd.f32 0.0, %v3368
        %3370 = vmatprep.mubr.f32.mxu0 %v2858
        %3371 = vmatmul.mubr.f32.gmra.mrb[0].mxu0 %v2856
        %v3372 = vpop.f32.mrb[0].mxu0
        %v3373 = vadd.f32 0.0, %v3372
        %v3374 = vpop.f32.mrb[0].mxu0
        %v3375 = vadd.f32 0.0, %v3374
        %3376 = vmatprep.mubr.f32.mxu0 %v2868
        %3377 = vmatmul.mubr.f32.gmra.mrb[0].mxu0 %v2866
        %v3378 = vpop.f32.mrb[0].mxu0
        %v3379 = vadd.f32 0.0, %v3378
        %v3380 = vpop.f32.mrb[0].mxu0
        %v3381 = vadd.f32 0.0, %v3380
        %3382 = vmatprep.mubr.f32.mxu0 %v2878
        %3383 = vmatmul.mubr.f32.gmra.mrb[0].mxu0 %v2876
        %v3384 = vpop.f32.mrb[0].mxu0
        %v3385 = vadd.f32 0.0, %v3384
        %v3386 = vpop.f32.mrb[0].mxu0
        %v3387 = vadd.f32 0.0, %v3386
        %3388 = vmatprep.mubr.f32.mxu0 %v2888
        %3389 = vmatmul.mubr.f32.gmra.mrb[0].mxu0 %v2886
        %v3390 = vpop.f32.mrb[0].mxu0
        %v3391 = vadd.f32 0.0, %v3390
        %v3392 = vpop.f32.mrb[0].mxu0
        %v3393 = vadd.f32 0.0, %v3392
        %3394 = vdwg.mxu0
        %3395 = vmatprep.subr.mxu0 %v2632
        %3396 = vmatpush1.msra.mxu0 %v2631
        %3397 = vmatprep.subr.mxu0 %v2636
        %3398 = vmatpush1.msra.mxu0 %v2635
        %3399 = vmatprep.subr.mxu0 %v2640
        %3400 = vmatpush1.msra.mxu0 %v2639
        %3401 = vmatprep.subr.mxu0 %v2644
        %3402 = vmatpush1.msra.mxu0 %v2643
        %3403 = vmatprep.subr.mxu0 %v2648
        %3404 = vmatpush1.msra.mxu0 %v2647
        %3405 = vmatprep.subr.mxu0 %v2652
        %3406 = vmatpush1.msra.mxu0 %v2651
        %3407 = vmatprep.subr.mxu0 %v2656
        %3408 = vmatpush1.msra.mxu0 %v2655
        %3409 = vmatprep.subr.mxu0 %v2660
        %3410 = vmatpush1.msra.mxu0 %v2659
        %3411 = vmatprep.subr.mxu0 %v2664
        %3412 = vmatpush1.msra.mxu0 %v2663
        %3413 = vmatprep.subr.mxu0 %v2668
        %3414 = vmatpush1.msra.mxu0 %v2667
        %3415 = vmatprep.subr.mxu0 %v2672
        %3416 = vmatpush1.msra.mxu0 %v2671
        %3417 = vmatprep.subr.mxu0 %v2676
        %3418 = vmatpush1.msra.mxu0 %v2675
        %3419 = vmatprep.subr.mxu0 %v2680
        %3420 = vmatpush1.msra.mxu0 %v2679
        %3421 = vmatprep.subr.mxu0 %v2684
        %3422 = vmatpush1.msra.mxu0 %v2683
        %3423 = vmatprep.subr.mxu0 %v2688
        %3424 = vmatpush1.msra.mxu0 %v2687
        %3425 = vmatprep.subr.mxu0 %v2692
        %3426 = vmatpush1.msra.mxu0 %v2691
        %3427 = vmatprep.subr.mxu0 %v2696
        %3428 = vmatpush1.msra.mxu0 %v2695
        %3429 = vmatprep.subr.mxu0 %v2700
        %3430 = vmatpush1.msra.mxu0 %v2699
        %3431 = vmatprep.subr.mxu0 %v2704
        %3432 = vmatpush1.msra.mxu0 %v2703
        %3433 = vmatprep.subr.mxu0 %v2708
        %3434 = vmatpush1.msra.mxu0 %v2707
        %3435 = vmatprep.subr.mxu0 %v2712
        %3436 = vmatpush1.msra.mxu0 %v2711
        %3437 = vmatprep.subr.mxu0 %v2716
        %3438 = vmatpush1.msra.mxu0 %v2715
        %3439 = vmatprep.subr.mxu0 %v2720
        %3440 = vmatpush1.msra.mxu0 %v2719
        %3441 = vmatprep.subr.mxu0 %v2724
        %3442 = vmatpush1.msra.mxu0 %v2723
        %3443 = vmatprep.subr.mxu0 %v2728
        %3444 = vmatpush1.msra.mxu0 %v2727
        %3445 = vmatprep.subr.mxu0 %v2732
        %3446 = vmatpush1.msra.mxu0 %v2731
        %3447 = vmatprep.subr.mxu0 %v2736
        %3448 = vmatpush1.msra.mxu0 %v2735
        %3449 = vmatprep.subr.mxu0 %v2740
        %3450 = vmatpush1.msra.mxu0 %v2739
        %3451 = vmatprep.subr.mxu0 %v2744
        %3452 = vmatpush1.msra.mxu0 %v2743
        %3453 = vmatprep.subr.mxu0 %v2748
        %3454 = vmatpush1.msra.mxu0 %v2747
        %3455 = vmatprep.subr.mxu0 %v2752
        %3456 = vmatpush1.msra.mxu0 %v2751
        %3457 = vmatprep.subr.mxu0 %v2756
        %3458 = vmatpush1.msra.mxu0 %v2755
        %3459 = vmatprep.mubr.f32.mxu0 %v2821
        %3460 = vmatmul.mubr.f32.gmra.mrb[0].mxu0 %v2818
        %v3461 = vpop.f32.mrb[0].mxu0
        %v3462 = vadd.f32 %v3349, %v3461
        %v3463 = vpop.f32.mrb[0].mxu0
        %v3464 = vadd.f32 %v3351, %v3463
        %3465 = vmatprep.mubr.f32.mxu0 %v2832
        %3466 = vmatmul.mubr.f32.gmra.mrb[0].mxu0 %v2830
        %v3467 = vpop.f32.mrb[0].mxu0
        %v3468 = vadd.f32 %v3355, %v3467
        %v3469 = vpop.f32.mrb[0].mxu0
        %v3470 = vadd.f32 %v3357, %v3469
        %3471 = vmatprep.mubr.f32.mxu0 %v2842
        %3472 = vmatmul.mubr.f32.gmra.mrb[0].mxu0 %v2840
        %v3473 = vpop.f32.mrb[0].mxu0
        %v3474 = vadd.f32 %v3361, %v3473
        %v3475 = vpop.f32.mrb[0].mxu0
        %v3476 = vadd.f32 %v3363, %v3475
        %3477 = vmatprep.mubr.f32.mxu0 %v2852
        %3478 = vmatmul.mubr.f32.gmra.mrb[0].mxu0 %v2850
        %v3479 = vpop.f32.mrb[0].mxu0
        %v3480 = vadd.f32 %v3367, %v3479
        %v3481 = vpop.f32.mrb[0].mxu0
        %v3482 = vadd.f32 %v3369, %v3481
        %3483 = vmatprep.mubr.f32.mxu0 %v2862
        %3484 = vmatmul.mubr.f32.gmra.mrb[0].mxu0 %v2860
        %v3485 = vpop.f32.mrb[0].mxu0
        %v3486 = vadd.f32 %v3373, %v3485
        %v3487 = vpop.f32.mrb[0].mxu0
        %v3488 = vadd.f32 %v3375, %v3487
        %3489 = vmatprep.mubr.f32.mxu0 %v2872
        %3490 = vmatmul.mubr.f32.gmra.mrb[0].mxu0 %v2870
        %v3491 = vpop.f32.mrb[0].mxu0
        %v3492 = vadd.f32 %v3379, %v3491
        %v3493 = vpop.f32.mrb[0].mxu0
        %v3494 = vadd.f32 %v3381, %v3493
        %3495 = vmatprep.mubr.f32.mxu0 %v2882
        %3496 = vmatmul.mubr.f32.gmra.mrb[0].mxu0 %v2880
        %v3497 = vpop.f32.mrb[0].mxu0
        %v3498 = vadd.f32 %v3385, %v3497
        %v3499 = vpop.f32.mrb[0].mxu0
        %v3500 = vadd.f32 %v3387, %v3499
        %3501 = vmatprep.mubr.f32.mxu0 %v2892
        %3502 = vmatmul.mubr.f32.gmra.mrb[0].mxu0 %v2890
        %v3503 = vpop.f32.mrb[0].mxu0
        %v3504 = vadd.f32 %v3391, %v3503
        %v3505 = vpop.f32.mrb[0].mxu0
        %v3506 = vadd.f32 %v3393, %v3505
        %3507 = vdwg.mxu0
        %3508 = vmatprep.subr.mxu0 %v2760
        %3509 = vmatpush1.msra.mxu0 %v2759
        %3510 = vmatprep.subr.mxu0 %v2764
        %3511 = vmatpush1.msra.mxu0 %v2763
        %3512 = vmatprep.subr.mxu0 0.0
        %3513 = vmatpush1.msra.mxu0 0.0
        %3514 = vmatprep.subr.mxu0 0.0
        %3515 = vmatpush1.msra.mxu0 0.0
        %3516 = vmatprep.subr.mxu0 0.0
        %3517 = vmatpush1.msra.mxu0 0.0
        %3518 = vmatprep.subr.mxu0 0.0
        %3519 = vmatpush1.msra.mxu0 0.0
        %3520 = vmatprep.subr.mxu0 0.0
        %3521 = vmatpush1.msra.mxu0 0.0
        %3522 = vmatprep.subr.mxu0 0.0
        %3523 = vmatpush1.msra.mxu0 0.0
        %3524 = vmatprep.subr.mxu0 0.0
        %3525 = vmatpush1.msra.mxu0 0.0
        %3526 = vmatprep.subr.mxu0 0.0
        %3527 = vmatpush1.msra.mxu0 0.0
        %3528 = vmatprep.subr.mxu0 0.0
        %3529 = vmatpush1.msra.mxu0 0.0
        %3530 = vmatprep.subr.mxu0 0.0
        %3531 = vmatpush1.msra.mxu0 0.0
        %3532 = vmatprep.subr.mxu0 0.0
        %3533 = vmatpush1.msra.mxu0 0.0
        %3534 = vmatprep.subr.mxu0 0.0
        %3535 = vmatpush1.msra.mxu0 0.0
        %3536 = vmatprep.subr.mxu0 0.0
        %3537 = vmatpush1.msra.mxu0 0.0
        %3538 = vmatprep.subr.mxu0 0.0
        %3539 = vmatpush1.msra.mxu0 0.0
        %3540 = vmatprep.subr.mxu0 0.0
        %3541 = vmatpush1.msra.mxu0 0.0
        %3542 = vmatprep.subr.mxu0 0.0
        %3543 = vmatpush1.msra.mxu0 0.0
        %3544 = vmatprep.subr.mxu0 0.0
        %3545 = vmatpush1.msra.mxu0 0.0
        %3546 = vmatprep.subr.mxu0 0.0
        %3547 = vmatpush1.msra.mxu0 0.0
        %3548 = vmatprep.subr.mxu0 0.0
        %3549 = vmatpush1.msra.mxu0 0.0
        %3550 = vmatprep.subr.mxu0 0.0
        %3551 = vmatpush1.msra.mxu0 0.0
        %3552 = vmatprep.subr.mxu0 0.0
        %3553 = vmatpush1.msra.mxu0 0.0
        %3554 = vmatprep.subr.mxu0 0.0
        %3555 = vmatpush1.msra.mxu0 0.0
        %3556 = vmatprep.subr.mxu0 0.0
        %3557 = vmatpush1.msra.mxu0 0.0
        %3558 = vmatprep.subr.mxu0 0.0
        %3559 = vmatpush1.msra.mxu0 0.0
        %3560 = vmatprep.subr.mxu0 0.0
        %3561 = vmatpush1.msra.mxu0 0.0
        %3562 = vmatprep.subr.mxu0 0.0
        %3563 = vmatpush1.msra.mxu0 0.0
        %3564 = vmatprep.subr.mxu0 0.0
        %3565 = vmatpush1.msra.mxu0 0.0
        %3566 = vmatprep.subr.mxu0 0.0
        %3567 = vmatpush1.msra.mxu0 0.0
        %3568 = vmatprep.subr.mxu0 0.0
        %3569 = vmatpush1.msra.mxu0 0.0
        %3570 = vmatprep.subr.mxu0 0.0
        %3571 = vmatpush1.msra.mxu0 0.0
        %3572 = vmatprep.mubr.f32.mxu0 0.0
        %3573 = vmatmul.mubr.f32.gmra.mrb[0].mxu0 %v2927
        %v3574 = vpop.f32.mrb[0].mxu0
        %v3575 = vadd.f32 %v3462, %v3574
        %v3576 = vpop.f32.mrb[0].mxu0
        %v3577 = vadd.f32 %v3464, %v3576
        %3578 = vmatprep.mubr.f32.mxu0 0.0
        %3579 = vmatmul.mubr.f32.gmra.mrb[0].mxu0 %v2929
        %v3580 = vpop.f32.mrb[0].mxu0
        %v3581 = vadd.f32 %v3468, %v3580
        %v3582 = vpop.f32.mrb[0].mxu0
        %v3583 = vadd.f32 %v3470, %v3582
        %3584 = vmatprep.mubr.f32.mxu0 0.0
        %3585 = vmatmul.mubr.f32.gmra.mrb[0].mxu0 %v2931
        %v3586 = vpop.f32.mrb[0].mxu0
        %v3587 = vadd.f32 %v3474, %v3586
        %v3588 = vpop.f32.mrb[0].mxu0
        %v3589 = vadd.f32 %v3476, %v3588
        %3590 = vmatprep.mubr.f32.mxu0 0.0
        %3591 = vmatmul.mubr.f32.gmra.mrb[0].mxu0 %v2933
        %v3592 = vpop.f32.mrb[0].mxu0
        %v3593 = vadd.f32 %v3480, %v3592
        %v3594 = vpop.f32.mrb[0].mxu0
        %v3595 = vadd.f32 %v3482, %v3594
        %3596 = vmatprep.mubr.f32.mxu0 0.0
        %3597 = vmatmul.mubr.f32.gmra.mrb[0].mxu0 %v2935
        %v3598 = vpop.f32.mrb[0].mxu0
        %v3599 = vadd.f32 %v3486, %v3598
        %v3600 = vpop.f32.mrb[0].mxu0
        %v3601 = vadd.f32 %v3488, %v3600
        %3602 = vmatprep.mubr.f32.mxu0 0.0
        %3603 = vmatmul.mubr.f32.gmra.mrb[0].mxu0 %v2937
        %v3604 = vpop.f32.mrb[0].mxu0
        %v3605 = vadd.f32 %v3492, %v3604
        %v3606 = vpop.f32.mrb[0].mxu0
        %v3607 = vadd.f32 %v3494, %v3606
        %3608 = vmatprep.mubr.f32.mxu0 0.0
        %3609 = vmatmul.mubr.f32.gmra.mrb[0].mxu0 %v2939
        %v3610 = vpop.f32.mrb[0].mxu0
        %v3611 = vadd.f32 %v3498, %v3610
        %v3612 = vpop.f32.mrb[0].mxu0
        %v3613 = vadd.f32 %v3500, %v3612
        %3614 = vmatprep.mubr.f32.mxu0 0.0
        %3615 = vmatmul.mubr.f32.gmra.mrb[0].mxu0 %v2941
        %v3616 = vpop.f32.mrb[0].mxu0
        %v3617 = vadd.f32 %v3504, %v3616
        %v3618 = vpop.f32.mrb[0].mxu0
        %v3619 = vadd.f32 %v3506, %v3618
        %3620 = vdwg.mxu0
        %v3622 = vsel %vm509, %v2190, 0
        %v3624 = vsel %vm509, %v2195, 0
        %v3626 = vsel %vm509, %v2200, 0
        %v3628 = vsel %vm509, %v2205, 0
        %v3630 = vsel %vm509, %v2210, 0
        %v3632 = vsel %vm509, %v2215, 0
        %v3634 = vsel %vm509, %v2220, 0
        %v3636 = vsel %vm509, %v2225, 0
        %3638 = vmatprep.subr.mxu0 %v2227
        %3639 = vmatpush1.msra.mxu0 %v2226
        %3640 = vmatprep.subr.mxu0 %v2231
        %3641 = vmatpush1.msra.mxu0 %v2230
        %3642 = vmatprep.subr.mxu0 %v2235
        %3643 = vmatpush1.msra.mxu0 %v2234
        %3644 = vmatprep.subr.mxu0 %v2239
        %3645 = vmatpush1.msra.mxu0 %v2238
        %3646 = vmatprep.subr.mxu0 %v2243
        %3647 = vmatpush1.msra.mxu0 %v2242
        %3648 = vmatprep.subr.mxu0 %v2247
        %3649 = vmatpush1.msra.mxu0 %v2246
        %3650 = vmatprep.subr.mxu0 %v2251
        %3651 = vmatpush1.msra.mxu0 %v2250
        %3652 = vmatprep.subr.mxu0 %v2255
        %3653 = vmatpush1.msra.mxu0 %v2254
        %3654 = vmatprep.subr.mxu0 %v2259
        %3655 = vmatpush1.msra.mxu0 %v2258
        %3656 = vmatprep.subr.mxu0 %v2263
        %3657 = vmatpush1.msra.mxu0 %v2262
        %3658 = vmatprep.subr.mxu0 %v2267
        %3659 = vmatpush1.msra.mxu0 %v2266
        %3660 = vmatprep.subr.mxu0 %v2271
        %3661 = vmatpush1.msra.mxu0 %v2270
        %3662 = vmatprep.subr.mxu0 %v2275
        %3663 = vmatpush1.msra.mxu0 %v2274
        %3664 = vmatprep.subr.mxu0 %v2279
        %3665 = vmatpush1.msra.mxu0 %v2278
        %3666 = vmatprep.subr.mxu0 %v2283
        %3667 = vmatpush1.msra.mxu0 %v2282
        %3668 = vmatprep.subr.mxu0 %v2287
        %3669 = vmatpush1.msra.mxu0 %v2286
        %3670 = vmatprep.subr.mxu0 %v2291
        %3671 = vmatpush1.msra.mxu0 %v2290
        %3672 = vmatprep.subr.mxu0 %v2295
        %3673 = vmatpush1.msra.mxu0 %v2294
        %3674 = vmatprep.subr.mxu0 %v2299
        %3675 = vmatpush1.msra.mxu0 %v2298
        %3676 = vmatprep.subr.mxu0 %v2303
        %3677 = vmatpush1.msra.mxu0 %v2302
        %3678 = vmatprep.subr.mxu0 %v2307
        %3679 = vmatpush1.msra.mxu0 %v2306
        %3680 = vmatprep.subr.mxu0 %v2311
        %3681 = vmatpush1.msra.mxu0 %v2310
        %3682 = vmatprep.subr.mxu0 %v2315
        %3683 = vmatpush1.msra.mxu0 %v2314
        %3684 = vmatprep.subr.mxu0 %v2319
        %3685 = vmatpush1.msra.mxu0 %v2318
        %3686 = vmatprep.subr.mxu0 %v2323
        %3687 = vmatpush1.msra.mxu0 %v2322
        %3688 = vmatprep.subr.mxu0 %v2327
        %3689 = vmatpush1.msra.mxu0 %v2326
        %3690 = vmatprep.subr.mxu0 %v2331
        %3691 = vmatpush1.msra.mxu0 %v2330
        %3692 = vmatprep.subr.mxu0 %v2335
        %3693 = vmatpush1.msra.mxu0 %v2334
        %3694 = vmatprep.subr.mxu0 %v2339
        %3695 = vmatpush1.msra.mxu0 %v2338
        %3696 = vmatprep.subr.mxu0 %v2343
        %3697 = vmatpush1.msra.mxu0 %v2342
        %3698 = vmatprep.subr.mxu0 %v2347
        %3699 = vmatpush1.msra.mxu0 %v2346
        %3700 = vmatprep.subr.mxu0 %v2351
        %3701 = vmatpush1.msra.mxu0 %v2350
        %3702 = vmatprep.mubr.f32.mxu0 %v2187
        %3703 = vmatmul.mubr.f32.gmra.mrb[0].mxu0 %v2186
        %v3704 = vpop.f32.mrb[0].mxu0
        %v3705 = vadd.f32 %v3236, %v3704
        %v3706 = vpop.f32.mrb[0].mxu0
        %v3707 = vadd.f32 %v3238, %v3706
        %3708 = vmatprep.mubr.f32.mxu0 %v2192
        %3709 = vmatmul.mubr.f32.gmra.mrb[0].mxu0 %v2191
        %v3710 = vpop.f32.mrb[0].mxu0
        %v3711 = vadd.f32 %v3242, %v3710
        %v3712 = vpop.f32.mrb[0].mxu0
        %v3713 = vadd.f32 %v3244, %v3712
        %3714 = vmatprep.mubr.f32.mxu0 %v2197
        %3715 = vmatmul.mubr.f32.gmra.mrb[0].mxu0 %v2196
        %v3716 = vpop.f32.mrb[0].mxu0
        %v3717 = vadd.f32 %v3248, %v3716
        %v3718 = vpop.f32.mrb[0].mxu0
        %v3719 = vadd.f32 %v3250, %v3718
        %3720 = vmatprep.mubr.f32.mxu0 %v2202
        %3721 = vmatmul.mubr.f32.gmra.mrb[0].mxu0 %v2201
        %v3722 = vpop.f32.mrb[0].mxu0
        %v3723 = vadd.f32 %v3254, %v3722
        %v3724 = vpop.f32.mrb[0].mxu0
        %v3725 = vadd.f32 %v3256, %v3724
        %3726 = vmatprep.mubr.f32.mxu0 %v2207
        %3727 = vmatmul.mubr.f32.gmra.mrb[0].mxu0 %v2206
        %v3728 = vpop.f32.mrb[0].mxu0
        %v3729 = vadd.f32 %v3260, %v3728
        %v3730 = vpop.f32.mrb[0].mxu0
        %v3731 = vadd.f32 %v3262, %v3730
        %3732 = vmatprep.mubr.f32.mxu0 %v2212
        %3733 = vmatmul.mubr.f32.gmra.mrb[0].mxu0 %v2211
        %v3734 = vpop.f32.mrb[0].mxu0
        %v3735 = vadd.f32 %v3266, %v3734
        %v3736 = vpop.f32.mrb[0].mxu0
        %v3737 = vadd.f32 %v3268, %v3736
        %3738 = vmatprep.mubr.f32.mxu0 %v2217
        %3739 = vmatmul.mubr.f32.gmra.mrb[0].mxu0 %v2216
        %v3740 = vpop.f32.mrb[0].mxu0
        %v3741 = vadd.f32 %v3272, %v3740
        %v3742 = vpop.f32.mrb[0].mxu0
        %v3743 = vadd.f32 %v3274, %v3742
        %3744 = vmatprep.mubr.f32.mxu0 %v2222
        %3745 = vmatmul.mubr.f32.gmra.mrb[0].mxu0 %v2221
        %v3746 = vpop.f32.mrb[0].mxu0
        %v3747 = vadd.f32 %v3278, %v3746
        %v3748 = vpop.f32.mrb[0].mxu0
        %v3749 = vadd.f32 %v3280, %v3748
        %3750 = vdwg.mxu0
        %3751 = vmatprep.subr.mxu0 %v2355
        %3752 = vmatpush1.msra.mxu0 %v2354
        %3753 = vmatprep.subr.mxu0 %v2359
        %3754 = vmatpush1.msra.mxu0 %v2358
        %3755 = vmatprep.subr.mxu0 %v2363
        %3756 = vmatpush1.msra.mxu0 %v2362
        %3757 = vmatprep.subr.mxu0 %v2367
        %3758 = vmatpush1.msra.mxu0 %v2366
        %3759 = vmatprep.subr.mxu0 %v2371
        %3760 = vmatpush1.msra.mxu0 %v2370
        %3761 = vmatprep.subr.mxu0 %v2375
        %3762 = vmatpush1.msra.mxu0 %v2374
        %3763 = vmatprep.subr.mxu0 %v2379
        %3764 = vmatpush1.msra.mxu0 %v2378
        %3765 = vmatprep.subr.mxu0 %v2383
        %3766 = vmatpush1.msra.mxu0 %v2382
        %3767 = vmatprep.subr.mxu0 %v2387
        %3768 = vmatpush1.msra.mxu0 %v2386
        %3769 = vmatprep.subr.mxu0 %v2391
        %3770 = vmatpush1.msra.mxu0 %v2390
        %3771 = vmatprep.subr.mxu0 %v2395
        %3772 = vmatpush1.msra.mxu0 %v2394
        %3773 = vmatprep.subr.mxu0 %v2399
        %3774 = vmatpush1.msra.mxu0 %v2398
        %3775 = vmatprep.subr.mxu0 %v2403
        %3776 = vmatpush1.msra.mxu0 %v2402
        %3777 = vmatprep.subr.mxu0 %v2407
        %3778 = vmatpush1.msra.mxu0 %v2406
        %3779 = vmatprep.subr.mxu0 %v2411
        %3780 = vmatpush1.msra.mxu0 %v2410
        %3781 = vmatprep.subr.mxu0 %v2415
        %3782 = vmatpush1.msra.mxu0 %v2414
        %3783 = vmatprep.subr.mxu0 %v2419
        %3784 = vmatpush1.msra.mxu0 %v2418
        %3785 = vmatprep.subr.mxu0 %v2423
        %3786 = vmatpush1.msra.mxu0 %v2422
        %3787 = vmatprep.subr.mxu0 %v2427
        %3788 = vmatpush1.msra.mxu0 %v2426
        %3789 = vmatprep.subr.mxu0 %v2431
        %3790 = vmatpush1.msra.mxu0 %v2430
        %3791 = vmatprep.subr.mxu0 %v2435
        %3792 = vmatpush1.msra.mxu0 %v2434
        %3793 = vmatprep.subr.mxu0 %v2439
        %3794 = vmatpush1.msra.mxu0 %v2438
        %3795 = vmatprep.subr.mxu0 %v2443
        %3796 = vmatpush1.msra.mxu0 %v2442
        %3797 = vmatprep.subr.mxu0 %v2447
        %3798 = vmatpush1.msra.mxu0 %v2446
        %3799 = vmatprep.subr.mxu0 %v2451
        %3800 = vmatpush1.msra.mxu0 %v2450
        %3801 = vmatprep.subr.mxu0 %v2455
        %3802 = vmatpush1.msra.mxu0 %v2454
        %3803 = vmatprep.subr.mxu0 %v2459
        %3804 = vmatpush1.msra.mxu0 %v2458
        %3805 = vmatprep.subr.mxu0 %v2463
        %3806 = vmatpush1.msra.mxu0 %v2462
        %3807 = vmatprep.subr.mxu0 %v2467
        %3808 = vmatpush1.msra.mxu0 %v2466
        %3809 = vmatprep.subr.mxu0 %v2471
        %3810 = vmatpush1.msra.mxu0 %v2470
        %3811 = vmatprep.subr.mxu0 %v2475
        %3812 = vmatpush1.msra.mxu0 %v2474
        %3813 = vmatprep.subr.mxu0 %v2479
        %3814 = vmatpush1.msra.mxu0 %v2478
        %3815 = vmatprep.mubr.f32.mxu0 %v2189
        %3816 = vmatmul.mubr.f32.gmra.mrb[0].mxu0 %v2188
        %v3817 = vpop.f32.mrb[0].mxu0
        %v3818 = vadd.f32 %v3705, %v3817
        %v3819 = vpop.f32.mrb[0].mxu0
        %v3820 = vadd.f32 %v3707, %v3819
        %3821 = vmatprep.mubr.f32.mxu0 %v2194
        %3822 = vmatmul.mubr.f32.gmra.mrb[0].mxu0 %v2193
        %v3823 = vpop.f32.mrb[0].mxu0
        %v3824 = vadd.f32 %v3711, %v3823
        %v3825 = vpop.f32.mrb[0].mxu0
        %v3826 = vadd.f32 %v3713, %v3825
        %3827 = vmatprep.mubr.f32.mxu0 %v2199
        %3828 = vmatmul.mubr.f32.gmra.mrb[0].mxu0 %v2198
        %v3829 = vpop.f32.mrb[0].mxu0
        %v3830 = vadd.f32 %v3717, %v3829
        %v3831 = vpop.f32.mrb[0].mxu0
        %v3832 = vadd.f32 %v3719, %v3831
        %3833 = vmatprep.mubr.f32.mxu0 %v2204
        %3834 = vmatmul.mubr.f32.gmra.mrb[0].mxu0 %v2203
        %v3835 = vpop.f32.mrb[0].mxu0
        %v3836 = vadd.f32 %v3723, %v3835
        %v3837 = vpop.f32.mrb[0].mxu0
        %v3838 = vadd.f32 %v3725, %v3837
        %3839 = vmatprep.mubr.f32.mxu0 %v2209
        %3840 = vmatmul.mubr.f32.gmra.mrb[0].mxu0 %v2208
        %v3841 = vpop.f32.mrb[0].mxu0
        %v3842 = vadd.f32 %v3729, %v3841
        %v3843 = vpop.f32.mrb[0].mxu0
        %v3844 = vadd.f32 %v3731, %v3843
        %3845 = vmatprep.mubr.f32.mxu0 %v2214
        %3846 = vmatmul.mubr.f32.gmra.mrb[0].mxu0 %v2213
        %v3847 = vpop.f32.mrb[0].mxu0
        %v3848 = vadd.f32 %v3735, %v3847
        %v3849 = vpop.f32.mrb[0].mxu0
        %v3850 = vadd.f32 %v3737, %v3849
        %3851 = vmatprep.mubr.f32.mxu0 %v2219
        %3852 = vmatmul.mubr.f32.gmra.mrb[0].mxu0 %v2218
        %v3853 = vpop.f32.mrb[0].mxu0
        %v3854 = vadd.f32 %v3741, %v3853
        %v3855 = vpop.f32.mrb[0].mxu0
        %v3856 = vadd.f32 %v3743, %v3855
        %3857 = vmatprep.mubr.f32.mxu0 %v2224
        %3858 = vmatmul.mubr.f32.gmra.mrb[0].mxu0 %v2223
        %v3859 = vpop.f32.mrb[0].mxu0
        %v3860 = vadd.f32 %v3747, %v3859
        %v3861 = vpop.f32.mrb[0].mxu0
        %v3862 = vadd.f32 %v3749, %v3861
        %3863 = vdwg.mxu0
        %3864 = vmatprep.subr.mxu0 %v2483
        %3865 = vmatpush1.msra.mxu0 %v2482
        %3866 = vmatprep.subr.mxu0 %v2487
        %3867 = vmatpush1.msra.mxu0 %v2486
        %3868 = vmatprep.subr.mxu0 0.0
        %3869 = vmatpush1.msra.mxu0 0.0
        %3870 = vmatprep.subr.mxu0 0.0
        %3871 = vmatpush1.msra.mxu0 0.0
        %3872 = vmatprep.subr.mxu0 0.0
        %3873 = vmatpush1.msra.mxu0 0.0
        %3874 = vmatprep.subr.mxu0 0.0
        %3875 = vmatpush1.msra.mxu0 0.0
        %3876 = vmatprep.subr.mxu0 0.0
        %3877 = vmatpush1.msra.mxu0 0.0
        %3878 = vmatprep.subr.mxu0 0.0
        %3879 = vmatpush1.msra.mxu0 0.0
        %3880 = vmatprep.subr.mxu0 0.0
        %3881 = vmatpush1.msra.mxu0 0.0
        %3882 = vmatprep.subr.mxu0 0.0
        %3883 = vmatpush1.msra.mxu0 0.0
        %3884 = vmatprep.subr.mxu0 0.0
        %3885 = vmatpush1.msra.mxu0 0.0
        %3886 = vmatprep.subr.mxu0 0.0
        %3887 = vmatpush1.msra.mxu0 0.0
        %3888 = vmatprep.subr.mxu0 0.0
        %3889 = vmatpush1.msra.mxu0 0.0
        %3890 = vmatprep.subr.mxu0 0.0
        %3891 = vmatpush1.msra.mxu0 0.0
        %3892 = vmatprep.subr.mxu0 0.0
        %3893 = vmatpush1.msra.mxu0 0.0
        %3894 = vmatprep.subr.mxu0 0.0
        %3895 = vmatpush1.msra.mxu0 0.0
        %3896 = vmatprep.subr.mxu0 0.0
        %3897 = vmatpush1.msra.mxu0 0.0
        %3898 = vmatprep.subr.mxu0 0.0
        %3899 = vmatpush1.msra.mxu0 0.0
        %3900 = vmatprep.subr.mxu0 0.0
        %3901 = vmatpush1.msra.mxu0 0.0
        %3902 = vmatprep.subr.mxu0 0.0
        %3903 = vmatpush1.msra.mxu0 0.0
        %3904 = vmatprep.subr.mxu0 0.0
        %3905 = vmatpush1.msra.mxu0 0.0
        %3906 = vmatprep.subr.mxu0 0.0
        %3907 = vmatpush1.msra.mxu0 0.0
        %3908 = vmatprep.subr.mxu0 0.0
        %3909 = vmatpush1.msra.mxu0 0.0
        %3910 = vmatprep.subr.mxu0 0.0
        %3911 = vmatpush1.msra.mxu0 0.0
        %3912 = vmatprep.subr.mxu0 0.0
        %3913 = vmatpush1.msra.mxu0 0.0
        %3914 = vmatprep.subr.mxu0 0.0
        %3915 = vmatpush1.msra.mxu0 0.0
        %3916 = vmatprep.subr.mxu0 0.0
        %3917 = vmatpush1.msra.mxu0 0.0
        %3918 = vmatprep.subr.mxu0 0.0
        %3919 = vmatpush1.msra.mxu0 0.0
        %3920 = vmatprep.subr.mxu0 0.0
        %3921 = vmatpush1.msra.mxu0 0.0
        %3922 = vmatprep.subr.mxu0 0.0
        %3923 = vmatpush1.msra.mxu0 0.0
        %3924 = vmatprep.subr.mxu0 0.0
        %3925 = vmatpush1.msra.mxu0 0.0
        %3926 = vmatprep.subr.mxu0 0.0
        %3927 = vmatpush1.msra.mxu0 0.0
        %3928 = vmatprep.mubr.f32.mxu0 0.0
        %3929 = vmatmul.mubr.f32.gmra.mrb[0].mxu0 %v3622
        %v3930 = vpop.f32.mrb[0].mxu0
        %v3931 = vadd.f32 %v3818, %v3930
        %v3932 = vpop.f32.mrb[0].mxu0
        %v3933 = vadd.f32 %v3820, %v3932
        %3934 = vmatprep.mubr.f32.mxu0 0.0
        %3935 = vmatmul.mubr.f32.gmra.mrb[0].mxu0 %v3624
        %v3936 = vpop.f32.mrb[0].mxu0
        %v3937 = vadd.f32 %v3824, %v3936
        %v3938 = vpop.f32.mrb[0].mxu0
        %v3939 = vadd.f32 %v3826, %v3938
        %3940 = vmatprep.mubr.f32.mxu0 0.0
        %3941 = vmatmul.mubr.f32.gmra.mrb[0].mxu0 %v3626
        %v3942 = vpop.f32.mrb[0].mxu0
        %v3943 = vadd.f32 %v3830, %v3942
        %v3944 = vpop.f32.mrb[0].mxu0
        %v3945 = vadd.f32 %v3832, %v3944
        %3946 = vmatprep.mubr.f32.mxu0 0.0
        %3947 = vmatmul.mubr.f32.gmra.mrb[0].mxu0 %v3628
        %v3948 = vpop.f32.mrb[0].mxu0
        %v3949 = vadd.f32 %v3836, %v3948
        %v3950 = vpop.f32.mrb[0].mxu0
        %v3951 = vadd.f32 %v3838, %v3950
        %3952 = vmatprep.mubr.f32.mxu0 0.0
        %3953 = vmatmul.mubr.f32.gmra.mrb[0].mxu0 %v3630
        %v3954 = vpop.f32.mrb[0].mxu0
        %v3955 = vadd.f32 %v3842, %v3954
        %v3956 = vpop.f32.mrb[0].mxu0
        %v3957 = vadd.f32 %v3844, %v3956
        %3958 = vmatprep.mubr.f32.mxu0 0.0
        %3959 = vmatmul.mubr.f32.gmra.mrb[0].mxu0 %v3632
        %v3960 = vpop.f32.mrb[0].mxu0
        %v3961 = vadd.f32 %v3848, %v3960
        %v3962 = vpop.f32.mrb[0].mxu0
        %v3963 = vadd.f32 %v3850, %v3962
        %3964 = vmatprep.mubr.f32.mxu0 0.0
        %3965 = vmatmul.mubr.f32.gmra.mrb[0].mxu0 %v3634
        %v3966 = vpop.f32.mrb[0].mxu0
        %v3967 = vadd.f32 %v3854, %v3966
        %v3968 = vpop.f32.mrb[0].mxu0
        %v3969 = vadd.f32 %v3856, %v3968
        %3970 = vmatprep.mubr.f32.mxu0 0.0
        %3971 = vmatmul.mubr.f32.gmra.mrb[0].mxu0 %v3636
        %v3972 = vpop.f32.mrb[0].mxu0
        %v3973 = vadd.f32 %v3860, %v3972
        %v3974 = vpop.f32.mrb[0].mxu0
        %v3975 = vadd.f32 %v3862, %v3974
        %3976 = vdwg.mxu0
        %3977 = vmatprep.subr.mxu0 %v2229
        %3978 = vmatpush1.msra.mxu0 %v2228
        %3979 = vmatprep.subr.mxu0 %v2233
        %3980 = vmatpush1.msra.mxu0 %v2232
        %3981 = vmatprep.subr.mxu0 %v2237
        %3982 = vmatpush1.msra.mxu0 %v2236
        %3983 = vmatprep.subr.mxu0 %v2241
        %3984 = vmatpush1.msra.mxu0 %v2240
        %3985 = vmatprep.subr.mxu0 %v2245
        %3986 = vmatpush1.msra.mxu0 %v2244
        %3987 = vmatprep.subr.mxu0 %v2249
        %3988 = vmatpush1.msra.mxu0 %v2248
        %3989 = vmatprep.subr.mxu0 %v2253
        %3990 = vmatpush1.msra.mxu0 %v2252
        %3991 = vmatprep.subr.mxu0 %v2257
        %3992 = vmatpush1.msra.mxu0 %v2256
        %3993 = vmatprep.subr.mxu0 %v2261
        %3994 = vmatpush1.msra.mxu0 %v2260
        %3995 = vmatprep.subr.mxu0 %v2265
        %3996 = vmatpush1.msra.mxu0 %v2264
        %3997 = vmatprep.subr.mxu0 %v2269
        %3998 = vmatpush1.msra.mxu0 %v2268
        %3999 = vmatprep.subr.mxu0 %v2273
        %4000 = vmatpush1.msra.mxu0 %v2272
        %4001 = vmatprep.subr.mxu0 %v2277
        %4002 = vmatpush1.msra.mxu0 %v2276
        %4003 = vmatprep.subr.mxu0 %v2281
        %4004 = vmatpush1.msra.mxu0 %v2280
        %4005 = vmatprep.subr.mxu0 %v2285
        %4006 = vmatpush1.msra.mxu0 %v2284
        %4007 = vmatprep.subr.mxu0 %v2289
        %4008 = vmatpush1.msra.mxu0 %v2288
        %4009 = vmatprep.subr.mxu0 %v2293
        %4010 = vmatpush1.msra.mxu0 %v2292
        %4011 = vmatprep.subr.mxu0 %v2297
        %4012 = vmatpush1.msra.mxu0 %v2296
        %4013 = vmatprep.subr.mxu0 %v2301
        %4014 = vmatpush1.msra.mxu0 %v2300
        %4015 = vmatprep.subr.mxu0 %v2305
        %4016 = vmatpush1.msra.mxu0 %v2304
        %4017 = vmatprep.subr.mxu0 %v2309
        %4018 = vmatpush1.msra.mxu0 %v2308
        %4019 = vmatprep.subr.mxu0 %v2313
        %4020 = vmatpush1.msra.mxu0 %v2312
        %4021 = vmatprep.subr.mxu0 %v2317
        %4022 = vmatpush1.msra.mxu0 %v2316
        %4023 = vmatprep.subr.mxu0 %v2321
        %4024 = vmatpush1.msra.mxu0 %v2320
        %4025 = vmatprep.subr.mxu0 %v2325
        %4026 = vmatpush1.msra.mxu0 %v2324
        %4027 = vmatprep.subr.mxu0 %v2329
        %4028 = vmatpush1.msra.mxu0 %v2328
        %4029 = vmatprep.subr.mxu0 %v2333
        %4030 = vmatpush1.msra.mxu0 %v2332
        %4031 = vmatprep.subr.mxu0 %v2337
        %4032 = vmatpush1.msra.mxu0 %v2336
        %4033 = vmatprep.subr.mxu0 %v2341
        %4034 = vmatpush1.msra.mxu0 %v2340
        %4035 = vmatprep.subr.mxu0 %v2345
        %4036 = vmatpush1.msra.mxu0 %v2344
        %4037 = vmatprep.subr.mxu0 %v2349
        %4038 = vmatpush1.msra.mxu0 %v2348
        %4039 = vmatprep.subr.mxu0 %v2353
        %4040 = vmatpush1.msra.mxu0 %v2352
        %4041 = vmatprep.mubr.f32.mxu0 %v2187
        %4042 = vmatmul.mubr.f32.gmra.mrb[0].mxu0 %v2186
        %v4043 = vpop.f32.mrb[0].mxu0
        %v4044 = vadd.f32 %v3575, %v4043
        %v4045 = vpop.f32.mrb[0].mxu0
        %v4046 = vadd.f32 %v3577, %v4045
        %4047 = vmatprep.mubr.f32.mxu0 %v2192
        %4048 = vmatmul.mubr.f32.gmra.mrb[0].mxu0 %v2191
        %v4049 = vpop.f32.mrb[0].mxu0
        %v4050 = vadd.f32 %v3581, %v4049
        %v4051 = vpop.f32.mrb[0].mxu0
        %v4052 = vadd.f32 %v3583, %v4051
        %4053 = vmatprep.mubr.f32.mxu0 %v2197
        %4054 = vmatmul.mubr.f32.gmra.mrb[0].mxu0 %v2196
        %v4055 = vpop.f32.mrb[0].mxu0
        %v4056 = vadd.f32 %v3587, %v4055
        %v4057 = vpop.f32.mrb[0].mxu0
        %v4058 = vadd.f32 %v3589, %v4057
        %4059 = vmatprep.mubr.f32.mxu0 %v2202
        %4060 = vmatmul.mubr.f32.gmra.mrb[0].mxu0 %v2201
        %v4061 = vpop.f32.mrb[0].mxu0
        %v4062 = vadd.f32 %v3593, %v4061
        %v4063 = vpop.f32.mrb[0].mxu0
        %v4064 = vadd.f32 %v3595, %v4063
        %4065 = vmatprep.mubr.f32.mxu0 %v2207
        %4066 = vmatmul.mubr.f32.gmra.mrb[0].mxu0 %v2206
        %v4067 = vpop.f32.mrb[0].mxu0
        %v4068 = vadd.f32 %v3599, %v4067
        %v4069 = vpop.f32.mrb[0].mxu0
        %v4070 = vadd.f32 %v3601, %v4069
        %4071 = vmatprep.mubr.f32.mxu0 %v2212
        %4072 = vmatmul.mubr.f32.gmra.mrb[0].mxu0 %v2211
        %v4073 = vpop.f32.mrb[0].mxu0
        %v4074 = vadd.f32 %v3605, %v4073
        %v4075 = vpop.f32.mrb[0].mxu0
        %v4076 = vadd.f32 %v3607, %v4075
        %4077 = vmatprep.mubr.f32.mxu0 %v2217
        %4078 = vmatmul.mubr.f32.gmra.mrb[0].mxu0 %v2216
        %v4079 = vpop.f32.mrb[0].mxu0
        %v4080 = vadd.f32 %v3611, %v4079
        %v4081 = vpop.f32.mrb[0].mxu0
        %v4082 = vadd.f32 %v3613, %v4081
        %4083 = vmatprep.mubr.f32.mxu0 %v2222
        %4084 = vmatmul.mubr.f32.gmra.mrb[0].mxu0 %v2221
        %v4085 = vpop.f32.mrb[0].mxu0
        %v4086 = vadd.f32 %v3617, %v4085
        %v4087 = vpop.f32.mrb[0].mxu0
        %v4088 = vadd.f32 %v3619, %v4087
        %4089 = vdwg.mxu0
        %4090 = vmatprep.subr.mxu0 %v2357
        %4091 = vmatpush1.msra.mxu0 %v2356
        %4092 = vmatprep.subr.mxu0 %v2361
        %4093 = vmatpush1.msra.mxu0 %v2360
        %4094 = vmatprep.subr.mxu0 %v2365
        %4095 = vmatpush1.msra.mxu0 %v2364
        %4096 = vmatprep.subr.mxu0 %v2369
        %4097 = vmatpush1.msra.mxu0 %v2368
        %4098 = vmatprep.subr.mxu0 %v2373
        %4099 = vmatpush1.msra.mxu0 %v2372
        %4100 = vmatprep.subr.mxu0 %v2377
        %4101 = vmatpush1.msra.mxu0 %v2376
        %4102 = vmatprep.subr.mxu0 %v2381
        %4103 = vmatpush1.msra.mxu0 %v2380
        %4104 = vmatprep.subr.mxu0 %v2385
        %4105 = vmatpush1.msra.mxu0 %v2384
        %4106 = vmatprep.subr.mxu0 %v2389
        %4107 = vmatpush1.msra.mxu0 %v2388
        %4108 = vmatprep.subr.mxu0 %v2393
        %4109 = vmatpush1.msra.mxu0 %v2392
        %4110 = vmatprep.subr.mxu0 %v2397
        %4111 = vmatpush1.msra.mxu0 %v2396
        %4112 = vmatprep.subr.mxu0 %v2401
        %4113 = vmatpush1.msra.mxu0 %v2400
        %4114 = vmatprep.subr.mxu0 %v2405
        %4115 = vmatpush1.msra.mxu0 %v2404
        %4116 = vmatprep.subr.mxu0 %v2409
        %4117 = vmatpush1.msra.mxu0 %v2408
        %4118 = vmatprep.subr.mxu0 %v2413
        %4119 = vmatpush1.msra.mxu0 %v2412
        %4120 = vmatprep.subr.mxu0 %v2417
        %4121 = vmatpush1.msra.mxu0 %v2416
        %4122 = vmatprep.subr.mxu0 %v2421
        %4123 = vmatpush1.msra.mxu0 %v2420
        %4124 = vmatprep.subr.mxu0 %v2425
        %4125 = vmatpush1.msra.mxu0 %v2424
        %4126 = vmatprep.subr.mxu0 %v2429
        %4127 = vmatpush1.msra.mxu0 %v2428
        %4128 = vmatprep.subr.mxu0 %v2433
        %4129 = vmatpush1.msra.mxu0 %v2432
        %4130 = vmatprep.subr.mxu0 %v2437
        %4131 = vmatpush1.msra.mxu0 %v2436
        %4132 = vmatprep.subr.mxu0 %v2441
        %4133 = vmatpush1.msra.mxu0 %v2440
        %4134 = vmatprep.subr.mxu0 %v2445
        %4135 = vmatpush1.msra.mxu0 %v2444
        %4136 = vmatprep.subr.mxu0 %v2449
        %4137 = vmatpush1.msra.mxu0 %v2448
        %4138 = vmatprep.subr.mxu0 %v2453
        %4139 = vmatpush1.msra.mxu0 %v2452
        %4140 = vmatprep.subr.mxu0 %v2457
        %4141 = vmatpush1.msra.mxu0 %v2456
        %4142 = vmatprep.subr.mxu0 %v2461
        %4143 = vmatpush1.msra.mxu0 %v2460
        %4144 = vmatprep.subr.mxu0 %v2465
        %4145 = vmatpush1.msra.mxu0 %v2464
        %4146 = vmatprep.subr.mxu0 %v2469
        %4147 = vmatpush1.msra.mxu0 %v2468
        %4148 = vmatprep.subr.mxu0 %v2473
        %4149 = vmatpush1.msra.mxu0 %v2472
        %4150 = vmatprep.subr.mxu0 %v2477
        %4151 = vmatpush1.msra.mxu0 %v2476
        %4152 = vmatprep.subr.mxu0 %v2481
        %4153 = vmatpush1.msra.mxu0 %v2480
        %4154 = vmatprep.mubr.f32.mxu0 %v2189
        %4155 = vmatmul.mubr.f32.gmra.mrb[0].mxu0 %v2188
        %v4156 = vpop.f32.mrb[0].mxu0
        %v4157 = vadd.f32 %v4044, %v4156
        %v4158 = vpop.f32.mrb[0].mxu0
        %v4159 = vadd.f32 %v4046, %v4158
        %4160 = vmatprep.mubr.f32.mxu0 %v2194
        %4161 = vmatmul.mubr.f32.gmra.mrb[0].mxu0 %v2193
        %v4162 = vpop.f32.mrb[0].mxu0
        %v4163 = vadd.f32 %v4050, %v4162
        %v4164 = vpop.f32.mrb[0].mxu0
        %v4165 = vadd.f32 %v4052, %v4164
        %4166 = vmatprep.mubr.f32.mxu0 %v2199
        %4167 = vmatmul.mubr.f32.gmra.mrb[0].mxu0 %v2198
        %v4168 = vpop.f32.mrb[0].mxu0
        %v4169 = vadd.f32 %v4056, %v4168
        %v4170 = vpop.f32.mrb[0].mxu0
        %v4171 = vadd.f32 %v4058, %v4170
        %4172 = vmatprep.mubr.f32.mxu0 %v2204
        %4173 = vmatmul.mubr.f32.gmra.mrb[0].mxu0 %v2203
        %v4174 = vpop.f32.mrb[0].mxu0
        %v4175 = vadd.f32 %v4062, %v4174
        %v4176 = vpop.f32.mrb[0].mxu0
        %v4177 = vadd.f32 %v4064, %v4176
        %4178 = vmatprep.mubr.f32.mxu0 %v2209
        %4179 = vmatmul.mubr.f32.gmra.mrb[0].mxu0 %v2208
        %v4180 = vpop.f32.mrb[0].mxu0
        %v4181 = vadd.f32 %v4068, %v4180
        %v4182 = vpop.f32.mrb[0].mxu0
        %v4183 = vadd.f32 %v4070, %v4182
        %4184 = vmatprep.mubr.f32.mxu0 %v2214
        %4185 = vmatmul.mubr.f32.gmra.mrb[0].mxu0 %v2213
        %v4186 = vpop.f32.mrb[0].mxu0
        %v4187 = vadd.f32 %v4074, %v4186
        %v4188 = vpop.f32.mrb[0].mxu0
        %v4189 = vadd.f32 %v4076, %v4188
        %4190 = vmatprep.mubr.f32.mxu0 %v2219
        %4191 = vmatmul.mubr.f32.gmra.mrb[0].mxu0 %v2218
        %v4192 = vpop.f32.mrb[0].mxu0
        %v4193 = vadd.f32 %v4080, %v4192
        %v4194 = vpop.f32.mrb[0].mxu0
        %v4195 = vadd.f32 %v4082, %v4194
        %4196 = vmatprep.mubr.f32.mxu0 %v2224
        %4197 = vmatmul.mubr.f32.gmra.mrb[0].mxu0 %v2223
        %v4198 = vpop.f32.mrb[0].mxu0
        %v4199 = vadd.f32 %v4086, %v4198
        %v4200 = vpop.f32.mrb[0].mxu0
        %v4201 = vadd.f32 %v4088, %v4200
        %4202 = vdwg.mxu0
        %4203 = vmatprep.subr.mxu0 %v2485
        %4204 = vmatpush1.msra.mxu0 %v2484
        %4205 = vmatprep.subr.mxu0 %v2489
        %4206 = vmatpush1.msra.mxu0 %v2488
        %4207 = vmatprep.subr.mxu0 0.0
        %4208 = vmatpush1.msra.mxu0 0.0
        %4209 = vmatprep.subr.mxu0 0.0
        %4210 = vmatpush1.msra.mxu0 0.0
        %4211 = vmatprep.subr.mxu0 0.0
        %4212 = vmatpush1.msra.mxu0 0.0
        %4213 = vmatprep.subr.mxu0 0.0
        %4214 = vmatpush1.msra.mxu0 0.0
        %4215 = vmatprep.subr.mxu0 0.0
        %4216 = vmatpush1.msra.mxu0 0.0
        %4217 = vmatprep.subr.mxu0 0.0
        %4218 = vmatpush1.msra.mxu0 0.0
        %4219 = vmatprep.subr.mxu0 0.0
        %4220 = vmatpush1.msra.mxu0 0.0
        %4221 = vmatprep.subr.mxu0 0.0
        %4222 = vmatpush1.msra.mxu0 0.0
        %4223 = vmatprep.subr.mxu0 0.0
        %4224 = vmatpush1.msra.mxu0 0.0
        %4225 = vmatprep.subr.mxu0 0.0
        %4226 = vmatpush1.msra.mxu0 0.0
        %4227 = vmatprep.subr.mxu0 0.0
        %4228 = vmatpush1.msra.mxu0 0.0
        %4229 = vmatprep.subr.mxu0 0.0
        %4230 = vmatpush1.msra.mxu0 0.0
        %4231 = vmatprep.subr.mxu0 0.0
        %4232 = vmatpush1.msra.mxu0 0.0
        %4233 = vmatprep.subr.mxu0 0.0
        %4234 = vmatpush1.msra.mxu0 0.0
        %4235 = vmatprep.subr.mxu0 0.0
        %4236 = vmatpush1.msra.mxu0 0.0
        %4237 = vmatprep.subr.mxu0 0.0
        %4238 = vmatpush1.msra.mxu0 0.0
        %4239 = vmatprep.subr.mxu0 0.0
        %4240 = vmatpush1.msra.mxu0 0.0
        %4241 = vmatprep.subr.mxu0 0.0
        %4242 = vmatpush1.msra.mxu0 0.0
        %4243 = vmatprep.subr.mxu0 0.0
        %4244 = vmatpush1.msra.mxu0 0.0
        %4245 = vmatprep.subr.mxu0 0.0
        %4246 = vmatpush1.msra.mxu0 0.0
        %4247 = vmatprep.subr.mxu0 0.0
        %4248 = vmatpush1.msra.mxu0 0.0
        %4249 = vmatprep.subr.mxu0 0.0
        %4250 = vmatpush1.msra.mxu0 0.0
        %4251 = vmatprep.subr.mxu0 0.0
        %4252 = vmatpush1.msra.mxu0 0.0
        %4253 = vmatprep.subr.mxu0 0.0
        %4254 = vmatpush1.msra.mxu0 0.0
        %4255 = vmatprep.subr.mxu0 0.0
        %4256 = vmatpush1.msra.mxu0 0.0
        %4257 = vmatprep.subr.mxu0 0.0
        %4258 = vmatpush1.msra.mxu0 0.0
        %4259 = vmatprep.subr.mxu0 0.0
        %4260 = vmatpush1.msra.mxu0 0.0
        %4261 = vmatprep.subr.mxu0 0.0
        %4262 = vmatpush1.msra.mxu0 0.0
        %4263 = vmatprep.subr.mxu0 0.0
        %4264 = vmatpush1.msra.mxu0 0.0
        %4265 = vmatprep.subr.mxu0 0.0
        %4266 = vmatpush1.msra.mxu0 0.0
        %4267 = vmatprep.mubr.f32.mxu0 0.0
        %4268 = vmatmul.mubr.f32.gmra.mrb[0].mxu0 %v3622
        %v4269 = vpop.f32.mrb[0].mxu0
        %v4270 = vadd.f32 %v4157, %v4269
        %v4271 = vpop.f32.mrb[0].mxu0
        %v4272 = vadd.f32 %v4159, %v4271
        %4273 = vmatprep.mubr.f32.mxu0 0.0
        %4274 = vmatmul.mubr.f32.gmra.mrb[0].mxu0 %v3624
        %v4275 = vpop.f32.mrb[0].mxu0
        %v4276 = vadd.f32 %v4163, %v4275
        %v4277 = vpop.f32.mrb[0].mxu0
        %v4278 = vadd.f32 %v4165, %v4277
        %4279 = vmatprep.mubr.f32.mxu0 0.0
        %4280 = vmatmul.mubr.f32.gmra.mrb[0].mxu0 %v3626
        %v4281 = vpop.f32.mrb[0].mxu0
        %v4282 = vadd.f32 %v4169, %v4281
        %v4283 = vpop.f32.mrb[0].mxu0
        %v4284 = vadd.f32 %v4171, %v4283
        %4285 = vmatprep.mubr.f32.mxu0 0.0
        %4286 = vmatmul.mubr.f32.gmra.mrb[0].mxu0 %v3628
        %v4287 = vpop.f32.mrb[0].mxu0
        %v4288 = vadd.f32 %v4175, %v4287
        %v4289 = vpop.f32.mrb[0].mxu0
        %v4290 = vadd.f32 %v4177, %v4289
        %4291 = vmatprep.mubr.f32.mxu0 0.0
        %4292 = vmatmul.mubr.f32.gmra.mrb[0].mxu0 %v3630
        %v4293 = vpop.f32.mrb[0].mxu0
        %v4294 = vadd.f32 %v4181, %v4293
        %v4295 = vpop.f32.mrb[0].mxu0
        %v4296 = vadd.f32 %v4183, %v4295
        %4297 = vmatprep.mubr.f32.mxu0 0.0
        %4298 = vmatmul.mubr.f32.gmra.mrb[0].mxu0 %v3632
        %v4299 = vpop.f32.mrb[0].mxu0
        %v4300 = vadd.f32 %v4187, %v4299
        %v4301 = vpop.f32.mrb[0].mxu0
        %v4302 = vadd.f32 %v4189, %v4301
        %4303 = vmatprep.mubr.f32.mxu0 0.0
        %4304 = vmatmul.mubr.f32.gmra.mrb[0].mxu0 %v3634
        %v4305 = vpop.f32.mrb[0].mxu0
        %v4306 = vadd.f32 %v4193, %v4305
        %v4307 = vpop.f32.mrb[0].mxu0
        %v4308 = vadd.f32 %v4195, %v4307
        %4309 = vmatprep.mubr.f32.mxu0 0.0
        %4310 = vmatmul.mubr.f32.gmra.mrb[0].mxu0 %v3636
        %v4311 = vpop.f32.mrb[0].mxu0
        %v4312 = vadd.f32 %v4199, %v4311
        %v4313 = vpop.f32.mrb[0].mxu0
        %v4314 = vadd.f32 %v4201, %v4313
        %4315 = vdwg.mxu0
        %v4316 = vld [vmem:[#allocation2] sm:$0xfc]
        %v4317 = vld [vmem:[#allocation2 + $0x8] sm:$0xfc]
        %v4318 = vld [vmem:[#allocation2 + $0x10] sm:$0xfc]
        %v4319 = vld [vmem:[#allocation2 + $0x18] sm:$0xfc]
        %v4320 = vld [vmem:[#allocation2 + $0x20] sm:$0xfc]
        %v4321 = vld [vmem:[#allocation2 + $0x140] sm:$0x3]
        %v4322 = vld [vmem:[#allocation2 + $0x148] sm:$0x3]
        %v4323 = vld [vmem:[#allocation2 + $0x150] sm:$0x3]
        %v4324 = vld [vmem:[#allocation2 + $0x158] sm:$0x3]
        %v4325 = vld [vmem:[#allocation2 + $0x160] sm:$0x3]
        %s4326 = scalar_lea.vmem [#allocation13], 4224
        %v4327 = vld [vmem:[%s4326] sm:$0xff]
        %v4328 = vld [vmem:[%s4326 + $0x8] sm:$0xff]
        %v4329 = vld [vmem:[%s4326 + $0x10] sm:$0xff]
        %v4330 = vld [vmem:[%s4326 + $0x18] sm:$0xff]
        %v4331 = vld [vmem:[%s4326 + $0x20] sm:$0xff]
        %v4332 = vld [vmem:[%s4326 + $0x28] sm:$0xff]
        %v4333 = vld [vmem:[%s4326 + $0x30] sm:$0xff]
        %v4334 = vld [vmem:[%s4326 + $0x38] sm:$0xff]
        %v4335 = vld [vmem:[%s4326 + $0x40] sm:$0xff]
        %v4336 = vld [vmem:[%s4326 + $0x48] sm:$0xff]
        %v4337 = vld [vmem:[%s4326 + $0x50] sm:$0xff]
        %v4338 = vld [vmem:[%s4326 + $0x58] sm:$0xff]
        %v4339 = vld [vmem:[%s4326 + $0x60] sm:$0xff]
        %v4340 = vld [vmem:[%s4326 + $0x68] sm:$0xff]
        %v4341 = vld [vmem:[%s4326 + $0x70] sm:$0xff]
        %v4342 = vld [vmem:[%s4326 + $0x78] sm:$0xff]
        %v4343 = vld [vmem:[%s4326 + $0x80] sm:$0xff]
        %v4344 = vld [vmem:[%s4326 + $0x88] sm:$0xff]
        %v4345 = vld [vmem:[%s4326 + $0x90] sm:$0xff]
        %v4346 = vld [vmem:[%s4326 + $0x98] sm:$0xff]
        %v4347 = vld [vmem:[%s4326 + $0xa0] sm:$0xff]
        %v4348 = vld [vmem:[%s4326 + $0xa8] sm:$0xff]
        %v4349 = vld [vmem:[%s4326 + $0xb0] sm:$0xff]
        %v4350 = vld [vmem:[%s4326 + $0xb8] sm:$0xff]
        %v4351 = vld [vmem:[%s4326 + $0xc0] sm:$0xff]
        %v4352 = vld [vmem:[%s4326 + $0xc8] sm:$0xff]
        %v4353 = vld [vmem:[%s4326 + $0xd0] sm:$0xff]
        %v4354 = vld [vmem:[%s4326 + $0xd8] sm:$0xff]
        %v4355 = vld [vmem:[%s4326 + $0xe0] sm:$0xff]
        %v4356 = vld [vmem:[%s4326 + $0xe8] sm:$0xff]
        %v4357 = vld [vmem:[%s4326 + $0xf0] sm:$0xff]
        %v4358 = vld [vmem:[%s4326 + $0xf8] sm:$0xff]
        %v4359 = vld [vmem:[%s4326 + $0x100] sm:$0xff]
        %v4360 = vld [vmem:[%s4326 + $0x108] sm:$0xff]
        %v4361 = vld [vmem:[%s4326 + $0x110] sm:$0xff]
        %v4362 = vld [vmem:[%s4326 + $0x118] sm:$0xff]
        %v4363 = vld [vmem:[%s4326 + $0x120] sm:$0xff]
        %v4364 = vld [vmem:[%s4326 + $0x128] sm:$0xff]
        %v4365 = vld [vmem:[%s4326 + $0x130] sm:$0xff]
        %v4366 = vld [vmem:[%s4326 + $0x138] sm:$0xff]
        %v4367 = vld [vmem:[%s4326 + $0x140] sm:$0xff]
        %v4368 = vld [vmem:[%s4326 + $0x148] sm:$0xff]
        %v4369 = vld [vmem:[%s4326 + $0x150] sm:$0xff]
        %v4370 = vld [vmem:[%s4326 + $0x158] sm:$0xff]
        %v4371 = vld [vmem:[%s4326 + $0x160] sm:$0xff]
        %v4372 = vld [vmem:[%s4326 + $0x168] sm:$0xff]
        %v4373 = vld [vmem:[%s4326 + $0x170] sm:$0xff]
        %v4374 = vld [vmem:[%s4326 + $0x178] sm:$0xff]
        %v4375 = vld [vmem:[%s4326 + $0x180] sm:$0xff]
        %v4376 = vld [vmem:[%s4326 + $0x188] sm:$0xff]
        %v4377 = vld [vmem:[%s4326 + $0x190] sm:$0xff]
        %v4378 = vld [vmem:[%s4326 + $0x198] sm:$0xff]
        %v4379 = vld [vmem:[%s4326 + $0x1a0] sm:$0xff]
        %v4380 = vld [vmem:[%s4326 + $0x1a8] sm:$0xff]
        %v4381 = vld [vmem:[%s4326 + $0x1b0] sm:$0xff]
        %v4382 = vld [vmem:[%s4326 + $0x1b8] sm:$0xff]
        %v4383 = vld [vmem:[%s4326 + $0x1c0] sm:$0xff]
        %v4384 = vld [vmem:[%s4326 + $0x1c8] sm:$0xff]
        %v4385 = vld [vmem:[%s4326 + $0x1d0] sm:$0xff]
        %v4386 = vld [vmem:[%s4326 + $0x1d8] sm:$0xff]
        %v4387 = vld [vmem:[%s4326 + $0x1e0] sm:$0xff]
        %v4388 = vld [vmem:[%s4326 + $0x1e8] sm:$0xff]
        %v4389 = vld [vmem:[%s4326 + $0x1f0] sm:$0xff]
        %v4390 = vld [vmem:[%s4326 + $0x1f8] sm:$0xff]
        %v4391 = vld [vmem:[%s4326 + $0x200] sm:$0xff]
        %v4392 = vld [vmem:[%s4326 + $0x208] sm:$0xff]
        %v4393 = vld [vmem:[%s4326 + $0x210] sm:$0xff]
        %v4394 = vld [vmem:[%s4326 + $0x218] sm:$0xff]
        %v4395 = vld [vmem:[%s4326 + $0x220] sm:$0xff]
        %v4396 = vld [vmem:[%s4326 + $0x228] sm:$0xff]
        %v4397 = vld [vmem:[%s4326 + $0x230] sm:$0xff]
        %v4398 = vld [vmem:[%s4326 + $0x238] sm:$0xff]
        %v4399 = vld [vmem:[%s4326 + $0x240] sm:$0xff]
        %v4400 = vld [vmem:[%s4326 + $0x248] sm:$0xff]
        %v4401 = vld [vmem:[%s4326 + $0x250] sm:$0xff]
        %v4402 = vld [vmem:[%s4326 + $0x258] sm:$0xff]
        %v4403 = vld [vmem:[%s4326 + $0x260] sm:$0xff]
        %v4404 = vld [vmem:[%s4326 + $0x268] sm:$0xff]
        %v4405 = vld [vmem:[%s4326 + $0x270] sm:$0xff]
        %v4406 = vld [vmem:[%s4326 + $0x278] sm:$0xff]
        %v4407 = vld [vmem:[%s4326 + $0x280] sm:$0xff]
        %v4408 = vld [vmem:[%s4326 + $0x288] sm:$0xff]
        %v4409 = vld [vmem:[%s4326 + $0x290] sm:$0xff]
        %v4410 = vld [vmem:[%s4326 + $0x298] sm:$0xff]
        %v4411 = vld [vmem:[%s4326 + $0x2a0] sm:$0xff]
        %v4412 = vld [vmem:[%s4326 + $0x2a8] sm:$0xff]
        %v4413 = vld [vmem:[%s4326 + $0x2b0] sm:$0xff]
        %v4414 = vld [vmem:[%s4326 + $0x2b8] sm:$0xff]
        %v4415 = vld [vmem:[%s4326 + $0x2c0] sm:$0xff]
        %v4416 = vld [vmem:[%s4326 + $0x2c8] sm:$0xff]
        %v4417 = vld [vmem:[%s4326 + $0x2d0] sm:$0xff]
        %v4418 = vld [vmem:[%s4326 + $0x2d8] sm:$0xff]
        %v4419 = vld [vmem:[%s4326 + $0x2e0] sm:$0xff]
        %v4420 = vld [vmem:[%s4326 + $0x2e8] sm:$0xff]
        %v4421 = vld [vmem:[%s4326 + $0x2f0] sm:$0xff]
        %v4422 = vld [vmem:[%s4326 + $0x2f8] sm:$0xff]
        %v4423 = vld [vmem:[%s4326 + $0x300] sm:$0xff]
        %v4424 = vld [vmem:[%s4326 + $0x308] sm:$0xff]
        %v4425 = vld [vmem:[%s4326 + $0x310] sm:$0xff]
        %v4426 = vld [vmem:[%s4326 + $0x318] sm:$0xff]
        %v4427 = vld [vmem:[%s4326 + $0x320] sm:$0xff]
        %v4428 = vld [vmem:[%s4326 + $0x328] sm:$0xff]
        %v4429 = vld [vmem:[%s4326 + $0x330] sm:$0xff]
        %v4430 = vld [vmem:[%s4326 + $0x338] sm:$0xff]
        %v4431 = vld [vmem:[%s4326 + $0x340] sm:$0xff]
        %v4432 = vld [vmem:[%s4326 + $0x348] sm:$0xff]
        %v4433 = vld [vmem:[%s4326 + $0x350] sm:$0xff]
        %v4434 = vld [vmem:[%s4326 + $0x358] sm:$0xff]
        %v4435 = vld [vmem:[%s4326 + $0x360] sm:$0xff]
        %v4436 = vld [vmem:[%s4326 + $0x368] sm:$0xff]
        %v4437 = vld [vmem:[%s4326 + $0x370] sm:$0xff]
        %v4438 = vld [vmem:[%s4326 + $0x378] sm:$0xff]
        %v4439 = vld [vmem:[%s4326 + $0x380] sm:$0xff]
        %v4440 = vld [vmem:[%s4326 + $0x388] sm:$0xff]
        %v4441 = vld [vmem:[%s4326 + $0x390] sm:$0xff]
        %v4442 = vld [vmem:[%s4326 + $0x398] sm:$0xff]
        %v4443 = vld [vmem:[%s4326 + $0x3a0] sm:$0xff]
        %v4444 = vld [vmem:[%s4326 + $0x3a8] sm:$0xff]
        %v4445 = vld [vmem:[%s4326 + $0x3b0] sm:$0xff]
        %v4446 = vld [vmem:[%s4326 + $0x3b8] sm:$0xff]
        %v4447 = vld [vmem:[%s4326 + $0x3c0] sm:$0xff]
        %v4448 = vld [vmem:[%s4326 + $0x3c8] sm:$0xff]
        %v4449 = vld [vmem:[%s4326 + $0x3d0] sm:$0xff]
        %v4450 = vld [vmem:[%s4326 + $0x3d8] sm:$0xff]
        %v4451 = vld [vmem:[%s4326 + $0x3e0] sm:$0xff]
        %v4452 = vld [vmem:[%s4326 + $0x3e8] sm:$0xff]
        %v4453 = vld [vmem:[%s4326 + $0x3f0] sm:$0xff]
        %v4454 = vld [vmem:[%s4326 + $0x3f8] sm:$0xff]
        %v4455 = vld [vmem:[%s4326 + $0x400] sm:$0xff]
        %v4456 = vld [vmem:[%s4326 + $0x408] sm:$0xff]
        %v4457 = vld [vmem:[%s4326 + $0x410] sm:$0xff]
        %v4458 = vld [vmem:[%s4326 + $0x418] sm:$0xff]
        %v4459 = vld [vmem:[%s4326 + $0x420] sm:$0xff]
        %v4460 = vld [vmem:[%s4326 + $0x428] sm:$0xff]
        %v4461 = vld [vmem:[%s4326 + $0x430] sm:$0xff]
        %v4462 = vld [vmem:[%s4326 + $0x438] sm:$0xff]
        %v4463 = vld [vmem:[%s4326 + $0x440] sm:$0xff]
        %v4464 = vld [vmem:[%s4326 + $0x448] sm:$0xff]
        %v4465 = vld [vmem:[%s4326 + $0x450] sm:$0xff]
        %v4466 = vld [vmem:[%s4326 + $0x458] sm:$0xff]
        %v4467 = vld [vmem:[%s4326 + $0x460] sm:$0xff]
        %v4468 = vld [vmem:[%s4326 + $0x468] sm:$0xff]
        %v4469 = vld [vmem:[%s4326 + $0x470] sm:$0xff]
        %v4470 = vld [vmem:[%s4326 + $0x478] sm:$0xff]
        %v4471 = vld [vmem:[%s4326 + $0x480] sm:$0xff]
        %v4472 = vld [vmem:[%s4326 + $0x488] sm:$0xff]
        %v4473 = vld [vmem:[%s4326 + $0x490] sm:$0xff]
        %v4474 = vld [vmem:[%s4326 + $0x498] sm:$0xff]
        %v4475 = vld [vmem:[%s4326 + $0x4a0] sm:$0xff]
        %v4476 = vld [vmem:[%s4326 + $0x4a8] sm:$0xff]
        %v4477 = vld [vmem:[%s4326 + $0x4b0] sm:$0xff]
        %v4478 = vld [vmem:[%s4326 + $0x4b8] sm:$0xff]
        %v4479 = vld [vmem:[%s4326 + $0x4c0] sm:$0xff]
        %v4480 = vld [vmem:[%s4326 + $0x4c8] sm:$0xff]
        %v4481 = vld [vmem:[%s4326 + $0x4d0] sm:$0xff]
        %v4482 = vld [vmem:[%s4326 + $0x4d8] sm:$0xff]
        %v4483 = vld [vmem:[%s4326 + $0x4e0] sm:$0xff]
        %v4484 = vld [vmem:[%s4326 + $0x4e8] sm:$0xff]
        %v4485 = vld [vmem:[%s4326 + $0x4f0] sm:$0xff]
        %v4486 = vld [vmem:[%s4326 + $0x4f8] sm:$0xff]
        %v4487 = vld [vmem:[%s4326 + $0x500] sm:$0xff]
        %v4488 = vld [vmem:[%s4326 + $0x508] sm:$0xff]
        %v4489 = vld [vmem:[%s4326 + $0x510] sm:$0xff]
        %v4490 = vld [vmem:[%s4326 + $0x518] sm:$0xff]
        %v4491 = vld [vmem:[%s4326 + $0x520] sm:$0xff]
        %v4492 = vld [vmem:[%s4326 + $0x528] sm:$0xff]
        %v4493 = vld [vmem:[%s4326 + $0x530] sm:$0xff]
        %v4494 = vld [vmem:[%s4326 + $0x538] sm:$0xff]
        %v4495 = vld [vmem:[%s4326 + $0x540] sm:$0xff]
        %v4496 = vld [vmem:[%s4326 + $0x548] sm:$0xff]
        %v4497 = vld [vmem:[%s4326 + $0x550] sm:$0xff]
        %v4498 = vld [vmem:[%s4326 + $0x558] sm:$0xff]
        %v4499 = vld [vmem:[%s4326 + $0x560] sm:$0xff]
        %v4500 = vld [vmem:[%s4326 + $0x568] sm:$0xff]
        %v4501 = vld [vmem:[%s4326 + $0x570] sm:$0xff]
        %v4502 = vld [vmem:[%s4326 + $0x578] sm:$0xff]
        %v4503 = vld [vmem:[%s4326 + $0x580] sm:$0xff]
        %v4504 = vld [vmem:[%s4326 + $0x588] sm:$0xff]
        %v4505 = vld [vmem:[%s4326 + $0x590] sm:$0xff]
        %v4506 = vld [vmem:[%s4326 + $0x598] sm:$0xff]
        %v4507 = vld [vmem:[%s4326 + $0x5a0] sm:$0xff]
        %v4508 = vld [vmem:[%s4326 + $0x5a8] sm:$0xff]
        %v4509 = vld [vmem:[%s4326 + $0x5b0] sm:$0xff]
        %v4510 = vld [vmem:[%s4326 + $0x5b8] sm:$0xff]
        %v4511 = vld [vmem:[%s4326 + $0x5c0] sm:$0xff]
        %v4512 = vld [vmem:[%s4326 + $0x5c8] sm:$0xff]
        %v4513 = vld [vmem:[%s4326 + $0x5d0] sm:$0xff]
        %v4514 = vld [vmem:[%s4326 + $0x5d8] sm:$0xff]
        %v4515 = vld [vmem:[%s4326 + $0x5e0] sm:$0xff]
        %v4516 = vld [vmem:[%s4326 + $0x5e8] sm:$0xff]
        %v4517 = vld [vmem:[%s4326 + $0x5f0] sm:$0xff]
        %v4518 = vld [vmem:[%s4326 + $0x5f8] sm:$0xff]
        %v4519 = vld [vmem:[%s4326 + $0x600] sm:$0xff]
        %v4520 = vld [vmem:[%s4326 + $0x608] sm:$0xff]
        %v4521 = vld [vmem:[%s4326 + $0x610] sm:$0xff]
        %v4522 = vld [vmem:[%s4326 + $0x618] sm:$0xff]
        %v4523 = vld [vmem:[%s4326 + $0x620] sm:$0xff]
        %v4524 = vld [vmem:[%s4326 + $0x628] sm:$0xff]
        %v4525 = vld [vmem:[%s4326 + $0x630] sm:$0xff]
        %v4526 = vld [vmem:[%s4326 + $0x638] sm:$0xff]
        %v4527 = vld [vmem:[%s4326 + $0x640] sm:$0xff]
        %v4528 = vld [vmem:[%s4326 + $0x648] sm:$0xff]
        %v4529 = vld [vmem:[%s4326 + $0x650] sm:$0xff]
        %v4530 = vld [vmem:[%s4326 + $0x658] sm:$0xff]
        %v4531 = vld [vmem:[%s4326 + $0x660] sm:$0xff]
        %v4532 = vld [vmem:[%s4326 + $0x668] sm:$0xff]
        %v4533 = vld [vmem:[%s4326 + $0x670] sm:$0xff]
        %v4534 = vld [vmem:[%s4326 + $0x678] sm:$0xff]
        %v4535 = vld [vmem:[%s4326 + $0x680] sm:$0xff]
        %v4536 = vld [vmem:[%s4326 + $0x688] sm:$0xff]
        %v4537 = vld [vmem:[%s4326 + $0x690] sm:$0xff]
        %v4538 = vld [vmem:[%s4326 + $0x698] sm:$0xff]
        %v4539 = vld [vmem:[%s4326 + $0x6a0] sm:$0xff]
        %v4540 = vld [vmem:[%s4326 + $0x6a8] sm:$0xff]
        %v4541 = vld [vmem:[%s4326 + $0x6b0] sm:$0xff]
        %v4542 = vld [vmem:[%s4326 + $0x6b8] sm:$0xff]
        %v4543 = vld [vmem:[%s4326 + $0x6c0] sm:$0xff]
        %v4544 = vld [vmem:[%s4326 + $0x6c8] sm:$0xff]
        %v4545 = vld [vmem:[%s4326 + $0x6d0] sm:$0xff]
        %v4546 = vld [vmem:[%s4326 + $0x6d8] sm:$0xff]
        %v4547 = vld [vmem:[%s4326 + $0x6e0] sm:$0xff]
        %v4548 = vld [vmem:[%s4326 + $0x6e8] sm:$0xff]
        %v4549 = vld [vmem:[%s4326 + $0x6f0] sm:$0xff]
        %v4550 = vld [vmem:[%s4326 + $0x6f8] sm:$0xff]
        %v4551 = vld [vmem:[%s4326 + $0x700] sm:$0xff]
        %v4552 = vld [vmem:[%s4326 + $0x708] sm:$0xff]
        %v4553 = vld [vmem:[%s4326 + $0x710] sm:$0xff]
        %v4554 = vld [vmem:[%s4326 + $0x718] sm:$0xff]
        %v4555 = vld [vmem:[%s4326 + $0x720] sm:$0xff]
        %v4556 = vld [vmem:[%s4326 + $0x728] sm:$0xff]
        %v4557 = vld [vmem:[%s4326 + $0x730] sm:$0xff]
        %v4558 = vld [vmem:[%s4326 + $0x738] sm:$0xff]
        %v4559 = vld [vmem:[%s4326 + $0x740] sm:$0xff]
        %v4560 = vld [vmem:[%s4326 + $0x748] sm:$0xff]
        %v4561 = vld [vmem:[%s4326 + $0x750] sm:$0xff]
        %v4562 = vld [vmem:[%s4326 + $0x758] sm:$0xff]
        %v4563 = vld [vmem:[%s4326 + $0x760] sm:$0xff]
        %v4564 = vld [vmem:[%s4326 + $0x768] sm:$0xff]
        %v4565 = vld [vmem:[%s4326 + $0x770] sm:$0xff]
        %v4566 = vld [vmem:[%s4326 + $0x778] sm:$0xff]
        %v4567 = vld [vmem:[%s4326 + $0x780] sm:$0xff]
        %v4568 = vld [vmem:[%s4326 + $0x788] sm:$0xff]
        %v4569 = vld [vmem:[%s4326 + $0x790] sm:$0xff]
        %v4570 = vld [vmem:[%s4326 + $0x798] sm:$0xff]
        %v4571 = vld [vmem:[%s4326 + $0x7a0] sm:$0xff]
        %v4572 = vld [vmem:[%s4326 + $0x7a8] sm:$0xff]
        %v4573 = vld [vmem:[%s4326 + $0x7b0] sm:$0xff]
        %v4574 = vld [vmem:[%s4326 + $0x7b8] sm:$0xff]
        %v4575 = vld [vmem:[%s4326 + $0x7c0] sm:$0xff]
        %v4576 = vld [vmem:[%s4326 + $0x7c8] sm:$0xff]
        %v4577 = vld [vmem:[%s4326 + $0x7d0] sm:$0xff]
        %v4578 = vld [vmem:[%s4326 + $0x7d8] sm:$0xff]
        %v4579 = vld [vmem:[%s4326 + $0x7e0] sm:$0xff]
        %v4580 = vld [vmem:[%s4326 + $0x7e8] sm:$0xff]
        %v4581 = vld [vmem:[%s4326 + $0x7f0] sm:$0xff]
        %v4582 = vld [vmem:[%s4326 + $0x7f8] sm:$0xff]
        %v4583 = vld [vmem:[%s4326 + $0x800] sm:$0xff]
        %v4584 = vld [vmem:[%s4326 + $0x808] sm:$0xff]
        %v4585 = vld [vmem:[%s4326 + $0x810] sm:$0xff]
        %v4586 = vld [vmem:[%s4326 + $0x818] sm:$0xff]
        %v4587 = vld [vmem:[%s4326 + $0x820] sm:$0xff]
        %v4588 = vld [vmem:[%s4326 + $0x828] sm:$0xff]
        %v4589 = vld [vmem:[%s4326 + $0x830] sm:$0xff]
        %v4590 = vld [vmem:[%s4326 + $0x838] sm:$0xff]
        %v4601 = vrot.slane %v4316, 2
        %v4602 = vrot.slane %v2191, 2
        %v4603 = vsel %vm881, %v4601, %v4602
        %v4604 = vrot.slane %v4317, 2
        %v4605 = vrot.slane %v2192, 2
        %v4606 = vsel %vm881, %v4604, %v4605
        %v4607 = vrot.slane %v4318, 2
        %v4608 = vrot.slane %v2193, 2
        %v4609 = vsel %vm881, %v4607, %v4608
        %v4610 = vrot.slane %v4319, 2
        %v4611 = vrot.slane %v2194, 2
        %v4612 = vsel %vm881, %v4610, %v4611
        %v4613 = vrot.slane %v4320, 2
        %v4614 = vrot.slane %v2195, 2
        %v4615 = vsel %vm881, %v4613, %v4614
        %v4616 = vrot.slane %v2196, 2
        %v4617 = vsel %vm881, %v4602, %v4616
        %v4618 = vrot.slane %v2197, 2
        %v4619 = vsel %vm881, %v4605, %v4618
        %v4620 = vrot.slane %v2198, 2
        %v4621 = vsel %vm881, %v4608, %v4620
        %v4622 = vrot.slane %v2199, 2
        %v4623 = vsel %vm881, %v4611, %v4622
        %v4624 = vrot.slane %v2200, 2
        %v4625 = vsel %vm881, %v4614, %v4624
        %v4626 = vrot.slane %v2201, 2
        %v4627 = vsel %vm881, %v4616, %v4626
        %v4628 = vrot.slane %v2202, 2
        %v4629 = vsel %vm881, %v4618, %v4628
        %v4630 = vrot.slane %v2203, 2
        %v4631 = vsel %vm881, %v4620, %v4630
        %v4632 = vrot.slane %v2204, 2
        %v4633 = vsel %vm881, %v4622, %v4632
        %v4634 = vrot.slane %v2205, 2
        %v4635 = vsel %vm881, %v4624, %v4634
        %v4636 = vrot.slane %v2206, 2
        %v4637 = vsel %vm881, %v4626, %v4636
        %v4638 = vrot.slane %v2207, 2
        %v4639 = vsel %vm881, %v4628, %v4638
        %v4640 = vrot.slane %v2208, 2
        %v4641 = vsel %vm881, %v4630, %v4640
        %v4642 = vrot.slane %v2209, 2
        %v4643 = vsel %vm881, %v4632, %v4642
        %v4644 = vrot.slane %v2210, 2
        %v4645 = vsel %vm881, %v4634, %v4644
        %v4646 = vrot.slane %v2211, 2
        %v4647 = vsel %vm881, %v4636, %v4646
        %v4648 = vrot.slane %v2212, 2
        %v4649 = vsel %vm881, %v4638, %v4648
        %v4650 = vrot.slane %v2213, 2
        %v4651 = vsel %vm881, %v4640, %v4650
        %v4652 = vrot.slane %v2214, 2
        %v4653 = vsel %vm881, %v4642, %v4652
        %v4654 = vrot.slane %v2215, 2
        %v4655 = vsel %vm881, %v4644, %v4654
        %v4656 = vrot.slane %v2216, 2
        %v4657 = vsel %vm881, %v4646, %v4656
        %v4658 = vrot.slane %v2217, 2
        %v4659 = vsel %vm881, %v4648, %v4658
        %v4660 = vrot.slane %v2218, 2
        %v4661 = vsel %vm881, %v4650, %v4660
        %v4662 = vrot.slane %v2219, 2
        %v4663 = vsel %vm881, %v4652, %v4662
        %v4664 = vrot.slane %v2220, 2
        %v4665 = vsel %vm881, %v4654, %v4664
        %v4666 = vrot.slane %v2221, 2
        %v4667 = vsel %vm881, %v4656, %v4666
        %v4668 = vrot.slane %v2222, 2
        %v4669 = vsel %vm881, %v4658, %v4668
        %v4670 = vrot.slane %v2223, 2
        %v4671 = vsel %vm881, %v4660, %v4670
        %v4672 = vrot.slane %v2224, 2
        %v4673 = vsel %vm881, %v4662, %v4672
        %v4674 = vrot.slane %v2225, 2
        %v4675 = vsel %vm881, %v4664, %v4674
        %v4676 = vrot.slane %v4321, 2
        %v4677 = vsel %vm881, %v4666, %v4676
        %v4678 = vrot.slane %v4322, 2
        %v4679 = vsel %vm881, %v4668, %v4678
        %v4680 = vrot.slane %v4323, 2
        %v4681 = vsel %vm881, %v4670, %v4680
        %v4682 = vrot.slane %v4324, 2
        %v4683 = vsel %vm881, %v4672, %v4682
        %v4684 = vrot.slane %v4325, 2
        %v4685 = vsel %vm881, %v4674, %v4684
        %v4718 = vsel %vm509, %v4615, 0
        %v4720 = vsel %vm509, %v4625, 0
        %v4722 = vsel %vm509, %v4635, 0
        %v4724 = vsel %vm509, %v4645, 0
        %v4726 = vsel %vm509, %v4655, 0
        %v4728 = vsel %vm509, %v4665, 0
        %v4730 = vsel %vm509, %v4675, 0
        %v4732 = vsel %vm509, %v4685, 0
        %4734 = vmatprep.subr.mxu0 %v4328
        %4735 = vmatpush1.msra.mxu0 %v4327
        %4736 = vmatprep.subr.mxu0 %v4332
        %4737 = vmatpush1.msra.mxu0 %v4331
        %4738 = vmatprep.subr.mxu0 %v4336
        %4739 = vmatpush1.msra.mxu0 %v4335
        %4740 = vmatprep.subr.mxu0 %v4340
        %4741 = vmatpush1.msra.mxu0 %v4339
        %4742 = vmatprep.subr.mxu0 %v4344
        %4743 = vmatpush1.msra.mxu0 %v4343
        %4744 = vmatprep.subr.mxu0 %v4348
        %4745 = vmatpush1.msra.mxu0 %v4347
        %4746 = vmatprep.subr.mxu0 %v4352
        %4747 = vmatpush1.msra.mxu0 %v4351
        %4748 = vmatprep.subr.mxu0 %v4356
        %4749 = vmatpush1.msra.mxu0 %v4355
        %4750 = vmatprep.subr.mxu0 %v4360
        %4751 = vmatpush1.msra.mxu0 %v4359
        %4752 = vmatprep.subr.mxu0 %v4364
        %4753 = vmatpush1.msra.mxu0 %v4363
        %4754 = vmatprep.subr.mxu0 %v4368
        %4755 = vmatpush1.msra.mxu0 %v4367
        %4756 = vmatprep.subr.mxu0 %v4372
        %4757 = vmatpush1.msra.mxu0 %v4371
        %4758 = vmatprep.subr.mxu0 %v4376
        %4759 = vmatpush1.msra.mxu0 %v4375
        %4760 = vmatprep.subr.mxu0 %v4380
        %4761 = vmatpush1.msra.mxu0 %v4379
        %4762 = vmatprep.subr.mxu0 %v4384
        %4763 = vmatpush1.msra.mxu0 %v4383
        %4764 = vmatprep.subr.mxu0 %v4388
        %4765 = vmatpush1.msra.mxu0 %v4387
        %4766 = vmatprep.subr.mxu0 %v4392
        %4767 = vmatpush1.msra.mxu0 %v4391
        %4768 = vmatprep.subr.mxu0 %v4396
        %4769 = vmatpush1.msra.mxu0 %v4395
        %4770 = vmatprep.subr.mxu0 %v4400
        %4771 = vmatpush1.msra.mxu0 %v4399
        %4772 = vmatprep.subr.mxu0 %v4404
        %4773 = vmatpush1.msra.mxu0 %v4403
        %4774 = vmatprep.subr.mxu0 %v4408
        %4775 = vmatpush1.msra.mxu0 %v4407
        %4776 = vmatprep.subr.mxu0 %v4412
        %4777 = vmatpush1.msra.mxu0 %v4411
        %4778 = vmatprep.subr.mxu0 %v4416
        %4779 = vmatpush1.msra.mxu0 %v4415
        %4780 = vmatprep.subr.mxu0 %v4420
        %4781 = vmatpush1.msra.mxu0 %v4419
        %4782 = vmatprep.subr.mxu0 %v4424
        %4783 = vmatpush1.msra.mxu0 %v4423
        %4784 = vmatprep.subr.mxu0 %v4428
        %4785 = vmatpush1.msra.mxu0 %v4427
        %4786 = vmatprep.subr.mxu0 %v4432
        %4787 = vmatpush1.msra.mxu0 %v4431
        %4788 = vmatprep.subr.mxu0 %v4436
        %4789 = vmatpush1.msra.mxu0 %v4435
        %4790 = vmatprep.subr.mxu0 %v4440
        %4791 = vmatpush1.msra.mxu0 %v4439
        %4792 = vmatprep.subr.mxu0 %v4444
        %4793 = vmatpush1.msra.mxu0 %v4443
        %4794 = vmatprep.subr.mxu0 %v4448
        %4795 = vmatpush1.msra.mxu0 %v4447
        %4796 = vmatprep.subr.mxu0 %v4452
        %4797 = vmatpush1.msra.mxu0 %v4451
        %4798 = vmatprep.mubr.f32.mxu0 %v4606
        %4799 = vmatmul.mubr.f32.gmra.mrb[0].mxu0 %v4603
        %v4800 = vpop.f32.mrb[0].mxu0
        %v4801 = vadd.f32 0.0, %v4800
        %v4802 = vpop.f32.mrb[0].mxu0
        %v4803 = vadd.f32 0.0, %v4802
        %4804 = vmatprep.mubr.f32.mxu0 %v4619
        %4805 = vmatmul.mubr.f32.gmra.mrb[0].mxu0 %v4617
        %v4806 = vpop.f32.mrb[0].mxu0
        %v4807 = vadd.f32 0.0, %v4806
        %v4808 = vpop.f32.mrb[0].mxu0
        %v4809 = vadd.f32 0.0, %v4808
        %4810 = vmatprep.mubr.f32.mxu0 %v4629
        %4811 = vmatmul.mubr.f32.gmra.mrb[0].mxu0 %v4627
        %v4812 = vpop.f32.mrb[0].mxu0
        %v4813 = vadd.f32 0.0, %v4812
        %v4814 = vpop.f32.mrb[0].mxu0
        %v4815 = vadd.f32 0.0, %v4814
        %4816 = vmatprep.mubr.f32.mxu0 %v4639
        %4817 = vmatmul.mubr.f32.gmra.mrb[0].mxu0 %v4637
        %v4818 = vpop.f32.mrb[0].mxu0
        %v4819 = vadd.f32 0.0, %v4818
        %v4820 = vpop.f32.mrb[0].mxu0
        %v4821 = vadd.f32 0.0, %v4820
        %4822 = vmatprep.mubr.f32.mxu0 %v4649
        %4823 = vmatmul.mubr.f32.gmra.mrb[0].mxu0 %v4647
        %v4824 = vpop.f32.mrb[0].mxu0
        %v4825 = vadd.f32 0.0, %v4824
        %v4826 = vpop.f32.mrb[0].mxu0
        %v4827 = vadd.f32 0.0, %v4826
        %4828 = vmatprep.mubr.f32.mxu0 %v4659
        %4829 = vmatmul.mubr.f32.gmra.mrb[0].mxu0 %v4657
        %v4830 = vpop.f32.mrb[0].mxu0
        %v4831 = vadd.f32 0.0, %v4830
        %v4832 = vpop.f32.mrb[0].mxu0
        %v4833 = vadd.f32 0.0, %v4832
        %4834 = vmatprep.mubr.f32.mxu0 %v4669
        %4835 = vmatmul.mubr.f32.gmra.mrb[0].mxu0 %v4667
        %v4836 = vpop.f32.mrb[0].mxu0
        %v4837 = vadd.f32 0.0, %v4836
        %v4838 = vpop.f32.mrb[0].mxu0
        %v4839 = vadd.f32 0.0, %v4838
        %4840 = vmatprep.mubr.f32.mxu0 %v4679
        %4841 = vmatmul.mubr.f32.gmra.mrb[0].mxu0 %v4677
        %v4842 = vpop.f32.mrb[0].mxu0
        %v4843 = vadd.f32 0.0, %v4842
        %v4844 = vpop.f32.mrb[0].mxu0
        %v4845 = vadd.f32 0.0, %v4844
        %4846 = vdwg.mxu0
        %4847 = vmatprep.subr.mxu0 %v4456
        %4848 = vmatpush1.msra.mxu0 %v4455
        %4849 = vmatprep.subr.mxu0 %v4460
        %4850 = vmatpush1.msra.mxu0 %v4459
        %4851 = vmatprep.subr.mxu0 %v4464
        %4852 = vmatpush1.msra.mxu0 %v4463
        %4853 = vmatprep.subr.mxu0 %v4468
        %4854 = vmatpush1.msra.mxu0 %v4467
        %4855 = vmatprep.subr.mxu0 %v4472
        %4856 = vmatpush1.msra.mxu0 %v4471
        %4857 = vmatprep.subr.mxu0 %v4476
        %4858 = vmatpush1.msra.mxu0 %v4475
        %4859 = vmatprep.subr.mxu0 %v4480
        %4860 = vmatpush1.msra.mxu0 %v4479
        %4861 = vmatprep.subr.mxu0 %v4484
        %4862 = vmatpush1.msra.mxu0 %v4483
        %4863 = vmatprep.subr.mxu0 %v4488
        %4864 = vmatpush1.msra.mxu0 %v4487
        %4865 = vmatprep.subr.mxu0 %v4492
        %4866 = vmatpush1.msra.mxu0 %v4491
        %4867 = vmatprep.subr.mxu0 %v4496
        %4868 = vmatpush1.msra.mxu0 %v4495
        %4869 = vmatprep.subr.mxu0 %v4500
        %4870 = vmatpush1.msra.mxu0 %v4499
        %4871 = vmatprep.subr.mxu0 %v4504
        %4872 = vmatpush1.msra.mxu0 %v4503
        %4873 = vmatprep.subr.mxu0 %v4508
        %4874 = vmatpush1.msra.mxu0 %v4507
        %4875 = vmatprep.subr.mxu0 %v4512
        %4876 = vmatpush1.msra.mxu0 %v4511
        %4877 = vmatprep.subr.mxu0 %v4516
        %4878 = vmatpush1.msra.mxu0 %v4515
        %4879 = vmatprep.subr.mxu0 %v4520
        %4880 = vmatpush1.msra.mxu0 %v4519
        %4881 = vmatprep.subr.mxu0 %v4524
        %4882 = vmatpush1.msra.mxu0 %v4523
        %4883 = vmatprep.subr.mxu0 %v4528
        %4884 = vmatpush1.msra.mxu0 %v4527
        %4885 = vmatprep.subr.mxu0 %v4532
        %4886 = vmatpush1.msra.mxu0 %v4531
        %4887 = vmatprep.subr.mxu0 %v4536
        %4888 = vmatpush1.msra.mxu0 %v4535
        %4889 = vmatprep.subr.mxu0 %v4540
        %4890 = vmatpush1.msra.mxu0 %v4539
        %4891 = vmatprep.subr.mxu0 %v4544
        %4892 = vmatpush1.msra.mxu0 %v4543
        %4893 = vmatprep.subr.mxu0 %v4548
        %4894 = vmatpush1.msra.mxu0 %v4547
        %4895 = vmatprep.subr.mxu0 %v4552
        %4896 = vmatpush1.msra.mxu0 %v4551
        %4897 = vmatprep.subr.mxu0 %v4556
        %4898 = vmatpush1.msra.mxu0 %v4555
        %4899 = vmatprep.subr.mxu0 %v4560
        %4900 = vmatpush1.msra.mxu0 %v4559
        %4901 = vmatprep.subr.mxu0 %v4564
        %4902 = vmatpush1.msra.mxu0 %v4563
        %4903 = vmatprep.subr.mxu0 %v4568
        %4904 = vmatpush1.msra.mxu0 %v4567
        %4905 = vmatprep.subr.mxu0 %v4572
        %4906 = vmatpush1.msra.mxu0 %v4571
        %4907 = vmatprep.subr.mxu0 %v4576
        %4908 = vmatpush1.msra.mxu0 %v4575
        %4909 = vmatprep.subr.mxu0 %v4580
        %4910 = vmatpush1.msra.mxu0 %v4579
        %4911 = vmatprep.mubr.f32.mxu0 %v4612
        %4912 = vmatmul.mubr.f32.gmra.mrb[0].mxu0 %v4609
        %v4913 = vpop.f32.mrb[0].mxu0
        %v4914 = vadd.f32 %v4801, %v4913
        %v4915 = vpop.f32.mrb[0].mxu0
        %v4916 = vadd.f32 %v4803, %v4915
        %4917 = vmatprep.mubr.f32.mxu0 %v4623
        %4918 = vmatmul.mubr.f32.gmra.mrb[0].mxu0 %v4621
        %v4919 = vpop.f32.mrb[0].mxu0
        %v4920 = vadd.f32 %v4807, %v4919
        %v4921 = vpop.f32.mrb[0].mxu0
        %v4922 = vadd.f32 %v4809, %v4921
        %4923 = vmatprep.mubr.f32.mxu0 %v4633
        %4924 = vmatmul.mubr.f32.gmra.mrb[0].mxu0 %v4631
        %v4925 = vpop.f32.mrb[0].mxu0
        %v4926 = vadd.f32 %v4813, %v4925
        %v4927 = vpop.f32.mrb[0].mxu0
        %v4928 = vadd.f32 %v4815, %v4927
        %4929 = vmatprep.mubr.f32.mxu0 %v4643
        %4930 = vmatmul.mubr.f32.gmra.mrb[0].mxu0 %v4641
        %v4931 = vpop.f32.mrb[0].mxu0
        %v4932 = vadd.f32 %v4819, %v4931
        %v4933 = vpop.f32.mrb[0].mxu0
        %v4934 = vadd.f32 %v4821, %v4933
        %4935 = vmatprep.mubr.f32.mxu0 %v4653
        %4936 = vmatmul.mubr.f32.gmra.mrb[0].mxu0 %v4651
        %v4937 = vpop.f32.mrb[0].mxu0
        %v4938 = vadd.f32 %v4825, %v4937
        %v4939 = vpop.f32.mrb[0].mxu0
        %v4940 = vadd.f32 %v4827, %v4939
        %4941 = vmatprep.mubr.f32.mxu0 %v4663
        %4942 = vmatmul.mubr.f32.gmra.mrb[0].mxu0 %v4661
        %v4943 = vpop.f32.mrb[0].mxu0
        %v4944 = vadd.f32 %v4831, %v4943
        %v4945 = vpop.f32.mrb[0].mxu0
        %v4946 = vadd.f32 %v4833, %v4945
        %4947 = vmatprep.mubr.f32.mxu0 %v4673
        %4948 = vmatmul.mubr.f32.gmra.mrb[0].mxu0 %v4671
        %v4949 = vpop.f32.mrb[0].mxu0
        %v4950 = vadd.f32 %v4837, %v4949
        %v4951 = vpop.f32.mrb[0].mxu0
        %v4952 = vadd.f32 %v4839, %v4951
        %4953 = vmatprep.mubr.f32.mxu0 %v4683
        %4954 = vmatmul.mubr.f32.gmra.mrb[0].mxu0 %v4681
        %v4955 = vpop.f32.mrb[0].mxu0
        %v4956 = vadd.f32 %v4843, %v4955
        %v4957 = vpop.f32.mrb[0].mxu0
        %v4958 = vadd.f32 %v4845, %v4957
        %4959 = vdwg.mxu0
        %4960 = vmatprep.subr.mxu0 %v4584
        %4961 = vmatpush1.msra.mxu0 %v4583
        %4962 = vmatprep.subr.mxu0 %v4588
        %4963 = vmatpush1.msra.mxu0 %v4587
        %4964 = vmatprep.subr.mxu0 0.0
        %4965 = vmatpush1.msra.mxu0 0.0
        %4966 = vmatprep.subr.mxu0 0.0
        %4967 = vmatpush1.msra.mxu0 0.0
        %4968 = vmatprep.subr.mxu0 0.0
        %4969 = vmatpush1.msra.mxu0 0.0
        %4970 = vmatprep.subr.mxu0 0.0
        %4971 = vmatpush1.msra.mxu0 0.0
        %4972 = vmatprep.subr.mxu0 0.0
        %4973 = vmatpush1.msra.mxu0 0.0
        %4974 = vmatprep.subr.mxu0 0.0
        %4975 = vmatpush1.msra.mxu0 0.0
        %4976 = vmatprep.subr.mxu0 0.0
        %4977 = vmatpush1.msra.mxu0 0.0
        %4978 = vmatprep.subr.mxu0 0.0
        %4979 = vmatpush1.msra.mxu0 0.0
        %4980 = vmatprep.subr.mxu0 0.0
        %4981 = vmatpush1.msra.mxu0 0.0
        %4982 = vmatprep.subr.mxu0 0.0
        %4983 = vmatpush1.msra.mxu0 0.0
        %4984 = vmatprep.subr.mxu0 0.0
        %4985 = vmatpush1.msra.mxu0 0.0
        %4986 = vmatprep.subr.mxu0 0.0
        %4987 = vmatpush1.msra.mxu0 0.0
        %4988 = vmatprep.subr.mxu0 0.0
        %4989 = vmatpush1.msra.mxu0 0.0
        %4990 = vmatprep.subr.mxu0 0.0
        %4991 = vmatpush1.msra.mxu0 0.0
        %4992 = vmatprep.subr.mxu0 0.0
        %4993 = vmatpush1.msra.mxu0 0.0
        %4994 = vmatprep.subr.mxu0 0.0
        %4995 = vmatpush1.msra.mxu0 0.0
        %4996 = vmatprep.subr.mxu0 0.0
        %4997 = vmatpush1.msra.mxu0 0.0
        %4998 = vmatprep.subr.mxu0 0.0
        %4999 = vmatpush1.msra.mxu0 0.0
        %5000 = vmatprep.subr.mxu0 0.0
        %5001 = vmatpush1.msra.mxu0 0.0
        %5002 = vmatprep.subr.mxu0 0.0
        %5003 = vmatpush1.msra.mxu0 0.0
        %5004 = vmatprep.subr.mxu0 0.0
        %5005 = vmatpush1.msra.mxu0 0.0
        %5006 = vmatprep.subr.mxu0 0.0
        %5007 = vmatpush1.msra.mxu0 0.0
        %5008 = vmatprep.subr.mxu0 0.0
        %5009 = vmatpush1.msra.mxu0 0.0
        %5010 = vmatprep.subr.mxu0 0.0
        %5011 = vmatpush1.msra.mxu0 0.0
        %5012 = vmatprep.subr.mxu0 0.0
        %5013 = vmatpush1.msra.mxu0 0.0
        %5014 = vmatprep.subr.mxu0 0.0
        %5015 = vmatpush1.msra.mxu0 0.0
        %5016 = vmatprep.subr.mxu0 0.0
        %5017 = vmatpush1.msra.mxu0 0.0
        %5018 = vmatprep.subr.mxu0 0.0
        %5019 = vmatpush1.msra.mxu0 0.0
        %5020 = vmatprep.subr.mxu0 0.0
        %5021 = vmatpush1.msra.mxu0 0.0
        %5022 = vmatprep.subr.mxu0 0.0
        %5023 = vmatpush1.msra.mxu0 0.0
        %5024 = vmatprep.mubr.f32.mxu0 0.0
        %5025 = vmatmul.mubr.f32.gmra.mrb[0].mxu0 %v4718
        %v5026 = vpop.f32.mrb[0].mxu0
        %v5027 = vadd.f32 %v4914, %v5026
        %v5028 = vpop.f32.mrb[0].mxu0
        %v5029 = vadd.f32 %v4916, %v5028
        %5030 = vmatprep.mubr.f32.mxu0 0.0
        %5031 = vmatmul.mubr.f32.gmra.mrb[0].mxu0 %v4720
        %v5032 = vpop.f32.mrb[0].mxu0
        %v5033 = vadd.f32 %v4920, %v5032
        %v5034 = vpop.f32.mrb[0].mxu0
        %v5035 = vadd.f32 %v4922, %v5034
        %5036 = vmatprep.mubr.f32.mxu0 0.0
        %5037 = vmatmul.mubr.f32.gmra.mrb[0].mxu0 %v4722
        %v5038 = vpop.f32.mrb[0].mxu0
        %v5039 = vadd.f32 %v4926, %v5038
        %v5040 = vpop.f32.mrb[0].mxu0
        %v5041 = vadd.f32 %v4928, %v5040
        %5042 = vmatprep.mubr.f32.mxu0 0.0
        %5043 = vmatmul.mubr.f32.gmra.mrb[0].mxu0 %v4724
        %v5044 = vpop.f32.mrb[0].mxu0
        %v5045 = vadd.f32 %v4932, %v5044
        %v5046 = vpop.f32.mrb[0].mxu0
        %v5047 = vadd.f32 %v4934, %v5046
        %5048 = vmatprep.mubr.f32.mxu0 0.0
        %5049 = vmatmul.mubr.f32.gmra.mrb[0].mxu0 %v4726
        %v5050 = vpop.f32.mrb[0].mxu0
        %v5051 = vadd.f32 %v4938, %v5050
        %v5052 = vpop.f32.mrb[0].mxu0
        %v5053 = vadd.f32 %v4940, %v5052
        %5054 = vmatprep.mubr.f32.mxu0 0.0
        %5055 = vmatmul.mubr.f32.gmra.mrb[0].mxu0 %v4728
        %v5056 = vpop.f32.mrb[0].mxu0
        %v5057 = vadd.f32 %v4944, %v5056
        %v5058 = vpop.f32.mrb[0].mxu0
        %v5059 = vadd.f32 %v4946, %v5058
        %5060 = vmatprep.mubr.f32.mxu0 0.0
        %5061 = vmatmul.mubr.f32.gmra.mrb[0].mxu0 %v4730
        %v5062 = vpop.f32.mrb[0].mxu0
        %v5063 = vadd.f32 %v4950, %v5062
        %v5064 = vpop.f32.mrb[0].mxu0
        %v5065 = vadd.f32 %v4952, %v5064
        %5066 = vmatprep.mubr.f32.mxu0 0.0
        %5067 = vmatmul.mubr.f32.gmra.mrb[0].mxu0 %v4732
        %v5068 = vpop.f32.mrb[0].mxu0
        %v5069 = vadd.f32 %v4956, %v5068
        %v5070 = vpop.f32.mrb[0].mxu0
        %v5071 = vadd.f32 %v4958, %v5070
        %5072 = vdwg.mxu0
        %5073 = vmatprep.subr.mxu0 %v4330
        %5074 = vmatpush1.msra.mxu0 %v4329
        %5075 = vmatprep.subr.mxu0 %v4334
        %5076 = vmatpush1.msra.mxu0 %v4333
        %5077 = vmatprep.subr.mxu0 %v4338
        %5078 = vmatpush1.msra.mxu0 %v4337
        %5079 = vmatprep.subr.mxu0 %v4342
        %5080 = vmatpush1.msra.mxu0 %v4341
        %5081 = vmatprep.subr.mxu0 %v4346
        %5082 = vmatpush1.msra.mxu0 %v4345
        %5083 = vmatprep.subr.mxu0 %v4350
        %5084 = vmatpush1.msra.mxu0 %v4349
        %5085 = vmatprep.subr.mxu0 %v4354
        %5086 = vmatpush1.msra.mxu0 %v4353
        %5087 = vmatprep.subr.mxu0 %v4358
        %5088 = vmatpush1.msra.mxu0 %v4357
        %5089 = vmatprep.subr.mxu0 %v4362
        %5090 = vmatpush1.msra.mxu0 %v4361
        %5091 = vmatprep.subr.mxu0 %v4366
        %5092 = vmatpush1.msra.mxu0 %v4365
        %5093 = vmatprep.subr.mxu0 %v4370
        %5094 = vmatpush1.msra.mxu0 %v4369
        %5095 = vmatprep.subr.mxu0 %v4374
        %5096 = vmatpush1.msra.mxu0 %v4373
        %5097 = vmatprep.subr.mxu0 %v4378
        %5098 = vmatpush1.msra.mxu0 %v4377
        %5099 = vmatprep.subr.mxu0 %v4382
        %5100 = vmatpush1.msra.mxu0 %v4381
        %5101 = vmatprep.subr.mxu0 %v4386
        %5102 = vmatpush1.msra.mxu0 %v4385
        %5103 = vmatprep.subr.mxu0 %v4390
        %5104 = vmatpush1.msra.mxu0 %v4389
        %5105 = vmatprep.subr.mxu0 %v4394
        %5106 = vmatpush1.msra.mxu0 %v4393
        %5107 = vmatprep.subr.mxu0 %v4398
        %5108 = vmatpush1.msra.mxu0 %v4397
        %5109 = vmatprep.subr.mxu0 %v4402
        %5110 = vmatpush1.msra.mxu0 %v4401
        %5111 = vmatprep.subr.mxu0 %v4406
        %5112 = vmatpush1.msra.mxu0 %v4405
        %5113 = vmatprep.subr.mxu0 %v4410
        %5114 = vmatpush1.msra.mxu0 %v4409
        %5115 = vmatprep.subr.mxu0 %v4414
        %5116 = vmatpush1.msra.mxu0 %v4413
        %5117 = vmatprep.subr.mxu0 %v4418
        %5118 = vmatpush1.msra.mxu0 %v4417
        %5119 = vmatprep.subr.mxu0 %v4422
        %5120 = vmatpush1.msra.mxu0 %v4421
        %5121 = vmatprep.subr.mxu0 %v4426
        %5122 = vmatpush1.msra.mxu0 %v4425
        %5123 = vmatprep.subr.mxu0 %v4430
        %5124 = vmatpush1.msra.mxu0 %v4429
        %5125 = vmatprep.subr.mxu0 %v4434
        %5126 = vmatpush1.msra.mxu0 %v4433
        %5127 = vmatprep.subr.mxu0 %v4438
        %5128 = vmatpush1.msra.mxu0 %v4437
        %5129 = vmatprep.subr.mxu0 %v4442
        %5130 = vmatpush1.msra.mxu0 %v4441
        %5131 = vmatprep.subr.mxu0 %v4446
        %5132 = vmatpush1.msra.mxu0 %v4445
        %5133 = vmatprep.subr.mxu0 %v4450
        %5134 = vmatpush1.msra.mxu0 %v4449
        %5135 = vmatprep.subr.mxu0 %v4454
        %5136 = vmatpush1.msra.mxu0 %v4453
        %5137 = vmatprep.mubr.f32.mxu0 %v4606
        %5138 = vmatmul.mubr.f32.gmra.mrb[0].mxu0 %v4603
        %v5139 = vpop.f32.mrb[0].mxu0
        %v5140 = vadd.f32 0.0, %v5139
        %v5141 = vpop.f32.mrb[0].mxu0
        %v5142 = vadd.f32 0.0, %v5141
        %5143 = vmatprep.mubr.f32.mxu0 %v4619
        %5144 = vmatmul.mubr.f32.gmra.mrb[0].mxu0 %v4617
        %v5145 = vpop.f32.mrb[0].mxu0
        %v5146 = vadd.f32 0.0, %v5145
        %v5147 = vpop.f32.mrb[0].mxu0
        %v5148 = vadd.f32 0.0, %v5147
        %5149 = vmatprep.mubr.f32.mxu0 %v4629
        %5150 = vmatmul.mubr.f32.gmra.mrb[0].mxu0 %v4627
        %v5151 = vpop.f32.mrb[0].mxu0
        %v5152 = vadd.f32 0.0, %v5151
        %v5153 = vpop.f32.mrb[0].mxu0
        %v5154 = vadd.f32 0.0, %v5153
        %5155 = vmatprep.mubr.f32.mxu0 %v4639
        %5156 = vmatmul.mubr.f32.gmra.mrb[0].mxu0 %v4637
        %v5157 = vpop.f32.mrb[0].mxu0
        %v5158 = vadd.f32 0.0, %v5157
        %v5159 = vpop.f32.mrb[0].mxu0
        %v5160 = vadd.f32 0.0, %v5159
        %5161 = vmatprep.mubr.f32.mxu0 %v4649
        %5162 = vmatmul.mubr.f32.gmra.mrb[0].mxu0 %v4647
        %v5163 = vpop.f32.mrb[0].mxu0
        %v5164 = vadd.f32 0.0, %v5163
        %v5165 = vpop.f32.mrb[0].mxu0
        %v5166 = vadd.f32 0.0, %v5165
        %5167 = vmatprep.mubr.f32.mxu0 %v4659
        %5168 = vmatmul.mubr.f32.gmra.mrb[0].mxu0 %v4657
        %v5169 = vpop.f32.mrb[0].mxu0
        %v5170 = vadd.f32 0.0, %v5169
        %v5171 = vpop.f32.mrb[0].mxu0
        %v5172 = vadd.f32 0.0, %v5171
        %5173 = vmatprep.mubr.f32.mxu0 %v4669
        %5174 = vmatmul.mubr.f32.gmra.mrb[0].mxu0 %v4667
        %v5175 = vpop.f32.mrb[0].mxu0
        %v5176 = vadd.f32 0.0, %v5175
        %v5177 = vpop.f32.mrb[0].mxu0
        %v5178 = vadd.f32 0.0, %v5177
        %5179 = vmatprep.mubr.f32.mxu0 %v4679
        %5180 = vmatmul.mubr.f32.gmra.mrb[0].mxu0 %v4677
        %v5181 = vpop.f32.mrb[0].mxu0
        %v5182 = vadd.f32 0.0, %v5181
        %v5183 = vpop.f32.mrb[0].mxu0
        %v5184 = vadd.f32 0.0, %v5183
        %5185 = vdwg.mxu0
        %5186 = vmatprep.subr.mxu0 %v4458
        %5187 = vmatpush1.msra.mxu0 %v4457
        %5188 = vmatprep.subr.mxu0 %v4462
        %5189 = vmatpush1.msra.mxu0 %v4461
        %5190 = vmatprep.subr.mxu0 %v4466
        %5191 = vmatpush1.msra.mxu0 %v4465
        %5192 = vmatprep.subr.mxu0 %v4470
        %5193 = vmatpush1.msra.mxu0 %v4469
        %5194 = vmatprep.subr.mxu0 %v4474
        %5195 = vmatpush1.msra.mxu0 %v4473
        %5196 = vmatprep.subr.mxu0 %v4478
        %5197 = vmatpush1.msra.mxu0 %v4477
        %5198 = vmatprep.subr.mxu0 %v4482
        %5199 = vmatpush1.msra.mxu0 %v4481
        %5200 = vmatprep.subr.mxu0 %v4486
        %5201 = vmatpush1.msra.mxu0 %v4485
        %5202 = vmatprep.subr.mxu0 %v4490
        %5203 = vmatpush1.msra.mxu0 %v4489
        %5204 = vmatprep.subr.mxu0 %v4494
        %5205 = vmatpush1.msra.mxu0 %v4493
        %5206 = vmatprep.subr.mxu0 %v4498
        %5207 = vmatpush1.msra.mxu0 %v4497
        %5208 = vmatprep.subr.mxu0 %v4502
        %5209 = vmatpush1.msra.mxu0 %v4501
        %5210 = vmatprep.subr.mxu0 %v4506
        %5211 = vmatpush1.msra.mxu0 %v4505
        %5212 = vmatprep.subr.mxu0 %v4510
        %5213 = vmatpush1.msra.mxu0 %v4509
        %5214 = vmatprep.subr.mxu0 %v4514
        %5215 = vmatpush1.msra.mxu0 %v4513
        %5216 = vmatprep.subr.mxu0 %v4518
        %5217 = vmatpush1.msra.mxu0 %v4517
        %5218 = vmatprep.subr.mxu0 %v4522
        %5219 = vmatpush1.msra.mxu0 %v4521
        %5220 = vmatprep.subr.mxu0 %v4526
        %5221 = vmatpush1.msra.mxu0 %v4525
        %5222 = vmatprep.subr.mxu0 %v4530
        %5223 = vmatpush1.msra.mxu0 %v4529
        %5224 = vmatprep.subr.mxu0 %v4534
        %5225 = vmatpush1.msra.mxu0 %v4533
        %5226 = vmatprep.subr.mxu0 %v4538
        %5227 = vmatpush1.msra.mxu0 %v4537
        %5228 = vmatprep.subr.mxu0 %v4542
        %5229 = vmatpush1.msra.mxu0 %v4541
        %5230 = vmatprep.subr.mxu0 %v4546
        %5231 = vmatpush1.msra.mxu0 %v4545
        %5232 = vmatprep.subr.mxu0 %v4550
        %5233 = vmatpush1.msra.mxu0 %v4549
        %5234 = vmatprep.subr.mxu0 %v4554
        %5235 = vmatpush1.msra.mxu0 %v4553
        %5236 = vmatprep.subr.mxu0 %v4558
        %5237 = vmatpush1.msra.mxu0 %v4557
        %5238 = vmatprep.subr.mxu0 %v4562
        %5239 = vmatpush1.msra.mxu0 %v4561
        %5240 = vmatprep.subr.mxu0 %v4566
        %5241 = vmatpush1.msra.mxu0 %v4565
        %5242 = vmatprep.subr.mxu0 %v4570
        %5243 = vmatpush1.msra.mxu0 %v4569
        %5244 = vmatprep.subr.mxu0 %v4574
        %5245 = vmatpush1.msra.mxu0 %v4573
        %5246 = vmatprep.subr.mxu0 %v4578
        %5247 = vmatpush1.msra.mxu0 %v4577
        %5248 = vmatprep.subr.mxu0 %v4582
        %5249 = vmatpush1.msra.mxu0 %v4581
        %5250 = vmatprep.mubr.f32.mxu0 %v4612
        %5251 = vmatmul.mubr.f32.gmra.mrb[0].mxu0 %v4609
        %v5252 = vpop.f32.mrb[0].mxu0
        %v5253 = vadd.f32 %v5140, %v5252
        %v5254 = vpop.f32.mrb[0].mxu0
        %v5255 = vadd.f32 %v5142, %v5254
        %5256 = vmatprep.mubr.f32.mxu0 %v4623
        %5257 = vmatmul.mubr.f32.gmra.mrb[0].mxu0 %v4621
        %v5258 = vpop.f32.mrb[0].mxu0
        %v5259 = vadd.f32 %v5146, %v5258
        %v5260 = vpop.f32.mrb[0].mxu0
        %v5261 = vadd.f32 %v5148, %v5260
        %5262 = vmatprep.mubr.f32.mxu0 %v4633
        %5263 = vmatmul.mubr.f32.gmra.mrb[0].mxu0 %v4631
        %v5264 = vpop.f32.mrb[0].mxu0
        %v5265 = vadd.f32 %v5152, %v5264
        %v5266 = vpop.f32.mrb[0].mxu0
        %v5267 = vadd.f32 %v5154, %v5266
        %5268 = vmatprep.mubr.f32.mxu0 %v4643
        %5269 = vmatmul.mubr.f32.gmra.mrb[0].mxu0 %v4641
        %v5270 = vpop.f32.mrb[0].mxu0
        %v5271 = vadd.f32 %v5158, %v5270
        %v5272 = vpop.f32.mrb[0].mxu0
        %v5273 = vadd.f32 %v5160, %v5272
        %5274 = vmatprep.mubr.f32.mxu0 %v4653
        %5275 = vmatmul.mubr.f32.gmra.mrb[0].mxu0 %v4651
        %v5276 = vpop.f32.mrb[0].mxu0
        %v5277 = vadd.f32 %v5164, %v5276
        %v5278 = vpop.f32.mrb[0].mxu0
        %v5279 = vadd.f32 %v5166, %v5278
        %5280 = vmatprep.mubr.f32.mxu0 %v4663
        %5281 = vmatmul.mubr.f32.gmra.mrb[0].mxu0 %v4661
        %v5282 = vpop.f32.mrb[0].mxu0
        %v5283 = vadd.f32 %v5170, %v5282
        %v5284 = vpop.f32.mrb[0].mxu0
        %v5285 = vadd.f32 %v5172, %v5284
        %5286 = vmatprep.mubr.f32.mxu0 %v4673
        %5287 = vmatmul.mubr.f32.gmra.mrb[0].mxu0 %v4671
        %v5288 = vpop.f32.mrb[0].mxu0
        %v5289 = vadd.f32 %v5176, %v5288
        %v5290 = vpop.f32.mrb[0].mxu0
        %v5291 = vadd.f32 %v5178, %v5290
        %5292 = vmatprep.mubr.f32.mxu0 %v4683
        %5293 = vmatmul.mubr.f32.gmra.mrb[0].mxu0 %v4681
        %v5294 = vpop.f32.mrb[0].mxu0
        %v5295 = vadd.f32 %v5182, %v5294
        %v5296 = vpop.f32.mrb[0].mxu0
        %v5297 = vadd.f32 %v5184, %v5296
        %5298 = vdwg.mxu0
        %5299 = vmatprep.subr.mxu0 %v4586
        %5300 = vmatpush1.msra.mxu0 %v4585
        %5301 = vmatprep.subr.mxu0 %v4590
        %5302 = vmatpush1.msra.mxu0 %v4589
        %5303 = vmatprep.subr.mxu0 0.0
        %5304 = vmatpush1.msra.mxu0 0.0
        %5305 = vmatprep.subr.mxu0 0.0
        %5306 = vmatpush1.msra.mxu0 0.0
        %5307 = vmatprep.subr.mxu0 0.0
        %5308 = vmatpush1.msra.mxu0 0.0
        %5309 = vmatprep.subr.mxu0 0.0
        %5310 = vmatpush1.msra.mxu0 0.0
        %5311 = vmatprep.subr.mxu0 0.0
        %5312 = vmatpush1.msra.mxu0 0.0
        %5313 = vmatprep.subr.mxu0 0.0
        %5314 = vmatpush1.msra.mxu0 0.0
        %5315 = vmatprep.subr.mxu0 0.0
        %5316 = vmatpush1.msra.mxu0 0.0
        %5317 = vmatprep.subr.mxu0 0.0
        %5318 = vmatpush1.msra.mxu0 0.0
        %5319 = vmatprep.subr.mxu0 0.0
        %5320 = vmatpush1.msra.mxu0 0.0
        %5321 = vmatprep.subr.mxu0 0.0
        %5322 = vmatpush1.msra.mxu0 0.0
        %5323 = vmatprep.subr.mxu0 0.0
        %5324 = vmatpush1.msra.mxu0 0.0
        %5325 = vmatprep.subr.mxu0 0.0
        %5326 = vmatpush1.msra.mxu0 0.0
        %5327 = vmatprep.subr.mxu0 0.0
        %5328 = vmatpush1.msra.mxu0 0.0
        %5329 = vmatprep.subr.mxu0 0.0
        %5330 = vmatpush1.msra.mxu0 0.0
        %5331 = vmatprep.subr.mxu0 0.0
        %5332 = vmatpush1.msra.mxu0 0.0
        %5333 = vmatprep.subr.mxu0 0.0
        %5334 = vmatpush1.msra.mxu0 0.0
        %5335 = vmatprep.subr.mxu0 0.0
        %5336 = vmatpush1.msra.mxu0 0.0
        %5337 = vmatprep.subr.mxu0 0.0
        %5338 = vmatpush1.msra.mxu0 0.0
        %5339 = vmatprep.subr.mxu0 0.0
        %5340 = vmatpush1.msra.mxu0 0.0
        %5341 = vmatprep.subr.mxu0 0.0
        %5342 = vmatpush1.msra.mxu0 0.0
        %5343 = vmatprep.subr.mxu0 0.0
        %5344 = vmatpush1.msra.mxu0 0.0
        %5345 = vmatprep.subr.mxu0 0.0
        %5346 = vmatpush1.msra.mxu0 0.0
        %5347 = vmatprep.subr.mxu0 0.0
        %5348 = vmatpush1.msra.mxu0 0.0
        %5349 = vmatprep.subr.mxu0 0.0
        %5350 = vmatpush1.msra.mxu0 0.0
        %5351 = vmatprep.subr.mxu0 0.0
        %5352 = vmatpush1.msra.mxu0 0.0
        %5353 = vmatprep.subr.mxu0 0.0
        %5354 = vmatpush1.msra.mxu0 0.0
        %5355 = vmatprep.subr.mxu0 0.0
        %5356 = vmatpush1.msra.mxu0 0.0
        %5357 = vmatprep.subr.mxu0 0.0
        %5358 = vmatpush1.msra.mxu0 0.0
        %5359 = vmatprep.subr.mxu0 0.0
        %5360 = vmatpush1.msra.mxu0 0.0
        %5361 = vmatprep.subr.mxu0 0.0
        %5362 = vmatpush1.msra.mxu0 0.0
        %5363 = vmatprep.mubr.f32.mxu0 0.0
        %5364 = vmatmul.mubr.f32.gmra.mrb[0].mxu0 %v4718
        %v5365 = vpop.f32.mrb[0].mxu0
        %v5366 = vadd.f32 %v5253, %v5365
        %v5367 = vpop.f32.mrb[0].mxu0
        %v5368 = vadd.f32 %v5255, %v5367
        %5369 = vmatprep.mubr.f32.mxu0 0.0
        %5370 = vmatmul.mubr.f32.gmra.mrb[0].mxu0 %v4720
        %v5371 = vpop.f32.mrb[0].mxu0
        %v5372 = vadd.f32 %v5259, %v5371
        %v5373 = vpop.f32.mrb[0].mxu0
        %v5374 = vadd.f32 %v5261, %v5373
        %5375 = vmatprep.mubr.f32.mxu0 0.0
        %5376 = vmatmul.mubr.f32.gmra.mrb[0].mxu0 %v4722
        %v5377 = vpop.f32.mrb[0].mxu0
        %v5378 = vadd.f32 %v5265, %v5377
        %v5379 = vpop.f32.mrb[0].mxu0
        %v5380 = vadd.f32 %v5267, %v5379
        %5381 = vmatprep.mubr.f32.mxu0 0.0
        %5382 = vmatmul.mubr.f32.gmra.mrb[0].mxu0 %v4724
        %v5383 = vpop.f32.mrb[0].mxu0
        %v5384 = vadd.f32 %v5271, %v5383
        %v5385 = vpop.f32.mrb[0].mxu0
        %v5386 = vadd.f32 %v5273, %v5385
        %5387 = vmatprep.mubr.f32.mxu0 0.0
        %5388 = vmatmul.mubr.f32.gmra.mrb[0].mxu0 %v4726
        %v5389 = vpop.f32.mrb[0].mxu0
        %v5390 = vadd.f32 %v5277, %v5389
        %v5391 = vpop.f32.mrb[0].mxu0
        %v5392 = vadd.f32 %v5279, %v5391
        %5393 = vmatprep.mubr.f32.mxu0 0.0
        %5394 = vmatmul.mubr.f32.gmra.mrb[0].mxu0 %v4728
        %v5395 = vpop.f32.mrb[0].mxu0
        %v5396 = vadd.f32 %v5283, %v5395
        %v5397 = vpop.f32.mrb[0].mxu0
        %v5398 = vadd.f32 %v5285, %v5397
        %5399 = vmatprep.mubr.f32.mxu0 0.0
        %5400 = vmatmul.mubr.f32.gmra.mrb[0].mxu0 %v4730
        %v5401 = vpop.f32.mrb[0].mxu0
        %v5402 = vadd.f32 %v5289, %v5401
        %v5403 = vpop.f32.mrb[0].mxu0
        %v5404 = vadd.f32 %v5291, %v5403
        %5405 = vmatprep.mubr.f32.mxu0 0.0
        %5406 = vmatmul.mubr.f32.gmra.mrb[0].mxu0 %v4732
        %v5407 = vpop.f32.mrb[0].mxu0
        %v5408 = vadd.f32 %v5295, %v5407
        %v5409 = vpop.f32.mrb[0].mxu0
        %v5410 = vadd.f32 %v5297, %v5409
        %5411 = vdwg.mxu0
        %v5412 = vadd.f32 %v3931, %v5027
        %v5413 = vadd.f32 %v3933, %v5029
        %v5414 = vadd.f32 %v4270, %v5366
        %v5415 = vadd.f32 %v4272, %v5368
        %v5416 = vadd.f32 %v3937, %v5033
        %v5417 = vadd.f32 %v3939, %v5035
        %v5418 = vadd.f32 %v4276, %v5372
        %v5419 = vadd.f32 %v4278, %v5374
        %v5420 = vadd.f32 %v3943, %v5039
        %v5421 = vadd.f32 %v3945, %v5041
        %v5422 = vadd.f32 %v4282, %v5378
        %v5423 = vadd.f32 %v4284, %v5380
        %v5424 = vadd.f32 %v3949, %v5045
        %v5425 = vadd.f32 %v3951, %v5047
        %v5426 = vadd.f32 %v4288, %v5384
        %v5427 = vadd.f32 %v4290, %v5386
        %v5428 = vadd.f32 %v3955, %v5051
        %v5429 = vadd.f32 %v3957, %v5053
        %v5430 = vadd.f32 %v4294, %v5390
        %v5431 = vadd.f32 %v4296, %v5392
        %v5432 = vadd.f32 %v3961, %v5057
        %v5433 = vadd.f32 %v3963, %v5059
        %v5434 = vadd.f32 %v4300, %v5396
        %v5435 = vadd.f32 %v4302, %v5398
        %v5436 = vadd.f32 %v3967, %v5063
        %v5437 = vadd.f32 %v3969, %v5065
        %v5438 = vadd.f32 %v4306, %v5402
        %v5439 = vadd.f32 %v4308, %v5404
        %v5440 = vadd.f32 %v3973, %v5069
        %v5441 = vadd.f32 %v3975, %v5071
        %v5442 = vadd.f32 %v4312, %v5408
        %v5443 = vadd.f32 %v4314, %v5410
        %v5444 = vld [vmem:[#allocation14] sm:$0xf]
        %v5446 = vlaneseq
        %v5447 = vshrl.u32 %v5446, 7
        %v5448 = vsub.s32 0, %v5447
        %v5449 = vrot.slane %v5444, %v5448
        %v5450 = vlaneseq
        %v5451 = vshrl.u32 %v5450, 7
        %v5452 = vsub.s32 1, %v5451
        %v5453 = vrot.slane %v5444, %v5452
        %v5454 = vlaneseq
        %v5455 = vshrl.u32 %v5454, 7
        %v5456 = vsub.s32 2, %v5455
        %v5457 = vrot.slane %v5444, %v5456
        %v5458 = vlaneseq
        %v5459 = vshrl.u32 %v5458, 7
        %v5460 = vsub.s32 3, %v5459
        %v5461 = vrot.slane %v5444, %v5460
        %v5466 = vadd.f32 %v5412, %v5449
        %v5467 = vadd.f32 %v5413, %v5453
        %v5468 = vadd.f32 %v5414, %v5457
        %v5469 = vadd.f32 %v5415, %v5461
        %v5470 = vadd.f32 %v5416, %v5449
        %v5471 = vadd.f32 %v5417, %v5453
        %v5472 = vadd.f32 %v5418, %v5457
        %v5473 = vadd.f32 %v5419, %v5461
        %v5474 = vadd.f32 %v5420, %v5449
        %v5475 = vadd.f32 %v5421, %v5453
        %v5476 = vadd.f32 %v5422, %v5457
        %v5477 = vadd.f32 %v5423, %v5461
        %v5478 = vadd.f32 %v5424, %v5449
        %v5479 = vadd.f32 %v5425, %v5453
        %v5480 = vadd.f32 %v5426, %v5457
        %v5481 = vadd.f32 %v5427, %v5461
        %v5482 = vadd.f32 %v5428, %v5449
        %v5483 = vadd.f32 %v5429, %v5453
        %v5484 = vadd.f32 %v5430, %v5457
        %v5485 = vadd.f32 %v5431, %v5461
        %v5486 = vadd.f32 %v5432, %v5449
        %v5487 = vadd.f32 %v5433, %v5453
        %v5488 = vadd.f32 %v5434, %v5457
        %v5489 = vadd.f32 %v5435, %v5461
        %v5490 = vadd.f32 %v5436, %v5449
        %v5491 = vadd.f32 %v5437, %v5453
        %v5492 = vadd.f32 %v5438, %v5457
        %v5493 = vadd.f32 %v5439, %v5461
        %v5494 = vadd.f32 %v5440, %v5449
        %v5495 = vadd.f32 %v5441, %v5453
        %v5496 = vadd.f32 %v5442, %v5457
        %v5497 = vadd.f32 %v5443, %v5461
        %v5498 = vmax.f32 %v5466, 0.0
        %v5499 = vmax.f32 %v5467, 0.0
        %v5500 = vmax.f32 %v5468, 0.0
        %v5501 = vmax.f32 %v5469, 0.0
        %v5502 = vmax.f32 %v5470, 0.0
        %v5503 = vmax.f32 %v5471, 0.0
        %v5504 = vmax.f32 %v5472, 0.0
        %v5505 = vmax.f32 %v5473, 0.0
        %v5506 = vmax.f32 %v5474, 0.0
        %v5507 = vmax.f32 %v5475, 0.0
        %v5508 = vmax.f32 %v5476, 0.0
        %v5509 = vmax.f32 %v5477, 0.0
        %v5510 = vmax.f32 %v5478, 0.0
        %v5511 = vmax.f32 %v5479, 0.0
        %v5512 = vmax.f32 %v5480, 0.0
        %v5513 = vmax.f32 %v5481, 0.0
        %v5514 = vmax.f32 %v5482, 0.0
        %v5515 = vmax.f32 %v5483, 0.0
        %v5516 = vmax.f32 %v5484, 0.0
        %v5517 = vmax.f32 %v5485, 0.0
        %v5518 = vmax.f32 %v5486, 0.0
        %v5519 = vmax.f32 %v5487, 0.0
        %v5520 = vmax.f32 %v5488, 0.0
        %v5521 = vmax.f32 %v5489, 0.0
        %v5522 = vmax.f32 %v5490, 0.0
        %v5523 = vmax.f32 %v5491, 0.0
        %v5524 = vmax.f32 %v5492, 0.0
        %v5525 = vmax.f32 %v5493, 0.0
        %v5526 = vmax.f32 %v5494, 0.0
        %v5527 = vmax.f32 %v5495, 0.0
        %v5528 = vmax.f32 %v5496, 0.0
        %v5529 = vmax.f32 %v5497, 0.0
        %5530 = vst [vmem:[#allocation5] sm:$0xff] %v5498
        %5531 = vst [vmem:[#allocation5 + $0x8] sm:$0xff] %v5499
        %5532 = vst [vmem:[#allocation5 + $0x10] sm:$0xff] %v5500
        %5533 = vst [vmem:[#allocation5 + $0x18] sm:$0xff] %v5501
        %5534 = vst [vmem:[#allocation5 + $0x20] sm:$0xff] %v5502
        %5535 = vst [vmem:[#allocation5 + $0x28] sm:$0xff] %v5503
        %5536 = vst [vmem:[#allocation5 + $0x30] sm:$0xff] %v5504
        %5537 = vst [vmem:[#allocation5 + $0x38] sm:$0xff] %v5505
        %5538 = vst [vmem:[#allocation5 + $0x40] sm:$0xff] %v5506
        %5539 = vst [vmem:[#allocation5 + $0x48] sm:$0xff] %v5507
        %5540 = vst [vmem:[#allocation5 + $0x50] sm:$0xff] %v5508
        %5541 = vst [vmem:[#allocation5 + $0x58] sm:$0xff] %v5509
        %5542 = vst [vmem:[#allocation5 + $0x60] sm:$0xff] %v5510
        %5543 = vst [vmem:[#allocation5 + $0x68] sm:$0xff] %v5511
        %5544 = vst [vmem:[#allocation5 + $0x70] sm:$0xff] %v5512
        %5545 = vst [vmem:[#allocation5 + $0x78] sm:$0xff] %v5513
        %5546 = vst [vmem:[#allocation5 + $0x80] sm:$0xff] %v5514
        %5547 = vst [vmem:[#allocation5 + $0x88] sm:$0xff] %v5515
        %5548 = vst [vmem:[#allocation5 + $0x90] sm:$0xff] %v5516
        %5549 = vst [vmem:[#allocation5 + $0x98] sm:$0xff] %v5517
        %5550 = vst [vmem:[#allocation5 + $0xa0] sm:$0xff] %v5518
        %5551 = vst [vmem:[#allocation5 + $0xa8] sm:$0xff] %v5519
        %5552 = vst [vmem:[#allocation5 + $0xb0] sm:$0xff] %v5520
        %5553 = vst [vmem:[#allocation5 + $0xb8] sm:$0xff] %v5521
        %5554 = vst [vmem:[#allocation5 + $0xc0] sm:$0xff] %v5522
        %5555 = vst [vmem:[#allocation5 + $0xc8] sm:$0xff] %v5523
        %5556 = vst [vmem:[#allocation5 + $0xd0] sm:$0xff] %v5524
        %5557 = vst [vmem:[#allocation5 + $0xd8] sm:$0xff] %v5525
        %5558 = vst [vmem:[#allocation5 + $0xe0] sm:$0xff] %v5526
        %5559 = vst [vmem:[#allocation5 + $0xe8] sm:$0xff] %v5527
        %5560 = vst [vmem:[#allocation5 + $0xf0] sm:$0xff] %v5528
        %5561 = vst [vmem:[#allocation5 + $0xf8] sm:$0xff] %v5529
        %v5562 = vld [vmem:[#allocation5] ss:$8 sm:$0xf]
        %s5563 = scalar_lea.vmem [#allocation5], 1
        %v5564 = vld [vmem:[%s5563] ss:$8 sm:$0xf]
        %v5565 = vmax.f32 %v5562, %v5564
        %v5567 = vrot.slane %v5565, 2
        %v5569 = vmax.f32 %v5565, %v5567
        %5571 = vrot.lane.b32.xlu0 %v5569, 8
        %v5572 = vpop.permute.xlu0 %5571
        %v5573 = vrot.slane %v5572, 7
        %v5574 = vsel %vm2063, %v5573, %v5572
        %v5576 = vlaneseq
        %vm5577 = vcmp.ge.s32.totalorder %v5576, 8
        %vm5578 = vcmp.lt.s32.totalorder %v5576, 264
        %vm5579 = vmand %vm5577, %vm5578
        %s5580 = scalar_lea.vmem [#allocation3], 1
        %5581 = vst.msk [vmem:[%s5580] ss:$8 sm:$0x7] %vm5579, %v5574
        %5582 = vst.msk [vmem:[%s5580] ss:$8 sm:$0x0] %vm5579, %v5574
        %s5583 = scalar_lea.vmem [#allocation5], 2
        %v5584 = vld [vmem:[%s5583] ss:$8 sm:$0xf]
        %s5585 = scalar_lea.vmem [#allocation5], 3
        %v5586 = vld [vmem:[%s5585] ss:$8 sm:$0xf]
        %v5587 = vmax.f32 %v5584, %v5586
        %v5589 = vrot.slane %v5587, 2
        %v5591 = vmax.f32 %v5587, %v5589
        %5593 = vrot.lane.b32.xlu0 %v5591, 8
        %v5594 = vpop.permute.xlu0 %5593
        %v5595 = vrot.slane %v5594, 7
        %v5596 = vsel %vm2063, %v5595, %v5594
        %s5598 = scalar_lea.vmem [#allocation3], 2
        %5599 = vst.msk [vmem:[%s5598] ss:$8 sm:$0x7] %vm5579, %v5596
        %5600 = vst.msk [vmem:[%s5598] ss:$8 sm:$0x0] %vm5579, %v5596
        %s5601 = scalar_lea.vmem [#allocation5], 4
        %v5602 = vld [vmem:[%s5601] ss:$8 sm:$0xf]
        %s5603 = scalar_lea.vmem [#allocation5], 5
        %v5604 = vld [vmem:[%s5603] ss:$8 sm:$0xf]
        %v5605 = vmax.f32 %v5602, %v5604
        %v5607 = vrot.slane %v5605, 2
        %v5609 = vmax.f32 %v5605, %v5607
        %5611 = vrot.lane.b32.xlu0 %v5609, 8
        %v5612 = vpop.permute.xlu0 %5611
        %v5613 = vrot.slane %v5612, 7
        %v5614 = vsel %vm2063, %v5613, %v5612
        %s5616 = scalar_lea.vmem [#allocation3], 3
        %5617 = vst.msk [vmem:[%s5616] ss:$8 sm:$0x7] %vm5579, %v5614
        %5618 = vst.msk [vmem:[%s5616] ss:$8 sm:$0x0] %vm5579, %v5614
        %s5619 = scalar_lea.vmem [#allocation5], 6
        %v5620 = vld [vmem:[%s5619] ss:$8 sm:$0xf]
        %s5621 = scalar_lea.vmem [#allocation5], 7
        %v5622 = vld [vmem:[%s5621] ss:$8 sm:$0xf]
        %v5623 = vmax.f32 %v5620, %v5622
        %v5625 = vrot.slane %v5623, 2
        %v5627 = vmax.f32 %v5623, %v5625
        %5629 = vrot.lane.b32.xlu0 %v5627, 8
        %v5630 = vpop.permute.xlu0 %5629
        %v5631 = vrot.slane %v5630, 7
        %v5632 = vsel %vm2063, %v5631, %v5630
        %s5634 = scalar_lea.vmem [#allocation3], 4
        %5635 = vst.msk [vmem:[%s5634] ss:$8 sm:$0x7] %vm5579, %v5632
        %5636 = vst.msk [vmem:[%s5634] ss:$8 sm:$0x0] %vm5579, %v5632
        %s5637 = scalar_lea.vmem [#allocation5], 32
        %v5638 = vld [vmem:[%s5637] ss:$8 sm:$0xf]
        %s5639 = scalar_lea.vmem [#allocation5], 33
        %v5640 = vld [vmem:[%s5639] ss:$8 sm:$0xf]
        %v5641 = vmax.f32 %v5638, %v5640
        %v5643 = vrot.slane %v5641, 2
        %v5645 = vmax.f32 %v5641, %v5643
        %5647 = vrot.lane.b32.xlu0 %v5645, 8
        %v5648 = vpop.permute.xlu0 %5647
        %v5649 = vrot.slane %v5648, 7
        %v5650 = vsel %vm2063, %v5649, %v5648
        %s5652 = scalar_lea.vmem [#allocation3], 5
        %5653 = vst.msk [vmem:[%s5652] ss:$8 sm:$0x7] %vm5579, %v5650
        %5654 = vst.msk [vmem:[%s5652] ss:$8 sm:$0x0] %vm5579, %v5650
        %s5655 = scalar_lea.vmem [#allocation5], 34
        %v5656 = vld [vmem:[%s5655] ss:$8 sm:$0xf]
        %s5657 = scalar_lea.vmem [#allocation5], 35
        %v5658 = vld [vmem:[%s5657] ss:$8 sm:$0xf]
        %v5659 = vmax.f32 %v5656, %v5658
        %v5661 = vrot.slane %v5659, 2
        %v5663 = vmax.f32 %v5659, %v5661
        %5665 = vrot.lane.b32.xlu0 %v5663, 8
        %v5666 = vpop.permute.xlu0 %5665
        %v5667 = vrot.slane %v5666, 7
        %v5668 = vsel %vm2063, %v5667, %v5666
        %s5670 = scalar_lea.vmem [#allocation3], 6
        %5671 = vst.msk [vmem:[%s5670] ss:$8 sm:$0x7] %vm5579, %v5668
        %5672 = vst.msk [vmem:[%s5670] ss:$8 sm:$0x0] %vm5579, %v5668
        %s5673 = scalar_lea.vmem [#allocation5], 36
        %v5674 = vld [vmem:[%s5673] ss:$8 sm:$0xf]
        %s5675 = scalar_lea.vmem [#allocation5], 37
        %v5676 = vld [vmem:[%s5675] ss:$8 sm:$0xf]
        %v5677 = vmax.f32 %v5674, %v5676
        %v5679 = vrot.slane %v5677, 2
        %v5681 = vmax.f32 %v5677, %v5679
        %5683 = vrot.lane.b32.xlu0 %v5681, 8
        %v5684 = vpop.permute.xlu0 %5683
        %v5685 = vrot.slane %v5684, 7
        %v5686 = vsel %vm2063, %v5685, %v5684
        %s5688 = scalar_lea.vmem [#allocation3], 7
        %5689 = vst.msk [vmem:[%s5688] ss:$8 sm:$0x7] %vm5579, %v5686
        %5690 = vst.msk [vmem:[%s5688] ss:$8 sm:$0x0] %vm5579, %v5686
        %s5691 = scalar_lea.vmem [#allocation5], 38
        %v5692 = vld [vmem:[%s5691] ss:$8 sm:$0xf]
        %s5693 = scalar_lea.vmem [#allocation5], 39
        %v5694 = vld [vmem:[%s5693] ss:$8 sm:$0xf]
        %v5695 = vmax.f32 %v5692, %v5694
        %v5697 = vrot.slane %v5695, 2
        %v5699 = vmax.f32 %v5695, %v5697
        %5701 = vrot.lane.b32.xlu0 %v5699, 8
        %v5702 = vpop.permute.xlu0 %5701
        %v5703 = vrot.slane %v5702, 7
        %v5704 = vsel %vm2063, %v5703, %v5702
        %s5706 = scalar_lea.vmem [#allocation3], 24
        %5707 = vst.msk [vmem:[%s5706] ss:$8 sm:$0x7] %vm5579, %v5704
        %5708 = vst.msk [vmem:[%s5706] ss:$8 sm:$0x0] %vm5579, %v5704
        %s5709 = scalar_lea.vmem [#allocation5], 64
        %v5710 = vld [vmem:[%s5709] ss:$8 sm:$0xf]
        %s5711 = scalar_lea.vmem [#allocation5], 65
        %v5712 = vld [vmem:[%s5711] ss:$8 sm:$0xf]
        %v5713 = vmax.f32 %v5710, %v5712
        %v5715 = vrot.slane %v5713, 2
        %v5717 = vmax.f32 %v5713, %v5715
        %5719 = vrot.lane.b32.xlu0 %v5717, 8
        %v5720 = vpop.permute.xlu0 %5719
        %v5721 = vrot.slane %v5720, 7
        %v5722 = vsel %vm2063, %v5721, %v5720
        %s5724 = scalar_lea.vmem [#allocation3], 25
        %5725 = vst.msk [vmem:[%s5724] ss:$8 sm:$0x7] %vm5579, %v5722
        %5726 = vst.msk [vmem:[%s5724] ss:$8 sm:$0x0] %vm5579, %v5722
        %s5727 = scalar_lea.vmem [#allocation5], 66
        %v5728 = vld [vmem:[%s5727] ss:$8 sm:$0xf]
        %s5729 = scalar_lea.vmem [#allocation5], 67
        %v5730 = vld [vmem:[%s5729] ss:$8 sm:$0xf]
        %v5731 = vmax.f32 %v5728, %v5730
        %v5733 = vrot.slane %v5731, 2
        %v5735 = vmax.f32 %v5731, %v5733
        %5737 = vrot.lane.b32.xlu0 %v5735, 8
        %v5738 = vpop.permute.xlu0 %5737
        %v5739 = vrot.slane %v5738, 7
        %v5740 = vsel %vm2063, %v5739, %v5738
        %s5742 = scalar_lea.vmem [#allocation3], 26
        %5743 = vst.msk [vmem:[%s5742] ss:$8 sm:$0x7] %vm5579, %v5740
        %5744 = vst.msk [vmem:[%s5742] ss:$8 sm:$0x0] %vm5579, %v5740
        %s5745 = scalar_lea.vmem [#allocation5], 68
        %v5746 = vld [vmem:[%s5745] ss:$8 sm:$0xf]
        %s5747 = scalar_lea.vmem [#allocation5], 69
        %v5748 = vld [vmem:[%s5747] ss:$8 sm:$0xf]
        %v5749 = vmax.f32 %v5746, %v5748
        %v5751 = vrot.slane %v5749, 2
        %v5753 = vmax.f32 %v5749, %v5751
        %5755 = vrot.lane.b32.xlu0 %v5753, 8
        %v5756 = vpop.permute.xlu0 %5755
        %v5757 = vrot.slane %v5756, 7
        %v5758 = vsel %vm2063, %v5757, %v5756
        %s5760 = scalar_lea.vmem [#allocation3], 27
        %5761 = vst.msk [vmem:[%s5760] ss:$8 sm:$0x7] %vm5579, %v5758
        %5762 = vst.msk [vmem:[%s5760] ss:$8 sm:$0x0] %vm5579, %v5758
        %s5763 = scalar_lea.vmem [#allocation5], 70
        %v5764 = vld [vmem:[%s5763] ss:$8 sm:$0xf]
        %s5765 = scalar_lea.vmem [#allocation5], 71
        %v5766 = vld [vmem:[%s5765] ss:$8 sm:$0xf]
        %v5767 = vmax.f32 %v5764, %v5766
        %v5769 = vrot.slane %v5767, 2
        %v5771 = vmax.f32 %v5767, %v5769
        %5773 = vrot.lane.b32.xlu0 %v5771, 8
        %v5774 = vpop.permute.xlu0 %5773
        %v5775 = vrot.slane %v5774, 7
        %v5776 = vsel %vm2063, %v5775, %v5774
        %s5778 = scalar_lea.vmem [#allocation3], 28
        %5779 = vst.msk [vmem:[%s5778] ss:$8 sm:$0x7] %vm5579, %v5776
        %5780 = vst.msk [vmem:[%s5778] ss:$8 sm:$0x0] %vm5579, %v5776
        %s5781 = scalar_lea.vmem [#allocation5], 96
        %v5782 = vld [vmem:[%s5781] ss:$8 sm:$0xf]
        %s5783 = scalar_lea.vmem [#allocation5], 97
        %v5784 = vld [vmem:[%s5783] ss:$8 sm:$0xf]
        %v5785 = vmax.f32 %v5782, %v5784
        %v5787 = vrot.slane %v5785, 2
        %v5789 = vmax.f32 %v5785, %v5787
        %5791 = vrot.lane.b32.xlu0 %v5789, 8
        %v5792 = vpop.permute.xlu0 %5791
        %v5793 = vrot.slane %v5792, 7
        %v5794 = vsel %vm2063, %v5793, %v5792
        %s5796 = scalar_lea.vmem [#allocation3], 29
        %5797 = vst.msk [vmem:[%s5796] ss:$8 sm:$0x7] %vm5579, %v5794
        %5798 = vst.msk [vmem:[%s5796] ss:$8 sm:$0x0] %vm5579, %v5794
        %s5799 = scalar_lea.vmem [#allocation5], 98
        %v5800 = vld [vmem:[%s5799] ss:$8 sm:$0xf]
        %s5801 = scalar_lea.vmem [#allocation5], 99
        %v5802 = vld [vmem:[%s5801] ss:$8 sm:$0xf]
        %v5803 = vmax.f32 %v5800, %v5802
        %v5805 = vrot.slane %v5803, 2
        %v5807 = vmax.f32 %v5803, %v5805
        %5809 = vrot.lane.b32.xlu0 %v5807, 8
        %v5810 = vpop.permute.xlu0 %5809
        %v5811 = vrot.slane %v5810, 7
        %v5812 = vsel %vm2063, %v5811, %v5810
        %s5814 = scalar_lea.vmem [#allocation3], 30
        %5815 = vst.msk [vmem:[%s5814] ss:$8 sm:$0x7] %vm5579, %v5812
        %5816 = vst.msk [vmem:[%s5814] ss:$8 sm:$0x0] %vm5579, %v5812
        %s5817 = scalar_lea.vmem [#allocation5], 100
        %v5818 = vld [vmem:[%s5817] ss:$8 sm:$0xf]
        %s5819 = scalar_lea.vmem [#allocation5], 101
        %v5820 = vld [vmem:[%s5819] ss:$8 sm:$0xf]
        %v5821 = vmax.f32 %v5818, %v5820
        %v5823 = vrot.slane %v5821, 2
        %v5825 = vmax.f32 %v5821, %v5823
        %5827 = vrot.lane.b32.xlu0 %v5825, 8
        %v5828 = vpop.permute.xlu0 %5827
        %v5829 = vrot.slane %v5828, 7
        %v5830 = vsel %vm2063, %v5829, %v5828
        %s5832 = scalar_lea.vmem [#allocation3], 31
        %5833 = vst.msk [vmem:[%s5832] ss:$8 sm:$0x7] %vm5579, %v5830
        %5834 = vst.msk [vmem:[%s5832] ss:$8 sm:$0x0] %vm5579, %v5830
        %s5835 = scalar_lea.vmem [#allocation5], 102
        %v5836 = vld [vmem:[%s5835] ss:$8 sm:$0xf]
        %s5837 = scalar_lea.vmem [#allocation5], 103
        %v5838 = vld [vmem:[%s5837] ss:$8 sm:$0xf]
        %v5839 = vmax.f32 %v5836, %v5838
        %v5841 = vrot.slane %v5839, 2
        %v5843 = vmax.f32 %v5839, %v5841
        %5845 = vrot.lane.b32.xlu0 %v5843, 8
        %v5846 = vpop.permute.xlu0 %5845
        %v5847 = vrot.slane %v5846, 7
        %v5848 = vsel %vm2063, %v5847, %v5846
        %s5850 = scalar_lea.vmem [#allocation3], 48
        %5851 = vst.msk [vmem:[%s5850] ss:$8 sm:$0x7] %vm5579, %v5848
        %5852 = vst.msk [vmem:[%s5850] ss:$8 sm:$0x0] %vm5579, %v5848
        %s5853 = scalar_lea.vmem [#allocation5], 128
        %v5854 = vld [vmem:[%s5853] ss:$8 sm:$0xf]
        %s5855 = scalar_lea.vmem [#allocation5], 129
        %v5856 = vld [vmem:[%s5855] ss:$8 sm:$0xf]
        %v5857 = vmax.f32 %v5854, %v5856
        %v5859 = vrot.slane %v5857, 2
        %v5861 = vmax.f32 %v5857, %v5859
        %5863 = vrot.lane.b32.xlu0 %v5861, 8
        %v5864 = vpop.permute.xlu0 %5863
        %v5865 = vrot.slane %v5864, 7
        %v5866 = vsel %vm2063, %v5865, %v5864
        %s5868 = scalar_lea.vmem [#allocation3], 49
        %5869 = vst.msk [vmem:[%s5868] ss:$8 sm:$0x7] %vm5579, %v5866
        %5870 = vst.msk [vmem:[%s5868] ss:$8 sm:$0x0] %vm5579, %v5866
        %s5871 = scalar_lea.vmem [#allocation5], 130
        %v5872 = vld [vmem:[%s5871] ss:$8 sm:$0xf]
        %s5873 = scalar_lea.vmem [#allocation5], 131
        %v5874 = vld [vmem:[%s5873] ss:$8 sm:$0xf]
        %v5875 = vmax.f32 %v5872, %v5874
        %v5877 = vrot.slane %v5875, 2
        %v5879 = vmax.f32 %v5875, %v5877
        %5881 = vrot.lane.b32.xlu0 %v5879, 8
        %v5882 = vpop.permute.xlu0 %5881
        %v5883 = vrot.slane %v5882, 7
        %v5884 = vsel %vm2063, %v5883, %v5882
        %s5886 = scalar_lea.vmem [#allocation3], 50
        %5887 = vst.msk [vmem:[%s5886] ss:$8 sm:$0x7] %vm5579, %v5884
        %5888 = vst.msk [vmem:[%s5886] ss:$8 sm:$0x0] %vm5579, %v5884
        %s5889 = scalar_lea.vmem [#allocation5], 132
        %v5890 = vld [vmem:[%s5889] ss:$8 sm:$0xf]
        %s5891 = scalar_lea.vmem [#allocation5], 133
        %v5892 = vld [vmem:[%s5891] ss:$8 sm:$0xf]
        %v5893 = vmax.f32 %v5890, %v5892
        %v5895 = vrot.slane %v5893, 2
        %v5897 = vmax.f32 %v5893, %v5895
        %5899 = vrot.lane.b32.xlu0 %v5897, 8
        %v5900 = vpop.permute.xlu0 %5899
        %v5901 = vrot.slane %v5900, 7
        %v5902 = vsel %vm2063, %v5901, %v5900
        %s5904 = scalar_lea.vmem [#allocation3], 51
        %5905 = vst.msk [vmem:[%s5904] ss:$8 sm:$0x7] %vm5579, %v5902
        %5906 = vst.msk [vmem:[%s5904] ss:$8 sm:$0x0] %vm5579, %v5902
        %s5907 = scalar_lea.vmem [#allocation5], 134
        %v5908 = vld [vmem:[%s5907] ss:$8 sm:$0xf]
        %s5909 = scalar_lea.vmem [#allocation5], 135
        %v5910 = vld [vmem:[%s5909] ss:$8 sm:$0xf]
        %v5911 = vmax.f32 %v5908, %v5910
        %v5913 = vrot.slane %v5911, 2
        %v5915 = vmax.f32 %v5911, %v5913
        %5917 = vrot.lane.b32.xlu0 %v5915, 8
        %v5918 = vpop.permute.xlu0 %5917
        %v5919 = vrot.slane %v5918, 7
        %v5920 = vsel %vm2063, %v5919, %v5918
        %s5922 = scalar_lea.vmem [#allocation3], 52
        %5923 = vst.msk [vmem:[%s5922] ss:$8 sm:$0x7] %vm5579, %v5920
        %5924 = vst.msk [vmem:[%s5922] ss:$8 sm:$0x0] %vm5579, %v5920
        %s5925 = scalar_lea.vmem [#allocation5], 160
        %v5926 = vld [vmem:[%s5925] ss:$8 sm:$0xf]
        %s5927 = scalar_lea.vmem [#allocation5], 161
        %v5928 = vld [vmem:[%s5927] ss:$8 sm:$0xf]
        %v5929 = vmax.f32 %v5926, %v5928
        %v5931 = vrot.slane %v5929, 2
        %v5933 = vmax.f32 %v5929, %v5931
        %5935 = vrot.lane.b32.xlu0 %v5933, 8
        %v5936 = vpop.permute.xlu0 %5935
        %v5937 = vrot.slane %v5936, 7
        %v5938 = vsel %vm2063, %v5937, %v5936
        %s5940 = scalar_lea.vmem [#allocation3], 53
        %5941 = vst.msk [vmem:[%s5940] ss:$8 sm:$0x7] %vm5579, %v5938
        %5942 = vst.msk [vmem:[%s5940] ss:$8 sm:$0x0] %vm5579, %v5938
        %s5943 = scalar_lea.vmem [#allocation5], 162
        %v5944 = vld [vmem:[%s5943] ss:$8 sm:$0xf]
        %s5945 = scalar_lea.vmem [#allocation5], 163
        %v5946 = vld [vmem:[%s5945] ss:$8 sm:$0xf]
        %v5947 = vmax.f32 %v5944, %v5946
        %v5949 = vrot.slane %v5947, 2
        %v5951 = vmax.f32 %v5947, %v5949
        %5953 = vrot.lane.b32.xlu0 %v5951, 8
        %v5954 = vpop.permute.xlu0 %5953
        %v5955 = vrot.slane %v5954, 7
        %v5956 = vsel %vm2063, %v5955, %v5954
        %s5958 = scalar_lea.vmem [#allocation3], 54
        %5959 = vst.msk [vmem:[%s5958] ss:$8 sm:$0x7] %vm5579, %v5956
        %5960 = vst.msk [vmem:[%s5958] ss:$8 sm:$0x0] %vm5579, %v5956
        %s5961 = scalar_lea.vmem [#allocation5], 164
        %v5962 = vld [vmem:[%s5961] ss:$8 sm:$0xf]
        %s5963 = scalar_lea.vmem [#allocation5], 165
        %v5964 = vld [vmem:[%s5963] ss:$8 sm:$0xf]
        %v5965 = vmax.f32 %v5962, %v5964
        %v5967 = vrot.slane %v5965, 2
        %v5969 = vmax.f32 %v5965, %v5967
        %5971 = vrot.lane.b32.xlu0 %v5969, 8
        %v5972 = vpop.permute.xlu0 %5971
        %v5973 = vrot.slane %v5972, 7
        %v5974 = vsel %vm2063, %v5973, %v5972
        %s5976 = scalar_lea.vmem [#allocation3], 55
        %5977 = vst.msk [vmem:[%s5976] ss:$8 sm:$0x7] %vm5579, %v5974
        %5978 = vst.msk [vmem:[%s5976] ss:$8 sm:$0x0] %vm5579, %v5974
        %s5979 = scalar_lea.vmem [#allocation5], 166
        %v5980 = vld [vmem:[%s5979] ss:$8 sm:$0xf]
        %s5981 = scalar_lea.vmem [#allocation5], 167
        %v5982 = vld [vmem:[%s5981] ss:$8 sm:$0xf]
        %v5983 = vmax.f32 %v5980, %v5982
        %v5985 = vrot.slane %v5983, 2
        %v5987 = vmax.f32 %v5983, %v5985
        %5989 = vrot.lane.b32.xlu0 %v5987, 8
        %v5990 = vpop.permute.xlu0 %5989
        %v5991 = vrot.slane %v5990, 7
        %v5992 = vsel %vm2063, %v5991, %v5990
        %s5994 = scalar_lea.vmem [#allocation3], 72
        %5995 = vst.msk [vmem:[%s5994] ss:$8 sm:$0x7] %vm5579, %v5992
        %5996 = vst.msk [vmem:[%s5994] ss:$8 sm:$0x0] %vm5579, %v5992
        %s5997 = scalar_lea.vmem [#allocation5], 192
        %v5998 = vld [vmem:[%s5997] ss:$8 sm:$0xf]
        %s5999 = scalar_lea.vmem [#allocation5], 193
        %v6000 = vld [vmem:[%s5999] ss:$8 sm:$0xf]
        %v6001 = vmax.f32 %v5998, %v6000
        %v6003 = vrot.slane %v6001, 2
        %v6005 = vmax.f32 %v6001, %v6003
        %6007 = vrot.lane.b32.xlu0 %v6005, 8
        %v6008 = vpop.permute.xlu0 %6007
        %v6009 = vrot.slane %v6008, 7
        %v6010 = vsel %vm2063, %v6009, %v6008
        %s6012 = scalar_lea.vmem [#allocation3], 73
        %6013 = vst.msk [vmem:[%s6012] ss:$8 sm:$0x7] %vm5579, %v6010
        %6014 = vst.msk [vmem:[%s6012] ss:$8 sm:$0x0] %vm5579, %v6010
        %s6015 = scalar_lea.vmem [#allocation5], 194
        %v6016 = vld [vmem:[%s6015] ss:$8 sm:$0xf]
        %s6017 = scalar_lea.vmem [#allocation5], 195
        %v6018 = vld [vmem:[%s6017] ss:$8 sm:$0xf]
        %v6019 = vmax.f32 %v6016, %v6018
        %v6021 = vrot.slane %v6019, 2
        %v6023 = vmax.f32 %v6019, %v6021
        %6025 = vrot.lane.b32.xlu0 %v6023, 8
        %v6026 = vpop.permute.xlu0 %6025
        %v6027 = vrot.slane %v6026, 7
        %v6028 = vsel %vm2063, %v6027, %v6026
        %s6030 = scalar_lea.vmem [#allocation3], 74
        %6031 = vst.msk [vmem:[%s6030] ss:$8 sm:$0x7] %vm5579, %v6028
        %6032 = vst.msk [vmem:[%s6030] ss:$8 sm:$0x0] %vm5579, %v6028
        %s6033 = scalar_lea.vmem [#allocation5], 196
        %v6034 = vld [vmem:[%s6033] ss:$8 sm:$0xf]
        %s6035 = scalar_lea.vmem [#allocation5], 197
        %v6036 = vld [vmem:[%s6035] ss:$8 sm:$0xf]
        %v6037 = vmax.f32 %v6034, %v6036
        %v6039 = vrot.slane %v6037, 2
        %v6041 = vmax.f32 %v6037, %v6039
        %6043 = vrot.lane.b32.xlu0 %v6041, 8
        %v6044 = vpop.permute.xlu0 %6043
        %v6045 = vrot.slane %v6044, 7
        %v6046 = vsel %vm2063, %v6045, %v6044
        %s6048 = scalar_lea.vmem [#allocation3], 75
        %6049 = vst.msk [vmem:[%s6048] ss:$8 sm:$0x7] %vm5579, %v6046
        %6050 = vst.msk [vmem:[%s6048] ss:$8 sm:$0x0] %vm5579, %v6046
        %s6051 = scalar_lea.vmem [#allocation5], 198
        %v6052 = vld [vmem:[%s6051] ss:$8 sm:$0xf]
        %s6053 = scalar_lea.vmem [#allocation5], 199
        %v6054 = vld [vmem:[%s6053] ss:$8 sm:$0xf]
        %v6055 = vmax.f32 %v6052, %v6054
        %v6057 = vrot.slane %v6055, 2
        %v6059 = vmax.f32 %v6055, %v6057
        %6061 = vrot.lane.b32.xlu0 %v6059, 8
        %v6062 = vpop.permute.xlu0 %6061
        %v6063 = vrot.slane %v6062, 7
        %v6064 = vsel %vm2063, %v6063, %v6062
        %s6066 = scalar_lea.vmem [#allocation3], 76
        %6067 = vst.msk [vmem:[%s6066] ss:$8 sm:$0x7] %vm5579, %v6064
        %6068 = vst.msk [vmem:[%s6066] ss:$8 sm:$0x0] %vm5579, %v6064
        %s6069 = scalar_lea.vmem [#allocation5], 224
        %v6070 = vld [vmem:[%s6069] ss:$8 sm:$0xf]
        %s6071 = scalar_lea.vmem [#allocation5], 225
        %v6072 = vld [vmem:[%s6071] ss:$8 sm:$0xf]
        %v6073 = vmax.f32 %v6070, %v6072
        %v6075 = vrot.slane %v6073, 2
        %v6077 = vmax.f32 %v6073, %v6075
        %6079 = vrot.lane.b32.xlu0 %v6077, 8
        %v6080 = vpop.permute.xlu0 %6079
        %v6081 = vrot.slane %v6080, 7
        %v6082 = vsel %vm2063, %v6081, %v6080
        %s6084 = scalar_lea.vmem [#allocation3], 77
        %6085 = vst.msk [vmem:[%s6084] ss:$8 sm:$0x7] %vm5579, %v6082
        %6086 = vst.msk [vmem:[%s6084] ss:$8 sm:$0x0] %vm5579, %v6082
        %s6087 = scalar_lea.vmem [#allocation5], 226
        %v6088 = vld [vmem:[%s6087] ss:$8 sm:$0xf]
        %s6089 = scalar_lea.vmem [#allocation5], 227
        %v6090 = vld [vmem:[%s6089] ss:$8 sm:$0xf]
        %v6091 = vmax.f32 %v6088, %v6090
        %v6093 = vrot.slane %v6091, 2
        %v6095 = vmax.f32 %v6091, %v6093
        %6097 = vrot.lane.b32.xlu0 %v6095, 8
        %v6098 = vpop.permute.xlu0 %6097
        %v6099 = vrot.slane %v6098, 7
        %v6100 = vsel %vm2063, %v6099, %v6098
        %s6102 = scalar_lea.vmem [#allocation3], 78
        %6103 = vst.msk [vmem:[%s6102] ss:$8 sm:$0x7] %vm5579, %v6100
        %6104 = vst.msk [vmem:[%s6102] ss:$8 sm:$0x0] %vm5579, %v6100
        %s6105 = scalar_lea.vmem [#allocation5], 228
        %v6106 = vld [vmem:[%s6105] ss:$8 sm:$0xf]
        %s6107 = scalar_lea.vmem [#allocation5], 229
        %v6108 = vld [vmem:[%s6107] ss:$8 sm:$0xf]
        %v6109 = vmax.f32 %v6106, %v6108
        %v6111 = vrot.slane %v6109, 2
        %v6113 = vmax.f32 %v6109, %v6111
        %6115 = vrot.lane.b32.xlu0 %v6113, 8
        %v6116 = vpop.permute.xlu0 %6115
        %v6117 = vrot.slane %v6116, 7
        %v6118 = vsel %vm2063, %v6117, %v6116
        %s6120 = scalar_lea.vmem [#allocation3], 79
        %6121 = vst.msk [vmem:[%s6120] ss:$8 sm:$0x7] %vm5579, %v6118
        %6122 = vst.msk [vmem:[%s6120] ss:$8 sm:$0x0] %vm5579, %v6118
        %s6123 = scalar_lea.vmem [#allocation5], 230
        %v6124 = vld [vmem:[%s6123] ss:$8 sm:$0xf]
        %s6125 = scalar_lea.vmem [#allocation5], 231
        %v6126 = vld [vmem:[%s6125] ss:$8 sm:$0xf]
        %v6127 = vmax.f32 %v6124, %v6126
        %v6129 = vrot.slane %v6127, 2
        %v6131 = vmax.f32 %v6127, %v6129
        %6133 = vrot.lane.b32.xlu0 %v6131, 8
        %v6134 = vpop.permute.xlu0 %6133
        %v6135 = vrot.slane %v6134, 7
        %v6136 = vsel %vm2063, %v6135, %v6134
        %s6138 = scalar_lea.vmem [#allocation3], 96
        %6139 = vst.msk [vmem:[%s6138] ss:$8 sm:$0x7] %vm5579, %v6136
        %6140 = vst.msk [vmem:[%s6138] ss:$8 sm:$0x0] %vm5579, %v6136
        %v6141 = vld [vmem:[#allocation3] sm:$0xff]
        %v6142 = vld [vmem:[#allocation3 + $0x8] sm:$0xff]
        %v6143 = vld [vmem:[#allocation3 + $0x10] sm:$0xff]
        %v6144 = vld [vmem:[#allocation3 + $0x18] sm:$0xff]
        %v6145 = vld [vmem:[#allocation3 + $0x20] sm:$0xff]
        %v6146 = vld [vmem:[#allocation3 + $0x28] sm:$0xff]
        %v6147 = vld [vmem:[#allocation3 + $0x30] sm:$0xff]
        %v6148 = vld [vmem:[#allocation3 + $0x38] sm:$0xff]
        %v6149 = vld [vmem:[#allocation3 + $0x40] sm:$0xff]
        %v6150 = vld [vmem:[#allocation3 + $0x48] sm:$0xff]
        %v6151 = vld [vmem:[#allocation3 + $0x50] sm:$0xff]
        %v6152 = vld [vmem:[#allocation3 + $0x58] sm:$0xff]
        %v6153 = vld [vmem:[#allocation16] sm:$0xff]
        %v6154 = vld [vmem:[#allocation16 + $0x8] sm:$0xff]
        %v6155 = vld [vmem:[#allocation16 + $0x10] sm:$0xff]
        %v6156 = vld [vmem:[#allocation16 + $0x18] sm:$0xff]
        %v6157 = vld [vmem:[#allocation16 + $0x20] sm:$0xff]
        %v6158 = vld [vmem:[#allocation16 + $0x28] sm:$0xff]
        %v6159 = vld [vmem:[#allocation16 + $0x30] sm:$0xff]
        %v6160 = vld [vmem:[#allocation16 + $0x38] sm:$0xff]
        %v6161 = vld [vmem:[#allocation16 + $0x40] sm:$0xff]
        %v6162 = vld [vmem:[#allocation16 + $0x48] sm:$0xff]
        %v6163 = vld [vmem:[#allocation16 + $0x50] sm:$0xff]
        %v6164 = vld [vmem:[#allocation16 + $0x58] sm:$0xff]
        %v6165 = vld [vmem:[#allocation16 + $0x60] sm:$0xff]
        %v6166 = vld [vmem:[#allocation16 + $0x68] sm:$0xff]
        %v6167 = vld [vmem:[#allocation16 + $0x70] sm:$0xff]
        %v6168 = vld [vmem:[#allocation16 + $0x78] sm:$0xff]
        %v6169 = vld [vmem:[#allocation16 + $0x80] sm:$0xff]
        %v6170 = vld [vmem:[#allocation16 + $0x88] sm:$0xff]
        %v6171 = vld [vmem:[#allocation16 + $0x90] sm:$0xff]
        %v6172 = vld [vmem:[#allocation16 + $0x98] sm:$0xff]
        %v6173 = vld [vmem:[#allocation16 + $0xa0] sm:$0xff]
        %v6174 = vld [vmem:[#allocation16 + $0xa8] sm:$0xff]
        %v6175 = vld [vmem:[#allocation16 + $0xb0] sm:$0xff]
        %v6176 = vld [vmem:[#allocation16 + $0xb8] sm:$0xff]
        %v6177 = vld [vmem:[#allocation16 + $0xc0] sm:$0xff]
        %v6178 = vld [vmem:[#allocation16 + $0xc8] sm:$0xff]
        %v6179 = vld [vmem:[#allocation16 + $0xd0] sm:$0xff]
        %v6180 = vld [vmem:[#allocation16 + $0xd8] sm:$0xff]
        %v6181 = vld [vmem:[#allocation16 + $0xe0] sm:$0xff]
        %v6182 = vld [vmem:[#allocation16 + $0xe8] sm:$0xff]
        %v6183 = vld [vmem:[#allocation16 + $0xf0] sm:$0xff]
        %v6184 = vld [vmem:[#allocation16 + $0xf8] sm:$0xff]
        %v6185 = vld [vmem:[#allocation16 + $0x100] sm:$0xff]
        %v6186 = vld [vmem:[#allocation16 + $0x108] sm:$0xff]
        %v6187 = vld [vmem:[#allocation16 + $0x110] sm:$0xff]
        %v6188 = vld [vmem:[#allocation16 + $0x118] sm:$0xff]
        %v6189 = vld [vmem:[#allocation16 + $0x120] sm:$0xff]
        %v6190 = vld [vmem:[#allocation16 + $0x128] sm:$0xff]
        %v6191 = vld [vmem:[#allocation16 + $0x130] sm:$0xff]
        %v6192 = vld [vmem:[#allocation16 + $0x138] sm:$0xff]
        %v6193 = vld [vmem:[#allocation16 + $0x140] sm:$0xff]
        %v6194 = vld [vmem:[#allocation16 + $0x148] sm:$0xff]
        %v6195 = vld [vmem:[#allocation16 + $0x150] sm:$0xff]
        %v6196 = vld [vmem:[#allocation16 + $0x158] sm:$0xff]
        %v6197 = vld [vmem:[#allocation16 + $0x160] sm:$0xff]
        %v6198 = vld [vmem:[#allocation16 + $0x168] sm:$0xff]
        %v6199 = vld [vmem:[#allocation16 + $0x170] sm:$0xff]
        %v6200 = vld [vmem:[#allocation16 + $0x178] sm:$0xff]
        %v6201 = vld [vmem:[#allocation16 + $0x180] sm:$0xff]
        %v6202 = vld [vmem:[#allocation16 + $0x188] sm:$0xff]
        %v6203 = vld [vmem:[#allocation16 + $0x190] sm:$0xff]
        %v6204 = vld [vmem:[#allocation16 + $0x198] sm:$0xff]
        %v6205 = vld [vmem:[#allocation16 + $0x1a0] sm:$0xff]
        %v6206 = vld [vmem:[#allocation16 + $0x1a8] sm:$0xff]
        %v6207 = vld [vmem:[#allocation16 + $0x1b0] sm:$0xff]
        %v6208 = vld [vmem:[#allocation16 + $0x1b8] sm:$0xff]
        %v6209 = vld [vmem:[#allocation16 + $0x1c0] sm:$0xff]
        %v6210 = vld [vmem:[#allocation16 + $0x1c8] sm:$0xff]
        %v6211 = vld [vmem:[#allocation16 + $0x1d0] sm:$0xff]
        %v6212 = vld [vmem:[#allocation16 + $0x1d8] sm:$0xff]
        %v6213 = vld [vmem:[#allocation16 + $0x1e0] sm:$0xff]
        %v6214 = vld [vmem:[#allocation16 + $0x1e8] sm:$0xff]
        %v6215 = vld [vmem:[#allocation16 + $0x1f0] sm:$0xff]
        %v6216 = vld [vmem:[#allocation16 + $0x1f8] sm:$0xff]
        %v6217 = vld [vmem:[#allocation16 + $0x200] sm:$0xff]
        %v6218 = vld [vmem:[#allocation16 + $0x208] sm:$0xff]
        %v6219 = vld [vmem:[#allocation16 + $0x210] sm:$0xff]
        %v6220 = vld [vmem:[#allocation16 + $0x218] sm:$0xff]
        %v6221 = vld [vmem:[#allocation3] sm:$0xfe]
        %v6222 = vld [vmem:[#allocation3 + $0x8] sm:$0xfe]
        %v6223 = vld [vmem:[#allocation3 + $0x10] sm:$0xfe]
        %v6224 = vld [vmem:[#allocation3 + $0x60] sm:$0x1]
        %v6225 = vld [vmem:[#allocation3 + $0x68] sm:$0x1]
        %v6226 = vld [vmem:[#allocation3 + $0x70] sm:$0x1]
        %s6227 = scalar_lea.vmem [#allocation16], 544
        %v6228 = vld [vmem:[%s6227] sm:$0xff]
        %v6229 = vld [vmem:[%s6227 + $0x8] sm:$0xff]
        %v6230 = vld [vmem:[%s6227 + $0x10] sm:$0xff]
        %v6231 = vld [vmem:[%s6227 + $0x18] sm:$0xff]
        %v6232 = vld [vmem:[%s6227 + $0x20] sm:$0xff]
        %v6233 = vld [vmem:[%s6227 + $0x28] sm:$0xff]
        %v6234 = vld [vmem:[%s6227 + $0x30] sm:$0xff]
        %v6235 = vld [vmem:[%s6227 + $0x38] sm:$0xff]
        %v6236 = vld [vmem:[%s6227 + $0x40] sm:$0xff]
        %v6237 = vld [vmem:[%s6227 + $0x48] sm:$0xff]
        %v6238 = vld [vmem:[%s6227 + $0x50] sm:$0xff]
        %v6239 = vld [vmem:[%s6227 + $0x58] sm:$0xff]
        %v6240 = vld [vmem:[%s6227 + $0x60] sm:$0xff]
        %v6241 = vld [vmem:[%s6227 + $0x68] sm:$0xff]
        %v6242 = vld [vmem:[%s6227 + $0x70] sm:$0xff]
        %v6243 = vld [vmem:[%s6227 + $0x78] sm:$0xff]
        %v6244 = vld [vmem:[%s6227 + $0x80] sm:$0xff]
        %v6245 = vld [vmem:[%s6227 + $0x88] sm:$0xff]
        %v6246 = vld [vmem:[%s6227 + $0x90] sm:$0xff]
        %v6247 = vld [vmem:[%s6227 + $0x98] sm:$0xff]
        %v6248 = vld [vmem:[%s6227 + $0xa0] sm:$0xff]
        %v6249 = vld [vmem:[%s6227 + $0xa8] sm:$0xff]
        %v6250 = vld [vmem:[%s6227 + $0xb0] sm:$0xff]
        %v6251 = vld [vmem:[%s6227 + $0xb8] sm:$0xff]
        %v6252 = vld [vmem:[%s6227 + $0xc0] sm:$0xff]
        %v6253 = vld [vmem:[%s6227 + $0xc8] sm:$0xff]
        %v6254 = vld [vmem:[%s6227 + $0xd0] sm:$0xff]
        %v6255 = vld [vmem:[%s6227 + $0xd8] sm:$0xff]
        %v6256 = vld [vmem:[%s6227 + $0xe0] sm:$0xff]
        %v6257 = vld [vmem:[%s6227 + $0xe8] sm:$0xff]
        %v6258 = vld [vmem:[%s6227 + $0xf0] sm:$0xff]
        %v6259 = vld [vmem:[%s6227 + $0xf8] sm:$0xff]
        %v6260 = vld [vmem:[%s6227 + $0x100] sm:$0xff]
        %v6261 = vld [vmem:[%s6227 + $0x108] sm:$0xff]
        %v6262 = vld [vmem:[%s6227 + $0x110] sm:$0xff]
        %v6263 = vld [vmem:[%s6227 + $0x118] sm:$0xff]
        %v6264 = vld [vmem:[%s6227 + $0x120] sm:$0xff]
        %v6265 = vld [vmem:[%s6227 + $0x128] sm:$0xff]
        %v6266 = vld [vmem:[%s6227 + $0x130] sm:$0xff]
        %v6267 = vld [vmem:[%s6227 + $0x138] sm:$0xff]
        %v6268 = vld [vmem:[%s6227 + $0x140] sm:$0xff]
        %v6269 = vld [vmem:[%s6227 + $0x148] sm:$0xff]
        %v6270 = vld [vmem:[%s6227 + $0x150] sm:$0xff]
        %v6271 = vld [vmem:[%s6227 + $0x158] sm:$0xff]
        %v6272 = vld [vmem:[%s6227 + $0x160] sm:$0xff]
        %v6273 = vld [vmem:[%s6227 + $0x168] sm:$0xff]
        %v6274 = vld [vmem:[%s6227 + $0x170] sm:$0xff]
        %v6275 = vld [vmem:[%s6227 + $0x178] sm:$0xff]
        %v6276 = vld [vmem:[%s6227 + $0x180] sm:$0xff]
        %v6277 = vld [vmem:[%s6227 + $0x188] sm:$0xff]
        %v6278 = vld [vmem:[%s6227 + $0x190] sm:$0xff]
        %v6279 = vld [vmem:[%s6227 + $0x198] sm:$0xff]
        %v6280 = vld [vmem:[%s6227 + $0x1a0] sm:$0xff]
        %v6281 = vld [vmem:[%s6227 + $0x1a8] sm:$0xff]
        %v6282 = vld [vmem:[%s6227 + $0x1b0] sm:$0xff]
        %v6283 = vld [vmem:[%s6227 + $0x1b8] sm:$0xff]
        %v6284 = vld [vmem:[%s6227 + $0x1c0] sm:$0xff]
        %v6285 = vld [vmem:[%s6227 + $0x1c8] sm:$0xff]
        %v6286 = vld [vmem:[%s6227 + $0x1d0] sm:$0xff]
        %v6287 = vld [vmem:[%s6227 + $0x1d8] sm:$0xff]
        %v6288 = vld [vmem:[%s6227 + $0x1e0] sm:$0xff]
        %v6289 = vld [vmem:[%s6227 + $0x1e8] sm:$0xff]
        %v6290 = vld [vmem:[%s6227 + $0x1f0] sm:$0xff]
        %v6291 = vld [vmem:[%s6227 + $0x1f8] sm:$0xff]
        %v6292 = vld [vmem:[%s6227 + $0x200] sm:$0xff]
        %v6293 = vld [vmem:[%s6227 + $0x208] sm:$0xff]
        %v6294 = vld [vmem:[%s6227 + $0x210] sm:$0xff]
        %v6295 = vld [vmem:[%s6227 + $0x218] sm:$0xff]
        %v6311 = vrot.slane %v6221, 1
        %v6312 = vrot.slane %v6144, 1
        %v6313 = vsel %vm821, %v6311, %v6312
        %v6314 = vrot.slane %v6222, 1
        %v6315 = vrot.slane %v6145, 1
        %v6316 = vsel %vm821, %v6314, %v6315
        %v6317 = vrot.slane %v6223, 1
        %v6318 = vrot.slane %v6146, 1
        %v6319 = vsel %vm821, %v6317, %v6318
        %v6320 = vrot.slane %v6147, 1
        %v6321 = vsel %vm821, %v6312, %v6320
        %v6322 = vrot.slane %v6148, 1
        %v6323 = vsel %vm821, %v6315, %v6322
        %v6324 = vrot.slane %v6149, 1
        %v6325 = vsel %vm821, %v6318, %v6324
        %v6326 = vrot.slane %v6150, 1
        %v6327 = vsel %vm821, %v6320, %v6326
        %v6328 = vrot.slane %v6151, 1
        %v6329 = vsel %vm821, %v6322, %v6328
        %v6330 = vrot.slane %v6152, 1
        %v6331 = vsel %vm821, %v6324, %v6330
        %v6332 = vrot.slane %v6224, 1
        %v6333 = vsel %vm821, %v6326, %v6332
        %v6334 = vrot.slane %v6225, 1
        %v6335 = vsel %vm821, %v6328, %v6334
        %v6336 = vrot.slane %v6226, 1
        %v6337 = vsel %vm821, %v6330, %v6336
        %v6346 = vsel %vm509, %v6319, 0
        %v6348 = vsel %vm509, %v6325, 0
        %v6350 = vsel %vm509, %v6331, 0
        %v6352 = vsel %vm509, %v6337, 0
        %6354 = vmatprep.subr.mxu0 %v6229
        %6355 = vmatpush1.msra.mxu0 %v6228
        %6356 = vmatprep.subr.mxu0 %v6231
        %6357 = vmatpush1.msra.mxu0 %v6230
        %6358 = vmatprep.subr.mxu0 %v6233
        %6359 = vmatpush1.msra.mxu0 %v6232
        %6360 = vmatprep.subr.mxu0 %v6235
        %6361 = vmatpush1.msra.mxu0 %v6234
        %6362 = vmatprep.subr.mxu0 %v6237
        %6363 = vmatpush1.msra.mxu0 %v6236
        %6364 = vmatprep.subr.mxu0 %v6239
        %6365 = vmatpush1.msra.mxu0 %v6238
        %6366 = vmatprep.subr.mxu0 %v6241
        %6367 = vmatpush1.msra.mxu0 %v6240
        %6368 = vmatprep.subr.mxu0 %v6243
        %6369 = vmatpush1.msra.mxu0 %v6242
        %6370 = vmatprep.subr.mxu0 %v6245
        %6371 = vmatpush1.msra.mxu0 %v6244
        %6372 = vmatprep.subr.mxu0 %v6247
        %6373 = vmatpush1.msra.mxu0 %v6246
        %6374 = vmatprep.subr.mxu0 %v6249
        %6375 = vmatpush1.msra.mxu0 %v6248
        %6376 = vmatprep.subr.mxu0 %v6251
        %6377 = vmatpush1.msra.mxu0 %v6250
        %6378 = vmatprep.subr.mxu0 %v6253
        %6379 = vmatpush1.msra.mxu0 %v6252
        %6380 = vmatprep.subr.mxu0 %v6255
        %6381 = vmatpush1.msra.mxu0 %v6254
        %6382 = vmatprep.subr.mxu0 %v6257
        %6383 = vmatpush1.msra.mxu0 %v6256
        %6384 = vmatprep.subr.mxu0 %v6259
        %6385 = vmatpush1.msra.mxu0 %v6258
        %6386 = vmatprep.subr.mxu0 %v6261
        %6387 = vmatpush1.msra.mxu0 %v6260
        %6388 = vmatprep.subr.mxu0 %v6263
        %6389 = vmatpush1.msra.mxu0 %v6262
        %6390 = vmatprep.subr.mxu0 %v6265
        %6391 = vmatpush1.msra.mxu0 %v6264
        %6392 = vmatprep.subr.mxu0 %v6267
        %6393 = vmatpush1.msra.mxu0 %v6266
        %6394 = vmatprep.subr.mxu0 %v6269
        %6395 = vmatpush1.msra.mxu0 %v6268
        %6396 = vmatprep.subr.mxu0 %v6271
        %6397 = vmatpush1.msra.mxu0 %v6270
        %6398 = vmatprep.subr.mxu0 %v6273
        %6399 = vmatpush1.msra.mxu0 %v6272
        %6400 = vmatprep.subr.mxu0 %v6275
        %6401 = vmatpush1.msra.mxu0 %v6274
        %6402 = vmatprep.subr.mxu0 %v6277
        %6403 = vmatpush1.msra.mxu0 %v6276
        %6404 = vmatprep.subr.mxu0 %v6279
        %6405 = vmatpush1.msra.mxu0 %v6278
        %6406 = vmatprep.subr.mxu0 %v6281
        %6407 = vmatpush1.msra.mxu0 %v6280
        %6408 = vmatprep.subr.mxu0 %v6283
        %6409 = vmatpush1.msra.mxu0 %v6282
        %6410 = vmatprep.subr.mxu0 %v6285
        %6411 = vmatpush1.msra.mxu0 %v6284
        %6412 = vmatprep.subr.mxu0 %v6287
        %6413 = vmatpush1.msra.mxu0 %v6286
        %6414 = vmatprep.subr.mxu0 %v6289
        %6415 = vmatpush1.msra.mxu0 %v6288
        %6416 = vmatprep.subr.mxu0 %v6291
        %6417 = vmatpush1.msra.mxu0 %v6290
        %6418 = vmatprep.mubr.f32.mxu0 %v6316
        %6419 = vmatmul.mubr.f32.gmra.mrb[0].mxu0 %v6313
        %v6420 = vpop.f32.mrb[0].mxu0
        %v6421 = vadd.f32 0.0, %v6420
        %v6422 = vpop.f32.mrb[0].mxu0
        %v6423 = vadd.f32 0.0, %v6422
        %6424 = vmatprep.mubr.f32.mxu0 %v6323
        %6425 = vmatmul.mubr.f32.gmra.mrb[0].mxu0 %v6321
        %v6426 = vpop.f32.mrb[0].mxu0
        %v6427 = vadd.f32 0.0, %v6426
        %v6428 = vpop.f32.mrb[0].mxu0
        %v6429 = vadd.f32 0.0, %v6428
        %6430 = vmatprep.mubr.f32.mxu0 %v6329
        %6431 = vmatmul.mubr.f32.gmra.mrb[0].mxu0 %v6327
        %v6432 = vpop.f32.mrb[0].mxu0
        %v6433 = vadd.f32 0.0, %v6432
        %v6434 = vpop.f32.mrb[0].mxu0
        %v6435 = vadd.f32 0.0, %v6434
        %6436 = vmatprep.mubr.f32.mxu0 %v6335
        %6437 = vmatmul.mubr.f32.gmra.mrb[0].mxu0 %v6333
        %v6438 = vpop.f32.mrb[0].mxu0
        %v6439 = vadd.f32 0.0, %v6438
        %v6440 = vpop.f32.mrb[0].mxu0
        %v6441 = vadd.f32 0.0, %v6440
        %6442 = vdwg.mxu0
        %6443 = vmatprep.subr.mxu0 %v6293
        %6444 = vmatpush1.msra.mxu0 %v6292
        %6445 = vmatprep.subr.mxu0 %v6295
        %6446 = vmatpush1.msra.mxu0 %v6294
        %6447 = vmatprep.subr.mxu0 0.0
        %6448 = vmatpush1.msra.mxu0 0.0
        %6449 = vmatprep.subr.mxu0 0.0
        %6450 = vmatpush1.msra.mxu0 0.0
        %6451 = vmatprep.subr.mxu0 0.0
        %6452 = vmatpush1.msra.mxu0 0.0
        %6453 = vmatprep.subr.mxu0 0.0
        %6454 = vmatpush1.msra.mxu0 0.0
        %6455 = vmatprep.subr.mxu0 0.0
        %6456 = vmatpush1.msra.mxu0 0.0
        %6457 = vmatprep.subr.mxu0 0.0
        %6458 = vmatpush1.msra.mxu0 0.0
        %6459 = vmatprep.subr.mxu0 0.0
        %6460 = vmatpush1.msra.mxu0 0.0
        %6461 = vmatprep.subr.mxu0 0.0
        %6462 = vmatpush1.msra.mxu0 0.0
        %6463 = vmatprep.subr.mxu0 0.0
        %6464 = vmatpush1.msra.mxu0 0.0
        %6465 = vmatprep.subr.mxu0 0.0
        %6466 = vmatpush1.msra.mxu0 0.0
        %6467 = vmatprep.subr.mxu0 0.0
        %6468 = vmatpush1.msra.mxu0 0.0
        %6469 = vmatprep.subr.mxu0 0.0
        %6470 = vmatpush1.msra.mxu0 0.0
        %6471 = vmatprep.subr.mxu0 0.0
        %6472 = vmatpush1.msra.mxu0 0.0
        %6473 = vmatprep.subr.mxu0 0.0
        %6474 = vmatpush1.msra.mxu0 0.0
        %6475 = vmatprep.subr.mxu0 0.0
        %6476 = vmatpush1.msra.mxu0 0.0
        %6477 = vmatprep.subr.mxu0 0.0
        %6478 = vmatpush1.msra.mxu0 0.0
        %6479 = vmatprep.subr.mxu0 0.0
        %6480 = vmatpush1.msra.mxu0 0.0
        %6481 = vmatprep.subr.mxu0 0.0
        %6482 = vmatpush1.msra.mxu0 0.0
        %6483 = vmatprep.subr.mxu0 0.0
        %6484 = vmatpush1.msra.mxu0 0.0
        %6485 = vmatprep.subr.mxu0 0.0
        %6486 = vmatpush1.msra.mxu0 0.0
        %6487 = vmatprep.subr.mxu0 0.0
        %6488 = vmatpush1.msra.mxu0 0.0
        %6489 = vmatprep.subr.mxu0 0.0
        %6490 = vmatpush1.msra.mxu0 0.0
        %6491 = vmatprep.subr.mxu0 0.0
        %6492 = vmatpush1.msra.mxu0 0.0
        %6493 = vmatprep.subr.mxu0 0.0
        %6494 = vmatpush1.msra.mxu0 0.0
        %6495 = vmatprep.subr.mxu0 0.0
        %6496 = vmatpush1.msra.mxu0 0.0
        %6497 = vmatprep.subr.mxu0 0.0
        %6498 = vmatpush1.msra.mxu0 0.0
        %6499 = vmatprep.subr.mxu0 0.0
        %6500 = vmatpush1.msra.mxu0 0.0
        %6501 = vmatprep.subr.mxu0 0.0
        %6502 = vmatpush1.msra.mxu0 0.0
        %6503 = vmatprep.subr.mxu0 0.0
        %6504 = vmatpush1.msra.mxu0 0.0
        %6505 = vmatprep.subr.mxu0 0.0
        %6506 = vmatpush1.msra.mxu0 0.0
        %6507 = vmatprep.mubr.f32.mxu0 0.0
        %6508 = vmatmul.mubr.f32.gmra.mrb[0].mxu0 %v6346
        %v6509 = vpop.f32.mrb[0].mxu0
        %v6510 = vadd.f32 %v6421, %v6509
        %v6511 = vpop.f32.mrb[0].mxu0
        %v6512 = vadd.f32 %v6423, %v6511
        %6513 = vmatprep.mubr.f32.mxu0 0.0
        %6514 = vmatmul.mubr.f32.gmra.mrb[0].mxu0 %v6348
        %v6515 = vpop.f32.mrb[0].mxu0
        %v6516 = vadd.f32 %v6427, %v6515
        %v6517 = vpop.f32.mrb[0].mxu0
        %v6518 = vadd.f32 %v6429, %v6517
        %6519 = vmatprep.mubr.f32.mxu0 0.0
        %6520 = vmatmul.mubr.f32.gmra.mrb[0].mxu0 %v6350
        %v6521 = vpop.f32.mrb[0].mxu0
        %v6522 = vadd.f32 %v6433, %v6521
        %v6523 = vpop.f32.mrb[0].mxu0
        %v6524 = vadd.f32 %v6435, %v6523
        %6525 = vmatprep.mubr.f32.mxu0 0.0
        %6526 = vmatmul.mubr.f32.gmra.mrb[0].mxu0 %v6352
        %v6527 = vpop.f32.mrb[0].mxu0
        %v6528 = vadd.f32 %v6439, %v6527
        %v6529 = vpop.f32.mrb[0].mxu0
        %v6530 = vadd.f32 %v6441, %v6529
        %6531 = vdwg.mxu0
        %v6533 = vsel %vm509, %v6143, 0
        %v6535 = vsel %vm509, %v6146, 0
        %v6537 = vsel %vm509, %v6149, 0
        %v6539 = vsel %vm509, %v6152, 0
        %6541 = vmatprep.subr.mxu0 %v6154
        %6542 = vmatpush1.msra.mxu0 %v6153
        %6543 = vmatprep.subr.mxu0 %v6156
        %6544 = vmatpush1.msra.mxu0 %v6155
        %6545 = vmatprep.subr.mxu0 %v6158
        %6546 = vmatpush1.msra.mxu0 %v6157
        %6547 = vmatprep.subr.mxu0 %v6160
        %6548 = vmatpush1.msra.mxu0 %v6159
        %6549 = vmatprep.subr.mxu0 %v6162
        %6550 = vmatpush1.msra.mxu0 %v6161
        %6551 = vmatprep.subr.mxu0 %v6164
        %6552 = vmatpush1.msra.mxu0 %v6163
        %6553 = vmatprep.subr.mxu0 %v6166
        %6554 = vmatpush1.msra.mxu0 %v6165
        %6555 = vmatprep.subr.mxu0 %v6168
        %6556 = vmatpush1.msra.mxu0 %v6167
        %6557 = vmatprep.subr.mxu0 %v6170
        %6558 = vmatpush1.msra.mxu0 %v6169
        %6559 = vmatprep.subr.mxu0 %v6172
        %6560 = vmatpush1.msra.mxu0 %v6171
        %6561 = vmatprep.subr.mxu0 %v6174
        %6562 = vmatpush1.msra.mxu0 %v6173
        %6563 = vmatprep.subr.mxu0 %v6176
        %6564 = vmatpush1.msra.mxu0 %v6175
        %6565 = vmatprep.subr.mxu0 %v6178
        %6566 = vmatpush1.msra.mxu0 %v6177
        %6567 = vmatprep.subr.mxu0 %v6180
        %6568 = vmatpush1.msra.mxu0 %v6179
        %6569 = vmatprep.subr.mxu0 %v6182
        %6570 = vmatpush1.msra.mxu0 %v6181
        %6571 = vmatprep.subr.mxu0 %v6184
        %6572 = vmatpush1.msra.mxu0 %v6183
        %6573 = vmatprep.subr.mxu0 %v6186
        %6574 = vmatpush1.msra.mxu0 %v6185
        %6575 = vmatprep.subr.mxu0 %v6188
        %6576 = vmatpush1.msra.mxu0 %v6187
        %6577 = vmatprep.subr.mxu0 %v6190
        %6578 = vmatpush1.msra.mxu0 %v6189
        %6579 = vmatprep.subr.mxu0 %v6192
        %6580 = vmatpush1.msra.mxu0 %v6191
        %6581 = vmatprep.subr.mxu0 %v6194
        %6582 = vmatpush1.msra.mxu0 %v6193
        %6583 = vmatprep.subr.mxu0 %v6196
        %6584 = vmatpush1.msra.mxu0 %v6195
        %6585 = vmatprep.subr.mxu0 %v6198
        %6586 = vmatpush1.msra.mxu0 %v6197
        %6587 = vmatprep.subr.mxu0 %v6200
        %6588 = vmatpush1.msra.mxu0 %v6199
        %6589 = vmatprep.subr.mxu0 %v6202
        %6590 = vmatpush1.msra.mxu0 %v6201
        %6591 = vmatprep.subr.mxu0 %v6204
        %6592 = vmatpush1.msra.mxu0 %v6203
        %6593 = vmatprep.subr.mxu0 %v6206
        %6594 = vmatpush1.msra.mxu0 %v6205
        %6595 = vmatprep.subr.mxu0 %v6208
        %6596 = vmatpush1.msra.mxu0 %v6207
        %6597 = vmatprep.subr.mxu0 %v6210
        %6598 = vmatpush1.msra.mxu0 %v6209
        %6599 = vmatprep.subr.mxu0 %v6212
        %6600 = vmatpush1.msra.mxu0 %v6211
        %6601 = vmatprep.subr.mxu0 %v6214
        %6602 = vmatpush1.msra.mxu0 %v6213
        %6603 = vmatprep.subr.mxu0 %v6216
        %6604 = vmatpush1.msra.mxu0 %v6215
        %6605 = vmatprep.mubr.f32.mxu0 %v6142
        %6606 = vmatmul.mubr.f32.gmra.mrb[0].mxu0 %v6141
        %v6607 = vpop.f32.mrb[0].mxu0
        %v6608 = vadd.f32 %v6510, %v6607
        %v6609 = vpop.f32.mrb[0].mxu0
        %v6610 = vadd.f32 %v6512, %v6609
        %6611 = vmatprep.mubr.f32.mxu0 %v6145
        %6612 = vmatmul.mubr.f32.gmra.mrb[0].mxu0 %v6144
        %v6613 = vpop.f32.mrb[0].mxu0
        %v6614 = vadd.f32 %v6516, %v6613
        %v6615 = vpop.f32.mrb[0].mxu0
        %v6616 = vadd.f32 %v6518, %v6615
        %6617 = vmatprep.mubr.f32.mxu0 %v6148
        %6618 = vmatmul.mubr.f32.gmra.mrb[0].mxu0 %v6147
        %v6619 = vpop.f32.mrb[0].mxu0
        %v6620 = vadd.f32 %v6522, %v6619
        %v6621 = vpop.f32.mrb[0].mxu0
        %v6622 = vadd.f32 %v6524, %v6621
        %6623 = vmatprep.mubr.f32.mxu0 %v6151
        %6624 = vmatmul.mubr.f32.gmra.mrb[0].mxu0 %v6150
        %v6625 = vpop.f32.mrb[0].mxu0
        %v6626 = vadd.f32 %v6528, %v6625
        %v6627 = vpop.f32.mrb[0].mxu0
        %v6628 = vadd.f32 %v6530, %v6627
        %6629 = vdwg.mxu0
        %6630 = vmatprep.subr.mxu0 %v6218
        %6631 = vmatpush1.msra.mxu0 %v6217
        %6632 = vmatprep.subr.mxu0 %v6220
        %6633 = vmatpush1.msra.mxu0 %v6219
        %6634 = vmatprep.subr.mxu0 0.0
        %6635 = vmatpush1.msra.mxu0 0.0
        %6636 = vmatprep.subr.mxu0 0.0
        %6637 = vmatpush1.msra.mxu0 0.0
        %6638 = vmatprep.subr.mxu0 0.0
        %6639 = vmatpush1.msra.mxu0 0.0
        %6640 = vmatprep.subr.mxu0 0.0
        %6641 = vmatpush1.msra.mxu0 0.0
        %6642 = vmatprep.subr.mxu0 0.0
        %6643 = vmatpush1.msra.mxu0 0.0
        %6644 = vmatprep.subr.mxu0 0.0
        %6645 = vmatpush1.msra.mxu0 0.0
        %6646 = vmatprep.subr.mxu0 0.0
        %6647 = vmatpush1.msra.mxu0 0.0
        %6648 = vmatprep.subr.mxu0 0.0
        %6649 = vmatpush1.msra.mxu0 0.0
        %6650 = vmatprep.subr.mxu0 0.0
        %6651 = vmatpush1.msra.mxu0 0.0
        %6652 = vmatprep.subr.mxu0 0.0
        %6653 = vmatpush1.msra.mxu0 0.0
        %6654 = vmatprep.subr.mxu0 0.0
        %6655 = vmatpush1.msra.mxu0 0.0
        %6656 = vmatprep.subr.mxu0 0.0
        %6657 = vmatpush1.msra.mxu0 0.0
        %6658 = vmatprep.subr.mxu0 0.0
        %6659 = vmatpush1.msra.mxu0 0.0
        %6660 = vmatprep.subr.mxu0 0.0
        %6661 = vmatpush1.msra.mxu0 0.0
        %6662 = vmatprep.subr.mxu0 0.0
        %6663 = vmatpush1.msra.mxu0 0.0
        %6664 = vmatprep.subr.mxu0 0.0
        %6665 = vmatpush1.msra.mxu0 0.0
        %6666 = vmatprep.subr.mxu0 0.0
        %6667 = vmatpush1.msra.mxu0 0.0
        %6668 = vmatprep.subr.mxu0 0.0
        %6669 = vmatpush1.msra.mxu0 0.0
        %6670 = vmatprep.subr.mxu0 0.0
        %6671 = vmatpush1.msra.mxu0 0.0
        %6672 = vmatprep.subr.mxu0 0.0
        %6673 = vmatpush1.msra.mxu0 0.0
        %6674 = vmatprep.subr.mxu0 0.0
        %6675 = vmatpush1.msra.mxu0 0.0
        %6676 = vmatprep.subr.mxu0 0.0
        %6677 = vmatpush1.msra.mxu0 0.0
        %6678 = vmatprep.subr.mxu0 0.0
        %6679 = vmatpush1.msra.mxu0 0.0
        %6680 = vmatprep.subr.mxu0 0.0
        %6681 = vmatpush1.msra.mxu0 0.0
        %6682 = vmatprep.subr.mxu0 0.0
        %6683 = vmatpush1.msra.mxu0 0.0
        %6684 = vmatprep.subr.mxu0 0.0
        %6685 = vmatpush1.msra.mxu0 0.0
        %6686 = vmatprep.subr.mxu0 0.0
        %6687 = vmatpush1.msra.mxu0 0.0
        %6688 = vmatprep.subr.mxu0 0.0
        %6689 = vmatpush1.msra.mxu0 0.0
        %6690 = vmatprep.subr.mxu0 0.0
        %6691 = vmatpush1.msra.mxu0 0.0
        %6692 = vmatprep.subr.mxu0 0.0
        %6693 = vmatpush1.msra.mxu0 0.0
        %6694 = vmatprep.mubr.f32.mxu0 0.0
        %6695 = vmatmul.mubr.f32.gmra.mrb[0].mxu0 %v6533
        %v6696 = vpop.f32.mrb[0].mxu0
        %v6697 = vadd.f32 %v6608, %v6696
        %v6698 = vpop.f32.mrb[0].mxu0
        %v6699 = vadd.f32 %v6610, %v6698
        %6700 = vmatprep.mubr.f32.mxu0 0.0
        %6701 = vmatmul.mubr.f32.gmra.mrb[0].mxu0 %v6535
        %v6702 = vpop.f32.mrb[0].mxu0
        %v6703 = vadd.f32 %v6614, %v6702
        %v6704 = vpop.f32.mrb[0].mxu0
        %v6705 = vadd.f32 %v6616, %v6704
        %6706 = vmatprep.mubr.f32.mxu0 0.0
        %6707 = vmatmul.mubr.f32.gmra.mrb[0].mxu0 %v6537
        %v6708 = vpop.f32.mrb[0].mxu0
        %v6709 = vadd.f32 %v6620, %v6708
        %v6710 = vpop.f32.mrb[0].mxu0
        %v6711 = vadd.f32 %v6622, %v6710
        %6712 = vmatprep.mubr.f32.mxu0 0.0
        %6713 = vmatmul.mubr.f32.gmra.mrb[0].mxu0 %v6539
        %v6714 = vpop.f32.mrb[0].mxu0
        %v6715 = vadd.f32 %v6626, %v6714
        %v6716 = vpop.f32.mrb[0].mxu0
        %v6717 = vadd.f32 %v6628, %v6716
        %6718 = vdwg.mxu0
        %v6719 = vld [vmem:[#allocation3] sm:$0xfc]
        %v6720 = vld [vmem:[#allocation3 + $0x8] sm:$0xfc]
        %v6721 = vld [vmem:[#allocation3 + $0x10] sm:$0xfc]
        %v6722 = vld [vmem:[#allocation3 + $0x60] sm:$0x3]
        %v6723 = vld [vmem:[#allocation3 + $0x68] sm:$0x3]
        %v6724 = vld [vmem:[#allocation3 + $0x70] sm:$0x3]
        %s6725 = scalar_lea.vmem [#allocation16], 1088
        %v6726 = vld [vmem:[%s6725] sm:$0xff]
        %v6727 = vld [vmem:[%s6725 + $0x8] sm:$0xff]
        %v6728 = vld [vmem:[%s6725 + $0x10] sm:$0xff]
        %v6729 = vld [vmem:[%s6725 + $0x18] sm:$0xff]
        %v6730 = vld [vmem:[%s6725 + $0x20] sm:$0xff]
        %v6731 = vld [vmem:[%s6725 + $0x28] sm:$0xff]
        %v6732 = vld [vmem:[%s6725 + $0x30] sm:$0xff]
        %v6733 = vld [vmem:[%s6725 + $0x38] sm:$0xff]
        %v6734 = vld [vmem:[%s6725 + $0x40] sm:$0xff]
        %v6735 = vld [vmem:[%s6725 + $0x48] sm:$0xff]
        %v6736 = vld [vmem:[%s6725 + $0x50] sm:$0xff]
        %v6737 = vld [vmem:[%s6725 + $0x58] sm:$0xff]
        %v6738 = vld [vmem:[%s6725 + $0x60] sm:$0xff]
        %v6739 = vld [vmem:[%s6725 + $0x68] sm:$0xff]
        %v6740 = vld [vmem:[%s6725 + $0x70] sm:$0xff]
        %v6741 = vld [vmem:[%s6725 + $0x78] sm:$0xff]
        %v6742 = vld [vmem:[%s6725 + $0x80] sm:$0xff]
        %v6743 = vld [vmem:[%s6725 + $0x88] sm:$0xff]
        %v6744 = vld [vmem:[%s6725 + $0x90] sm:$0xff]
        %v6745 = vld [vmem:[%s6725 + $0x98] sm:$0xff]
        %v6746 = vld [vmem:[%s6725 + $0xa0] sm:$0xff]
        %v6747 = vld [vmem:[%s6725 + $0xa8] sm:$0xff]
        %v6748 = vld [vmem:[%s6725 + $0xb0] sm:$0xff]
        %v6749 = vld [vmem:[%s6725 + $0xb8] sm:$0xff]
        %v6750 = vld [vmem:[%s6725 + $0xc0] sm:$0xff]
        %v6751 = vld [vmem:[%s6725 + $0xc8] sm:$0xff]
        %v6752 = vld [vmem:[%s6725 + $0xd0] sm:$0xff]
        %v6753 = vld [vmem:[%s6725 + $0xd8] sm:$0xff]
        %v6754 = vld [vmem:[%s6725 + $0xe0] sm:$0xff]
        %v6755 = vld [vmem:[%s6725 + $0xe8] sm:$0xff]
        %v6756 = vld [vmem:[%s6725 + $0xf0] sm:$0xff]
        %v6757 = vld [vmem:[%s6725 + $0xf8] sm:$0xff]
        %v6758 = vld [vmem:[%s6725 + $0x100] sm:$0xff]
        %v6759 = vld [vmem:[%s6725 + $0x108] sm:$0xff]
        %v6760 = vld [vmem:[%s6725 + $0x110] sm:$0xff]
        %v6761 = vld [vmem:[%s6725 + $0x118] sm:$0xff]
        %v6762 = vld [vmem:[%s6725 + $0x120] sm:$0xff]
        %v6763 = vld [vmem:[%s6725 + $0x128] sm:$0xff]
        %v6764 = vld [vmem:[%s6725 + $0x130] sm:$0xff]
        %v6765 = vld [vmem:[%s6725 + $0x138] sm:$0xff]
        %v6766 = vld [vmem:[%s6725 + $0x140] sm:$0xff]
        %v6767 = vld [vmem:[%s6725 + $0x148] sm:$0xff]
        %v6768 = vld [vmem:[%s6725 + $0x150] sm:$0xff]
        %v6769 = vld [vmem:[%s6725 + $0x158] sm:$0xff]
        %v6770 = vld [vmem:[%s6725 + $0x160] sm:$0xff]
        %v6771 = vld [vmem:[%s6725 + $0x168] sm:$0xff]
        %v6772 = vld [vmem:[%s6725 + $0x170] sm:$0xff]
        %v6773 = vld [vmem:[%s6725 + $0x178] sm:$0xff]
        %v6774 = vld [vmem:[%s6725 + $0x180] sm:$0xff]
        %v6775 = vld [vmem:[%s6725 + $0x188] sm:$0xff]
        %v6776 = vld [vmem:[%s6725 + $0x190] sm:$0xff]
        %v6777 = vld [vmem:[%s6725 + $0x198] sm:$0xff]
        %v6778 = vld [vmem:[%s6725 + $0x1a0] sm:$0xff]
        %v6779 = vld [vmem:[%s6725 + $0x1a8] sm:$0xff]
        %v6780 = vld [vmem:[%s6725 + $0x1b0] sm:$0xff]
        %v6781 = vld [vmem:[%s6725 + $0x1b8] sm:$0xff]
        %v6782 = vld [vmem:[%s6725 + $0x1c0] sm:$0xff]
        %v6783 = vld [vmem:[%s6725 + $0x1c8] sm:$0xff]
        %v6784 = vld [vmem:[%s6725 + $0x1d0] sm:$0xff]
        %v6785 = vld [vmem:[%s6725 + $0x1d8] sm:$0xff]
        %v6786 = vld [vmem:[%s6725 + $0x1e0] sm:$0xff]
        %v6787 = vld [vmem:[%s6725 + $0x1e8] sm:$0xff]
        %v6788 = vld [vmem:[%s6725 + $0x1f0] sm:$0xff]
        %v6789 = vld [vmem:[%s6725 + $0x1f8] sm:$0xff]
        %v6790 = vld [vmem:[%s6725 + $0x200] sm:$0xff]
        %v6791 = vld [vmem:[%s6725 + $0x208] sm:$0xff]
        %v6792 = vld [vmem:[%s6725 + $0x210] sm:$0xff]
        %v6793 = vld [vmem:[%s6725 + $0x218] sm:$0xff]
        %v6800 = vrot.slane %v6719, 2
        %v6801 = vrot.slane %v6144, 2
        %v6802 = vsel %vm881, %v6800, %v6801
        %v6803 = vrot.slane %v6720, 2
        %v6804 = vrot.slane %v6145, 2
        %v6805 = vsel %vm881, %v6803, %v6804
        %v6806 = vrot.slane %v6721, 2
        %v6807 = vrot.slane %v6146, 2
        %v6808 = vsel %vm881, %v6806, %v6807
        %v6809 = vrot.slane %v6147, 2
        %v6810 = vsel %vm881, %v6801, %v6809
        %v6811 = vrot.slane %v6148, 2
        %v6812 = vsel %vm881, %v6804, %v6811
        %v6813 = vrot.slane %v6149, 2
        %v6814 = vsel %vm881, %v6807, %v6813
        %v6815 = vrot.slane %v6150, 2
        %v6816 = vsel %vm881, %v6809, %v6815
        %v6817 = vrot.slane %v6151, 2
        %v6818 = vsel %vm881, %v6811, %v6817
        %v6819 = vrot.slane %v6152, 2
        %v6820 = vsel %vm881, %v6813, %v6819
        %v6821 = vrot.slane %v6722, 2
        %v6822 = vsel %vm881, %v6815, %v6821
        %v6823 = vrot.slane %v6723, 2
        %v6824 = vsel %vm881, %v6817, %v6823
        %v6825 = vrot.slane %v6724, 2
        %v6826 = vsel %vm881, %v6819, %v6825
        %v6835 = vsel %vm509, %v6808, 0
        %v6837 = vsel %vm509, %v6814, 0
        %v6839 = vsel %vm509, %v6820, 0
        %v6841 = vsel %vm509, %v6826, 0
        %6843 = vmatprep.subr.mxu0 %v6727
        %6844 = vmatpush1.msra.mxu0 %v6726
        %6845 = vmatprep.subr.mxu0 %v6729
        %6846 = vmatpush1.msra.mxu0 %v6728
        %6847 = vmatprep.subr.mxu0 %v6731
        %6848 = vmatpush1.msra.mxu0 %v6730
        %6849 = vmatprep.subr.mxu0 %v6733
        %6850 = vmatpush1.msra.mxu0 %v6732
        %6851 = vmatprep.subr.mxu0 %v6735
        %6852 = vmatpush1.msra.mxu0 %v6734
        %6853 = vmatprep.subr.mxu0 %v6737
        %6854 = vmatpush1.msra.mxu0 %v6736
        %6855 = vmatprep.subr.mxu0 %v6739
        %6856 = vmatpush1.msra.mxu0 %v6738
        %6857 = vmatprep.subr.mxu0 %v6741
        %6858 = vmatpush1.msra.mxu0 %v6740
        %6859 = vmatprep.subr.mxu0 %v6743
        %6860 = vmatpush1.msra.mxu0 %v6742
        %6861 = vmatprep.subr.mxu0 %v6745
        %6862 = vmatpush1.msra.mxu0 %v6744
        %6863 = vmatprep.subr.mxu0 %v6747
        %6864 = vmatpush1.msra.mxu0 %v6746
        %6865 = vmatprep.subr.mxu0 %v6749
        %6866 = vmatpush1.msra.mxu0 %v6748
        %6867 = vmatprep.subr.mxu0 %v6751
        %6868 = vmatpush1.msra.mxu0 %v6750
        %6869 = vmatprep.subr.mxu0 %v6753
        %6870 = vmatpush1.msra.mxu0 %v6752
        %6871 = vmatprep.subr.mxu0 %v6755
        %6872 = vmatpush1.msra.mxu0 %v6754
        %6873 = vmatprep.subr.mxu0 %v6757
        %6874 = vmatpush1.msra.mxu0 %v6756
        %6875 = vmatprep.subr.mxu0 %v6759
        %6876 = vmatpush1.msra.mxu0 %v6758
        %6877 = vmatprep.subr.mxu0 %v6761
        %6878 = vmatpush1.msra.mxu0 %v6760
        %6879 = vmatprep.subr.mxu0 %v6763
        %6880 = vmatpush1.msra.mxu0 %v6762
        %6881 = vmatprep.subr.mxu0 %v6765
        %6882 = vmatpush1.msra.mxu0 %v6764
        %6883 = vmatprep.subr.mxu0 %v6767
        %6884 = vmatpush1.msra.mxu0 %v6766
        %6885 = vmatprep.subr.mxu0 %v6769
        %6886 = vmatpush1.msra.mxu0 %v6768
        %6887 = vmatprep.subr.mxu0 %v6771
        %6888 = vmatpush1.msra.mxu0 %v6770
        %6889 = vmatprep.subr.mxu0 %v6773
        %6890 = vmatpush1.msra.mxu0 %v6772
        %6891 = vmatprep.subr.mxu0 %v6775
        %6892 = vmatpush1.msra.mxu0 %v6774
        %6893 = vmatprep.subr.mxu0 %v6777
        %6894 = vmatpush1.msra.mxu0 %v6776
        %6895 = vmatprep.subr.mxu0 %v6779
        %6896 = vmatpush1.msra.mxu0 %v6778
        %6897 = vmatprep.subr.mxu0 %v6781
        %6898 = vmatpush1.msra.mxu0 %v6780
        %6899 = vmatprep.subr.mxu0 %v6783
        %6900 = vmatpush1.msra.mxu0 %v6782
        %6901 = vmatprep.subr.mxu0 %v6785
        %6902 = vmatpush1.msra.mxu0 %v6784
        %6903 = vmatprep.subr.mxu0 %v6787
        %6904 = vmatpush1.msra.mxu0 %v6786
        %6905 = vmatprep.subr.mxu0 %v6789
        %6906 = vmatpush1.msra.mxu0 %v6788
        %6907 = vmatprep.mubr.f32.mxu0 %v6805
        %6908 = vmatmul.mubr.f32.gmra.mrb[0].mxu0 %v6802
        %v6909 = vpop.f32.mrb[0].mxu0
        %v6910 = vadd.f32 0.0, %v6909
        %v6911 = vpop.f32.mrb[0].mxu0
        %v6912 = vadd.f32 0.0, %v6911
        %6913 = vmatprep.mubr.f32.mxu0 %v6812
        %6914 = vmatmul.mubr.f32.gmra.mrb[0].mxu0 %v6810
        %v6915 = vpop.f32.mrb[0].mxu0
        %v6916 = vadd.f32 0.0, %v6915
        %v6917 = vpop.f32.mrb[0].mxu0
        %v6918 = vadd.f32 0.0, %v6917
        %6919 = vmatprep.mubr.f32.mxu0 %v6818
        %6920 = vmatmul.mubr.f32.gmra.mrb[0].mxu0 %v6816
        %v6921 = vpop.f32.mrb[0].mxu0
        %v6922 = vadd.f32 0.0, %v6921
        %v6923 = vpop.f32.mrb[0].mxu0
        %v6924 = vadd.f32 0.0, %v6923
        %6925 = vmatprep.mubr.f32.mxu0 %v6824
        %6926 = vmatmul.mubr.f32.gmra.mrb[0].mxu0 %v6822
        %v6927 = vpop.f32.mrb[0].mxu0
        %v6928 = vadd.f32 0.0, %v6927
        %v6929 = vpop.f32.mrb[0].mxu0
        %v6930 = vadd.f32 0.0, %v6929
        %6931 = vdwg.mxu0
        %6932 = vmatprep.subr.mxu0 %v6791
        %6933 = vmatpush1.msra.mxu0 %v6790
        %6934 = vmatprep.subr.mxu0 %v6793
        %6935 = vmatpush1.msra.mxu0 %v6792
        %6936 = vmatprep.subr.mxu0 0.0
        %6937 = vmatpush1.msra.mxu0 0.0
        %6938 = vmatprep.subr.mxu0 0.0
        %6939 = vmatpush1.msra.mxu0 0.0
        %6940 = vmatprep.subr.mxu0 0.0
        %6941 = vmatpush1.msra.mxu0 0.0
        %6942 = vmatprep.subr.mxu0 0.0
        %6943 = vmatpush1.msra.mxu0 0.0
        %6944 = vmatprep.subr.mxu0 0.0
        %6945 = vmatpush1.msra.mxu0 0.0
        %6946 = vmatprep.subr.mxu0 0.0
        %6947 = vmatpush1.msra.mxu0 0.0
        %6948 = vmatprep.subr.mxu0 0.0
        %6949 = vmatpush1.msra.mxu0 0.0
        %6950 = vmatprep.subr.mxu0 0.0
        %6951 = vmatpush1.msra.mxu0 0.0
        %6952 = vmatprep.subr.mxu0 0.0
        %6953 = vmatpush1.msra.mxu0 0.0
        %6954 = vmatprep.subr.mxu0 0.0
        %6955 = vmatpush1.msra.mxu0 0.0
        %6956 = vmatprep.subr.mxu0 0.0
        %6957 = vmatpush1.msra.mxu0 0.0
        %6958 = vmatprep.subr.mxu0 0.0
        %6959 = vmatpush1.msra.mxu0 0.0
        %6960 = vmatprep.subr.mxu0 0.0
        %6961 = vmatpush1.msra.mxu0 0.0
        %6962 = vmatprep.subr.mxu0 0.0
        %6963 = vmatpush1.msra.mxu0 0.0
        %6964 = vmatprep.subr.mxu0 0.0
        %6965 = vmatpush1.msra.mxu0 0.0
        %6966 = vmatprep.subr.mxu0 0.0
        %6967 = vmatpush1.msra.mxu0 0.0
        %6968 = vmatprep.subr.mxu0 0.0
        %6969 = vmatpush1.msra.mxu0 0.0
        %6970 = vmatprep.subr.mxu0 0.0
        %6971 = vmatpush1.msra.mxu0 0.0
        %6972 = vmatprep.subr.mxu0 0.0
        %6973 = vmatpush1.msra.mxu0 0.0
        %6974 = vmatprep.subr.mxu0 0.0
        %6975 = vmatpush1.msra.mxu0 0.0
        %6976 = vmatprep.subr.mxu0 0.0
        %6977 = vmatpush1.msra.mxu0 0.0
        %6978 = vmatprep.subr.mxu0 0.0
        %6979 = vmatpush1.msra.mxu0 0.0
        %6980 = vmatprep.subr.mxu0 0.0
        %6981 = vmatpush1.msra.mxu0 0.0
        %6982 = vmatprep.subr.mxu0 0.0
        %6983 = vmatpush1.msra.mxu0 0.0
        %6984 = vmatprep.subr.mxu0 0.0
        %6985 = vmatpush1.msra.mxu0 0.0
        %6986 = vmatprep.subr.mxu0 0.0
        %6987 = vmatpush1.msra.mxu0 0.0
        %6988 = vmatprep.subr.mxu0 0.0
        %6989 = vmatpush1.msra.mxu0 0.0
        %6990 = vmatprep.subr.mxu0 0.0
        %6991 = vmatpush1.msra.mxu0 0.0
        %6992 = vmatprep.subr.mxu0 0.0
        %6993 = vmatpush1.msra.mxu0 0.0
        %6994 = vmatprep.subr.mxu0 0.0
        %6995 = vmatpush1.msra.mxu0 0.0
        %6996 = vmatprep.mubr.f32.mxu0 0.0
        %6997 = vmatmul.mubr.f32.gmra.mrb[0].mxu0 %v6835
        %v6998 = vpop.f32.mrb[0].mxu0
        %v6999 = vadd.f32 %v6910, %v6998
        %v7000 = vpop.f32.mrb[0].mxu0
        %v7001 = vadd.f32 %v6912, %v7000
        %7002 = vmatprep.mubr.f32.mxu0 0.0
        %7003 = vmatmul.mubr.f32.gmra.mrb[0].mxu0 %v6837
        %v7004 = vpop.f32.mrb[0].mxu0
        %v7005 = vadd.f32 %v6916, %v7004
        %v7006 = vpop.f32.mrb[0].mxu0
        %v7007 = vadd.f32 %v6918, %v7006
        %7008 = vmatprep.mubr.f32.mxu0 0.0
        %7009 = vmatmul.mubr.f32.gmra.mrb[0].mxu0 %v6839
        %v7010 = vpop.f32.mrb[0].mxu0
        %v7011 = vadd.f32 %v6922, %v7010
        %v7012 = vpop.f32.mrb[0].mxu0
        %v7013 = vadd.f32 %v6924, %v7012
        %7014 = vmatprep.mubr.f32.mxu0 0.0
        %7015 = vmatmul.mubr.f32.gmra.mrb[0].mxu0 %v6841
        %v7016 = vpop.f32.mrb[0].mxu0
        %v7017 = vadd.f32 %v6928, %v7016
        %v7018 = vpop.f32.mrb[0].mxu0
        %v7019 = vadd.f32 %v6930, %v7018
        %7020 = vdwg.mxu0
        %v7021 = vadd.f32 %v6697, %v6999
        %v7022 = vadd.f32 %v6699, %v7001
        %v7023 = vadd.f32 %v6703, %v7005
        %v7024 = vadd.f32 %v6705, %v7007
        %v7025 = vadd.f32 %v6709, %v7011
        %v7026 = vadd.f32 %v6711, %v7013
        %v7027 = vadd.f32 %v6715, %v7017
        %v7028 = vadd.f32 %v6717, %v7019
        %v7029 = vld [vmem:[#allocation17] sm:$0x3]
        %v7031 = vlaneseq
        %v7032 = vshrl.u32 %v7031, 7
        %v7033 = vsub.s32 0, %v7032
        %v7034 = vrot.slane %v7029, %v7033
        %v7035 = vlaneseq
        %v7036 = vshrl.u32 %v7035, 7
        %v7037 = vsub.s32 1, %v7036
        %v7038 = vrot.slane %v7029, %v7037
        %v7041 = vadd.f32 %v7021, %v7034
        %v7042 = vadd.f32 %v7022, %v7038
        %v7043 = vadd.f32 %v7023, %v7034
        %v7044 = vadd.f32 %v7024, %v7038
        %v7045 = vadd.f32 %v7025, %v7034
        %v7046 = vadd.f32 %v7026, %v7038
        %v7047 = vadd.f32 %v7027, %v7034
        %v7048 = vadd.f32 %v7028, %v7038
        %v7049 = vmax.f32 %v7041, 0.0
        %v7050 = vmax.f32 %v7042, 0.0
        %v7051 = vmax.f32 %v7043, 0.0
        %v7052 = vmax.f32 %v7044, 0.0
        %v7053 = vmax.f32 %v7045, 0.0
        %v7054 = vmax.f32 %v7046, 0.0
        %v7055 = vmax.f32 %v7047, 0.0
        %v7056 = vmax.f32 %v7048, 0.0
        %v7065 = vrot.slane %v7049, 7
        %v7066 = vrot.slane %v7050, 7
        %v7067 = vrot.slane %v7051, 7
        %v7068 = vsel %vm1930, %v7065, %v7067
        %v7069 = vrot.slane %v7052, 7
        %v7070 = vsel %vm1930, %v7066, %v7069
        %v7071 = vrot.slane %v7053, 7
        %v7072 = vsel %vm1930, %v7067, %v7071
        %v7073 = vrot.slane %v7054, 7
        %v7074 = vsel %vm1930, %v7069, %v7073
        %v7075 = vrot.slane %v7055, 7
        %v7076 = vsel %vm1930, %v7071, %v7075
        %v7077 = vrot.slane %v7056, 7
        %v7078 = vsel %vm1930, %v7073, %v7077
        %7079 = vrot.lane.b32.xlu0 %v7065, 8
        %v7080 = vpop.permute.xlu0 %7079
        %7081 = vrot.lane.b32.xlu0 %v7066, 8
        %v7082 = vpop.permute.xlu0 %7081
        %7083 = vrot.lane.b32.xlu0 %v7068, 8
        %v7084 = vpop.permute.xlu0 %7083
        %7085 = vrot.lane.b32.xlu0 %v7070, 8
        %v7086 = vpop.permute.xlu0 %7085
        %7087 = vrot.lane.b32.xlu0 %v7072, 8
        %v7088 = vpop.permute.xlu0 %7087
        %7089 = vrot.lane.b32.xlu0 %v7074, 8
        %v7090 = vpop.permute.xlu0 %7089
        %7091 = vrot.lane.b32.xlu0 %v7076, 8
        %v7092 = vpop.permute.xlu0 %7091
        %7093 = vrot.lane.b32.xlu0 %v7078, 8
        %v7094 = vpop.permute.xlu0 %7093
        %7095 = vrot.lane.b32.xlu0 %v7075, 8
        %v7096 = vpop.permute.xlu0 %7095
        %7097 = vrot.lane.b32.xlu0 %v7077, 8
        %v7098 = vpop.permute.xlu0 %7097
        %v7099 = vsel %vm2063, %v7080, %v7082
        %v7100 = vsel %vm2063, %v7084, %v7086
        %v7101 = vsel %vm2063, %v7088, %v7090
        %v7102 = vsel %vm2063, %v7092, %v7094
        %v7103 = vsel %vm2063, %v7096, %v7098
        %7119 = vst.msk [vmem:[#allocation4] sm:$0xfe] %vm2136, %v7080
        %7120 = vst [vmem:[#allocation4 + $0x8] sm:$0xfe] %v7099
        %7121 = vst.msk [vmem:[#allocation4 + $0x10] sm:$0xfe] %vm2141, %v7082
        %7122 = vst.msk [vmem:[#allocation4 + $0x18] sm:$0xff] %vm2143, %v7084
        %7123 = vst [vmem:[#allocation4 + $0x20] sm:$0xff] %v7100
        %7124 = vst.msk [vmem:[#allocation4 + $0x28] sm:$0xff] %vm2063, %v7086
        %7125 = vst.msk [vmem:[#allocation4 + $0x30] sm:$0xff] %vm2143, %v7088
        %7126 = vst [vmem:[#allocation4 + $0x38] sm:$0xff] %v7101
        %7127 = vst.msk [vmem:[#allocation4 + $0x40] sm:$0xff] %vm2063, %v7090
        %7128 = vst.msk [vmem:[#allocation4 + $0x48] sm:$0xff] %vm2143, %v7092
        %7129 = vst [vmem:[#allocation4 + $0x50] sm:$0xff] %v7102
        %7130 = vst.msk [vmem:[#allocation4 + $0x58] sm:$0xff] %vm2063, %v7094
        %7131 = vst.msk [vmem:[#allocation4 + $0x60] sm:$0x1] %vm2179, %v7096
        %7132 = vst [vmem:[#allocation4 + $0x68] sm:$0x1] %v7103
        %7133 = vst.msk [vmem:[#allocation4 + $0x70] sm:$0x1] %vm2184, %v7098
        %v7134 = vld [vmem:[#allocation4] sm:$0xff]
        %v7135 = vld [vmem:[#allocation4 + $0x8] sm:$0xff]
        %v7136 = vld [vmem:[#allocation4 + $0x10] sm:$0xff]
        %v7137 = vld [vmem:[#allocation4 + $0x18] sm:$0xff]
        %v7138 = vld [vmem:[#allocation4 + $0x20] sm:$0xff]
        %v7139 = vld [vmem:[#allocation4 + $0x28] sm:$0xff]
        %v7140 = vld [vmem:[#allocation4 + $0x30] sm:$0xff]
        %v7141 = vld [vmem:[#allocation4 + $0x38] sm:$0xff]
        %v7142 = vld [vmem:[#allocation4 + $0x40] sm:$0xff]
        %v7143 = vld [vmem:[#allocation4 + $0x48] sm:$0xff]
        %v7144 = vld [vmem:[#allocation4 + $0x50] sm:$0xff]
        %v7145 = vld [vmem:[#allocation4 + $0x58] sm:$0xff]
        %v7146 = vld [vmem:[#allocation19] sm:$0xff]
        %v7147 = vld [vmem:[#allocation19 + $0x8] sm:$0xff]
        %v7148 = vld [vmem:[#allocation19 + $0x10] sm:$0xff]
        %v7149 = vld [vmem:[#allocation19 + $0x18] sm:$0xff]
        %v7150 = vld [vmem:[#allocation19 + $0x20] sm:$0xff]
        %v7151 = vld [vmem:[#allocation19 + $0x28] sm:$0xff]
        %v7152 = vld [vmem:[#allocation19 + $0x30] sm:$0xff]
        %v7153 = vld [vmem:[#allocation19 + $0x38] sm:$0xff]
        %v7154 = vld [vmem:[#allocation19 + $0x40] sm:$0xff]
        %v7155 = vld [vmem:[#allocation19 + $0x48] sm:$0xff]
        %v7156 = vld [vmem:[#allocation19 + $0x50] sm:$0xff]
        %v7157 = vld [vmem:[#allocation19 + $0x58] sm:$0xff]
        %v7158 = vld [vmem:[#allocation19 + $0x60] sm:$0xff]
        %v7159 = vld [vmem:[#allocation19 + $0x68] sm:$0xff]
        %v7160 = vld [vmem:[#allocation19 + $0x70] sm:$0xff]
        %v7161 = vld [vmem:[#allocation19 + $0x78] sm:$0xff]
        %v7162 = vld [vmem:[#allocation19 + $0x80] sm:$0xff]
        %v7163 = vld [vmem:[#allocation19 + $0x88] sm:$0xff]
        %v7164 = vld [vmem:[#allocation19 + $0x90] sm:$0xff]
        %v7165 = vld [vmem:[#allocation19 + $0x98] sm:$0xff]
        %v7166 = vld [vmem:[#allocation19 + $0xa0] sm:$0xff]
        %v7167 = vld [vmem:[#allocation19 + $0xa8] sm:$0xff]
        %v7168 = vld [vmem:[#allocation19 + $0xb0] sm:$0xff]
        %v7169 = vld [vmem:[#allocation19 + $0xb8] sm:$0xff]
        %v7170 = vld [vmem:[#allocation19 + $0xc0] sm:$0xff]
        %v7171 = vld [vmem:[#allocation19 + $0xc8] sm:$0xff]
        %v7172 = vld [vmem:[#allocation19 + $0xd0] sm:$0xff]
        %v7173 = vld [vmem:[#allocation19 + $0xd8] sm:$0xff]
        %v7174 = vld [vmem:[#allocation19 + $0xe0] sm:$0xff]
        %v7175 = vld [vmem:[#allocation19 + $0xe8] sm:$0xff]
        %v7176 = vld [vmem:[#allocation19 + $0xf0] sm:$0xff]
        %v7177 = vld [vmem:[#allocation19 + $0xf8] sm:$0xff]
        %v7178 = vld [vmem:[#allocation19 + $0x100] sm:$0xff]
        %v7179 = vld [vmem:[#allocation19 + $0x108] sm:$0xff]
        %v7180 = vld [vmem:[#allocation19 + $0x110] sm:$0xff]
        %v7181 = vld [vmem:[#allocation19 + $0x118] sm:$0xff]
        %v7182 = vld [vmem:[#allocation19 + $0x120] sm:$0xff]
        %v7183 = vld [vmem:[#allocation19 + $0x128] sm:$0xff]
        %v7184 = vld [vmem:[#allocation19 + $0x130] sm:$0xff]
        %v7185 = vld [vmem:[#allocation19 + $0x138] sm:$0xff]
        %v7186 = vld [vmem:[#allocation19 + $0x140] sm:$0xff]
        %v7187 = vld [vmem:[#allocation19 + $0x148] sm:$0xff]
        %v7188 = vld [vmem:[#allocation19 + $0x150] sm:$0xff]
        %v7189 = vld [vmem:[#allocation19 + $0x158] sm:$0xff]
        %v7190 = vld [vmem:[#allocation19 + $0x160] sm:$0xff]
        %v7191 = vld [vmem:[#allocation19 + $0x168] sm:$0xff]
        %v7192 = vld [vmem:[#allocation19 + $0x170] sm:$0xff]
        %v7193 = vld [vmem:[#allocation19 + $0x178] sm:$0xff]
        %v7194 = vld [vmem:[#allocation19 + $0x180] sm:$0xff]
        %v7195 = vld [vmem:[#allocation19 + $0x188] sm:$0xff]
        %v7196 = vld [vmem:[#allocation19 + $0x190] sm:$0xff]
        %v7197 = vld [vmem:[#allocation19 + $0x198] sm:$0xff]
        %v7198 = vld [vmem:[#allocation19 + $0x1a0] sm:$0xff]
        %v7199 = vld [vmem:[#allocation19 + $0x1a8] sm:$0xff]
        %v7200 = vld [vmem:[#allocation19 + $0x1b0] sm:$0xff]
        %v7201 = vld [vmem:[#allocation19 + $0x1b8] sm:$0xff]
        %v7202 = vld [vmem:[#allocation19 + $0x1c0] sm:$0xff]
        %v7203 = vld [vmem:[#allocation19 + $0x1c8] sm:$0xff]
        %v7204 = vld [vmem:[#allocation19 + $0x1d0] sm:$0xff]
        %v7205 = vld [vmem:[#allocation19 + $0x1d8] sm:$0xff]
        %v7206 = vld [vmem:[#allocation19 + $0x1e0] sm:$0xff]
        %v7207 = vld [vmem:[#allocation19 + $0x1e8] sm:$0xff]
        %v7208 = vld [vmem:[#allocation19 + $0x1f0] sm:$0xff]
        %v7209 = vld [vmem:[#allocation19 + $0x1f8] sm:$0xff]
        %v7210 = vld [vmem:[#allocation19 + $0x200] sm:$0xff]
        %v7211 = vld [vmem:[#allocation19 + $0x208] sm:$0xff]
        %v7212 = vld [vmem:[#allocation19 + $0x210] sm:$0xff]
        %v7213 = vld [vmem:[#allocation19 + $0x218] sm:$0xff]
        %v7214 = vld [vmem:[#allocation4] sm:$0xfe]
        %v7215 = vld [vmem:[#allocation4 + $0x8] sm:$0xfe]
        %v7216 = vld [vmem:[#allocation4 + $0x10] sm:$0xfe]
        %v7217 = vld [vmem:[#allocation4 + $0x60] sm:$0x1]
        %v7218 = vld [vmem:[#allocation4 + $0x68] sm:$0x1]
        %v7219 = vld [vmem:[#allocation4 + $0x70] sm:$0x1]
        %s7220 = scalar_lea.vmem [#allocation19], 544
        %v7221 = vld [vmem:[%s7220] sm:$0xff]
        %v7222 = vld [vmem:[%s7220 + $0x8] sm:$0xff]
        %v7223 = vld [vmem:[%s7220 + $0x10] sm:$0xff]
        %v7224 = vld [vmem:[%s7220 + $0x18] sm:$0xff]
        %v7225 = vld [vmem:[%s7220 + $0x20] sm:$0xff]
        %v7226 = vld [vmem:[%s7220 + $0x28] sm:$0xff]
        %v7227 = vld [vmem:[%s7220 + $0x30] sm:$0xff]
        %v7228 = vld [vmem:[%s7220 + $0x38] sm:$0xff]
        %v7229 = vld [vmem:[%s7220 + $0x40] sm:$0xff]
        %v7230 = vld [vmem:[%s7220 + $0x48] sm:$0xff]
        %v7231 = vld [vmem:[%s7220 + $0x50] sm:$0xff]
        %v7232 = vld [vmem:[%s7220 + $0x58] sm:$0xff]
        %v7233 = vld [vmem:[%s7220 + $0x60] sm:$0xff]
        %v7234 = vld [vmem:[%s7220 + $0x68] sm:$0xff]
        %v7235 = vld [vmem:[%s7220 + $0x70] sm:$0xff]
        %v7236 = vld [vmem:[%s7220 + $0x78] sm:$0xff]
        %v7237 = vld [vmem:[%s7220 + $0x80] sm:$0xff]
        %v7238 = vld [vmem:[%s7220 + $0x88] sm:$0xff]
        %v7239 = vld [vmem:[%s7220 + $0x90] sm:$0xff]
        %v7240 = vld [vmem:[%s7220 + $0x98] sm:$0xff]
        %v7241 = vld [vmem:[%s7220 + $0xa0] sm:$0xff]
        %v7242 = vld [vmem:[%s7220 + $0xa8] sm:$0xff]
        %v7243 = vld [vmem:[%s7220 + $0xb0] sm:$0xff]
        %v7244 = vld [vmem:[%s7220 + $0xb8] sm:$0xff]
        %v7245 = vld [vmem:[%s7220 + $0xc0] sm:$0xff]
        %v7246 = vld [vmem:[%s7220 + $0xc8] sm:$0xff]
        %v7247 = vld [vmem:[%s7220 + $0xd0] sm:$0xff]
        %v7248 = vld [vmem:[%s7220 + $0xd8] sm:$0xff]
        %v7249 = vld [vmem:[%s7220 + $0xe0] sm:$0xff]
        %v7250 = vld [vmem:[%s7220 + $0xe8] sm:$0xff]
        %v7251 = vld [vmem:[%s7220 + $0xf0] sm:$0xff]
        %v7252 = vld [vmem:[%s7220 + $0xf8] sm:$0xff]
        %v7253 = vld [vmem:[%s7220 + $0x100] sm:$0xff]
        %v7254 = vld [vmem:[%s7220 + $0x108] sm:$0xff]
        %v7255 = vld [vmem:[%s7220 + $0x110] sm:$0xff]
        %v7256 = vld [vmem:[%s7220 + $0x118] sm:$0xff]
        %v7257 = vld [vmem:[%s7220 + $0x120] sm:$0xff]
        %v7258 = vld [vmem:[%s7220 + $0x128] sm:$0xff]
        %v7259 = vld [vmem:[%s7220 + $0x130] sm:$0xff]
        %v7260 = vld [vmem:[%s7220 + $0x138] sm:$0xff]
        %v7261 = vld [vmem:[%s7220 + $0x140] sm:$0xff]
        %v7262 = vld [vmem:[%s7220 + $0x148] sm:$0xff]
        %v7263 = vld [vmem:[%s7220 + $0x150] sm:$0xff]
        %v7264 = vld [vmem:[%s7220 + $0x158] sm:$0xff]
        %v7265 = vld [vmem:[%s7220 + $0x160] sm:$0xff]
        %v7266 = vld [vmem:[%s7220 + $0x168] sm:$0xff]
        %v7267 = vld [vmem:[%s7220 + $0x170] sm:$0xff]
        %v7268 = vld [vmem:[%s7220 + $0x178] sm:$0xff]
        %v7269 = vld [vmem:[%s7220 + $0x180] sm:$0xff]
        %v7270 = vld [vmem:[%s7220 + $0x188] sm:$0xff]
        %v7271 = vld [vmem:[%s7220 + $0x190] sm:$0xff]
        %v7272 = vld [vmem:[%s7220 + $0x198] sm:$0xff]
        %v7273 = vld [vmem:[%s7220 + $0x1a0] sm:$0xff]
        %v7274 = vld [vmem:[%s7220 + $0x1a8] sm:$0xff]
        %v7275 = vld [vmem:[%s7220 + $0x1b0] sm:$0xff]
        %v7276 = vld [vmem:[%s7220 + $0x1b8] sm:$0xff]
        %v7277 = vld [vmem:[%s7220 + $0x1c0] sm:$0xff]
        %v7278 = vld [vmem:[%s7220 + $0x1c8] sm:$0xff]
        %v7279 = vld [vmem:[%s7220 + $0x1d0] sm:$0xff]
        %v7280 = vld [vmem:[%s7220 + $0x1d8] sm:$0xff]
        %v7281 = vld [vmem:[%s7220 + $0x1e0] sm:$0xff]
        %v7282 = vld [vmem:[%s7220 + $0x1e8] sm:$0xff]
        %v7283 = vld [vmem:[%s7220 + $0x1f0] sm:$0xff]
        %v7284 = vld [vmem:[%s7220 + $0x1f8] sm:$0xff]
        %v7285 = vld [vmem:[%s7220 + $0x200] sm:$0xff]
        %v7286 = vld [vmem:[%s7220 + $0x208] sm:$0xff]
        %v7287 = vld [vmem:[%s7220 + $0x210] sm:$0xff]
        %v7288 = vld [vmem:[%s7220 + $0x218] sm:$0xff]
        %v7304 = vrot.slane %v7214, 1
        %v7305 = vrot.slane %v7137, 1
        %v7306 = vsel %vm821, %v7304, %v7305
        %v7307 = vrot.slane %v7215, 1
        %v7308 = vrot.slane %v7138, 1
        %v7309 = vsel %vm821, %v7307, %v7308
        %v7310 = vrot.slane %v7216, 1
        %v7311 = vrot.slane %v7139, 1
        %v7312 = vsel %vm821, %v7310, %v7311
        %v7313 = vrot.slane %v7140, 1
        %v7314 = vsel %vm821, %v7305, %v7313
        %v7315 = vrot.slane %v7141, 1
        %v7316 = vsel %vm821, %v7308, %v7315
        %v7317 = vrot.slane %v7142, 1
        %v7318 = vsel %vm821, %v7311, %v7317
        %v7319 = vrot.slane %v7143, 1
        %v7320 = vsel %vm821, %v7313, %v7319
        %v7321 = vrot.slane %v7144, 1
        %v7322 = vsel %vm821, %v7315, %v7321
        %v7323 = vrot.slane %v7145, 1
        %v7324 = vsel %vm821, %v7317, %v7323
        %v7325 = vrot.slane %v7217, 1
        %v7326 = vsel %vm821, %v7319, %v7325
        %v7327 = vrot.slane %v7218, 1
        %v7328 = vsel %vm821, %v7321, %v7327
        %v7329 = vrot.slane %v7219, 1
        %v7330 = vsel %vm821, %v7323, %v7329
        %v7339 = vsel %vm509, %v7312, 0
        %v7341 = vsel %vm509, %v7318, 0
        %v7343 = vsel %vm509, %v7324, 0
        %v7345 = vsel %vm509, %v7330, 0
        %7347 = vmatprep.subr.mxu0 %v7222
        %7348 = vmatpush1.msra.mxu0 %v7221
        %7349 = vmatprep.subr.mxu0 %v7224
        %7350 = vmatpush1.msra.mxu0 %v7223
        %7351 = vmatprep.subr.mxu0 %v7226
        %7352 = vmatpush1.msra.mxu0 %v7225
        %7353 = vmatprep.subr.mxu0 %v7228
        %7354 = vmatpush1.msra.mxu0 %v7227
        %7355 = vmatprep.subr.mxu0 %v7230
        %7356 = vmatpush1.msra.mxu0 %v7229
        %7357 = vmatprep.subr.mxu0 %v7232
        %7358 = vmatpush1.msra.mxu0 %v7231
        %7359 = vmatprep.subr.mxu0 %v7234
        %7360 = vmatpush1.msra.mxu0 %v7233
        %7361 = vmatprep.subr.mxu0 %v7236
        %7362 = vmatpush1.msra.mxu0 %v7235
        %7363 = vmatprep.subr.mxu0 %v7238
        %7364 = vmatpush1.msra.mxu0 %v7237
        %7365 = vmatprep.subr.mxu0 %v7240
        %7366 = vmatpush1.msra.mxu0 %v7239
        %7367 = vmatprep.subr.mxu0 %v7242
        %7368 = vmatpush1.msra.mxu0 %v7241
        %7369 = vmatprep.subr.mxu0 %v7244
        %7370 = vmatpush1.msra.mxu0 %v7243
        %7371 = vmatprep.subr.mxu0 %v7246
        %7372 = vmatpush1.msra.mxu0 %v7245
        %7373 = vmatprep.subr.mxu0 %v7248
        %7374 = vmatpush1.msra.mxu0 %v7247
        %7375 = vmatprep.subr.mxu0 %v7250
        %7376 = vmatpush1.msra.mxu0 %v7249
        %7377 = vmatprep.subr.mxu0 %v7252
        %7378 = vmatpush1.msra.mxu0 %v7251
        %7379 = vmatprep.subr.mxu0 %v7254
        %7380 = vmatpush1.msra.mxu0 %v7253
        %7381 = vmatprep.subr.mxu0 %v7256
        %7382 = vmatpush1.msra.mxu0 %v7255
        %7383 = vmatprep.subr.mxu0 %v7258
        %7384 = vmatpush1.msra.mxu0 %v7257
        %7385 = vmatprep.subr.mxu0 %v7260
        %7386 = vmatpush1.msra.mxu0 %v7259
        %7387 = vmatprep.subr.mxu0 %v7262
        %7388 = vmatpush1.msra.mxu0 %v7261
        %7389 = vmatprep.subr.mxu0 %v7264
        %7390 = vmatpush1.msra.mxu0 %v7263
        %7391 = vmatprep.subr.mxu0 %v7266
        %7392 = vmatpush1.msra.mxu0 %v7265
        %7393 = vmatprep.subr.mxu0 %v7268
        %7394 = vmatpush1.msra.mxu0 %v7267
        %7395 = vmatprep.subr.mxu0 %v7270
        %7396 = vmatpush1.msra.mxu0 %v7269
        %7397 = vmatprep.subr.mxu0 %v7272
        %7398 = vmatpush1.msra.mxu0 %v7271
        %7399 = vmatprep.subr.mxu0 %v7274
        %7400 = vmatpush1.msra.mxu0 %v7273
        %7401 = vmatprep.subr.mxu0 %v7276
        %7402 = vmatpush1.msra.mxu0 %v7275
        %7403 = vmatprep.subr.mxu0 %v7278
        %7404 = vmatpush1.msra.mxu0 %v7277
        %7405 = vmatprep.subr.mxu0 %v7280
        %7406 = vmatpush1.msra.mxu0 %v7279
        %7407 = vmatprep.subr.mxu0 %v7282
        %7408 = vmatpush1.msra.mxu0 %v7281
        %7409 = vmatprep.subr.mxu0 %v7284
        %7410 = vmatpush1.msra.mxu0 %v7283
        %7411 = vmatprep.mubr.f32.mxu0 %v7309
        %7412 = vmatmul.mubr.f32.gmra.mrb[0].mxu0 %v7306
        %v7413 = vpop.f32.mrb[0].mxu0
        %v7414 = vadd.f32 0.0, %v7413
        %v7415 = vpop.f32.mrb[0].mxu0
        %v7416 = vadd.f32 0.0, %v7415
        %7417 = vmatprep.mubr.f32.mxu0 %v7316
        %7418 = vmatmul.mubr.f32.gmra.mrb[0].mxu0 %v7314
        %v7419 = vpop.f32.mrb[0].mxu0
        %v7420 = vadd.f32 0.0, %v7419
        %v7421 = vpop.f32.mrb[0].mxu0
        %v7422 = vadd.f32 0.0, %v7421
        %7423 = vmatprep.mubr.f32.mxu0 %v7322
        %7424 = vmatmul.mubr.f32.gmra.mrb[0].mxu0 %v7320
        %v7425 = vpop.f32.mrb[0].mxu0
        %v7426 = vadd.f32 0.0, %v7425
        %v7427 = vpop.f32.mrb[0].mxu0
        %v7428 = vadd.f32 0.0, %v7427
        %7429 = vmatprep.mubr.f32.mxu0 %v7328
        %7430 = vmatmul.mubr.f32.gmra.mrb[0].mxu0 %v7326
        %v7431 = vpop.f32.mrb[0].mxu0
        %v7432 = vadd.f32 0.0, %v7431
        %v7433 = vpop.f32.mrb[0].mxu0
        %v7434 = vadd.f32 0.0, %v7433
        %7435 = vdwg.mxu0
        %7436 = vmatprep.subr.mxu0 %v7286
        %7437 = vmatpush1.msra.mxu0 %v7285
        %7438 = vmatprep.subr.mxu0 %v7288
        %7439 = vmatpush1.msra.mxu0 %v7287
        %7440 = vmatprep.subr.mxu0 0.0
        %7441 = vmatpush1.msra.mxu0 0.0
        %7442 = vmatprep.subr.mxu0 0.0
        %7443 = vmatpush1.msra.mxu0 0.0
        %7444 = vmatprep.subr.mxu0 0.0
        %7445 = vmatpush1.msra.mxu0 0.0
        %7446 = vmatprep.subr.mxu0 0.0
        %7447 = vmatpush1.msra.mxu0 0.0
        %7448 = vmatprep.subr.mxu0 0.0
        %7449 = vmatpush1.msra.mxu0 0.0
        %7450 = vmatprep.subr.mxu0 0.0
        %7451 = vmatpush1.msra.mxu0 0.0
        %7452 = vmatprep.subr.mxu0 0.0
        %7453 = vmatpush1.msra.mxu0 0.0
        %7454 = vmatprep.subr.mxu0 0.0
        %7455 = vmatpush1.msra.mxu0 0.0
        %7456 = vmatprep.subr.mxu0 0.0
        %7457 = vmatpush1.msra.mxu0 0.0
        %7458 = vmatprep.subr.mxu0 0.0
        %7459 = vmatpush1.msra.mxu0 0.0
        %7460 = vmatprep.subr.mxu0 0.0
        %7461 = vmatpush1.msra.mxu0 0.0
        %7462 = vmatprep.subr.mxu0 0.0
        %7463 = vmatpush1.msra.mxu0 0.0
        %7464 = vmatprep.subr.mxu0 0.0
        %7465 = vmatpush1.msra.mxu0 0.0
        %7466 = vmatprep.subr.mxu0 0.0
        %7467 = vmatpush1.msra.mxu0 0.0
        %7468 = vmatprep.subr.mxu0 0.0
        %7469 = vmatpush1.msra.mxu0 0.0
        %7470 = vmatprep.subr.mxu0 0.0
        %7471 = vmatpush1.msra.mxu0 0.0
        %7472 = vmatprep.subr.mxu0 0.0
        %7473 = vmatpush1.msra.mxu0 0.0
        %7474 = vmatprep.subr.mxu0 0.0
        %7475 = vmatpush1.msra.mxu0 0.0
        %7476 = vmatprep.subr.mxu0 0.0
        %7477 = vmatpush1.msra.mxu0 0.0
        %7478 = vmatprep.subr.mxu0 0.0
        %7479 = vmatpush1.msra.mxu0 0.0
        %7480 = vmatprep.subr.mxu0 0.0
        %7481 = vmatpush1.msra.mxu0 0.0
        %7482 = vmatprep.subr.mxu0 0.0
        %7483 = vmatpush1.msra.mxu0 0.0
        %7484 = vmatprep.subr.mxu0 0.0
        %7485 = vmatpush1.msra.mxu0 0.0
        %7486 = vmatprep.subr.mxu0 0.0
        %7487 = vmatpush1.msra.mxu0 0.0
        %7488 = vmatprep.subr.mxu0 0.0
        %7489 = vmatpush1.msra.mxu0 0.0
        %7490 = vmatprep.subr.mxu0 0.0
        %7491 = vmatpush1.msra.mxu0 0.0
        %7492 = vmatprep.subr.mxu0 0.0
        %7493 = vmatpush1.msra.mxu0 0.0
        %7494 = vmatprep.subr.mxu0 0.0
        %7495 = vmatpush1.msra.mxu0 0.0
        %7496 = vmatprep.subr.mxu0 0.0
        %7497 = vmatpush1.msra.mxu0 0.0
        %7498 = vmatprep.subr.mxu0 0.0
        %7499 = vmatpush1.msra.mxu0 0.0
        %7500 = vmatprep.mubr.f32.mxu0 0.0
        %7501 = vmatmul.mubr.f32.gmra.mrb[0].mxu0 %v7339
        %v7502 = vpop.f32.mrb[0].mxu0
        %v7503 = vadd.f32 %v7414, %v7502
        %v7504 = vpop.f32.mrb[0].mxu0
        %v7505 = vadd.f32 %v7416, %v7504
        %7506 = vmatprep.mubr.f32.mxu0 0.0
        %7507 = vmatmul.mubr.f32.gmra.mrb[0].mxu0 %v7341
        %v7508 = vpop.f32.mrb[0].mxu0
        %v7509 = vadd.f32 %v7420, %v7508
        %v7510 = vpop.f32.mrb[0].mxu0
        %v7511 = vadd.f32 %v7422, %v7510
        %7512 = vmatprep.mubr.f32.mxu0 0.0
        %7513 = vmatmul.mubr.f32.gmra.mrb[0].mxu0 %v7343
        %v7514 = vpop.f32.mrb[0].mxu0
        %v7515 = vadd.f32 %v7426, %v7514
        %v7516 = vpop.f32.mrb[0].mxu0
        %v7517 = vadd.f32 %v7428, %v7516
        %7518 = vmatprep.mubr.f32.mxu0 0.0
        %7519 = vmatmul.mubr.f32.gmra.mrb[0].mxu0 %v7345
        %v7520 = vpop.f32.mrb[0].mxu0
        %v7521 = vadd.f32 %v7432, %v7520
        %v7522 = vpop.f32.mrb[0].mxu0
        %v7523 = vadd.f32 %v7434, %v7522
        %7524 = vdwg.mxu0
        %v7526 = vsel %vm509, %v7136, 0
        %v7528 = vsel %vm509, %v7139, 0
        %v7530 = vsel %vm509, %v7142, 0
        %v7532 = vsel %vm509, %v7145, 0
        %7534 = vmatprep.subr.mxu0 %v7147
        %7535 = vmatpush1.msra.mxu0 %v7146
        %7536 = vmatprep.subr.mxu0 %v7149
        %7537 = vmatpush1.msra.mxu0 %v7148
        %7538 = vmatprep.subr.mxu0 %v7151
        %7539 = vmatpush1.msra.mxu0 %v7150
        %7540 = vmatprep.subr.mxu0 %v7153
        %7541 = vmatpush1.msra.mxu0 %v7152
        %7542 = vmatprep.subr.mxu0 %v7155
        %7543 = vmatpush1.msra.mxu0 %v7154
        %7544 = vmatprep.subr.mxu0 %v7157
        %7545 = vmatpush1.msra.mxu0 %v7156
        %7546 = vmatprep.subr.mxu0 %v7159
        %7547 = vmatpush1.msra.mxu0 %v7158
        %7548 = vmatprep.subr.mxu0 %v7161
        %7549 = vmatpush1.msra.mxu0 %v7160
        %7550 = vmatprep.subr.mxu0 %v7163
        %7551 = vmatpush1.msra.mxu0 %v7162
        %7552 = vmatprep.subr.mxu0 %v7165
        %7553 = vmatpush1.msra.mxu0 %v7164
        %7554 = vmatprep.subr.mxu0 %v7167
        %7555 = vmatpush1.msra.mxu0 %v7166
        %7556 = vmatprep.subr.mxu0 %v7169
        %7557 = vmatpush1.msra.mxu0 %v7168
        %7558 = vmatprep.subr.mxu0 %v7171
        %7559 = vmatpush1.msra.mxu0 %v7170
        %7560 = vmatprep.subr.mxu0 %v7173
        %7561 = vmatpush1.msra.mxu0 %v7172
        %7562 = vmatprep.subr.mxu0 %v7175
        %7563 = vmatpush1.msra.mxu0 %v7174
        %7564 = vmatprep.subr.mxu0 %v7177
        %7565 = vmatpush1.msra.mxu0 %v7176
        %7566 = vmatprep.subr.mxu0 %v7179
        %7567 = vmatpush1.msra.mxu0 %v7178
        %7568 = vmatprep.subr.mxu0 %v7181
        %7569 = vmatpush1.msra.mxu0 %v7180
        %7570 = vmatprep.subr.mxu0 %v7183
        %7571 = vmatpush1.msra.mxu0 %v7182
        %7572 = vmatprep.subr.mxu0 %v7185
        %7573 = vmatpush1.msra.mxu0 %v7184
        %7574 = vmatprep.subr.mxu0 %v7187
        %7575 = vmatpush1.msra.mxu0 %v7186
        %7576 = vmatprep.subr.mxu0 %v7189
        %7577 = vmatpush1.msra.mxu0 %v7188
        %7578 = vmatprep.subr.mxu0 %v7191
        %7579 = vmatpush1.msra.mxu0 %v7190
        %7580 = vmatprep.subr.mxu0 %v7193
        %7581 = vmatpush1.msra.mxu0 %v7192
        %7582 = vmatprep.subr.mxu0 %v7195
        %7583 = vmatpush1.msra.mxu0 %v7194
        %7584 = vmatprep.subr.mxu0 %v7197
        %7585 = vmatpush1.msra.mxu0 %v7196
        %7586 = vmatprep.subr.mxu0 %v7199
        %7587 = vmatpush1.msra.mxu0 %v7198
        %7588 = vmatprep.subr.mxu0 %v7201
        %7589 = vmatpush1.msra.mxu0 %v7200
        %7590 = vmatprep.subr.mxu0 %v7203
        %7591 = vmatpush1.msra.mxu0 %v7202
        %7592 = vmatprep.subr.mxu0 %v7205
        %7593 = vmatpush1.msra.mxu0 %v7204
        %7594 = vmatprep.subr.mxu0 %v7207
        %7595 = vmatpush1.msra.mxu0 %v7206
        %7596 = vmatprep.subr.mxu0 %v7209
        %7597 = vmatpush1.msra.mxu0 %v7208
        %7598 = vmatprep.mubr.f32.mxu0 %v7135
        %7599 = vmatmul.mubr.f32.gmra.mrb[0].mxu0 %v7134
        %v7600 = vpop.f32.mrb[0].mxu0
        %v7601 = vadd.f32 %v7503, %v7600
        %v7602 = vpop.f32.mrb[0].mxu0
        %v7603 = vadd.f32 %v7505, %v7602
        %7604 = vmatprep.mubr.f32.mxu0 %v7138
        %7605 = vmatmul.mubr.f32.gmra.mrb[0].mxu0 %v7137
        %v7606 = vpop.f32.mrb[0].mxu0
        %v7607 = vadd.f32 %v7509, %v7606
        %v7608 = vpop.f32.mrb[0].mxu0
        %v7609 = vadd.f32 %v7511, %v7608
        %7610 = vmatprep.mubr.f32.mxu0 %v7141
        %7611 = vmatmul.mubr.f32.gmra.mrb[0].mxu0 %v7140
        %v7612 = vpop.f32.mrb[0].mxu0
        %v7613 = vadd.f32 %v7515, %v7612
        %v7614 = vpop.f32.mrb[0].mxu0
        %v7615 = vadd.f32 %v7517, %v7614
        %7616 = vmatprep.mubr.f32.mxu0 %v7144
        %7617 = vmatmul.mubr.f32.gmra.mrb[0].mxu0 %v7143
        %v7618 = vpop.f32.mrb[0].mxu0
        %v7619 = vadd.f32 %v7521, %v7618
        %v7620 = vpop.f32.mrb[0].mxu0
        %v7621 = vadd.f32 %v7523, %v7620
        %7622 = vdwg.mxu0
        %7623 = vmatprep.subr.mxu0 %v7211
        %7624 = vmatpush1.msra.mxu0 %v7210
        %7625 = vmatprep.subr.mxu0 %v7213
        %7626 = vmatpush1.msra.mxu0 %v7212
        %7627 = vmatprep.subr.mxu0 0.0
        %7628 = vmatpush1.msra.mxu0 0.0
        %7629 = vmatprep.subr.mxu0 0.0
        %7630 = vmatpush1.msra.mxu0 0.0
        %7631 = vmatprep.subr.mxu0 0.0
        %7632 = vmatpush1.msra.mxu0 0.0
        %7633 = vmatprep.subr.mxu0 0.0
        %7634 = vmatpush1.msra.mxu0 0.0
        %7635 = vmatprep.subr.mxu0 0.0
        %7636 = vmatpush1.msra.mxu0 0.0
        %7637 = vmatprep.subr.mxu0 0.0
        %7638 = vmatpush1.msra.mxu0 0.0
        %7639 = vmatprep.subr.mxu0 0.0
        %7640 = vmatpush1.msra.mxu0 0.0
        %7641 = vmatprep.subr.mxu0 0.0
        %7642 = vmatpush1.msra.mxu0 0.0
        %7643 = vmatprep.subr.mxu0 0.0
        %7644 = vmatpush1.msra.mxu0 0.0
        %7645 = vmatprep.subr.mxu0 0.0
        %7646 = vmatpush1.msra.mxu0 0.0
        %7647 = vmatprep.subr.mxu0 0.0
        %7648 = vmatpush1.msra.mxu0 0.0
        %7649 = vmatprep.subr.mxu0 0.0
        %7650 = vmatpush1.msra.mxu0 0.0
        %7651 = vmatprep.subr.mxu0 0.0
        %7652 = vmatpush1.msra.mxu0 0.0
        %7653 = vmatprep.subr.mxu0 0.0
        %7654 = vmatpush1.msra.mxu0 0.0
        %7655 = vmatprep.subr.mxu0 0.0
        %7656 = vmatpush1.msra.mxu0 0.0
        %7657 = vmatprep.subr.mxu0 0.0
        %7658 = vmatpush1.msra.mxu0 0.0
        %7659 = vmatprep.subr.mxu0 0.0
        %7660 = vmatpush1.msra.mxu0 0.0
        %7661 = vmatprep.subr.mxu0 0.0
        %7662 = vmatpush1.msra.mxu0 0.0
        %7663 = vmatprep.subr.mxu0 0.0
        %7664 = vmatpush1.msra.mxu0 0.0
        %7665 = vmatprep.subr.mxu0 0.0
        %7666 = vmatpush1.msra.mxu0 0.0
        %7667 = vmatprep.subr.mxu0 0.0
        %7668 = vmatpush1.msra.mxu0 0.0
        %7669 = vmatprep.subr.mxu0 0.0
        %7670 = vmatpush1.msra.mxu0 0.0
        %7671 = vmatprep.subr.mxu0 0.0
        %7672 = vmatpush1.msra.mxu0 0.0
        %7673 = vmatprep.subr.mxu0 0.0
        %7674 = vmatpush1.msra.mxu0 0.0
        %7675 = vmatprep.subr.mxu0 0.0
        %7676 = vmatpush1.msra.mxu0 0.0
        %7677 = vmatprep.subr.mxu0 0.0
        %7678 = vmatpush1.msra.mxu0 0.0
        %7679 = vmatprep.subr.mxu0 0.0
        %7680 = vmatpush1.msra.mxu0 0.0
        %7681 = vmatprep.subr.mxu0 0.0
        %7682 = vmatpush1.msra.mxu0 0.0
        %7683 = vmatprep.subr.mxu0 0.0
        %7684 = vmatpush1.msra.mxu0 0.0
        %7685 = vmatprep.subr.mxu0 0.0
        %7686 = vmatpush1.msra.mxu0 0.0
        %7687 = vmatprep.mubr.f32.mxu0 0.0
        %7688 = vmatmul.mubr.f32.gmra.mrb[0].mxu0 %v7526
        %v7689 = vpop.f32.mrb[0].mxu0
        %v7690 = vadd.f32 %v7601, %v7689
        %v7691 = vpop.f32.mrb[0].mxu0
        %v7692 = vadd.f32 %v7603, %v7691
        %7693 = vmatprep.mubr.f32.mxu0 0.0
        %7694 = vmatmul.mubr.f32.gmra.mrb[0].mxu0 %v7528
        %v7695 = vpop.f32.mrb[0].mxu0
        %v7696 = vadd.f32 %v7607, %v7695
        %v7697 = vpop.f32.mrb[0].mxu0
        %v7698 = vadd.f32 %v7609, %v7697
        %7699 = vmatprep.mubr.f32.mxu0 0.0
        %7700 = vmatmul.mubr.f32.gmra.mrb[0].mxu0 %v7530
        %v7701 = vpop.f32.mrb[0].mxu0
        %v7702 = vadd.f32 %v7613, %v7701
        %v7703 = vpop.f32.mrb[0].mxu0
        %v7704 = vadd.f32 %v7615, %v7703
        %7705 = vmatprep.mubr.f32.mxu0 0.0
        %7706 = vmatmul.mubr.f32.gmra.mrb[0].mxu0 %v7532
        %v7707 = vpop.f32.mrb[0].mxu0
        %v7708 = vadd.f32 %v7619, %v7707
        %v7709 = vpop.f32.mrb[0].mxu0
        %v7710 = vadd.f32 %v7621, %v7709
        %7711 = vdwg.mxu0
        %v7712 = vld [vmem:[#allocation4] sm:$0xfc]
        %v7713 = vld [vmem:[#allocation4 + $0x8] sm:$0xfc]
        %v7714 = vld [vmem:[#allocation4 + $0x10] sm:$0xfc]
        %v7715 = vld [vmem:[#allocation4 + $0x60] sm:$0x3]
        %v7716 = vld [vmem:[#allocation4 + $0x68] sm:$0x3]
        %v7717 = vld [vmem:[#allocation4 + $0x70] sm:$0x3]
        %s7718 = scalar_lea.vmem [#allocation19], 1088
        %v7719 = vld [vmem:[%s7718] sm:$0xff]
        %v7720 = vld [vmem:[%s7718 + $0x8] sm:$0xff]
        %v7721 = vld [vmem:[%s7718 + $0x10] sm:$0xff]
        %v7722 = vld [vmem:[%s7718 + $0x18] sm:$0xff]
        %v7723 = vld [vmem:[%s7718 + $0x20] sm:$0xff]
        %v7724 = vld [vmem:[%s7718 + $0x28] sm:$0xff]
        %v7725 = vld [vmem:[%s7718 + $0x30] sm:$0xff]
        %v7726 = vld [vmem:[%s7718 + $0x38] sm:$0xff]
        %v7727 = vld [vmem:[%s7718 + $0x40] sm:$0xff]
        %v7728 = vld [vmem:[%s7718 + $0x48] sm:$0xff]
        %v7729 = vld [vmem:[%s7718 + $0x50] sm:$0xff]
        %v7730 = vld [vmem:[%s7718 + $0x58] sm:$0xff]
        %v7731 = vld [vmem:[%s7718 + $0x60] sm:$0xff]
        %v7732 = vld [vmem:[%s7718 + $0x68] sm:$0xff]
        %v7733 = vld [vmem:[%s7718 + $0x70] sm:$0xff]
        %v7734 = vld [vmem:[%s7718 + $0x78] sm:$0xff]
        %v7735 = vld [vmem:[%s7718 + $0x80] sm:$0xff]
        %v7736 = vld [vmem:[%s7718 + $0x88] sm:$0xff]
        %v7737 = vld [vmem:[%s7718 + $0x90] sm:$0xff]
        %v7738 = vld [vmem:[%s7718 + $0x98] sm:$0xff]
        %v7739 = vld [vmem:[%s7718 + $0xa0] sm:$0xff]
        %v7740 = vld [vmem:[%s7718 + $0xa8] sm:$0xff]
        %v7741 = vld [vmem:[%s7718 + $0xb0] sm:$0xff]
        %v7742 = vld [vmem:[%s7718 + $0xb8] sm:$0xff]
        %v7743 = vld [vmem:[%s7718 + $0xc0] sm:$0xff]
        %v7744 = vld [vmem:[%s7718 + $0xc8] sm:$0xff]
        %v7745 = vld [vmem:[%s7718 + $0xd0] sm:$0xff]
        %v7746 = vld [vmem:[%s7718 + $0xd8] sm:$0xff]
        %v7747 = vld [vmem:[%s7718 + $0xe0] sm:$0xff]
        %v7748 = vld [vmem:[%s7718 + $0xe8] sm:$0xff]
        %v7749 = vld [vmem:[%s7718 + $0xf0] sm:$0xff]
        %v7750 = vld [vmem:[%s7718 + $0xf8] sm:$0xff]
        %v7751 = vld [vmem:[%s7718 + $0x100] sm:$0xff]
        %v7752 = vld [vmem:[%s7718 + $0x108] sm:$0xff]
        %v7753 = vld [vmem:[%s7718 + $0x110] sm:$0xff]
        %v7754 = vld [vmem:[%s7718 + $0x118] sm:$0xff]
        %v7755 = vld [vmem:[%s7718 + $0x120] sm:$0xff]
        %v7756 = vld [vmem:[%s7718 + $0x128] sm:$0xff]
        %v7757 = vld [vmem:[%s7718 + $0x130] sm:$0xff]
        %v7758 = vld [vmem:[%s7718 + $0x138] sm:$0xff]
        %v7759 = vld [vmem:[%s7718 + $0x140] sm:$0xff]
        %v7760 = vld [vmem:[%s7718 + $0x148] sm:$0xff]
        %v7761 = vld [vmem:[%s7718 + $0x150] sm:$0xff]
        %v7762 = vld [vmem:[%s7718 + $0x158] sm:$0xff]
        %v7763 = vld [vmem:[%s7718 + $0x160] sm:$0xff]
        %v7764 = vld [vmem:[%s7718 + $0x168] sm:$0xff]
        %v7765 = vld [vmem:[%s7718 + $0x170] sm:$0xff]
        %v7766 = vld [vmem:[%s7718 + $0x178] sm:$0xff]
        %v7767 = vld [vmem:[%s7718 + $0x180] sm:$0xff]
        %v7768 = vld [vmem:[%s7718 + $0x188] sm:$0xff]
        %v7769 = vld [vmem:[%s7718 + $0x190] sm:$0xff]
        %v7770 = vld [vmem:[%s7718 + $0x198] sm:$0xff]
        %v7771 = vld [vmem:[%s7718 + $0x1a0] sm:$0xff]
        %v7772 = vld [vmem:[%s7718 + $0x1a8] sm:$0xff]
        %v7773 = vld [vmem:[%s7718 + $0x1b0] sm:$0xff]
        %v7774 = vld [vmem:[%s7718 + $0x1b8] sm:$0xff]
        %v7775 = vld [vmem:[%s7718 + $0x1c0] sm:$0xff]
        %v7776 = vld [vmem:[%s7718 + $0x1c8] sm:$0xff]
        %v7777 = vld [vmem:[%s7718 + $0x1d0] sm:$0xff]
        %v7778 = vld [vmem:[%s7718 + $0x1d8] sm:$0xff]
        %v7779 = vld [vmem:[%s7718 + $0x1e0] sm:$0xff]
        %v7780 = vld [vmem:[%s7718 + $0x1e8] sm:$0xff]
        %v7781 = vld [vmem:[%s7718 + $0x1f0] sm:$0xff]
        %v7782 = vld [vmem:[%s7718 + $0x1f8] sm:$0xff]
        %v7783 = vld [vmem:[%s7718 + $0x200] sm:$0xff]
        %v7784 = vld [vmem:[%s7718 + $0x208] sm:$0xff]
        %v7785 = vld [vmem:[%s7718 + $0x210] sm:$0xff]
        %v7786 = vld [vmem:[%s7718 + $0x218] sm:$0xff]
        %v7793 = vrot.slane %v7712, 2
        %v7794 = vrot.slane %v7137, 2
        %v7795 = vsel %vm881, %v7793, %v7794
        %v7796 = vrot.slane %v7713, 2
        %v7797 = vrot.slane %v7138, 2
        %v7798 = vsel %vm881, %v7796, %v7797
        %v7799 = vrot.slane %v7714, 2
        %v7800 = vrot.slane %v7139, 2
        %v7801 = vsel %vm881, %v7799, %v7800
        %v7802 = vrot.slane %v7140, 2
        %v7803 = vsel %vm881, %v7794, %v7802
        %v7804 = vrot.slane %v7141, 2
        %v7805 = vsel %vm881, %v7797, %v7804
        %v7806 = vrot.slane %v7142, 2
        %v7807 = vsel %vm881, %v7800, %v7806
        %v7808 = vrot.slane %v7143, 2
        %v7809 = vsel %vm881, %v7802, %v7808
        %v7810 = vrot.slane %v7144, 2
        %v7811 = vsel %vm881, %v7804, %v7810
        %v7812 = vrot.slane %v7145, 2
        %v7813 = vsel %vm881, %v7806, %v7812
        %v7814 = vrot.slane %v7715, 2
        %v7815 = vsel %vm881, %v7808, %v7814
        %v7816 = vrot.slane %v7716, 2
        %v7817 = vsel %vm881, %v7810, %v7816
        %v7818 = vrot.slane %v7717, 2
        %v7819 = vsel %vm881, %v7812, %v7818
        %v7828 = vsel %vm509, %v7801, 0
        %v7830 = vsel %vm509, %v7807, 0
        %v7832 = vsel %vm509, %v7813, 0
        %v7834 = vsel %vm509, %v7819, 0
        %7836 = vmatprep.subr.mxu0 %v7720
        %7837 = vmatpush1.msra.mxu0 %v7719
        %7838 = vmatprep.subr.mxu0 %v7722
        %7839 = vmatpush1.msra.mxu0 %v7721
        %7840 = vmatprep.subr.mxu0 %v7724
        %7841 = vmatpush1.msra.mxu0 %v7723
        %7842 = vmatprep.subr.mxu0 %v7726
        %7843 = vmatpush1.msra.mxu0 %v7725
        %7844 = vmatprep.subr.mxu0 %v7728
        %7845 = vmatpush1.msra.mxu0 %v7727
        %7846 = vmatprep.subr.mxu0 %v7730
        %7847 = vmatpush1.msra.mxu0 %v7729
        %7848 = vmatprep.subr.mxu0 %v7732
        %7849 = vmatpush1.msra.mxu0 %v7731
        %7850 = vmatprep.subr.mxu0 %v7734
        %7851 = vmatpush1.msra.mxu0 %v7733
        %7852 = vmatprep.subr.mxu0 %v7736
        %7853 = vmatpush1.msra.mxu0 %v7735
        %7854 = vmatprep.subr.mxu0 %v7738
        %7855 = vmatpush1.msra.mxu0 %v7737
        %7856 = vmatprep.subr.mxu0 %v7740
        %7857 = vmatpush1.msra.mxu0 %v7739
        %7858 = vmatprep.subr.mxu0 %v7742
        %7859 = vmatpush1.msra.mxu0 %v7741
        %7860 = vmatprep.subr.mxu0 %v7744
        %7861 = vmatpush1.msra.mxu0 %v7743
        %7862 = vmatprep.subr.mxu0 %v7746
        %7863 = vmatpush1.msra.mxu0 %v7745
        %7864 = vmatprep.subr.mxu0 %v7748
        %7865 = vmatpush1.msra.mxu0 %v7747
        %7866 = vmatprep.subr.mxu0 %v7750
        %7867 = vmatpush1.msra.mxu0 %v7749
        %7868 = vmatprep.subr.mxu0 %v7752
        %7869 = vmatpush1.msra.mxu0 %v7751
        %7870 = vmatprep.subr.mxu0 %v7754
        %7871 = vmatpush1.msra.mxu0 %v7753
        %7872 = vmatprep.subr.mxu0 %v7756
        %7873 = vmatpush1.msra.mxu0 %v7755
        %7874 = vmatprep.subr.mxu0 %v7758
        %7875 = vmatpush1.msra.mxu0 %v7757
        %7876 = vmatprep.subr.mxu0 %v7760
        %7877 = vmatpush1.msra.mxu0 %v7759
        %7878 = vmatprep.subr.mxu0 %v7762
        %7879 = vmatpush1.msra.mxu0 %v7761
        %7880 = vmatprep.subr.mxu0 %v7764
        %7881 = vmatpush1.msra.mxu0 %v7763
        %7882 = vmatprep.subr.mxu0 %v7766
        %7883 = vmatpush1.msra.mxu0 %v7765
        %7884 = vmatprep.subr.mxu0 %v7768
        %7885 = vmatpush1.msra.mxu0 %v7767
        %7886 = vmatprep.subr.mxu0 %v7770
        %7887 = vmatpush1.msra.mxu0 %v7769
        %7888 = vmatprep.subr.mxu0 %v7772
        %7889 = vmatpush1.msra.mxu0 %v7771
        %7890 = vmatprep.subr.mxu0 %v7774
        %7891 = vmatpush1.msra.mxu0 %v7773
        %7892 = vmatprep.subr.mxu0 %v7776
        %7893 = vmatpush1.msra.mxu0 %v7775
        %7894 = vmatprep.subr.mxu0 %v7778
        %7895 = vmatpush1.msra.mxu0 %v7777
        %7896 = vmatprep.subr.mxu0 %v7780
        %7897 = vmatpush1.msra.mxu0 %v7779
        %7898 = vmatprep.subr.mxu0 %v7782
        %7899 = vmatpush1.msra.mxu0 %v7781
        %7900 = vmatprep.mubr.f32.mxu0 %v7798
        %7901 = vmatmul.mubr.f32.gmra.mrb[0].mxu0 %v7795
        %v7902 = vpop.f32.mrb[0].mxu0
        %v7903 = vadd.f32 0.0, %v7902
        %v7904 = vpop.f32.mrb[0].mxu0
        %v7905 = vadd.f32 0.0, %v7904
        %7906 = vmatprep.mubr.f32.mxu0 %v7805
        %7907 = vmatmul.mubr.f32.gmra.mrb[0].mxu0 %v7803
        %v7908 = vpop.f32.mrb[0].mxu0
        %v7909 = vadd.f32 0.0, %v7908
        %v7910 = vpop.f32.mrb[0].mxu0
        %v7911 = vadd.f32 0.0, %v7910
        %7912 = vmatprep.mubr.f32.mxu0 %v7811
        %7913 = vmatmul.mubr.f32.gmra.mrb[0].mxu0 %v7809
        %v7914 = vpop.f32.mrb[0].mxu0
        %v7915 = vadd.f32 0.0, %v7914
        %v7916 = vpop.f32.mrb[0].mxu0
        %v7917 = vadd.f32 0.0, %v7916
        %7918 = vmatprep.mubr.f32.mxu0 %v7817
        %7919 = vmatmul.mubr.f32.gmra.mrb[0].mxu0 %v7815
        %v7920 = vpop.f32.mrb[0].mxu0
        %v7921 = vadd.f32 0.0, %v7920
        %v7922 = vpop.f32.mrb[0].mxu0
        %v7923 = vadd.f32 0.0, %v7922
        %7924 = vdwg.mxu0
        %7925 = vmatprep.subr.mxu0 %v7784
        %7926 = vmatpush1.msra.mxu0 %v7783
        %7927 = vmatprep.subr.mxu0 %v7786
        %7928 = vmatpush1.msra.mxu0 %v7785
        %7929 = vmatprep.subr.mxu0 0.0
        %7930 = vmatpush1.msra.mxu0 0.0
        %7931 = vmatprep.subr.mxu0 0.0
        %7932 = vmatpush1.msra.mxu0 0.0
        %7933 = vmatprep.subr.mxu0 0.0
        %7934 = vmatpush1.msra.mxu0 0.0
        %7935 = vmatprep.subr.mxu0 0.0
        %7936 = vmatpush1.msra.mxu0 0.0
        %7937 = vmatprep.subr.mxu0 0.0
        %7938 = vmatpush1.msra.mxu0 0.0
        %7939 = vmatprep.subr.mxu0 0.0
        %7940 = vmatpush1.msra.mxu0 0.0
        %7941 = vmatprep.subr.mxu0 0.0
        %7942 = vmatpush1.msra.mxu0 0.0
        %7943 = vmatprep.subr.mxu0 0.0
        %7944 = vmatpush1.msra.mxu0 0.0
        %7945 = vmatprep.subr.mxu0 0.0
        %7946 = vmatpush1.msra.mxu0 0.0
        %7947 = vmatprep.subr.mxu0 0.0
        %7948 = vmatpush1.msra.mxu0 0.0
        %7949 = vmatprep.subr.mxu0 0.0
        %7950 = vmatpush1.msra.mxu0 0.0
        %7951 = vmatprep.subr.mxu0 0.0
        %7952 = vmatpush1.msra.mxu0 0.0
        %7953 = vmatprep.subr.mxu0 0.0
        %7954 = vmatpush1.msra.mxu0 0.0
        %7955 = vmatprep.subr.mxu0 0.0
        %7956 = vmatpush1.msra.mxu0 0.0
        %7957 = vmatprep.subr.mxu0 0.0
        %7958 = vmatpush1.msra.mxu0 0.0
        %7959 = vmatprep.subr.mxu0 0.0
        %7960 = vmatpush1.msra.mxu0 0.0
        %7961 = vmatprep.subr.mxu0 0.0
        %7962 = vmatpush1.msra.mxu0 0.0
        %7963 = vmatprep.subr.mxu0 0.0
        %7964 = vmatpush1.msra.mxu0 0.0
        %7965 = vmatprep.subr.mxu0 0.0
        %7966 = vmatpush1.msra.mxu0 0.0
        %7967 = vmatprep.subr.mxu0 0.0
        %7968 = vmatpush1.msra.mxu0 0.0
        %7969 = vmatprep.subr.mxu0 0.0
        %7970 = vmatpush1.msra.mxu0 0.0
        %7971 = vmatprep.subr.mxu0 0.0
        %7972 = vmatpush1.msra.mxu0 0.0
        %7973 = vmatprep.subr.mxu0 0.0
        %7974 = vmatpush1.msra.mxu0 0.0
        %7975 = vmatprep.subr.mxu0 0.0
        %7976 = vmatpush1.msra.mxu0 0.0
        %7977 = vmatprep.subr.mxu0 0.0
        %7978 = vmatpush1.msra.mxu0 0.0
        %7979 = vmatprep.subr.mxu0 0.0
        %7980 = vmatpush1.msra.mxu0 0.0
        %7981 = vmatprep.subr.mxu0 0.0
        %7982 = vmatpush1.msra.mxu0 0.0
        %7983 = vmatprep.subr.mxu0 0.0
        %7984 = vmatpush1.msra.mxu0 0.0
        %7985 = vmatprep.subr.mxu0 0.0
        %7986 = vmatpush1.msra.mxu0 0.0
        %7987 = vmatprep.subr.mxu0 0.0
        %7988 = vmatpush1.msra.mxu0 0.0
        %7989 = vmatprep.mubr.f32.mxu0 0.0
        %7990 = vmatmul.mubr.f32.gmra.mrb[0].mxu0 %v7828
        %v7991 = vpop.f32.mrb[0].mxu0
        %v7992 = vadd.f32 %v7903, %v7991
        %v7993 = vpop.f32.mrb[0].mxu0
        %v7994 = vadd.f32 %v7905, %v7993
        %7995 = vmatprep.mubr.f32.mxu0 0.0
        %7996 = vmatmul.mubr.f32.gmra.mrb[0].mxu0 %v7830
        %v7997 = vpop.f32.mrb[0].mxu0
        %v7998 = vadd.f32 %v7909, %v7997
        %v7999 = vpop.f32.mrb[0].mxu0
        %v8000 = vadd.f32 %v7911, %v7999
        %8001 = vmatprep.mubr.f32.mxu0 0.0
        %8002 = vmatmul.mubr.f32.gmra.mrb[0].mxu0 %v7832
        %v8003 = vpop.f32.mrb[0].mxu0
        %v8004 = vadd.f32 %v7915, %v8003
        %v8005 = vpop.f32.mrb[0].mxu0
        %v8006 = vadd.f32 %v7917, %v8005
        %8007 = vmatprep.mubr.f32.mxu0 0.0
        %8008 = vmatmul.mubr.f32.gmra.mrb[0].mxu0 %v7834
        %v8009 = vpop.f32.mrb[0].mxu0
        %v8010 = vadd.f32 %v7921, %v8009
        %v8011 = vpop.f32.mrb[0].mxu0
        %v8012 = vadd.f32 %v7923, %v8011
        %8013 = vdwg.mxu0
        %v8014 = vadd.f32 %v7690, %v7992
        %v8015 = vadd.f32 %v7692, %v7994
        %v8016 = vadd.f32 %v7696, %v7998
        %v8017 = vadd.f32 %v7698, %v8000
        %v8018 = vadd.f32 %v7702, %v8004
        %v8019 = vadd.f32 %v7704, %v8006
        %v8020 = vadd.f32 %v7708, %v8010
        %v8021 = vadd.f32 %v7710, %v8012
        %v8022 = vld [vmem:[#allocation20] sm:$0x3]
        %v8024 = vlaneseq
        %v8025 = vshrl.u32 %v8024, 7
        %v8026 = vsub.s32 0, %v8025
        %v8027 = vrot.slane %v8022, %v8026
        %v8028 = vlaneseq
        %v8029 = vshrl.u32 %v8028, 7
        %v8030 = vsub.s32 1, %v8029
        %v8031 = vrot.slane %v8022, %v8030
        %v8034 = vadd.f32 %v8014, %v8027
        %v8035 = vadd.f32 %v8015, %v8031
        %v8036 = vadd.f32 %v8016, %v8027
        %v8037 = vadd.f32 %v8017, %v8031
        %v8038 = vadd.f32 %v8018, %v8027
        %v8039 = vadd.f32 %v8019, %v8031
        %v8040 = vadd.f32 %v8020, %v8027
        %v8041 = vadd.f32 %v8021, %v8031
        %v8042 = vmax.f32 %v8034, 0.0
        %v8043 = vmax.f32 %v8035, 0.0
        %v8044 = vmax.f32 %v8036, 0.0
        %v8045 = vmax.f32 %v8037, 0.0
        %v8046 = vmax.f32 %v8038, 0.0
        %v8047 = vmax.f32 %v8039, 0.0
        %v8048 = vmax.f32 %v8040, 0.0
        %v8049 = vmax.f32 %v8041, 0.0
        %8050 = vst [vmem:[#allocation6] sm:$0xff] %v8042
        %8051 = vst [vmem:[#allocation6 + $0x8] sm:$0xff] %v8043
        %8052 = vst [vmem:[#allocation6 + $0x10] sm:$0xff] %v8044
        %8053 = vst [vmem:[#allocation6 + $0x18] sm:$0xff] %v8045
        %8054 = vst [vmem:[#allocation6 + $0x20] sm:$0xff] %v8046
        %8055 = vst [vmem:[#allocation6 + $0x28] sm:$0xff] %v8047
        %8056 = vst [vmem:[#allocation6 + $0x30] sm:$0xff] %v8048
        %8057 = vst [vmem:[#allocation6 + $0x38] sm:$0xff] %v8049
        %v8058 = vld [vmem:[#allocation6] ss:$8 sm:$0x3]
        %s8059 = scalar_lea.vmem [#allocation6], 1
        %v8060 = vld [vmem:[%s8059] ss:$8 sm:$0x3]
        %v8061 = vmax.f32 %v8058, %v8060
        %v8063 = vrot.slane %v8061, 1
        %v8065 = vmax.f32 %v8061, %v8063
        %vm8066 = vcmp.ge.s32.totalorder %v5576, 0
        %vm8067 = vcmp.lt.s32.totalorder %v5576, 128
        %vm8068 = vmand %vm8066, %vm8067
        %8069 = vst.msk [vmem:[#allocation7] sm:$0x1] %vm8068, %v8065
        %s8070 = scalar_lea.vmem [#allocation6], 2
        %v8071 = vld [vmem:[%s8070] ss:$8 sm:$0x3]
        %s8072 = scalar_lea.vmem [#allocation6], 3
        %v8073 = vld [vmem:[%s8072] ss:$8 sm:$0x3]
        %v8074 = vmax.f32 %v8071, %v8073
        %v8076 = vrot.slane %v8074, 1
        %v8078 = vmax.f32 %v8074, %v8076
        %8079 = vst.msk [vmem:[#allocation7 + $0x1] sm:$0x1] %vm8068, %v8078
        %s8080 = scalar_lea.vmem [#allocation6], 4
        %v8081 = vld [vmem:[%s8080] ss:$8 sm:$0x3]
        %s8082 = scalar_lea.vmem [#allocation6], 5
        %v8083 = vld [vmem:[%s8082] ss:$8 sm:$0x3]
        %v8084 = vmax.f32 %v8081, %v8083
        %v8086 = vrot.slane %v8084, 1
        %v8088 = vmax.f32 %v8084, %v8086
        %8089 = vst.msk [vmem:[#allocation7 + $0x2] sm:$0x1] %vm8068, %v8088
        %s8090 = scalar_lea.vmem [#allocation6], 6
        %v8091 = vld [vmem:[%s8090] ss:$8 sm:$0x3]
        %s8092 = scalar_lea.vmem [#allocation6], 7
        %v8093 = vld [vmem:[%s8092] ss:$8 sm:$0x3]
        %v8094 = vmax.f32 %v8091, %v8093
        %v8096 = vrot.slane %v8094, 1
        %v8098 = vmax.f32 %v8094, %v8096
        %8099 = vst.msk [vmem:[#allocation7 + $0x3] sm:$0x1] %vm8068, %v8098
        %s8100 = scalar_lea.vmem [#allocation6], 16
        %v8101 = vld [vmem:[%s8100] ss:$8 sm:$0x3]
        %s8102 = scalar_lea.vmem [#allocation6], 17
        %v8103 = vld [vmem:[%s8102] ss:$8 sm:$0x3]
        %v8104 = vmax.f32 %v8101, %v8103
        %v8106 = vrot.slane %v8104, 1
        %v8108 = vmax.f32 %v8104, %v8106
        %8109 = vst.msk [vmem:[#allocation7 + $0x4] sm:$0x1] %vm8068, %v8108
        %s8110 = scalar_lea.vmem [#allocation6], 18
        %v8111 = vld [vmem:[%s8110] ss:$8 sm:$0x3]
        %s8112 = scalar_lea.vmem [#allocation6], 19
        %v8113 = vld [vmem:[%s8112] ss:$8 sm:$0x3]
        %v8114 = vmax.f32 %v8111, %v8113
        %v8116 = vrot.slane %v8114, 1
        %v8118 = vmax.f32 %v8114, %v8116
        %8119 = vst.msk [vmem:[#allocation7 + $0x5] sm:$0x1] %vm8068, %v8118
        %s8120 = scalar_lea.vmem [#allocation6], 20
        %v8121 = vld [vmem:[%s8120] ss:$8 sm:$0x3]
        %s8122 = scalar_lea.vmem [#allocation6], 21
        %v8123 = vld [vmem:[%s8122] ss:$8 sm:$0x3]
        %v8124 = vmax.f32 %v8121, %v8123
        %v8126 = vrot.slane %v8124, 1
        %v8128 = vmax.f32 %v8124, %v8126
        %8129 = vst.msk [vmem:[#allocation7 + $0x6] sm:$0x1] %vm8068, %v8128
        %s8130 = scalar_lea.vmem [#allocation6], 22
        %v8131 = vld [vmem:[%s8130] ss:$8 sm:$0x3]
        %s8132 = scalar_lea.vmem [#allocation6], 23
        %v8133 = vld [vmem:[%s8132] ss:$8 sm:$0x3]
        %v8134 = vmax.f32 %v8131, %v8133
        %v8136 = vrot.slane %v8134, 1
        %v8138 = vmax.f32 %v8134, %v8136
        %8139 = vst.msk [vmem:[#allocation7 + $0x7] sm:$0x1] %vm8068, %v8138
        %s8140 = scalar_lea.vmem [#allocation6], 32
        %v8141 = vld [vmem:[%s8140] ss:$8 sm:$0x3]
        %s8142 = scalar_lea.vmem [#allocation6], 33
        %v8143 = vld [vmem:[%s8142] ss:$8 sm:$0x3]
        %v8144 = vmax.f32 %v8141, %v8143
        %v8146 = vrot.slane %v8144, 1
        %v8148 = vmax.f32 %v8144, %v8146
        %8149 = vst.msk [vmem:[#allocation7 + $0x8] sm:$0x1] %vm8068, %v8148
        %s8150 = scalar_lea.vmem [#allocation6], 34
        %v8151 = vld [vmem:[%s8150] ss:$8 sm:$0x3]
        %s8152 = scalar_lea.vmem [#allocation6], 35
        %v8153 = vld [vmem:[%s8152] ss:$8 sm:$0x3]
        %v8154 = vmax.f32 %v8151, %v8153
        %v8156 = vrot.slane %v8154, 1
        %v8158 = vmax.f32 %v8154, %v8156
        %8159 = vst.msk [vmem:[#allocation7 + $0x9] sm:$0x1] %vm8068, %v8158
        %s8160 = scalar_lea.vmem [#allocation6], 36
        %v8161 = vld [vmem:[%s8160] ss:$8 sm:$0x3]
        %s8162 = scalar_lea.vmem [#allocation6], 37
        %v8163 = vld [vmem:[%s8162] ss:$8 sm:$0x3]
        %v8164 = vmax.f32 %v8161, %v8163
        %v8166 = vrot.slane %v8164, 1
        %v8168 = vmax.f32 %v8164, %v8166
        %8169 = vst.msk [vmem:[#allocation7 + $0xa] sm:$0x1] %vm8068, %v8168
        %s8170 = scalar_lea.vmem [#allocation6], 38
        %v8171 = vld [vmem:[%s8170] ss:$8 sm:$0x3]
        %s8172 = scalar_lea.vmem [#allocation6], 39
        %v8173 = vld [vmem:[%s8172] ss:$8 sm:$0x3]
        %v8174 = vmax.f32 %v8171, %v8173
        %v8176 = vrot.slane %v8174, 1
        %v8178 = vmax.f32 %v8174, %v8176
        %8179 = vst.msk [vmem:[#allocation7 + $0xb] sm:$0x1] %vm8068, %v8178
        %s8180 = scalar_lea.vmem [#allocation6], 48
        %v8181 = vld [vmem:[%s8180] ss:$8 sm:$0x3]
        %s8182 = scalar_lea.vmem [#allocation6], 49
        %v8183 = vld [vmem:[%s8182] ss:$8 sm:$0x3]
        %v8184 = vmax.f32 %v8181, %v8183
        %v8186 = vrot.slane %v8184, 1
        %v8188 = vmax.f32 %v8184, %v8186
        %8189 = vst.msk [vmem:[#allocation7 + $0xc] sm:$0x1] %vm8068, %v8188
        %s8190 = scalar_lea.vmem [#allocation6], 50
        %v8191 = vld [vmem:[%s8190] ss:$8 sm:$0x3]
        %s8192 = scalar_lea.vmem [#allocation6], 51
        %v8193 = vld [vmem:[%s8192] ss:$8 sm:$0x3]
        %v8194 = vmax.f32 %v8191, %v8193
        %v8196 = vrot.slane %v8194, 1
        %v8198 = vmax.f32 %v8194, %v8196
        %8199 = vst.msk [vmem:[#allocation7 + $0xd] sm:$0x1] %vm8068, %v8198
        %s8200 = scalar_lea.vmem [#allocation6], 52
        %v8201 = vld [vmem:[%s8200] ss:$8 sm:$0x3]
        %s8202 = scalar_lea.vmem [#allocation6], 53
        %v8203 = vld [vmem:[%s8202] ss:$8 sm:$0x3]
        %v8204 = vmax.f32 %v8201, %v8203
        %v8206 = vrot.slane %v8204, 1
        %v8208 = vmax.f32 %v8204, %v8206
        %8209 = vst.msk [vmem:[#allocation7 + $0xe] sm:$0x1] %vm8068, %v8208
        %s8210 = scalar_lea.vmem [#allocation6], 54
        %v8211 = vld [vmem:[%s8210] ss:$8 sm:$0x3]
        %s8212 = scalar_lea.vmem [#allocation6], 55
        %v8213 = vld [vmem:[%s8212] ss:$8 sm:$0x3]
        %v8214 = vmax.f32 %v8211, %v8213
        %v8216 = vrot.slane %v8214, 1
        %v8218 = vmax.f32 %v8214, %v8216
        %8219 = vst.msk [vmem:[#allocation7 + $0xf] sm:$0x1] %vm8068, %v8218
        %v8220 = vld [vmem:[#allocation7] sm:$0xff]
        %v8221 = vld [vmem:[#allocation7 + $0x8] sm:$0xff]
        %v8222 = vld [vmem:[%s9] sm:$0xff]
        %v8223 = vld [vmem:[%s9 + $0x8] sm:$0xff]
        %v8224 = vld [vmem:[%s9 + $0x10] sm:$0xff]
        %v8225 = vld [vmem:[%s9 + $0x18] sm:$0xff]
        %v8226 = vld [vmem:[%s9 + $0x20] sm:$0xff]
        %v8227 = vld [vmem:[%s9 + $0x28] sm:$0xff]
        %v8228 = vld [vmem:[%s9 + $0x30] sm:$0xff]
        %v8229 = vld [vmem:[%s9 + $0x38] sm:$0xff]
        %v8230 = vld [vmem:[%s9 + $0x40] sm:$0xff]
        %v8231 = vld [vmem:[%s9 + $0x48] sm:$0xff]
        %v8232 = vld [vmem:[%s9 + $0x50] sm:$0xff]
        %v8233 = vld [vmem:[%s9 + $0x58] sm:$0xff]
        %v8234 = vld [vmem:[%s9 + $0x60] sm:$0xff]
        %v8235 = vld [vmem:[%s9 + $0x68] sm:$0xff]
        %v8236 = vld [vmem:[%s9 + $0x70] sm:$0xff]
        %v8237 = vld [vmem:[%s9 + $0x78] sm:$0xff]
        %v8238 = vld [vmem:[%s9 + $0x80] sm:$0xff]
        %v8239 = vld [vmem:[%s9 + $0x88] sm:$0xff]
        %v8240 = vld [vmem:[%s9 + $0x90] sm:$0xff]
        %v8241 = vld [vmem:[%s9 + $0x98] sm:$0xff]
        %v8242 = vld [vmem:[%s9 + $0xa0] sm:$0xff]
        %v8243 = vld [vmem:[%s9 + $0xa8] sm:$0xff]
        %v8244 = vld [vmem:[%s9 + $0xb0] sm:$0xff]
        %v8245 = vld [vmem:[%s9 + $0xb8] sm:$0xff]
        %v8246 = vld [vmem:[%s9 + $0xc0] sm:$0xff]
        %v8247 = vld [vmem:[%s9 + $0xc8] sm:$0xff]
        %v8248 = vld [vmem:[%s9 + $0xd0] sm:$0xff]
        %v8249 = vld [vmem:[%s9 + $0xd8] sm:$0xff]
        %v8250 = vld [vmem:[%s9 + $0xe0] sm:$0xff]
        %v8251 = vld [vmem:[%s9 + $0xe8] sm:$0xff]
        %v8252 = vld [vmem:[%s9 + $0xf0] sm:$0xff]
        %v8253 = vld [vmem:[%s9 + $0xf8] sm:$0xff]
        %v8254 = vld [vmem:[%s9 + $0x100] sm:$0xff]
        %v8255 = vld [vmem:[%s9 + $0x108] sm:$0xff]
        %v8256 = vld [vmem:[%s9 + $0x110] sm:$0xff]
        %v8257 = vld [vmem:[%s9 + $0x118] sm:$0xff]
        %v8258 = vld [vmem:[%s9 + $0x120] sm:$0xff]
        %v8259 = vld [vmem:[%s9 + $0x128] sm:$0xff]
        %v8260 = vld [vmem:[%s9 + $0x130] sm:$0xff]
        %v8261 = vld [vmem:[%s9 + $0x138] sm:$0xff]
        %v8262 = vld [vmem:[%s9 + $0x140] sm:$0xff]
        %v8263 = vld [vmem:[%s9 + $0x148] sm:$0xff]
        %v8264 = vld [vmem:[%s9 + $0x150] sm:$0xff]
        %v8265 = vld [vmem:[%s9 + $0x158] sm:$0xff]
        %v8266 = vld [vmem:[%s9 + $0x160] sm:$0xff]
        %v8267 = vld [vmem:[%s9 + $0x168] sm:$0xff]
        %v8268 = vld [vmem:[%s9 + $0x170] sm:$0xff]
        %v8269 = vld [vmem:[%s9 + $0x178] sm:$0xff]
        %v8270 = vld [vmem:[%s9 + $0x180] sm:$0xff]
        %v8271 = vld [vmem:[%s9 + $0x188] sm:$0xff]
        %v8272 = vld [vmem:[%s9 + $0x190] sm:$0xff]
        %v8273 = vld [vmem:[%s9 + $0x198] sm:$0xff]
        %v8274 = vld [vmem:[%s9 + $0x1a0] sm:$0xff]
        %v8275 = vld [vmem:[%s9 + $0x1a8] sm:$0xff]
        %v8276 = vld [vmem:[%s9 + $0x1b0] sm:$0xff]
        %v8277 = vld [vmem:[%s9 + $0x1b8] sm:$0xff]
        %v8278 = vld [vmem:[%s9 + $0x1c0] sm:$0xff]
        %v8279 = vld [vmem:[%s9 + $0x1c8] sm:$0xff]
        %v8280 = vld [vmem:[%s9 + $0x1d0] sm:$0xff]
        %v8281 = vld [vmem:[%s9 + $0x1d8] sm:$0xff]
        %v8282 = vld [vmem:[%s9 + $0x1e0] sm:$0xff]
        %v8283 = vld [vmem:[%s9 + $0x1e8] sm:$0xff]
        %v8284 = vld [vmem:[%s9 + $0x1f0] sm:$0xff]
        %v8285 = vld [vmem:[%s9 + $0x1f8] sm:$0xff]
        %v8286 = vld [vmem:[%s9 + $0x200] sm:$0xff]
        %v8287 = vld [vmem:[%s9 + $0x208] sm:$0xff]
        %v8288 = vld [vmem:[%s9 + $0x210] sm:$0xff]
        %v8289 = vld [vmem:[%s9 + $0x218] sm:$0xff]
        %v8290 = vld [vmem:[%s9 + $0x220] sm:$0xff]
        %v8291 = vld [vmem:[%s9 + $0x228] sm:$0xff]
        %v8292 = vld [vmem:[%s9 + $0x230] sm:$0xff]
        %v8293 = vld [vmem:[%s9 + $0x238] sm:$0xff]
        %v8294 = vld [vmem:[%s9 + $0x240] sm:$0xff]
        %v8295 = vld [vmem:[%s9 + $0x248] sm:$0xff]
        %v8296 = vld [vmem:[%s9 + $0x250] sm:$0xff]
        %v8297 = vld [vmem:[%s9 + $0x258] sm:$0xff]
        %v8298 = vld [vmem:[%s9 + $0x260] sm:$0xff]
        %v8299 = vld [vmem:[%s9 + $0x268] sm:$0xff]
        %v8300 = vld [vmem:[%s9 + $0x270] sm:$0xff]
        %v8301 = vld [vmem:[%s9 + $0x278] sm:$0xff]
        %v8302 = vld [vmem:[%s9 + $0x280] sm:$0xff]
        %v8303 = vld [vmem:[%s9 + $0x288] sm:$0xff]
        %v8304 = vld [vmem:[%s9 + $0x290] sm:$0xff]
        %v8305 = vld [vmem:[%s9 + $0x298] sm:$0xff]
        %v8306 = vld [vmem:[%s9 + $0x2a0] sm:$0xff]
        %v8307 = vld [vmem:[%s9 + $0x2a8] sm:$0xff]
        %v8308 = vld [vmem:[%s9 + $0x2b0] sm:$0xff]
        %v8309 = vld [vmem:[%s9 + $0x2b8] sm:$0xff]
        %v8310 = vld [vmem:[%s9 + $0x2c0] sm:$0xff]
        %v8311 = vld [vmem:[%s9 + $0x2c8] sm:$0xff]
        %v8312 = vld [vmem:[%s9 + $0x2d0] sm:$0xff]
        %v8313 = vld [vmem:[%s9 + $0x2d8] sm:$0xff]
        %v8314 = vld [vmem:[%s9 + $0x2e0] sm:$0xff]
        %v8315 = vld [vmem:[%s9 + $0x2e8] sm:$0xff]
        %v8316 = vld [vmem:[%s9 + $0x2f0] sm:$0xff]
        %v8317 = vld [vmem:[%s9 + $0x2f8] sm:$0xff]
        %v8318 = vld [vmem:[%s9 + $0x300] sm:$0xff]
        %v8319 = vld [vmem:[%s9 + $0x308] sm:$0xff]
        %v8320 = vld [vmem:[%s9 + $0x310] sm:$0xff]
        %v8321 = vld [vmem:[%s9 + $0x318] sm:$0xff]
        %v8322 = vld [vmem:[%s9 + $0x320] sm:$0xff]
        %v8323 = vld [vmem:[%s9 + $0x328] sm:$0xff]
        %v8324 = vld [vmem:[%s9 + $0x330] sm:$0xff]
        %v8325 = vld [vmem:[%s9 + $0x338] sm:$0xff]
        %v8326 = vld [vmem:[%s9 + $0x340] sm:$0xff]
        %v8327 = vld [vmem:[%s9 + $0x348] sm:$0xff]
        %v8328 = vld [vmem:[%s9 + $0x350] sm:$0xff]
        %v8329 = vld [vmem:[%s9 + $0x358] sm:$0xff]
        %v8330 = vld [vmem:[%s9 + $0x360] sm:$0xff]
        %v8331 = vld [vmem:[%s9 + $0x368] sm:$0xff]
        %v8332 = vld [vmem:[%s9 + $0x370] sm:$0xff]
        %v8333 = vld [vmem:[%s9 + $0x378] sm:$0xff]
        %v8334 = vld [vmem:[%s9 + $0x380] sm:$0xff]
        %v8335 = vld [vmem:[%s9 + $0x388] sm:$0xff]
        %v8336 = vld [vmem:[%s9 + $0x390] sm:$0xff]
        %v8337 = vld [vmem:[%s9 + $0x398] sm:$0xff]
        %v8338 = vld [vmem:[%s9 + $0x3a0] sm:$0xff]
        %v8339 = vld [vmem:[%s9 + $0x3a8] sm:$0xff]
        %v8340 = vld [vmem:[%s9 + $0x3b0] sm:$0xff]
        %v8341 = vld [vmem:[%s9 + $0x3b8] sm:$0xff]
        %v8342 = vld [vmem:[%s9 + $0x3c0] sm:$0xff]
        %v8343 = vld [vmem:[%s9 + $0x3c8] sm:$0xff]
        %v8344 = vld [vmem:[%s9 + $0x3d0] sm:$0xff]
        %v8345 = vld [vmem:[%s9 + $0x3d8] sm:$0xff]
        %v8346 = vld [vmem:[%s9 + $0x3e0] sm:$0xff]
        %v8347 = vld [vmem:[%s9 + $0x3e8] sm:$0xff]
        %v8348 = vld [vmem:[%s9 + $0x3f0] sm:$0xff]
        %v8349 = vld [vmem:[%s9 + $0x3f8] sm:$0xff]
        %v8350 = vld [vmem:[%s9 + $0x400] sm:$0xff]
        %v8351 = vld [vmem:[%s9 + $0x408] sm:$0xff]
        %v8352 = vld [vmem:[%s9 + $0x410] sm:$0xff]
        %v8353 = vld [vmem:[%s9 + $0x418] sm:$0xff]
        %v8354 = vld [vmem:[%s9 + $0x420] sm:$0xff]
        %v8355 = vld [vmem:[%s9 + $0x428] sm:$0xff]
        %v8356 = vld [vmem:[%s9 + $0x430] sm:$0xff]
        %v8357 = vld [vmem:[%s9 + $0x438] sm:$0xff]
        %v8358 = vld [vmem:[%s9 + $0x440] sm:$0xff]
        %v8359 = vld [vmem:[%s9 + $0x448] sm:$0xff]
        %v8360 = vld [vmem:[%s9 + $0x450] sm:$0xff]
        %v8361 = vld [vmem:[%s9 + $0x458] sm:$0xff]
        %v8362 = vld [vmem:[%s9 + $0x460] sm:$0xff]
        %v8363 = vld [vmem:[%s9 + $0x468] sm:$0xff]
        %v8364 = vld [vmem:[%s9 + $0x470] sm:$0xff]
        %v8365 = vld [vmem:[%s9 + $0x478] sm:$0xff]
        %v8366 = vld [vmem:[%s9 + $0x480] sm:$0xff]
        %v8367 = vld [vmem:[%s9 + $0x488] sm:$0xff]
        %v8368 = vld [vmem:[%s9 + $0x490] sm:$0xff]
        %v8369 = vld [vmem:[%s9 + $0x498] sm:$0xff]
        %v8370 = vld [vmem:[%s9 + $0x4a0] sm:$0xff]
        %v8371 = vld [vmem:[%s9 + $0x4a8] sm:$0xff]
        %v8372 = vld [vmem:[%s9 + $0x4b0] sm:$0xff]
        %v8373 = vld [vmem:[%s9 + $0x4b8] sm:$0xff]
        %v8374 = vld [vmem:[%s9 + $0x4c0] sm:$0xff]
        %v8375 = vld [vmem:[%s9 + $0x4c8] sm:$0xff]
        %v8376 = vld [vmem:[%s9 + $0x4d0] sm:$0xff]
        %v8377 = vld [vmem:[%s9 + $0x4d8] sm:$0xff]
        %v8378 = vld [vmem:[%s9 + $0x4e0] sm:$0xff]
        %v8379 = vld [vmem:[%s9 + $0x4e8] sm:$0xff]
        %v8380 = vld [vmem:[%s9 + $0x4f0] sm:$0xff]
        %v8381 = vld [vmem:[%s9 + $0x4f8] sm:$0xff]
        %v8382 = vld [vmem:[%s9 + $0x500] sm:$0xff]
        %v8383 = vld [vmem:[%s9 + $0x508] sm:$0xff]
        %v8384 = vld [vmem:[%s9 + $0x510] sm:$0xff]
        %v8385 = vld [vmem:[%s9 + $0x518] sm:$0xff]
        %v8386 = vld [vmem:[%s9 + $0x520] sm:$0xff]
        %v8387 = vld [vmem:[%s9 + $0x528] sm:$0xff]
        %v8388 = vld [vmem:[%s9 + $0x530] sm:$0xff]
        %v8389 = vld [vmem:[%s9 + $0x538] sm:$0xff]
        %v8390 = vld [vmem:[%s9 + $0x540] sm:$0xff]
        %v8391 = vld [vmem:[%s9 + $0x548] sm:$0xff]
        %v8392 = vld [vmem:[%s9 + $0x550] sm:$0xff]
        %v8393 = vld [vmem:[%s9 + $0x558] sm:$0xff]
        %v8394 = vld [vmem:[%s9 + $0x560] sm:$0xff]
        %v8395 = vld [vmem:[%s9 + $0x568] sm:$0xff]
        %v8396 = vld [vmem:[%s9 + $0x570] sm:$0xff]
        %v8397 = vld [vmem:[%s9 + $0x578] sm:$0xff]
        %v8398 = vld [vmem:[%s9 + $0x580] sm:$0xff]
        %v8399 = vld [vmem:[%s9 + $0x588] sm:$0xff]
        %v8400 = vld [vmem:[%s9 + $0x590] sm:$0xff]
        %v8401 = vld [vmem:[%s9 + $0x598] sm:$0xff]
        %v8402 = vld [vmem:[%s9 + $0x5a0] sm:$0xff]
        %v8403 = vld [vmem:[%s9 + $0x5a8] sm:$0xff]
        %v8404 = vld [vmem:[%s9 + $0x5b0] sm:$0xff]
        %v8405 = vld [vmem:[%s9 + $0x5b8] sm:$0xff]
        %v8406 = vld [vmem:[%s9 + $0x5c0] sm:$0xff]
        %v8407 = vld [vmem:[%s9 + $0x5c8] sm:$0xff]
        %v8408 = vld [vmem:[%s9 + $0x5d0] sm:$0xff]
        %v8409 = vld [vmem:[%s9 + $0x5d8] sm:$0xff]
        %v8410 = vld [vmem:[%s9 + $0x5e0] sm:$0xff]
        %v8411 = vld [vmem:[%s9 + $0x5e8] sm:$0xff]
        %v8412 = vld [vmem:[%s9 + $0x5f0] sm:$0xff]
        %v8413 = vld [vmem:[%s9 + $0x5f8] sm:$0xff]
        %v8414 = vld [vmem:[%s9 + $0x600] sm:$0xff]
        %v8415 = vld [vmem:[%s9 + $0x608] sm:$0xff]
        %v8416 = vld [vmem:[%s9 + $0x610] sm:$0xff]
        %v8417 = vld [vmem:[%s9 + $0x618] sm:$0xff]
        %v8418 = vld [vmem:[%s9 + $0x620] sm:$0xff]
        %v8419 = vld [vmem:[%s9 + $0x628] sm:$0xff]
        %v8420 = vld [vmem:[%s9 + $0x630] sm:$0xff]
        %v8421 = vld [vmem:[%s9 + $0x638] sm:$0xff]
        %v8422 = vld [vmem:[%s9 + $0x640] sm:$0xff]
        %v8423 = vld [vmem:[%s9 + $0x648] sm:$0xff]
        %v8424 = vld [vmem:[%s9 + $0x650] sm:$0xff]
        %v8425 = vld [vmem:[%s9 + $0x658] sm:$0xff]
        %v8426 = vld [vmem:[%s9 + $0x660] sm:$0xff]
        %v8427 = vld [vmem:[%s9 + $0x668] sm:$0xff]
        %v8428 = vld [vmem:[%s9 + $0x670] sm:$0xff]
        %v8429 = vld [vmem:[%s9 + $0x678] sm:$0xff]
        %v8430 = vld [vmem:[%s9 + $0x680] sm:$0xff]
        %v8431 = vld [vmem:[%s9 + $0x688] sm:$0xff]
        %v8432 = vld [vmem:[%s9 + $0x690] sm:$0xff]
        %v8433 = vld [vmem:[%s9 + $0x698] sm:$0xff]
        %v8434 = vld [vmem:[%s9 + $0x6a0] sm:$0xff]
        %v8435 = vld [vmem:[%s9 + $0x6a8] sm:$0xff]
        %v8436 = vld [vmem:[%s9 + $0x6b0] sm:$0xff]
        %v8437 = vld [vmem:[%s9 + $0x6b8] sm:$0xff]
        %v8438 = vld [vmem:[%s9 + $0x6c0] sm:$0xff]
        %v8439 = vld [vmem:[%s9 + $0x6c8] sm:$0xff]
        %v8440 = vld [vmem:[%s9 + $0x6d0] sm:$0xff]
        %v8441 = vld [vmem:[%s9 + $0x6d8] sm:$0xff]
        %v8442 = vld [vmem:[%s9 + $0x6e0] sm:$0xff]
        %v8443 = vld [vmem:[%s9 + $0x6e8] sm:$0xff]
        %v8444 = vld [vmem:[%s9 + $0x6f0] sm:$0xff]
        %v8445 = vld [vmem:[%s9 + $0x6f8] sm:$0xff]
        %v8446 = vld [vmem:[%s9 + $0x700] sm:$0xff]
        %v8447 = vld [vmem:[%s9 + $0x708] sm:$0xff]
        %v8448 = vld [vmem:[%s9 + $0x710] sm:$0xff]
        %v8449 = vld [vmem:[%s9 + $0x718] sm:$0xff]
        %v8450 = vld [vmem:[%s9 + $0x720] sm:$0xff]
        %v8451 = vld [vmem:[%s9 + $0x728] sm:$0xff]
        %v8452 = vld [vmem:[%s9 + $0x730] sm:$0xff]
        %v8453 = vld [vmem:[%s9 + $0x738] sm:$0xff]
        %v8454 = vld [vmem:[%s9 + $0x740] sm:$0xff]
        %v8455 = vld [vmem:[%s9 + $0x748] sm:$0xff]
        %v8456 = vld [vmem:[%s9 + $0x750] sm:$0xff]
        %v8457 = vld [vmem:[%s9 + $0x758] sm:$0xff]
        %v8458 = vld [vmem:[%s9 + $0x760] sm:$0xff]
        %v8459 = vld [vmem:[%s9 + $0x768] sm:$0xff]
        %v8460 = vld [vmem:[%s9 + $0x770] sm:$0xff]
        %v8461 = vld [vmem:[%s9 + $0x778] sm:$0xff]
        %v8462 = vld [vmem:[%s9 + $0x780] sm:$0xff]
        %v8463 = vld [vmem:[%s9 + $0x788] sm:$0xff]
        %v8464 = vld [vmem:[%s9 + $0x790] sm:$0xff]
        %v8465 = vld [vmem:[%s9 + $0x798] sm:$0xff]
        %v8466 = vld [vmem:[%s9 + $0x7a0] sm:$0xff]
        %v8467 = vld [vmem:[%s9 + $0x7a8] sm:$0xff]
        %v8468 = vld [vmem:[%s9 + $0x7b0] sm:$0xff]
        %v8469 = vld [vmem:[%s9 + $0x7b8] sm:$0xff]
        %v8470 = vld [vmem:[%s9 + $0x7c0] sm:$0xff]
        %v8471 = vld [vmem:[%s9 + $0x7c8] sm:$0xff]
        %v8472 = vld [vmem:[%s9 + $0x7d0] sm:$0xff]
        %v8473 = vld [vmem:[%s9 + $0x7d8] sm:$0xff]
        %v8474 = vld [vmem:[%s9 + $0x7e0] sm:$0xff]
        %v8475 = vld [vmem:[%s9 + $0x7e8] sm:$0xff]
        %v8476 = vld [vmem:[%s9 + $0x7f0] sm:$0xff]
        %v8477 = vld [vmem:[%s9 + $0x7f8] sm:$0xff]
        %v8478 = vld [vmem:[#allocation22] sm:$0x1]
        %v8481 = vlaneseq
        %v8482 = vshrl.u32 %v8481, 7
        %v8483 = vsub.s32 0, %v8482
        %v8484 = vrot.slane %v8220, %v8483
        %v8485 = vlaneseq
        %v8486 = vshrl.u32 %v8485, 7
        %v8487 = vsub.s32 1, %v8486
        %v8488 = vrot.slane %v8220, %v8487
        %v8489 = vlaneseq
        %v8490 = vshrl.u32 %v8489, 7
        %v8491 = vsub.s32 2, %v8490
        %v8492 = vrot.slane %v8220, %v8491
        %v8493 = vlaneseq
        %v8494 = vshrl.u32 %v8493, 7
        %v8495 = vsub.s32 3, %v8494
        %v8496 = vrot.slane %v8220, %v8495
        %v8497 = vlaneseq
        %v8498 = vshrl.u32 %v8497, 7
        %v8499 = vsub.s32 4, %v8498
        %v8500 = vrot.slane %v8220, %v8499
        %v8501 = vlaneseq
        %v8502 = vshrl.u32 %v8501, 7
        %v8503 = vsub.s32 5, %v8502
        %v8504 = vrot.slane %v8220, %v8503
        %v8505 = vlaneseq
        %v8506 = vshrl.u32 %v8505, 7
        %v8507 = vsub.s32 6, %v8506
        %v8508 = vrot.slane %v8220, %v8507
        %v8509 = vlaneseq
        %v8510 = vshrl.u32 %v8509, 7
        %v8511 = vsub.s32 7, %v8510
        %v8512 = vrot.slane %v8220, %v8511
        %v8513 = vlaneseq
        %v8514 = vshrl.u32 %v8513, 7
        %v8515 = vsub.s32 0, %v8514
        %v8516 = vrot.slane %v8221, %v8515
        %v8517 = vlaneseq
        %v8518 = vshrl.u32 %v8517, 7
        %v8519 = vsub.s32 1, %v8518
        %v8520 = vrot.slane %v8221, %v8519
        %v8521 = vlaneseq
        %v8522 = vshrl.u32 %v8521, 7
        %v8523 = vsub.s32 2, %v8522
        %v8524 = vrot.slane %v8221, %v8523
        %v8525 = vlaneseq
        %v8526 = vshrl.u32 %v8525, 7
        %v8527 = vsub.s32 3, %v8526
        %v8528 = vrot.slane %v8221, %v8527
        %v8529 = vlaneseq
        %v8530 = vshrl.u32 %v8529, 7
        %v8531 = vsub.s32 4, %v8530
        %v8532 = vrot.slane %v8221, %v8531
        %v8533 = vlaneseq
        %v8534 = vshrl.u32 %v8533, 7
        %v8535 = vsub.s32 5, %v8534
        %v8536 = vrot.slane %v8221, %v8535
        %v8537 = vlaneseq
        %v8538 = vshrl.u32 %v8537, 7
        %v8539 = vsub.s32 6, %v8538
        %v8540 = vrot.slane %v8221, %v8539
        %v8541 = vlaneseq
        %v8542 = vshrl.u32 %v8541, 7
        %v8543 = vsub.s32 7, %v8542
        %v8544 = vrot.slane %v8221, %v8543
        %8561 = vmatprep.subr.mxu0 0.0
        %8562 = vmatpush1.msra.mxu0 %v8222
        %8563 = vmatprep.subr.mxu0 0.0
        %8564 = vmatpush1.msra.mxu0 %v8223
        %8565 = vmatprep.subr.mxu0 0.0
        %8566 = vmatpush1.msra.mxu0 %v8224
        %8567 = vmatprep.subr.mxu0 0.0
        %8568 = vmatpush1.msra.mxu0 %v8225
        %8569 = vmatprep.subr.mxu0 0.0
        %8570 = vmatpush1.msra.mxu0 %v8226
        %8571 = vmatprep.subr.mxu0 0.0
        %8572 = vmatpush1.msra.mxu0 %v8227
        %8573 = vmatprep.subr.mxu0 0.0
        %8574 = vmatpush1.msra.mxu0 %v8228
        %8575 = vmatprep.subr.mxu0 0.0
        %8576 = vmatpush1.msra.mxu0 %v8229
        %8577 = vmatprep.subr.mxu0 0.0
        %8578 = vmatpush1.msra.mxu0 %v8230
        %8579 = vmatprep.subr.mxu0 0.0
        %8580 = vmatpush1.msra.mxu0 %v8231
        %8581 = vmatprep.subr.mxu0 0.0
        %8582 = vmatpush1.msra.mxu0 %v8232
        %8583 = vmatprep.subr.mxu0 0.0
        %8584 = vmatpush1.msra.mxu0 %v8233
        %8585 = vmatprep.subr.mxu0 0.0
        %8586 = vmatpush1.msra.mxu0 %v8234
        %8587 = vmatprep.subr.mxu0 0.0
        %8588 = vmatpush1.msra.mxu0 %v8235
        %8589 = vmatprep.subr.mxu0 0.0
        %8590 = vmatpush1.msra.mxu0 %v8236
        %8591 = vmatprep.subr.mxu0 0.0
        %8592 = vmatpush1.msra.mxu0 %v8237
        %8593 = vmatprep.subr.mxu0 0.0
        %8594 = vmatpush1.msra.mxu0 %v8238
        %8595 = vmatprep.subr.mxu0 0.0
        %8596 = vmatpush1.msra.mxu0 %v8239
        %8597 = vmatprep.subr.mxu0 0.0
        %8598 = vmatpush1.msra.mxu0 %v8240
        %8599 = vmatprep.subr.mxu0 0.0
        %8600 = vmatpush1.msra.mxu0 %v8241
        %8601 = vmatprep.subr.mxu0 0.0
        %8602 = vmatpush1.msra.mxu0 %v8242
        %8603 = vmatprep.subr.mxu0 0.0
        %8604 = vmatpush1.msra.mxu0 %v8243
        %8605 = vmatprep.subr.mxu0 0.0
        %8606 = vmatpush1.msra.mxu0 %v8244
        %8607 = vmatprep.subr.mxu0 0.0
        %8608 = vmatpush1.msra.mxu0 %v8245
        %8609 = vmatprep.subr.mxu0 0.0
        %8610 = vmatpush1.msra.mxu0 %v8246
        %8611 = vmatprep.subr.mxu0 0.0
        %8612 = vmatpush1.msra.mxu0 %v8247
        %8613 = vmatprep.subr.mxu0 0.0
        %8614 = vmatpush1.msra.mxu0 %v8248
        %8615 = vmatprep.subr.mxu0 0.0
        %8616 = vmatpush1.msra.mxu0 %v8249
        %8617 = vmatprep.subr.mxu0 0.0
        %8618 = vmatpush1.msra.mxu0 %v8250
        %8619 = vmatprep.subr.mxu0 0.0
        %8620 = vmatpush1.msra.mxu0 %v8251
        %8621 = vmatprep.subr.mxu0 0.0
        %8622 = vmatpush1.msra.mxu0 %v8252
        %8623 = vmatprep.subr.mxu0 0.0
        %8624 = vmatpush1.msra.mxu0 %v8253
        %8625 = vmatprep.mubr.f32.mxu0 %v8488
        %8626 = vmatmul.mubr.f32.gmra.mrb[0].mxu0 %v8484
        %v8627 = vpop.f32.mrb[0].mxu0
        %v8628 = vadd.f32 %v8478, %v8627
        %v8629 = vpop.f32.mrb[0].mxu0
        %8630 = vdwg.mxu0
        %8631 = vmatprep.subr.mxu0 0.0
        %8632 = vmatpush1.msra.mxu0 %v8254
        %8633 = vmatprep.subr.mxu0 0.0
        %8634 = vmatpush1.msra.mxu0 %v8255
        %8635 = vmatprep.subr.mxu0 0.0
        %8636 = vmatpush1.msra.mxu0 %v8256
        %8637 = vmatprep.subr.mxu0 0.0
        %8638 = vmatpush1.msra.mxu0 %v8257
        %8639 = vmatprep.subr.mxu0 0.0
        %8640 = vmatpush1.msra.mxu0 %v8258
        %8641 = vmatprep.subr.mxu0 0.0
        %8642 = vmatpush1.msra.mxu0 %v8259
        %8643 = vmatprep.subr.mxu0 0.0
        %8644 = vmatpush1.msra.mxu0 %v8260
        %8645 = vmatprep.subr.mxu0 0.0
        %8646 = vmatpush1.msra.mxu0 %v8261
        %8647 = vmatprep.subr.mxu0 0.0
        %8648 = vmatpush1.msra.mxu0 %v8262
        %8649 = vmatprep.subr.mxu0 0.0
        %8650 = vmatpush1.msra.mxu0 %v8263
        %8651 = vmatprep.subr.mxu0 0.0
        %8652 = vmatpush1.msra.mxu0 %v8264
        %8653 = vmatprep.subr.mxu0 0.0
        %8654 = vmatpush1.msra.mxu0 %v8265
        %8655 = vmatprep.subr.mxu0 0.0
        %8656 = vmatpush1.msra.mxu0 %v8266
        %8657 = vmatprep.subr.mxu0 0.0
        %8658 = vmatpush1.msra.mxu0 %v8267
        %8659 = vmatprep.subr.mxu0 0.0
        %8660 = vmatpush1.msra.mxu0 %v8268
        %8661 = vmatprep.subr.mxu0 0.0
        %8662 = vmatpush1.msra.mxu0 %v8269
        %8663 = vmatprep.subr.mxu0 0.0
        %8664 = vmatpush1.msra.mxu0 %v8270
        %8665 = vmatprep.subr.mxu0 0.0
        %8666 = vmatpush1.msra.mxu0 %v8271
        %8667 = vmatprep.subr.mxu0 0.0
        %8668 = vmatpush1.msra.mxu0 %v8272
        %8669 = vmatprep.subr.mxu0 0.0
        %8670 = vmatpush1.msra.mxu0 %v8273
        %8671 = vmatprep.subr.mxu0 0.0
        %8672 = vmatpush1.msra.mxu0 %v8274
        %8673 = vmatprep.subr.mxu0 0.0
        %8674 = vmatpush1.msra.mxu0 %v8275
        %8675 = vmatprep.subr.mxu0 0.0
        %8676 = vmatpush1.msra.mxu0 %v8276
        %8677 = vmatprep.subr.mxu0 0.0
        %8678 = vmatpush1.msra.mxu0 %v8277
        %8679 = vmatprep.subr.mxu0 0.0
        %8680 = vmatpush1.msra.mxu0 %v8278
        %8681 = vmatprep.subr.mxu0 0.0
        %8682 = vmatpush1.msra.mxu0 %v8279
        %8683 = vmatprep.subr.mxu0 0.0
        %8684 = vmatpush1.msra.mxu0 %v8280
        %8685 = vmatprep.subr.mxu0 0.0
        %8686 = vmatpush1.msra.mxu0 %v8281
        %8687 = vmatprep.subr.mxu0 0.0
        %8688 = vmatpush1.msra.mxu0 %v8282
        %8689 = vmatprep.subr.mxu0 0.0
        %8690 = vmatpush1.msra.mxu0 %v8283
        %8691 = vmatprep.subr.mxu0 0.0
        %8692 = vmatpush1.msra.mxu0 %v8284
        %8693 = vmatprep.subr.mxu0 0.0
        %8694 = vmatpush1.msra.mxu0 %v8285
        %8695 = vmatprep.mubr.f32.mxu0 %v8496
        %8696 = vmatmul.mubr.f32.gmra.mrb[0].mxu0 %v8492
        %v8697 = vpop.f32.mrb[0].mxu0
        %v8698 = vadd.f32 %v8628, %v8697
        %v8699 = vpop.f32.mrb[0].mxu0
        %8700 = vdwg.mxu0
        %8701 = vmatprep.subr.mxu0 0.0
        %8702 = vmatpush1.msra.mxu0 %v8286
        %8703 = vmatprep.subr.mxu0 0.0
        %8704 = vmatpush1.msra.mxu0 %v8287
        %8705 = vmatprep.subr.mxu0 0.0
        %8706 = vmatpush1.msra.mxu0 %v8288
        %8707 = vmatprep.subr.mxu0 0.0
        %8708 = vmatpush1.msra.mxu0 %v8289
        %8709 = vmatprep.subr.mxu0 0.0
        %8710 = vmatpush1.msra.mxu0 %v8290
        %8711 = vmatprep.subr.mxu0 0.0
        %8712 = vmatpush1.msra.mxu0 %v8291
        %8713 = vmatprep.subr.mxu0 0.0
        %8714 = vmatpush1.msra.mxu0 %v8292
        %8715 = vmatprep.subr.mxu0 0.0
        %8716 = vmatpush1.msra.mxu0 %v8293
        %8717 = vmatprep.subr.mxu0 0.0
        %8718 = vmatpush1.msra.mxu0 %v8294
        %8719 = vmatprep.subr.mxu0 0.0
        %8720 = vmatpush1.msra.mxu0 %v8295
        %8721 = vmatprep.subr.mxu0 0.0
        %8722 = vmatpush1.msra.mxu0 %v8296
        %8723 = vmatprep.subr.mxu0 0.0
        %8724 = vmatpush1.msra.mxu0 %v8297
        %8725 = vmatprep.subr.mxu0 0.0
        %8726 = vmatpush1.msra.mxu0 %v8298
        %8727 = vmatprep.subr.mxu0 0.0
        %8728 = vmatpush1.msra.mxu0 %v8299
        %8729 = vmatprep.subr.mxu0 0.0
        %8730 = vmatpush1.msra.mxu0 %v8300
        %8731 = vmatprep.subr.mxu0 0.0
        %8732 = vmatpush1.msra.mxu0 %v8301
        %8733 = vmatprep.subr.mxu0 0.0
        %8734 = vmatpush1.msra.mxu0 %v8302
        %8735 = vmatprep.subr.mxu0 0.0
        %8736 = vmatpush1.msra.mxu0 %v8303
        %8737 = vmatprep.subr.mxu0 0.0
        %8738 = vmatpush1.msra.mxu0 %v8304
        %8739 = vmatprep.subr.mxu0 0.0
        %8740 = vmatpush1.msra.mxu0 %v8305
        %8741 = vmatprep.subr.mxu0 0.0
        %8742 = vmatpush1.msra.mxu0 %v8306
        %8743 = vmatprep.subr.mxu0 0.0
        %8744 = vmatpush1.msra.mxu0 %v8307
        %8745 = vmatprep.subr.mxu0 0.0
        %8746 = vmatpush1.msra.mxu0 %v8308
        %8747 = vmatprep.subr.mxu0 0.0
        %8748 = vmatpush1.msra.mxu0 %v8309
        %8749 = vmatprep.subr.mxu0 0.0
        %8750 = vmatpush1.msra.mxu0 %v8310
        %8751 = vmatprep.subr.mxu0 0.0
        %8752 = vmatpush1.msra.mxu0 %v8311
        %8753 = vmatprep.subr.mxu0 0.0
        %8754 = vmatpush1.msra.mxu0 %v8312
        %8755 = vmatprep.subr.mxu0 0.0
        %8756 = vmatpush1.msra.mxu0 %v8313
        %8757 = vmatprep.subr.mxu0 0.0
        %8758 = vmatpush1.msra.mxu0 %v8314
        %8759 = vmatprep.subr.mxu0 0.0
        %8760 = vmatpush1.msra.mxu0 %v8315
        %8761 = vmatprep.subr.mxu0 0.0
        %8762 = vmatpush1.msra.mxu0 %v8316
        %8763 = vmatprep.subr.mxu0 0.0
        %8764 = vmatpush1.msra.mxu0 %v8317
        %8765 = vmatprep.mubr.f32.mxu0 %v8504
        %8766 = vmatmul.mubr.f32.gmra.mrb[0].mxu0 %v8500
        %v8767 = vpop.f32.mrb[0].mxu0
        %v8768 = vadd.f32 %v8698, %v8767
        %v8769 = vpop.f32.mrb[0].mxu0
        %8770 = vdwg.mxu0
        %8771 = vmatprep.subr.mxu0 0.0
        %8772 = vmatpush1.msra.mxu0 %v8318
        %8773 = vmatprep.subr.mxu0 0.0
        %8774 = vmatpush1.msra.mxu0 %v8319
        %8775 = vmatprep.subr.mxu0 0.0
        %8776 = vmatpush1.msra.mxu0 %v8320
        %8777 = vmatprep.subr.mxu0 0.0
        %8778 = vmatpush1.msra.mxu0 %v8321
        %8779 = vmatprep.subr.mxu0 0.0
        %8780 = vmatpush1.msra.mxu0 %v8322
        %8781 = vmatprep.subr.mxu0 0.0
        %8782 = vmatpush1.msra.mxu0 %v8323
        %8783 = vmatprep.subr.mxu0 0.0
        %8784 = vmatpush1.msra.mxu0 %v8324
        %8785 = vmatprep.subr.mxu0 0.0
        %8786 = vmatpush1.msra.mxu0 %v8325
        %8787 = vmatprep.subr.mxu0 0.0
        %8788 = vmatpush1.msra.mxu0 %v8326
        %8789 = vmatprep.subr.mxu0 0.0
        %8790 = vmatpush1.msra.mxu0 %v8327
        %8791 = vmatprep.subr.mxu0 0.0
        %8792 = vmatpush1.msra.mxu0 %v8328
        %8793 = vmatprep.subr.mxu0 0.0
        %8794 = vmatpush1.msra.mxu0 %v8329
        %8795 = vmatprep.subr.mxu0 0.0
        %8796 = vmatpush1.msra.mxu0 %v8330
        %8797 = vmatprep.subr.mxu0 0.0
        %8798 = vmatpush1.msra.mxu0 %v8331
        %8799 = vmatprep.subr.mxu0 0.0
        %8800 = vmatpush1.msra.mxu0 %v8332
        %8801 = vmatprep.subr.mxu0 0.0
        %8802 = vmatpush1.msra.mxu0 %v8333
        %8803 = vmatprep.subr.mxu0 0.0
        %8804 = vmatpush1.msra.mxu0 %v8334
        %8805 = vmatprep.subr.mxu0 0.0
        %8806 = vmatpush1.msra.mxu0 %v8335
        %8807 = vmatprep.subr.mxu0 0.0
        %8808 = vmatpush1.msra.mxu0 %v8336
        %8809 = vmatprep.subr.mxu0 0.0
        %8810 = vmatpush1.msra.mxu0 %v8337
        %8811 = vmatprep.subr.mxu0 0.0
        %8812 = vmatpush1.msra.mxu0 %v8338
        %8813 = vmatprep.subr.mxu0 0.0
        %8814 = vmatpush1.msra.mxu0 %v8339
        %8815 = vmatprep.subr.mxu0 0.0
        %8816 = vmatpush1.msra.mxu0 %v8340
        %8817 = vmatprep.subr.mxu0 0.0
        %8818 = vmatpush1.msra.mxu0 %v8341
        %8819 = vmatprep.subr.mxu0 0.0
        %8820 = vmatpush1.msra.mxu0 %v8342
        %8821 = vmatprep.subr.mxu0 0.0
        %8822 = vmatpush1.msra.mxu0 %v8343
        %8823 = vmatprep.subr.mxu0 0.0
        %8824 = vmatpush1.msra.mxu0 %v8344
        %8825 = vmatprep.subr.mxu0 0.0
        %8826 = vmatpush1.msra.mxu0 %v8345
        %8827 = vmatprep.subr.mxu0 0.0
        %8828 = vmatpush1.msra.mxu0 %v8346
        %8829 = vmatprep.subr.mxu0 0.0
        %8830 = vmatpush1.msra.mxu0 %v8347
        %8831 = vmatprep.subr.mxu0 0.0
        %8832 = vmatpush1.msra.mxu0 %v8348
        %8833 = vmatprep.subr.mxu0 0.0
        %8834 = vmatpush1.msra.mxu0 %v8349
        %8835 = vmatprep.mubr.f32.mxu0 %v8512
        %8836 = vmatmul.mubr.f32.gmra.mrb[0].mxu0 %v8508
        %v8837 = vpop.f32.mrb[0].mxu0
        %v8838 = vadd.f32 %v8768, %v8837
        %v8839 = vpop.f32.mrb[0].mxu0
        %8840 = vdwg.mxu0
        %8841 = vmatprep.subr.mxu0 0.0
        %8842 = vmatpush1.msra.mxu0 %v8350
        %8843 = vmatprep.subr.mxu0 0.0
        %8844 = vmatpush1.msra.mxu0 %v8351
        %8845 = vmatprep.subr.mxu0 0.0
        %8846 = vmatpush1.msra.mxu0 %v8352
        %8847 = vmatprep.subr.mxu0 0.0
        %8848 = vmatpush1.msra.mxu0 %v8353
        %8849 = vmatprep.subr.mxu0 0.0
        %8850 = vmatpush1.msra.mxu0 %v8354
        %8851 = vmatprep.subr.mxu0 0.0
        %8852 = vmatpush1.msra.mxu0 %v8355
        %8853 = vmatprep.subr.mxu0 0.0
        %8854 = vmatpush1.msra.mxu0 %v8356
        %8855 = vmatprep.subr.mxu0 0.0
        %8856 = vmatpush1.msra.mxu0 %v8357
        %8857 = vmatprep.subr.mxu0 0.0
        %8858 = vmatpush1.msra.mxu0 %v8358
        %8859 = vmatprep.subr.mxu0 0.0
        %8860 = vmatpush1.msra.mxu0 %v8359
        %8861 = vmatprep.subr.mxu0 0.0
        %8862 = vmatpush1.msra.mxu0 %v8360
        %8863 = vmatprep.subr.mxu0 0.0
        %8864 = vmatpush1.msra.mxu0 %v8361
        %8865 = vmatprep.subr.mxu0 0.0
        %8866 = vmatpush1.msra.mxu0 %v8362
        %8867 = vmatprep.subr.mxu0 0.0
        %8868 = vmatpush1.msra.mxu0 %v8363
        %8869 = vmatprep.subr.mxu0 0.0
        %8870 = vmatpush1.msra.mxu0 %v8364
        %8871 = vmatprep.subr.mxu0 0.0
        %8872 = vmatpush1.msra.mxu0 %v8365
        %8873 = vmatprep.subr.mxu0 0.0
        %8874 = vmatpush1.msra.mxu0 %v8366
        %8875 = vmatprep.subr.mxu0 0.0
        %8876 = vmatpush1.msra.mxu0 %v8367
        %8877 = vmatprep.subr.mxu0 0.0
        %8878 = vmatpush1.msra.mxu0 %v8368
        %8879 = vmatprep.subr.mxu0 0.0
        %8880 = vmatpush1.msra.mxu0 %v8369
        %8881 = vmatprep.subr.mxu0 0.0
        %8882 = vmatpush1.msra.mxu0 %v8370
        %8883 = vmatprep.subr.mxu0 0.0
        %8884 = vmatpush1.msra.mxu0 %v8371
        %8885 = vmatprep.subr.mxu0 0.0
        %8886 = vmatpush1.msra.mxu0 %v8372
        %8887 = vmatprep.subr.mxu0 0.0
        %8888 = vmatpush1.msra.mxu0 %v8373
        %8889 = vmatprep.subr.mxu0 0.0
        %8890 = vmatpush1.msra.mxu0 %v8374
        %8891 = vmatprep.subr.mxu0 0.0
        %8892 = vmatpush1.msra.mxu0 %v8375
        %8893 = vmatprep.subr.mxu0 0.0
        %8894 = vmatpush1.msra.mxu0 %v8376
        %8895 = vmatprep.subr.mxu0 0.0
        %8896 = vmatpush1.msra.mxu0 %v8377
        %8897 = vmatprep.subr.mxu0 0.0
        %8898 = vmatpush1.msra.mxu0 %v8378
        %8899 = vmatprep.subr.mxu0 0.0
        %8900 = vmatpush1.msra.mxu0 %v8379
        %8901 = vmatprep.subr.mxu0 0.0
        %8902 = vmatpush1.msra.mxu0 %v8380
        %8903 = vmatprep.subr.mxu0 0.0
        %8904 = vmatpush1.msra.mxu0 %v8381
        %8905 = vmatprep.mubr.f32.mxu0 %v8520
        %8906 = vmatmul.mubr.f32.gmra.mrb[0].mxu0 %v8516
        %v8907 = vpop.f32.mrb[0].mxu0
        %v8908 = vadd.f32 %v8838, %v8907
        %v8909 = vpop.f32.mrb[0].mxu0
        %8910 = vdwg.mxu0
        %8911 = vmatprep.subr.mxu0 0.0
        %8912 = vmatpush1.msra.mxu0 %v8382
        %8913 = vmatprep.subr.mxu0 0.0
        %8914 = vmatpush1.msra.mxu0 %v8383
        %8915 = vmatprep.subr.mxu0 0.0
        %8916 = vmatpush1.msra.mxu0 %v8384
        %8917 = vmatprep.subr.mxu0 0.0
        %8918 = vmatpush1.msra.mxu0 %v8385
        %8919 = vmatprep.subr.mxu0 0.0
        %8920 = vmatpush1.msra.mxu0 %v8386
        %8921 = vmatprep.subr.mxu0 0.0
        %8922 = vmatpush1.msra.mxu0 %v8387
        %8923 = vmatprep.subr.mxu0 0.0
        %8924 = vmatpush1.msra.mxu0 %v8388
        %8925 = vmatprep.subr.mxu0 0.0
        %8926 = vmatpush1.msra.mxu0 %v8389
        %8927 = vmatprep.subr.mxu0 0.0
        %8928 = vmatpush1.msra.mxu0 %v8390
        %8929 = vmatprep.subr.mxu0 0.0
        %8930 = vmatpush1.msra.mxu0 %v8391
        %8931 = vmatprep.subr.mxu0 0.0
        %8932 = vmatpush1.msra.mxu0 %v8392
        %8933 = vmatprep.subr.mxu0 0.0
        %8934 = vmatpush1.msra.mxu0 %v8393
        %8935 = vmatprep.subr.mxu0 0.0
        %8936 = vmatpush1.msra.mxu0 %v8394
        %8937 = vmatprep.subr.mxu0 0.0
        %8938 = vmatpush1.msra.mxu0 %v8395
        %8939 = vmatprep.subr.mxu0 0.0
        %8940 = vmatpush1.msra.mxu0 %v8396
        %8941 = vmatprep.subr.mxu0 0.0
        %8942 = vmatpush1.msra.mxu0 %v8397
        %8943 = vmatprep.subr.mxu0 0.0
        %8944 = vmatpush1.msra.mxu0 %v8398
        %8945 = vmatprep.subr.mxu0 0.0
        %8946 = vmatpush1.msra.mxu0 %v8399
        %8947 = vmatprep.subr.mxu0 0.0
        %8948 = vmatpush1.msra.mxu0 %v8400
        %8949 = vmatprep.subr.mxu0 0.0
        %8950 = vmatpush1.msra.mxu0 %v8401
        %8951 = vmatprep.subr.mxu0 0.0
        %8952 = vmatpush1.msra.mxu0 %v8402
        %8953 = vmatprep.subr.mxu0 0.0
        %8954 = vmatpush1.msra.mxu0 %v8403
        %8955 = vmatprep.subr.mxu0 0.0
        %8956 = vmatpush1.msra.mxu0 %v8404
        %8957 = vmatprep.subr.mxu0 0.0
        %8958 = vmatpush1.msra.mxu0 %v8405
        %8959 = vmatprep.subr.mxu0 0.0
        %8960 = vmatpush1.msra.mxu0 %v8406
        %8961 = vmatprep.subr.mxu0 0.0
        %8962 = vmatpush1.msra.mxu0 %v8407
        %8963 = vmatprep.subr.mxu0 0.0
        %8964 = vmatpush1.msra.mxu0 %v8408
        %8965 = vmatprep.subr.mxu0 0.0
        %8966 = vmatpush1.msra.mxu0 %v8409
        %8967 = vmatprep.subr.mxu0 0.0
        %8968 = vmatpush1.msra.mxu0 %v8410
        %8969 = vmatprep.subr.mxu0 0.0
        %8970 = vmatpush1.msra.mxu0 %v8411
        %8971 = vmatprep.subr.mxu0 0.0
        %8972 = vmatpush1.msra.mxu0 %v8412
        %8973 = vmatprep.subr.mxu0 0.0
        %8974 = vmatpush1.msra.mxu0 %v8413
        %8975 = vmatprep.mubr.f32.mxu0 %v8528
        %8976 = vmatmul.mubr.f32.gmra.mrb[0].mxu0 %v8524
        %v8977 = vpop.f32.mrb[0].mxu0
        %v8978 = vadd.f32 %v8908, %v8977
        %v8979 = vpop.f32.mrb[0].mxu0
        %8980 = vdwg.mxu0
        %8981 = vmatprep.subr.mxu0 0.0
        %8982 = vmatpush1.msra.mxu0 %v8414
        %8983 = vmatprep.subr.mxu0 0.0
        %8984 = vmatpush1.msra.mxu0 %v8415
        %8985 = vmatprep.subr.mxu0 0.0
        %8986 = vmatpush1.msra.mxu0 %v8416
        %8987 = vmatprep.subr.mxu0 0.0
        %8988 = vmatpush1.msra.mxu0 %v8417
        %8989 = vmatprep.subr.mxu0 0.0
        %8990 = vmatpush1.msra.mxu0 %v8418
        %8991 = vmatprep.subr.mxu0 0.0
        %8992 = vmatpush1.msra.mxu0 %v8419
        %8993 = vmatprep.subr.mxu0 0.0
        %8994 = vmatpush1.msra.mxu0 %v8420
        %8995 = vmatprep.subr.mxu0 0.0
        %8996 = vmatpush1.msra.mxu0 %v8421
        %8997 = vmatprep.subr.mxu0 0.0
        %8998 = vmatpush1.msra.mxu0 %v8422
        %8999 = vmatprep.subr.mxu0 0.0
        %9000 = vmatpush1.msra.mxu0 %v8423
        %9001 = vmatprep.subr.mxu0 0.0
        %9002 = vmatpush1.msra.mxu0 %v8424
        %9003 = vmatprep.subr.mxu0 0.0
        %9004 = vmatpush1.msra.mxu0 %v8425
        %9005 = vmatprep.subr.mxu0 0.0
        %9006 = vmatpush1.msra.mxu0 %v8426
        %9007 = vmatprep.subr.mxu0 0.0
        %9008 = vmatpush1.msra.mxu0 %v8427
        %9009 = vmatprep.subr.mxu0 0.0
        %9010 = vmatpush1.msra.mxu0 %v8428
        %9011 = vmatprep.subr.mxu0 0.0
        %9012 = vmatpush1.msra.mxu0 %v8429
        %9013 = vmatprep.subr.mxu0 0.0
        %9014 = vmatpush1.msra.mxu0 %v8430
        %9015 = vmatprep.subr.mxu0 0.0
        %9016 = vmatpush1.msra.mxu0 %v8431
        %9017 = vmatprep.subr.mxu0 0.0
        %9018 = vmatpush1.msra.mxu0 %v8432
        %9019 = vmatprep.subr.mxu0 0.0
        %9020 = vmatpush1.msra.mxu0 %v8433
        %9021 = vmatprep.subr.mxu0 0.0
        %9022 = vmatpush1.msra.mxu0 %v8434
        %9023 = vmatprep.subr.mxu0 0.0
        %9024 = vmatpush1.msra.mxu0 %v8435
        %9025 = vmatprep.subr.mxu0 0.0
        %9026 = vmatpush1.msra.mxu0 %v8436
        %9027 = vmatprep.subr.mxu0 0.0
        %9028 = vmatpush1.msra.mxu0 %v8437
        %9029 = vmatprep.subr.mxu0 0.0
        %9030 = vmatpush1.msra.mxu0 %v8438
        %9031 = vmatprep.subr.mxu0 0.0
        %9032 = vmatpush1.msra.mxu0 %v8439
        %9033 = vmatprep.subr.mxu0 0.0
        %9034 = vmatpush1.msra.mxu0 %v8440
        %9035 = vmatprep.subr.mxu0 0.0
        %9036 = vmatpush1.msra.mxu0 %v8441
        %9037 = vmatprep.subr.mxu0 0.0
        %9038 = vmatpush1.msra.mxu0 %v8442
        %9039 = vmatprep.subr.mxu0 0.0
        %9040 = vmatpush1.msra.mxu0 %v8443
        %9041 = vmatprep.subr.mxu0 0.0
        %9042 = vmatpush1.msra.mxu0 %v8444
        %9043 = vmatprep.subr.mxu0 0.0
        %9044 = vmatpush1.msra.mxu0 %v8445
        %9045 = vmatprep.mubr.f32.mxu0 %v8536
        %9046 = vmatmul.mubr.f32.gmra.mrb[0].mxu0 %v8532
        %v9047 = vpop.f32.mrb[0].mxu0
        %v9048 = vadd.f32 %v8978, %v9047
        %v9049 = vpop.f32.mrb[0].mxu0
        %9050 = vdwg.mxu0
        %9051 = vmatprep.subr.mxu0 0.0
        %9052 = vmatpush1.msra.mxu0 %v8446
        %9053 = vmatprep.subr.mxu0 0.0
        %9054 = vmatpush1.msra.mxu0 %v8447
        %9055 = vmatprep.subr.mxu0 0.0
        %9056 = vmatpush1.msra.mxu0 %v8448
        %9057 = vmatprep.subr.mxu0 0.0
        %9058 = vmatpush1.msra.mxu0 %v8449
        %9059 = vmatprep.subr.mxu0 0.0
        %9060 = vmatpush1.msra.mxu0 %v8450
        %9061 = vmatprep.subr.mxu0 0.0
        %9062 = vmatpush1.msra.mxu0 %v8451
        %9063 = vmatprep.subr.mxu0 0.0
        %9064 = vmatpush1.msra.mxu0 %v8452
        %9065 = vmatprep.subr.mxu0 0.0
        %9066 = vmatpush1.msra.mxu0 %v8453
        %9067 = vmatprep.subr.mxu0 0.0
        %9068 = vmatpush1.msra.mxu0 %v8454
        %9069 = vmatprep.subr.mxu0 0.0
        %9070 = vmatpush1.msra.mxu0 %v8455
        %9071 = vmatprep.subr.mxu0 0.0
        %9072 = vmatpush1.msra.mxu0 %v8456
        %9073 = vmatprep.subr.mxu0 0.0
        %9074 = vmatpush1.msra.mxu0 %v8457
        %9075 = vmatprep.subr.mxu0 0.0
        %9076 = vmatpush1.msra.mxu0 %v8458
        %9077 = vmatprep.subr.mxu0 0.0
        %9078 = vmatpush1.msra.mxu0 %v8459
        %9079 = vmatprep.subr.mxu0 0.0
        %9080 = vmatpush1.msra.mxu0 %v8460
        %9081 = vmatprep.subr.mxu0 0.0
        %9082 = vmatpush1.msra.mxu0 %v8461
        %9083 = vmatprep.subr.mxu0 0.0
        %9084 = vmatpush1.msra.mxu0 %v8462
        %9085 = vmatprep.subr.mxu0 0.0
        %9086 = vmatpush1.msra.mxu0 %v8463
        %9087 = vmatprep.subr.mxu0 0.0
        %9088 = vmatpush1.msra.mxu0 %v8464
        %9089 = vmatprep.subr.mxu0 0.0
        %9090 = vmatpush1.msra.mxu0 %v8465
        %9091 = vmatprep.subr.mxu0 0.0
        %9092 = vmatpush1.msra.mxu0 %v8466
        %9093 = vmatprep.subr.mxu0 0.0
        %9094 = vmatpush1.msra.mxu0 %v8467
        %9095 = vmatprep.subr.mxu0 0.0
        %9096 = vmatpush1.msra.mxu0 %v8468
        %9097 = vmatprep.subr.mxu0 0.0
        %9098 = vmatpush1.msra.mxu0 %v8469
        %9099 = vmatprep.subr.mxu0 0.0
        %9100 = vmatpush1.msra.mxu0 %v8470
        %9101 = vmatprep.subr.mxu0 0.0
        %9102 = vmatpush1.msra.mxu0 %v8471
        %9103 = vmatprep.subr.mxu0 0.0
        %9104 = vmatpush1.msra.mxu0 %v8472
        %9105 = vmatprep.subr.mxu0 0.0
        %9106 = vmatpush1.msra.mxu0 %v8473
        %9107 = vmatprep.subr.mxu0 0.0
        %9108 = vmatpush1.msra.mxu0 %v8474
        %9109 = vmatprep.subr.mxu0 0.0
        %9110 = vmatpush1.msra.mxu0 %v8475
        %9111 = vmatprep.subr.mxu0 0.0
        %9112 = vmatpush1.msra.mxu0 %v8476
        %9113 = vmatprep.subr.mxu0 0.0
        %9114 = vmatpush1.msra.mxu0 %v8477
        %9115 = vmatprep.mubr.f32.mxu0 %v8544
        %9116 = vmatmul.mubr.f32.gmra.mrb[0].mxu0 %v8540
        %v9117 = vpop.f32.mrb[0].mxu0
        %v9118 = vadd.f32 %v9048, %v9117
        %v9119 = vpop.f32.mrb[0].mxu0
        %9120 = vdwg.mxu0
        %vm9121 = vcmask 16384
        %9122 = vst.msk [vmem:[%s499] sm:$0x1] %vm9121, %v9118
        %s9123 = sand.u32 %s274, 1
        %s9124 = scalar_lea.sflag [#allocation10], %s9123
        %s9125 = sand.u32 %s274, 1
        %s9126 = scalar_lea.vmem [#allocation23], %s9125
        // Predicated region
        $region101: #{tiny_vgg_forward.1} parent=63 // pred_check
          %p9127 = pneg %p284
        $region102: #{tiny_vgg_forward.1} parent=63 // pred_check_branch
          %9129 = sbr.rel (%p9127) target = $region104
        $region103: #{tiny_vgg_forward.1} parent=63 // pred_region
          %s9131 = ssub.s32 16, 16
          %9132 = vsyncadd %s9124, %s9131
          %s9133 = smul.addr %s30, 16
          %s9134 = scalar_lea.hbm %s11, %s9133
          %s9136 = sshll.u32 %s9126, 4
          %s9137 = int_to_ptr.vmem [resolvable:$true] %s9136
          %9139 = dma.vmem_to_hbm [thread:$0]  %s9137, 16, %s9134, %s9124
        $region104: #{tiny_vgg_forward.1} parent=63 // pred_fallthru
          _
      $region64: #{tiny_vgg_forward.1} parent=5 // pred_fallthru
        _
      %p9140 = scmp.le.s32.totalorder 2, %s25
      // Predicated region
      $region105: #{tiny_vgg_forward.1} parent=5 // pred_check
        %p9141 = pneg %p9140
      $region106: #{tiny_vgg_forward.1} parent=5 // pred_check_branch
        %9143 = sbr.rel (%p9141) target = $region108
      $region107: #{tiny_vgg_forward.1} parent=5 // pred_region
        %s9144 = ssub.s32 %s25, 2
        // Predicated region
        $region109: #{tiny_vgg_forward.1} parent=107 // pred_check
          %p9145 = pneg %p290
        $region110: #{tiny_vgg_forward.1} parent=107 // pred_check_branch
          %9147 = sbr.rel (%p9145) target = $region112
        $region111: #{tiny_vgg_forward.1} parent=107 // pred_region
          %s9148 = sand.u32 %s275, 1
          %s9149 = scalar_lea.sflag [#allocation10], %s9148
          %s9150 = sand.u32 %s275, 1
          %s9151 = scalar_lea.vmem [#allocation23], %s9150
          %9152 = dma.done %s9149, 16
        $region112: #{tiny_vgg_forward.1} parent=107 // pred_fallthru
          _
      $region108: #{tiny_vgg_forward.1} parent=5 // pred_fallthru
        _
    $region6: #{tiny_vgg_forward.1} parent=1 // loop_footer
      %s29 = sadd.s32 1, %s25
    $region7: #{tiny_vgg_forward.1} parent=1 // loop_footer_branch
      %24 = sbr.rel target = $region3
    $region8: #{tiny_vgg_forward.1} parent=1 // loop_exit
      _
    %9153 = vsyncpa [#allocation9], 1
    %s9154 = scalar_lea.sflag [#allocation9], 1
    %9155 = vsyncpa %s9154, 1
    %9156 = vsyncpa [#allocation12], 1
    %9157 = vsyncpa [#allocation15], 1
    %9158 = vsyncpa [#allocation18], 1
    %9159 = vsyncpa [#allocation21], 1
    %9160 = vsyncpa [#allocation10], 1
    %s9161 = scalar_lea.sflag [#allocation10], 1
    %9162 = vsyncpa %s9161, 1

</llo_original>
